<compile_context>
chip_gen: v5e
topology: v5e:2x2
jax: 0.10.0
libtpu: 0.0.40
codegen_flags: <defaults>
</compile_context>

<pallas_src>
import functools

import jax
import jax.numpy as jnp
from jax.experimental import pallas as pl
from jax.experimental.pallas import tpu as pltpu

EPS = 1e-5          # InstanceNorm3d default eps
NEG_SLOPE = 0.01    # LeakyReLU negative_slope


def _round_up(x, m):
    return (x + m - 1) // m * m


# ----------------------------- Pallas kernel -------------------------------

def _residual_block_kernel(x_ref, w1_ref, w2_ref, wr_ref, mask_ref, o_ref,
                           col_ref, h1_ref,
                           *, hw_p, w_p, g, wout, m_valid):
    """Fused ResidualBlock forward for one batch element.

    Layout: channels on sublanes, flattened zero-padded spatial volume on the
    lane axis.  Columns [g, g+wout) of x_ref hold the padded volume (margins
    are zero); outputs are produced on the padded flat grid (width `wout`).

    x_ref:    (CinP, L)          bf16  padded input + slicing margins
    w1_ref:   (CoutP, 27*CinP)   bf16  conv1 weights, tap-major / in-ch minor
    w2_ref:   (CoutP, 27*CoutP)  bf16  conv2 weights
    wr_ref:   (CoutP, CinP)      bf16  1x1x1 residual projection (no bias)
    mask_ref: (1, wout)          f32   1.0 at valid (interior) output columns
    o_ref:    (CoutP, wout)      bf16  output on the padded flat grid
    col_ref:  (27*Cmax, wout)    bf16  SHARED stacked-window scratch (im2col)
    h1_ref:   (CoutP, L)         bf16  first ConvBlock activation + margins
    """
    cin_p = wr_ref.shape[1]
    cout_p = o_ref.shape[0]
    l_tot = h1_ref.shape[1]

    # Flat-index offsets of the 27 taps of a 3x3x3 kernel on the padded grid.
    taps = [(kd - 1) * hw_p + (kh - 1) * w_p + (kw - 1)
            for kd in range(3) for kh in range(3) for kw in range(3)]

    inv_m = 1.0 / m_valid
    # Broadcast the validity mask once and reuse (JAX does not CSE
    # broadcast_in_dim across uses).
    mask_b = jnp.broadcast_to(mask_ref[...], (cout_p, wout))   # f32

    # ---------------- residual 1x1x1 conv (first: shortens x's live range) --
    # x's ring / margins are zero, so the residual is zero off-interior too.
    res = jnp.dot(wr_ref[...], x_ref[:, g:g + wout],
                  preferred_element_type=jnp.float32)          # (CoutP, wout)

    # ---------------- ConvBlock 1: bf16 im2col + one K=27*CinP dot ----------
    for k, t in enumerate(taps):
        col_ref[k * cin_p:(k + 1) * cin_p, :] = x_ref[:, g + t:g + t + wout]
    y1 = jnp.dot(w1_ref[...], col_ref[0:27 * cin_p, :],
                 preferred_element_type=jnp.float32)           # (CoutP, wout)
    # Conv bias skipped: a per-channel constant is exactly cancelled by the
    # mean subtraction of the non-affine InstanceNorm below.

    # InstanceNorm3d (affine=False) over valid positions + LeakyReLU.
    # One masked pass: mean and E[y^2] together, var = E[y^2] - mean^2.
    ym1 = y1 * mask_b
    mean1 = jnp.sum(ym1, axis=1, keepdims=True) * inv_m
    sq1 = jnp.sum(ym1 * ym1, axis=1, keepdims=True) * inv_m
    var1 = sq1 - mean1 * mean1
    h1 = (ym1 - mean1) * jax.lax.rsqrt(var1 + EPS)
    h1 = jnp.where(h1 >= 0, h1, NEG_SLOPE * h1) * mask_b       # ring -> 0

    # Stage h1 (bf16) with margins; its zero ring doubles as conv2's "same"
    # padding.  Zero only the margin columns (interior is overwritten below);
    # do it EVERY step (pl.when(i==0) hoisting is unsafe under megacore
    # 'parallel' batch sharding).
    h1_ref[:, 0:g] = jnp.zeros((cout_p, g), h1_ref.dtype)
    h1_ref[:, g + wout:l_tot] = jnp.zeros((cout_p, l_tot - g - wout),
                                          h1_ref.dtype)
    h1_ref[:, g:g + wout] = h1.astype(h1_ref.dtype)

    # ---------------- ConvBlock 2 (reuses the same col scratch) -------------
    for k, t in enumerate(taps):
        col_ref[k * cout_p:(k + 1) * cout_p, :] = h1_ref[:, g + t:g + t + wout]
    y2 = jnp.dot(w2_ref[...], col_ref[0:27 * cout_p, :],
                 preferred_element_type=jnp.float32)
    ym2 = y2 * mask_b
    mean2 = jnp.sum(ym2, axis=1, keepdims=True) * inv_m
    sq2 = jnp.sum(ym2 * ym2, axis=1, keepdims=True) * inv_m
    var2 = sq2 - mean2 * mean2
    h2 = (ym2 - mean2) * jax.lax.rsqrt(var2 + EPS)
    h2 = jnp.where(h2 >= 0, h2, NEG_SLOPE * h2)
    # Off-interior columns of h2 hold finite garbage; they are cropped outside
    # and res is zero there, so no final mask multiply is needed.

    # ---------------- add residual ------------------------------------------
    o_ref[...] = (h2 + res).astype(o_ref.dtype)


# ------------------------------- JAX glue ----------------------------------

def _pack_conv_weight(w_oi333, cin_p, cout_p):
    """(Cout, Cin, 3, 3, 3) PyTorch weight -> (CoutP, 27*CinP) bf16, tap-major."""
    cout, cin = w_oi333.shape[0], w_oi333.shape[1]
    w = jnp.transpose(w_oi333, (2, 3, 4, 1, 0)).reshape(27, cin, cout)
    w = jnp.pad(w, ((0, 0), (0, cin_p - cin), (0, cout_p - cout)))
    w = w.reshape(27 * cin_p, cout_p)
    return jnp.transpose(w, (1, 0)).astype(jnp.bfloat16)


def _interior_mask(d, h, w, wout):
    """1.0 at flat-padded-grid columns that are interior (valid) outputs."""
    dp, hp, wp = d + 2, h + 2, w + 2
    mp = dp * hp * wp
    idx = jnp.arange(wout, dtype=jnp.int32)
    dd = idx // (hp * wp)
    rem = idx % (hp * wp)
    hh = rem // wp
    ww = rem % wp
    valid = ((idx < mp)
             & (dd >= 1) & (dd <= d)
             & (hh >= 1) & (hh <= h)
             & (ww >= 1) & (ww <= w))
    return valid.astype(jnp.float32)[None, :]


def residual_block_forward(x_ncdhw, params):
    """ResidualBlock.forward; input/output layout NCDHW (PyTorch convention)."""
    n, cin, d, h, w = x_ncdhw.shape
    cout = params["w1"].shape[0]
    dp, hp, wp = d + 2, h + 2, w + 2
    mp = dp * hp * wp
    cin_p = _round_up(cin, 16)                     # bf16 sublane tile = 16
    cout_p = _round_up(cout, 16)
    cmax = max(cin_p, cout_p)
    wout = _round_up(mp, 128)                      # lane-dense output width
    t_max = hp * wp + wp + 1                       # max |tap offset|
    g = _round_up(t_max, 128)                      # left margin (lane aligned)
    l_tot = _round_up(g + wout + t_max, 128)       # total flat buffer width

    # Channels-first, spatially zero-padded, flattened volume on the lane axis.
    xp = jnp.pad(x_ncdhw, ((0, 0), (0, cin_p - cin), (1, 1), (1, 1), (1, 1)))
    xp = xp.reshape(n, cin_p, mp)
    xp = jnp.pad(xp, ((0, 0), (0, 0), (g, l_tot - g - mp))).astype(jnp.bfloat16)

    w1s = _pack_conv_weight(params["w1"], cin_p, cout_p)     # (CoutP, 27*CinP)
    w2s = _pack_conv_weight(params["w2"], cout_p, cout_p)    # (CoutP, 27*CoutP)
    wr_t = jnp.pad(params["wr"],
                   ((0, cout_p - cout), (0, cin_p - cin))).astype(jnp.bfloat16)
    mask = _interior_mask(d, h, w, wout)

    kernel = functools.partial(
        _residual_block_kernel,
        hw_p=hp * wp, w_p=wp, g=g, wout=wout, m_valid=d * h * w)

    # VMEM budget: double-buffered in/out blocks + the two scratch buffers,
    # with 2x headroom, capped below v7x's 64 MiB physical per-TC VMEM.
    vmem_est = (2 * cin_p * l_tot * 2                # x block (bf16, dbl buf)
                + 2 * cout_p * 27 * cin_p * 2        # w1
                + 2 * cout_p * 27 * cout_p * 2       # w2
                + 2 * cout_p * cin_p * 2             # wr
                + 2 * wout * 4                       # mask
                + 2 * cout_p * wout * 2              # out block
                + 27 * cmax * wout * 2               # shared col scratch
                + cout_p * l_tot * 2)                # h1 scratch
    vmem_limit = int(min(48 * 1024 * 1024, max(8 * 1024 * 1024, 2 * vmem_est)))

    out = pl.pallas_call(
        kernel,
        out_shape=jax.ShapeDtypeStruct((n, cout_p, wout), jnp.bfloat16),
        grid_spec=pltpu.PrefetchScalarGridSpec(
            num_scalar_prefetch=0,
            grid=(n,),
            in_specs=[
                pl.BlockSpec((None, cin_p, l_tot), lambda i: (i, 0, 0)),
                pl.BlockSpec((cout_p, 27 * cin_p), lambda i: (0, 0)),
                pl.BlockSpec((cout_p, 27 * cout_p), lambda i: (0, 0)),
                pl.BlockSpec((cout_p, cin_p), lambda i: (0, 0)),
                pl.BlockSpec((1, wout), lambda i: (0, 0)),
            ],
            out_specs=pl.BlockSpec((None, cout_p, wout), lambda i: (i, 0, 0)),
            scratch_shapes=[
                pltpu.VMEM((27 * cmax, wout), jnp.bfloat16),   # shared im2col
                pltpu.VMEM((cout_p, l_tot), jnp.bfloat16),     # h1 + margins
            ]),
        compiler_params=pltpu.CompilerParams(
            dimension_semantics=("parallel",),
            vmem_limit_bytes=vmem_limit),
    )(xp, w1s, w2s, wr_t, mask)

    out = out[:, :cout, :mp].reshape(n, cout, dp, hp, wp)
    return out[:, :, 1:1 + d, 1:1 + h, 1:1 + w].astype(jnp.float32)


# ------------------------- pure-JAX reference check ------------------------

def _ref_forward(x, params):
    hi = jax.lax.Precision.HIGHEST

    def conv3(v, wgt, b):
        y = jax.lax.conv_general_dilated(
            v, wgt, window_strides=(1, 1, 1), padding="SAME",
            dimension_numbers=("NCDHW", "OIDHW", "NCDHW"), precision=hi)
        return y + b.reshape(1, -1, 1, 1, 1)

    def inorm_lrelu(y):
        mean = y.mean(axis=(2, 3, 4), keepdims=True)
        var = ((y - mean) ** 2).mean(axis=(2, 3, 4), keepdims=True)
        z = (y - mean) * jax.lax.rsqrt(var + EPS)
        return jnp.where(z >= 0, z, NEG_SLOPE * z)

    res = jnp.einsum("oc,ncdhw->nodhw", params["wr"], x, precision=hi)
    hid = inorm_lrelu(conv3(x, params["w1"], params["b1"]))
    hid = inorm_lrelu(conv3(hid, params["w2"], params["b2"]))
    return hid + res


# --------------------------------- main -------------------------------------

if __name__ == "__main__":
    N, CIN, COUT = 2, 4, 8
    D = H = W = 8

    key = jax.random.PRNGKey(0)
    kx, k1, kb1, k2, kb2, kr = jax.random.split(key, 6)

    def _q(a):
        # Quantize once so the bf16-storing kernel and the f32 reference see
        # identical (bf16-representable) operands.
        return a.astype(jnp.bfloat16).astype(jnp.float32)

    x = _q(jax.random.normal(kx, (N, CIN, D, H, W), dtype=jnp.float32))

    params = {
        # conv1: Conv3d(CIN, COUT, k=3, pad=1, bias=True), PyTorch OIDHW weight
        "w1": _q(0.1 * jax.random.normal(k1, (COUT, CIN, 3, 3, 3), jnp.float32)),
        "b1": 0.1 * jax.random.normal(kb1, (COUT,), jnp.float32),
        # conv2: Conv3d(COUT, COUT, k=3, pad=1, bias=True)
        "w2": _q(0.1 * jax.random.normal(k2, (COUT, COUT, 3, 3, 3), jnp.float32)),
        "b2": 0.1 * jax.random.normal(kb2, (COUT,), jnp.float32),
        # residual: Conv3d(CIN, COUT, k=1, bias=False) weight squeezed to 2D
        "wr": _q(0.1 * jax.random.normal(kr, (COUT, CIN), jnp.float32)),
    }

    out = jax.block_until_ready(jax.jit(residual_block_forward)(x, params))
    assert out.shape == (N, COUT, D, H, W), out.shape

    ref = jax.block_until_ready(_ref_forward(x, params))
    err = float(jnp.max(jnp.abs(out - ref)))
    # Tolerance covers bf16 activation/weight storage and f32-accum MXU passes.
    assert jnp.allclose(out, ref, rtol=5e-2, atol=5e-2), err
    print("KERNEL_OK")
</pallas_src>

<mosaic_0001>
module attributes {stable_mosaic.version = 11 : i64} {
  func.func @_residual_block_kernel(%arg0: i32, %arg1: memref<1x16x1280xbf16, #tpu.memory_space<vmem>>, %arg2: memref<16x432xbf16, #tpu.memory_space<vmem>>, %arg3: memref<16x432xbf16, #tpu.memory_space<vmem>>, %arg4: memref<16x16xbf16, #tpu.memory_space<vmem>>, %arg5: memref<1x1024xf32, #tpu.memory_space<vmem>>, %arg6: memref<1x16x1024xbf16, #tpu.memory_space<vmem>>, %arg7: memref<432x1024xbf16, #tpu.memory_space<vmem>>, %arg8: memref<16x1280xbf16, #tpu.memory_space<vmem>>) attributes {dimension_semantics = [#tpu.dimension_semantics<parallel>], iteration_bounds = array<i64: 2>, scalar_prefetch = 0 : i64, scratch_operands = 2 : i64, tpu.core_type = #tpu.core_type<tc>, window_params = [{transform_indices = @transform_0, window_bounds = array<i64: 1, 16, 1280>}, {pipeline_mode = #tpu.pipeline_mode<synchronous>, transform_indices = @transform_1, window_bounds = array<i64: 16, 432>}, {pipeline_mode = #tpu.pipeline_mode<synchronous>, transform_indices = @transform_2, window_bounds = array<i64: 16, 432>}, {pipeline_mode = #tpu.pipeline_mode<synchronous>, transform_indices = @transform_3, window_bounds = array<i64: 16, 16>}, {pipeline_mode = #tpu.pipeline_mode<synchronous>, transform_indices = @transform_4, window_bounds = array<i64: 1, 1024>}, {transform_indices = @transform_5, window_bounds = array<i64: 1, 16, 1024>}]} {
    %c0 = arith.constant 0 : index
    %c0_0 = arith.constant 0 : index
    %0 = vector.load %arg5[%c0, %c0_0] : memref<1x1024xf32, #tpu.memory_space<vmem>>, vector<1x1024xf32>
    %1 = vector.shape_cast %0 : vector<1x1024xf32> to vector<1x1024xf32>
    %2 = vector.broadcast %1 : vector<1x1024xf32> to vector<16x1024xf32>
    %c0_1 = arith.constant 0 : index
    %c0_2 = arith.constant 0 : index
    %3 = vector.load %arg4[%c0_1, %c0_2] : memref<16x16xbf16, #tpu.memory_space<vmem>>, vector<16x16xbf16>
    %c0_3 = arith.constant 0 : index
    %c0_4 = arith.constant 0 : index
    %c128 = arith.constant 128 : index
    %4 = vector.load %arg1[%c0_3, %c0_4, %c128] : memref<1x16x1280xbf16, #tpu.memory_space<vmem>>, vector<1x16x1024xbf16>
    %5 = vector.shape_cast %4 : vector<1x16x1024xbf16> to vector<16x1024xbf16>
    %cst = arith.constant dense<0.000000e+00> : vector<16x1024xf32>
    %6 = tpu.matmul %3, %5, %cst {dimension_numbers = #tpu.dot_dimension_numbers<[1], [0], [0], [1], [0, 0, 1, 1], [], []>} : vector<16x16xbf16>, vector<16x1024xbf16>, vector<16x1024xf32> -> vector<16x1024xf32>
    %c0_5 = arith.constant 0 : index
    %c0_6 = arith.constant 0 : index
    %c17 = arith.constant 17 : index
    %7 = vector.load %arg1[%c0_5, %c0_6, %c17] : memref<1x16x1280xbf16, #tpu.memory_space<vmem>>, vector<1x16x1024xbf16>
    %8 = vector.shape_cast %7 : vector<1x16x1024xbf16> to vector<16x1024xbf16>
    %c0_7 = arith.constant 0 : index
    %c0_8 = arith.constant 0 : index
    %9 = vector.load %arg7[%c0_7, %c0_8] : memref<432x1024xbf16, #tpu.memory_space<vmem>>, vector<16x1024xbf16>
    tpu.vector_store %arg7[%c0_7, %c0_8], %8 {strides = array<i32>} : memref<432x1024xbf16, #tpu.memory_space<vmem>>, vector<16x1024xbf16>,
    %c0_9 = arith.constant 0 : index
    %c0_10 = arith.constant 0 : index
    %c18 = arith.constant 18 : index
    %10 = vector.load %arg1[%c0_9, %c0_10, %c18] : memref<1x16x1280xbf16, #tpu.memory_space<vmem>>, vector<1x16x1024xbf16>
    %11 = vector.shape_cast %10 : vector<1x16x1024xbf16> to vector<16x1024xbf16>
    %c16 = arith.constant 16 : index
    %c0_11 = arith.constant 0 : index
    %12 = vector.load %arg7[%c16, %c0_11] : memref<432x1024xbf16, #tpu.memory_space<vmem>>, vector<16x1024xbf16>
    tpu.vector_store %arg7[%c16, %c0_11], %11 {strides = array<i32>} : memref<432x1024xbf16, #tpu.memory_space<vmem>>, vector<16x1024xbf16>,
    %c0_12 = arith.constant 0 : index
    %c0_13 = arith.constant 0 : index
    %c19 = arith.constant 19 : index
    %13 = vector.load %arg1[%c0_12, %c0_13, %c19] : memref<1x16x1280xbf16, #tpu.memory_space<vmem>>, vector<1x16x1024xbf16>
    %14 = vector.shape_cast %13 : vector<1x16x1024xbf16> to vector<16x1024xbf16>
    %c32 = arith.constant 32 : index
    %c0_14 = arith.constant 0 : index
    %15 = vector.load %arg7[%c32, %c0_14] : memref<432x1024xbf16, #tpu.memory_space<vmem>>, vector<16x1024xbf16>
    tpu.vector_store %arg7[%c32, %c0_14], %14 {strides = array<i32>} : memref<432x1024xbf16, #tpu.memory_space<vmem>>, vector<16x1024xbf16>,
    %c0_15 = arith.constant 0 : index
    %c0_16 = arith.constant 0 : index
    %c27 = arith.constant 27 : index
    %16 = vector.load %arg1[%c0_15, %c0_16, %c27] : memref<1x16x1280xbf16, #tpu.memory_space<vmem>>, vector<1x16x1024xbf16>
    %17 = vector.shape_cast %16 : vector<1x16x1024xbf16> to vector<16x1024xbf16>
    %c48 = arith.constant 48 : index
    %c0_17 = arith.constant 0 : index
    %18 = vector.load %arg7[%c48, %c0_17] : memref<432x1024xbf16, #tpu.memory_space<vmem>>, vector<16x1024xbf16>
    tpu.vector_store %arg7[%c48, %c0_17], %17 {strides = array<i32>} : memref<432x1024xbf16, #tpu.memory_space<vmem>>, vector<16x1024xbf16>,
    %c0_18 = arith.constant 0 : index
    %c0_19 = arith.constant 0 : index
    %c28 = arith.constant 28 : index
    %19 = vector.load %arg1[%c0_18, %c0_19, %c28] : memref<1x16x1280xbf16, #tpu.memory_space<vmem>>, vector<1x16x1024xbf16>
    %20 = vector.shape_cast %19 : vector<1x16x1024xbf16> to vector<16x1024xbf16>
    %c64 = arith.constant 64 : index
    %c0_20 = arith.constant 0 : index
    %21 = vector.load %arg7[%c64, %c0_20] : memref<432x1024xbf16, #tpu.memory_space<vmem>>, vector<16x1024xbf16>
    tpu.vector_store %arg7[%c64, %c0_20], %20 {strides = array<i32>} : memref<432x1024xbf16, #tpu.memory_space<vmem>>, vector<16x1024xbf16>,
    %c0_21 = arith.constant 0 : index
    %c0_22 = arith.constant 0 : index
    %c29 = arith.constant 29 : index
    %22 = vector.load %arg1[%c0_21, %c0_22, %c29] : memref<1x16x1280xbf16, #tpu.memory_space<vmem>>, vector<1x16x1024xbf16>
    %23 = vector.shape_cast %22 : vector<1x16x1024xbf16> to vector<16x1024xbf16>
    %c80 = arith.constant 80 : index
    %c0_23 = arith.constant 0 : index
    %24 = vector.load %arg7[%c80, %c0_23] : memref<432x1024xbf16, #tpu.memory_space<vmem>>, vector<16x1024xbf16>
    tpu.vector_store %arg7[%c80, %c0_23], %23 {strides = array<i32>} : memref<432x1024xbf16, #tpu.memory_space<vmem>>, vector<16x1024xbf16>,
    %c0_24 = arith.constant 0 : index
    %c0_25 = arith.constant 0 : index
    %c37 = arith.constant 37 : index
    %25 = vector.load %arg1[%c0_24, %c0_25, %c37] : memref<1x16x1280xbf16, #tpu.memory_space<vmem>>, vector<1x16x1024xbf16>
    %26 = vector.shape_cast %25 : vector<1x16x1024xbf16> to vector<16x1024xbf16>
    %c96 = arith.constant 96 : index
    %c0_26 = arith.constant 0 : index
    %27 = vector.load %arg7[%c96, %c0_26] : memref<432x1024xbf16, #tpu.memory_space<vmem>>, vector<16x1024xbf16>
    tpu.vector_store %arg7[%c96, %c0_26], %26 {strides = array<i32>} : memref<432x1024xbf16, #tpu.memory_space<vmem>>, vector<16x1024xbf16>,
    %c0_27 = arith.constant 0 : index
    %c0_28 = arith.constant 0 : index
    %c38 = arith.constant 38 : index
    %28 = vector.load %arg1[%c0_27, %c0_28, %c38] : memref<1x16x1280xbf16, #tpu.memory_space<vmem>>, vector<1x16x1024xbf16>
    %29 = vector.shape_cast %28 : vector<1x16x1024xbf16> to vector<16x1024xbf16>
    %c112 = arith.constant 112 : index
    %c0_29 = arith.constant 0 : index
    %30 = vector.load %arg7[%c112, %c0_29] : memref<432x1024xbf16, #tpu.memory_space<vmem>>, vector<16x1024xbf16>
    tpu.vector_store %arg7[%c112, %c0_29], %29 {strides = array<i32>} : memref<432x1024xbf16, #tpu.memory_space<vmem>>, vector<16x1024xbf16>,
    %c0_30 = arith.constant 0 : index
    %c0_31 = arith.constant 0 : index
    %c39 = arith.constant 39 : index
    %31 = vector.load %arg1[%c0_30, %c0_31, %c39] : memref<1x16x1280xbf16, #tpu.memory_space<vmem>>, vector<1x16x1024xbf16>
    %32 = vector.shape_cast %31 : vector<1x16x1024xbf16> to vector<16x1024xbf16>
    %c128_32 = arith.constant 128 : index
    %c0_33 = arith.constant 0 : index
    %33 = vector.load %arg7[%c128_32, %c0_33] : memref<432x1024xbf16, #tpu.memory_space<vmem>>, vector<16x1024xbf16>
    tpu.vector_store %arg7[%c128_32, %c0_33], %32 {strides = array<i32>} : memref<432x1024xbf16, #tpu.memory_space<vmem>>, vector<16x1024xbf16>,
    %c0_34 = arith.constant 0 : index
    %c0_35 = arith.constant 0 : index
    %c117 = arith.constant 117 : index
    %34 = vector.load %arg1[%c0_34, %c0_35, %c117] : memref<1x16x1280xbf16, #tpu.memory_space<vmem>>, vector<1x16x1024xbf16>
    %35 = vector.shape_cast %34 : vector<1x16x1024xbf16> to vector<16x1024xbf16>
    %c144 = arith.constant 144 : index
    %c0_36 = arith.constant 0 : index
    %36 = vector.load %arg7[%c144, %c0_36] : memref<432x1024xbf16, #tpu.memory_space<vmem>>, vector<16x1024xbf16>
    tpu.vector_store %arg7[%c144, %c0_36], %35 {strides = array<i32>} : memref<432x1024xbf16, #tpu.memory_space<vmem>>, vector<16x1024xbf16>,
    %c0_37 = arith.constant 0 : index
    %c0_38 = arith.constant 0 : index
    %c118 = arith.constant 118 : index
    %37 = vector.load %arg1[%c0_37, %c0_38, %c118] : memref<1x16x1280xbf16, #tpu.memory_space<vmem>>, vector<1x16x1024xbf16>
    %38 = vector.shape_cast %37 : vector<1x16x1024xbf16> to vector<16x1024xbf16>
    %c160 = arith.constant 160 : index
    %c0_39 = arith.constant 0 : index
    %39 = vector.load %arg7[%c160, %c0_39] : memref<432x1024xbf16, #tpu.memory_space<vmem>>, vector<16x1024xbf16>
    tpu.vector_store %arg7[%c160, %c0_39], %38 {strides = array<i32>} : memref<432x1024xbf16, #tpu.memory_space<vmem>>, vector<16x1024xbf16>,
    %c0_40 = arith.constant 0 : index
    %c0_41 = arith.constant 0 : index
    %c119 = arith.constant 119 : index
    %40 = vector.load %arg1[%c0_40, %c0_41, %c119] : memref<1x16x1280xbf16, #tpu.memory_space<vmem>>, vector<1x16x1024xbf16>
    %41 = vector.shape_cast %40 : vector<1x16x1024xbf16> to vector<16x1024xbf16>
    %c176 = arith.constant 176 : index
    %c0_42 = arith.constant 0 : index
    %42 = vector.load %arg7[%c176, %c0_42] : memref<432x1024xbf16, #tpu.memory_space<vmem>>, vector<16x1024xbf16>
    tpu.vector_store %arg7[%c176, %c0_42], %41 {strides = array<i32>} : memref<432x1024xbf16, #tpu.memory_space<vmem>>, vector<16x1024xbf16>,
    %c0_43 = arith.constant 0 : index
    %c0_44 = arith.constant 0 : index
    %c127 = arith.constant 127 : index
    %43 = vector.load %arg1[%c0_43, %c0_44, %c127] : memref<1x16x1280xbf16, #tpu.memory_space<vmem>>, vector<1x16x1024xbf16>
    %44 = vector.shape_cast %43 : vector<1x16x1024xbf16> to vector<16x1024xbf16>
    %c192 = arith.constant 192 : index
    %c0_45 = arith.constant 0 : index
    %45 = vector.load %arg7[%c192, %c0_45] : memref<432x1024xbf16, #tpu.memory_space<vmem>>, vector<16x1024xbf16>
    tpu.vector_store %arg7[%c192, %c0_45], %44 {strides = array<i32>} : memref<432x1024xbf16, #tpu.memory_space<vmem>>, vector<16x1024xbf16>,
    %c0_46 = arith.constant 0 : index
    %c0_47 = arith.constant 0 : index
    %c128_48 = arith.constant 128 : index
    %46 = vector.load %arg1[%c0_46, %c0_47, %c128_48] : memref<1x16x1280xbf16, #tpu.memory_space<vmem>>, vector<1x16x1024xbf16>
    %47 = vector.shape_cast %46 : vector<1x16x1024xbf16> to vector<16x1024xbf16>
    %c208 = arith.constant 208 : index
    %c0_49 = arith.constant 0 : index
    %48 = vector.load %arg7[%c208, %c0_49] : memref<432x1024xbf16, #tpu.memory_space<vmem>>, vector<16x1024xbf16>
    tpu.vector_store %arg7[%c208, %c0_49], %47 {strides = array<i32>} : memref<432x1024xbf16, #tpu.memory_space<vmem>>, vector<16x1024xbf16>,
    %c0_50 = arith.constant 0 : index
    %c0_51 = arith.constant 0 : index
    %c129 = arith.constant 129 : index
    %49 = vector.load %arg1[%c0_50, %c0_51, %c129] : memref<1x16x1280xbf16, #tpu.memory_space<vmem>>, vector<1x16x1024xbf16>
    %50 = vector.shape_cast %49 : vector<1x16x1024xbf16> to vector<16x1024xbf16>
    %c224 = arith.constant 224 : index
    %c0_52 = arith.constant 0 : index
    %51 = vector.load %arg7[%c224, %c0_52] : memref<432x1024xbf16, #tpu.memory_space<vmem>>, vector<16x1024xbf16>
    tpu.vector_store %arg7[%c224, %c0_52], %50 {strides = array<i32>} : memref<432x1024xbf16, #tpu.memory_space<vmem>>, vector<16x1024xbf16>,
    %c0_53 = arith.constant 0 : index
    %c0_54 = arith.constant 0 : index
    %c137 = arith.constant 137 : index
    %52 = vector.load %arg1[%c0_53, %c0_54, %c137] : memref<1x16x1280xbf16, #tpu.memory_space<vmem>>, vector<1x16x1024xbf16>
    %53 = vector.shape_cast %52 : vector<1x16x1024xbf16> to vector<16x1024xbf16>
    %c240 = arith.constant 240 : index
    %c0_55 = arith.constant 0 : index
    %54 = vector.load %arg7[%c240, %c0_55] : memref<432x1024xbf16, #tpu.memory_space<vmem>>, vector<16x1024xbf16>
    tpu.vector_store %arg7[%c240, %c0_55], %53 {strides = array<i32>} : memref<432x1024xbf16, #tpu.memory_space<vmem>>, vector<16x1024xbf16>,
    %c0_56 = arith.constant 0 : index
    %c0_57 = arith.constant 0 : index
    %c138 = arith.constant 138 : index
    %55 = vector.load %arg1[%c0_56, %c0_57, %c138] : memref<1x16x1280xbf16, #tpu.memory_space<vmem>>, vector<1x16x1024xbf16>
    %56 = vector.shape_cast %55 : vector<1x16x1024xbf16> to vector<16x1024xbf16>
    %c256 = arith.constant 256 : index
    %c0_58 = arith.constant 0 : index
    %57 = vector.load %arg7[%c256, %c0_58] : memref<432x1024xbf16, #tpu.memory_space<vmem>>, vector<16x1024xbf16>
    tpu.vector_store %arg7[%c256, %c0_58], %56 {strides = array<i32>} : memref<432x1024xbf16, #tpu.memory_space<vmem>>, vector<16x1024xbf16>,
    %c0_59 = arith.constant 0 : index
    %c0_60 = arith.constant 0 : index
    %c139 = arith.constant 139 : index
    %58 = vector.load %arg1[%c0_59, %c0_60, %c139] : memref<1x16x1280xbf16, #tpu.memory_space<vmem>>, vector<1x16x1024xbf16>
    %59 = vector.shape_cast %58 : vector<1x16x1024xbf16> to vector<16x1024xbf16>
    %c272 = arith.constant 272 : index
    %c0_61 = arith.constant 0 : index
    %60 = vector.load %arg7[%c272, %c0_61] : memref<432x1024xbf16, #tpu.memory_space<vmem>>, vector<16x1024xbf16>
    tpu.vector_store %arg7[%c272, %c0_61], %59 {strides = array<i32>} : memref<432x1024xbf16, #tpu.memory_space<vmem>>, vector<16x1024xbf16>,
    %c0_62 = arith.constant 0 : index
    %c0_63 = arith.constant 0 : index
    %c217 = arith.constant 217 : index
    %61 = vector.load %arg1[%c0_62, %c0_63, %c217] : memref<1x16x1280xbf16, #tpu.memory_space<vmem>>, vector<1x16x1024xbf16>
    %62 = vector.shape_cast %61 : vector<1x16x1024xbf16> to vector<16x1024xbf16>
    %c288 = arith.constant 288 : index
    %c0_64 = arith.constant 0 : index
    %63 = vector.load %arg7[%c288, %c0_64] : memref<432x1024xbf16, #tpu.memory_space<vmem>>, vector<16x1024xbf16>
    tpu.vector_store %arg7[%c288, %c0_64], %62 {strides = array<i32>} : memref<432x1024xbf16, #tpu.memory_space<vmem>>, vector<16x1024xbf16>,
    %c0_65 = arith.constant 0 : index
    %c0_66 = arith.constant 0 : index
    %c218 = arith.constant 218 : index
    %64 = vector.load %arg1[%c0_65, %c0_66, %c218] : memref<1x16x1280xbf16, #tpu.memory_space<vmem>>, vector<1x16x1024xbf16>
    %65 = vector.shape_cast %64 : vector<1x16x1024xbf16> to vector<16x1024xbf16>
    %c304 = arith.constant 304 : index
    %c0_67 = arith.constant 0 : index
    %66 = vector.load %arg7[%c304, %c0_67] : memref<432x1024xbf16, #tpu.memory_space<vmem>>, vector<16x1024xbf16>
    tpu.vector_store %arg7[%c304, %c0_67], %65 {strides = array<i32>} : memref<432x1024xbf16, #tpu.memory_space<vmem>>, vector<16x1024xbf16>,
    %c0_68 = arith.constant 0 : index
    %c0_69 = arith.constant 0 : index
    %c219 = arith.constant 219 : index
    %67 = vector.load %arg1[%c0_68, %c0_69, %c219] : memref<1x16x1280xbf16, #tpu.memory_space<vmem>>, vector<1x16x1024xbf16>
    %68 = vector.shape_cast %67 : vector<1x16x1024xbf16> to vector<16x1024xbf16>
    %c320 = arith.constant 320 : index
    %c0_70 = arith.constant 0 : index
    %69 = vector.load %arg7[%c320, %c0_70] : memref<432x1024xbf16, #tpu.memory_space<vmem>>, vector<16x1024xbf16>
    tpu.vector_store %arg7[%c320, %c0_70], %68 {strides = array<i32>} : memref<432x1024xbf16, #tpu.memory_space<vmem>>, vector<16x1024xbf16>,
    %c0_71 = arith.constant 0 : index
    %c0_72 = arith.constant 0 : index
    %c227 = arith.constant 227 : index
    %70 = vector.load %arg1[%c0_71, %c0_72, %c227] : memref<1x16x1280xbf16, #tpu.memory_space<vmem>>, vector<1x16x1024xbf16>
    %71 = vector.shape_cast %70 : vector<1x16x1024xbf16> to vector<16x1024xbf16>
    %c336 = arith.constant 336 : index
    %c0_73 = arith.constant 0 : index
    %72 = vector.load %arg7[%c336, %c0_73] : memref<432x1024xbf16, #tpu.memory_space<vmem>>, vector<16x1024xbf16>
    tpu.vector_store %arg7[%c336, %c0_73], %71 {strides = array<i32>} : memref<432x1024xbf16, #tpu.memory_space<vmem>>, vector<16x1024xbf16>,
    %c0_74 = arith.constant 0 : index
    %c0_75 = arith.constant 0 : index
    %c228 = arith.constant 228 : index
    %73 = vector.load %arg1[%c0_74, %c0_75, %c228] : memref<1x16x1280xbf16, #tpu.memory_space<vmem>>, vector<1x16x1024xbf16>
    %74 = vector.shape_cast %73 : vector<1x16x1024xbf16> to vector<16x1024xbf16>
    %c352 = arith.constant 352 : index
    %c0_76 = arith.constant 0 : index
    %75 = vector.load %arg7[%c352, %c0_76] : memref<432x1024xbf16, #tpu.memory_space<vmem>>, vector<16x1024xbf16>
    tpu.vector_store %arg7[%c352, %c0_76], %74 {strides = array<i32>} : memref<432x1024xbf16, #tpu.memory_space<vmem>>, vector<16x1024xbf16>,
    %c0_77 = arith.constant 0 : index
    %c0_78 = arith.constant 0 : index
    %c229 = arith.constant 229 : index
    %76 = vector.load %arg1[%c0_77, %c0_78, %c229] : memref<1x16x1280xbf16, #tpu.memory_space<vmem>>, vector<1x16x1024xbf16>
    %77 = vector.shape_cast %76 : vector<1x16x1024xbf16> to vector<16x1024xbf16>
    %c368 = arith.constant 368 : index
    %c0_79 = arith.constant 0 : index
    %78 = vector.load %arg7[%c368, %c0_79] : memref<432x1024xbf16, #tpu.memory_space<vmem>>, vector<16x1024xbf16>
    tpu.vector_store %arg7[%c368, %c0_79], %77 {strides = array<i32>} : memref<432x1024xbf16, #tpu.memory_space<vmem>>, vector<16x1024xbf16>,
    %c0_80 = arith.constant 0 : index
    %c0_81 = arith.constant 0 : index
    %c237 = arith.constant 237 : index
    %79 = vector.load %arg1[%c0_80, %c0_81, %c237] : memref<1x16x1280xbf16, #tpu.memory_space<vmem>>, vector<1x16x1024xbf16>
    %80 = vector.shape_cast %79 : vector<1x16x1024xbf16> to vector<16x1024xbf16>
    %c384 = arith.constant 384 : index
    %c0_82 = arith.constant 0 : index
    %81 = vector.load %arg7[%c384, %c0_82] : memref<432x1024xbf16, #tpu.memory_space<vmem>>, vector<16x1024xbf16>
    tpu.vector_store %arg7[%c384, %c0_82], %80 {strides = array<i32>} : memref<432x1024xbf16, #tpu.memory_space<vmem>>, vector<16x1024xbf16>,
    %c0_83 = arith.constant 0 : index
    %c0_84 = arith.constant 0 : index
    %c238 = arith.constant 238 : index
    %82 = vector.load %arg1[%c0_83, %c0_84, %c238] : memref<1x16x1280xbf16, #tpu.memory_space<vmem>>, vector<1x16x1024xbf16>
    %83 = vector.shape_cast %82 : vector<1x16x1024xbf16> to vector<16x1024xbf16>
    %c400 = arith.constant 400 : index
    %c0_85 = arith.constant 0 : index
    %84 = vector.load %arg7[%c400, %c0_85] : memref<432x1024xbf16, #tpu.memory_space<vmem>>, vector<16x1024xbf16>
    tpu.vector_store %arg7[%c400, %c0_85], %83 {strides = array<i32>} : memref<432x1024xbf16, #tpu.memory_space<vmem>>, vector<16x1024xbf16>,
    %c0_86 = arith.constant 0 : index
    %c0_87 = arith.constant 0 : index
    %c239 = arith.constant 239 : index
    %85 = vector.load %arg1[%c0_86, %c0_87, %c239] : memref<1x16x1280xbf16, #tpu.memory_space<vmem>>, vector<1x16x1024xbf16>
    %86 = vector.shape_cast %85 : vector<1x16x1024xbf16> to vector<16x1024xbf16>
    %c416 = arith.constant 416 : index
    %c0_88 = arith.constant 0 : index
    %87 = vector.load %arg7[%c416, %c0_88] : memref<432x1024xbf16, #tpu.memory_space<vmem>>, vector<16x1024xbf16>
    tpu.vector_store %arg7[%c416, %c0_88], %86 {strides = array<i32>} : memref<432x1024xbf16, #tpu.memory_space<vmem>>, vector<16x1024xbf16>,
    %c0_89 = arith.constant 0 : index
    %c0_90 = arith.constant 0 : index
    %88 = vector.load %arg2[%c0_89, %c0_90] : memref<16x432xbf16, #tpu.memory_space<vmem>>, vector<16x432xbf16>
    %c0_91 = arith.constant 0 : index
    %c0_92 = arith.constant 0 : index
    %89 = vector.load %arg7[%c0_91, %c0_92] : memref<432x1024xbf16, #tpu.memory_space<vmem>>, vector<432x1024xbf16>
    %cst_93 = arith.constant dense<0.000000e+00> : vector<16x1024xf32>
    %90 = tpu.matmul %88, %89, %cst_93 {dimension_numbers = #tpu.dot_dimension_numbers<[1], [0], [0], [1], [0, 0, 1, 1], [], []>} : vector<16x432xbf16>, vector<432x1024xbf16>, vector<16x1024xf32> -> vector<16x1024xf32>
    %91 = arith.mulf %90, %2 : vector<16x1024xf32>
    %cst_94 = arith.constant dense<0.000000e+00> : vector<16xf32>
    %92 = vector.multi_reduction <add>, %91, %cst_94 [1] : vector<16x1024xf32> to vector<16xf32>
    %93 = vector.shape_cast %92 : vector<16xf32> to vector<16x1xf32>
    %cst_95 = arith.constant 0.001953125 : f32
    %94 = vector.broadcast %cst_95 : f32 to vector<16x1xf32>
    %95 = arith.mulf %93, %94 : vector<16x1xf32>
    %96 = arith.mulf %91, %91 : vector<16x1024xf32>
    %cst_96 = arith.constant dense<0.000000e+00> : vector<16xf32>
    %97 = vector.multi_reduction <add>, %96, %cst_96 [1] : vector<16x1024xf32> to vector<16xf32>
    %98 = vector.shape_cast %97 : vector<16xf32> to vector<16x1xf32>
    %cst_97 = arith.constant 0.001953125 : f32
    %99 = vector.broadcast %cst_97 : f32 to vector<16x1xf32>
    %100 = arith.mulf %98, %99 : vector<16x1xf32>
    %101 = arith.mulf %95, %95 : vector<16x1xf32>
    %102 = arith.subf %100, %101 : vector<16x1xf32>
    %103 = vector.broadcast %95 : vector<16x1xf32> to vector<16x1024xf32>
    %104 = arith.subf %91, %103 : vector<16x1024xf32>
    %cst_98 = arith.constant 9.99999974E-6 : f32
    %105 = vector.broadcast %cst_98 : f32 to vector<16x1xf32>
    %106 = arith.addf %102, %105 : vector<16x1xf32>
    %107 = math.rsqrt %106 : vector<16x1xf32>
    %108 = vector.broadcast %107 : vector<16x1xf32> to vector<16x1024xf32>
    %109 = arith.mulf %104, %108 : vector<16x1024xf32>
    %cst_99 = arith.constant 0.000000e+00 : f32
    %110 = vector.broadcast %cst_99 : f32 to vector<16x1024xf32>
    %111 = arith.cmpf oge, %109, %110 : vector<16x1024xf32>
    %cst_100 = arith.constant 0.00999999977 : f32
    %112 = vector.broadcast %cst_100 : f32 to vector<16x1024xf32>
    %113 = arith.mulf %112, %109 : vector<16x1024xf32>
    %114 = arith.select %111, %109, %113 : vector<16x1024xi1>, vector<16x1024xf32>
    %115 = arith.mulf %114, %2 : vector<16x1024xf32>
    %cst_101 = arith.constant 0.000000e+00 : bf16
    %116 = vector.broadcast %cst_101 : bf16 to vector<16x128xbf16>
    %c0_102 = arith.constant 0 : index
    %c0_103 = arith.constant 0 : index
    %117 = vector.load %arg8[%c0_102, %c0_103] : memref<16x1280xbf16, #tpu.memory_space<vmem>>, vector<16x128xbf16>
    tpu.vector_store %arg8[%c0_102, %c0_103], %116 {strides = array<i32>} : memref<16x1280xbf16, #tpu.memory_space<vmem>>, vector<16x128xbf16>,
    %cst_104 = arith.constant 0.000000e+00 : bf16
    %118 = vector.broadcast %cst_104 : bf16 to vector<16x128xbf16>
    %c0_105 = arith.constant 0 : index
    %c1152 = arith.constant 1152 : index
    %119 = vector.load %arg8[%c0_105, %c1152] : memref<16x1280xbf16, #tpu.memory_space<vmem>>, vector<16x128xbf16>
    tpu.vector_store %arg8[%c0_105, %c1152], %118 {strides = array<i32>} : memref<16x1280xbf16, #tpu.memory_space<vmem>>, vector<16x128xbf16>,
    %120 = arith.truncf %115 : vector<16x1024xf32> to vector<16x1024xbf16>
    %c0_106 = arith.constant 0 : index
    %c128_107 = arith.constant 128 : index
    %121 = vector.load %arg8[%c0_106, %c128_107] : memref<16x1280xbf16, #tpu.memory_space<vmem>>, vector<16x1024xbf16>
    tpu.vector_store %arg8[%c0_106, %c128_107], %120 {strides = array<i32>} : memref<16x1280xbf16, #tpu.memory_space<vmem>>, vector<16x1024xbf16>,
    %c0_108 = arith.constant 0 : index
    %c17_109 = arith.constant 17 : index
    %122 = vector.load %arg8[%c0_108, %c17_109] : memref<16x1280xbf16, #tpu.memory_space<vmem>>, vector<16x1024xbf16>
    %c0_110 = arith.constant 0 : index
    %c0_111 = arith.constant 0 : index
    %123 = vector.load %arg7[%c0_110, %c0_111] : memref<432x1024xbf16, #tpu.memory_space<vmem>>, vector<16x1024xbf16>
    tpu.vector_store %arg7[%c0_110, %c0_111], %122 {strides = array<i32>} : memref<432x1024xbf16, #tpu.memory_space<vmem>>, vector<16x1024xbf16>,
    %c0_112 = arith.constant 0 : index
    %c18_113 = arith.constant 18 : index
    %124 = vector.load %arg8[%c0_112, %c18_113] : memref<16x1280xbf16, #tpu.memory_space<vmem>>, vector<16x1024xbf16>
    %c16_114 = arith.constant 16 : index
    %c0_115 = arith.constant 0 : index
    %125 = vector.load %arg7[%c16_114, %c0_115] : memref<432x1024xbf16, #tpu.memory_space<vmem>>, vector<16x1024xbf16>
    tpu.vector_store %arg7[%c16_114, %c0_115], %124 {strides = array<i32>} : memref<432x1024xbf16, #tpu.memory_space<vmem>>, vector<16x1024xbf16>,
    %c0_116 = arith.constant 0 : index
    %c19_117 = arith.constant 19 : index
    %126 = vector.load %arg8[%c0_116, %c19_117] : memref<16x1280xbf16, #tpu.memory_space<vmem>>, vector<16x1024xbf16>
    %c32_118 = arith.constant 32 : index
    %c0_119 = arith.constant 0 : index
    %127 = vector.load %arg7[%c32_118, %c0_119] : memref<432x1024xbf16, #tpu.memory_space<vmem>>, vector<16x1024xbf16>
    tpu.vector_store %arg7[%c32_118, %c0_119], %126 {strides = array<i32>} : memref<432x1024xbf16, #tpu.memory_space<vmem>>, vector<16x1024xbf16>,
    %c0_120 = arith.constant 0 : index
    %c27_121 = arith.constant 27 : index
    %128 = vector.load %arg8[%c0_120, %c27_121] : memref<16x1280xbf16, #tpu.memory_space<vmem>>, vector<16x1024xbf16>
    %c48_122 = arith.constant 48 : index
    %c0_123 = arith.constant 0 : index
    %129 = vector.load %arg7[%c48_122, %c0_123] : memref<432x1024xbf16, #tpu.memory_space<vmem>>, vector<16x1024xbf16>
    tpu.vector_store %arg7[%c48_122, %c0_123], %128 {strides = array<i32>} : memref<432x1024xbf16, #tpu.memory_space<vmem>>, vector<16x1024xbf16>,
    %c0_124 = arith.constant 0 : index
    %c28_125 = arith.constant 28 : index
    %130 = vector.load %arg8[%c0_124, %c28_125] : memref<16x1280xbf16, #tpu.memory_space<vmem>>, vector<16x1024xbf16>
    %c64_126 = arith.constant 64 : index
    %c0_127 = arith.constant 0 : index
    %131 = vector.load %arg7[%c64_126, %c0_127] : memref<432x1024xbf16, #tpu.memory_space<vmem>>, vector<16x1024xbf16>
    tpu.vector_store %arg7[%c64_126, %c0_127], %130 {strides = array<i32>} : memref<432x1024xbf16, #tpu.memory_space<vmem>>, vector<16x1024xbf16>,
    %c0_128 = arith.constant 0 : index
    %c29_129 = arith.constant 29 : index
    %132 = vector.load %arg8[%c0_128, %c29_129] : memref<16x1280xbf16, #tpu.memory_space<vmem>>, vector<16x1024xbf16>
    %c80_130 = arith.constant 80 : index
    %c0_131 = arith.constant 0 : index
    %133 = vector.load %arg7[%c80_130, %c0_131] : memref<432x1024xbf16, #tpu.memory_space<vmem>>, vector<16x1024xbf16>
    tpu.vector_store %arg7[%c80_130, %c0_131], %132 {strides = array<i32>} : memref<432x1024xbf16, #tpu.memory_space<vmem>>, vector<16x1024xbf16>,
    %c0_132 = arith.constant 0 : index
    %c37_133 = arith.constant 37 : index
    %134 = vector.load %arg8[%c0_132, %c37_133] : memref<16x1280xbf16, #tpu.memory_space<vmem>>, vector<16x1024xbf16>
    %c96_134 = arith.constant 96 : index
    %c0_135 = arith.constant 0 : index
    %135 = vector.load %arg7[%c96_134, %c0_135] : memref<432x1024xbf16, #tpu.memory_space<vmem>>, vector<16x1024xbf16>
    tpu.vector_store %arg7[%c96_134, %c0_135], %134 {strides = array<i32>} : memref<432x1024xbf16, #tpu.memory_space<vmem>>, vector<16x1024xbf16>,
    %c0_136 = arith.constant 0 : index
    %c38_137 = arith.constant 38 : index
    %136 = vector.load %arg8[%c0_136, %c38_137] : memref<16x1280xbf16, #tpu.memory_space<vmem>>, vector<16x1024xbf16>
    %c112_138 = arith.constant 112 : index
    %c0_139 = arith.constant 0 : index
    %137 = vector.load %arg7[%c112_138, %c0_139] : memref<432x1024xbf16, #tpu.memory_space<vmem>>, vector<16x1024xbf16>
    tpu.vector_store %arg7[%c112_138, %c0_139], %136 {strides = array<i32>} : memref<432x1024xbf16, #tpu.memory_space<vmem>>, vector<16x1024xbf16>,
    %c0_140 = arith.constant 0 : index
    %c39_141 = arith.constant 39 : index
    %138 = vector.load %arg8[%c0_140, %c39_141] : memref<16x1280xbf16, #tpu.memory_space<vmem>>, vector<16x1024xbf16>
    %c128_142 = arith.constant 128 : index
    %c0_143 = arith.constant 0 : index
    %139 = vector.load %arg7[%c128_142, %c0_143] : memref<432x1024xbf16, #tpu.memory_space<vmem>>, vector<16x1024xbf16>
    tpu.vector_store %arg7[%c128_142, %c0_143], %138 {strides = array<i32>} : memref<432x1024xbf16, #tpu.memory_space<vmem>>, vector<16x1024xbf16>,
    %c0_144 = arith.constant 0 : index
    %c117_145 = arith.constant 117 : index
    %140 = vector.load %arg8[%c0_144, %c117_145] : memref<16x1280xbf16, #tpu.memory_space<vmem>>, vector<16x1024xbf16>
    %c144_146 = arith.constant 144 : index
    %c0_147 = arith.constant 0 : index
    %141 = vector.load %arg7[%c144_146, %c0_147] : memref<432x1024xbf16, #tpu.memory_space<vmem>>, vector<16x1024xbf16>
    tpu.vector_store %arg7[%c144_146, %c0_147], %140 {strides = array<i32>} : memref<432x1024xbf16, #tpu.memory_space<vmem>>, vector<16x1024xbf16>,
    %c0_148 = arith.constant 0 : index
    %c118_149 = arith.constant 118 : index
    %142 = vector.load %arg8[%c0_148, %c118_149] : memref<16x1280xbf16, #tpu.memory_space<vmem>>, vector<16x1024xbf16>
    %c160_150 = arith.constant 160 : index
    %c0_151 = arith.constant 0 : index
    %143 = vector.load %arg7[%c160_150, %c0_151] : memref<432x1024xbf16, #tpu.memory_space<vmem>>, vector<16x1024xbf16>
    tpu.vector_store %arg7[%c160_150, %c0_151], %142 {strides = array<i32>} : memref<432x1024xbf16, #tpu.memory_space<vmem>>, vector<16x1024xbf16>,
    %c0_152 = arith.constant 0 : index
    %c119_153 = arith.constant 119 : index
    %144 = vector.load %arg8[%c0_152, %c119_153] : memref<16x1280xbf16, #tpu.memory_space<vmem>>, vector<16x1024xbf16>
    %c176_154 = arith.constant 176 : index
    %c0_155 = arith.constant 0 : index
    %145 = vector.load %arg7[%c176_154, %c0_155] : memref<432x1024xbf16, #tpu.memory_space<vmem>>, vector<16x1024xbf16>
    tpu.vector_store %arg7[%c176_154, %c0_155], %144 {strides = array<i32>} : memref<432x1024xbf16, #tpu.memory_space<vmem>>, vector<16x1024xbf16>,
    %c0_156 = arith.constant 0 : index
    %c127_157 = arith.constant 127 : index
    %146 = vector.load %arg8[%c0_156, %c127_157] : memref<16x1280xbf16, #tpu.memory_space<vmem>>, vector<16x1024xbf16>
    %c192_158 = arith.constant 192 : index
    %c0_159 = arith.constant 0 : index
    %147 = vector.load %arg7[%c192_158, %c0_159] : memref<432x1024xbf16, #tpu.memory_space<vmem>>, vector<16x1024xbf16>
    tpu.vector_store %arg7[%c192_158, %c0_159], %146 {strides = array<i32>} : memref<432x1024xbf16, #tpu.memory_space<vmem>>, vector<16x1024xbf16>,
    %c0_160 = arith.constant 0 : index
    %c128_161 = arith.constant 128 : index
    %148 = vector.load %arg8[%c0_160, %c128_161] : memref<16x1280xbf16, #tpu.memory_space<vmem>>, vector<16x1024xbf16>
    %c208_162 = arith.constant 208 : index
    %c0_163 = arith.constant 0 : index
    %149 = vector.load %arg7[%c208_162, %c0_163] : memref<432x1024xbf16, #tpu.memory_space<vmem>>, vector<16x1024xbf16>
    tpu.vector_store %arg7[%c208_162, %c0_163], %148 {strides = array<i32>} : memref<432x1024xbf16, #tpu.memory_space<vmem>>, vector<16x1024xbf16>,
    %c0_164 = arith.constant 0 : index
    %c129_165 = arith.constant 129 : index
    %150 = vector.load %arg8[%c0_164, %c129_165] : memref<16x1280xbf16, #tpu.memory_space<vmem>>, vector<16x1024xbf16>
    %c224_166 = arith.constant 224 : index
    %c0_167 = arith.constant 0 : index
    %151 = vector.load %arg7[%c224_166, %c0_167] : memref<432x1024xbf16, #tpu.memory_space<vmem>>, vector<16x1024xbf16>
    tpu.vector_store %arg7[%c224_166, %c0_167], %150 {strides = array<i32>} : memref<432x1024xbf16, #tpu.memory_space<vmem>>, vector<16x1024xbf16>,
    %c0_168 = arith.constant 0 : index
    %c137_169 = arith.constant 137 : index
    %152 = vector.load %arg8[%c0_168, %c137_169] : memref<16x1280xbf16, #tpu.memory_space<vmem>>, vector<16x1024xbf16>
    %c240_170 = arith.constant 240 : index
    %c0_171 = arith.constant 0 : index
    %153 = vector.load %arg7[%c240_170, %c0_171] : memref<432x1024xbf16, #tpu.memory_space<vmem>>, vector<16x1024xbf16>
    tpu.vector_store %arg7[%c240_170, %c0_171], %152 {strides = array<i32>} : memref<432x1024xbf16, #tpu.memory_space<vmem>>, vector<16x1024xbf16>,
    %c0_172 = arith.constant 0 : index
    %c138_173 = arith.constant 138 : index
    %154 = vector.load %arg8[%c0_172, %c138_173] : memref<16x1280xbf16, #tpu.memory_space<vmem>>, vector<16x1024xbf16>
    %c256_174 = arith.constant 256 : index
    %c0_175 = arith.constant 0 : index
    %155 = vector.load %arg7[%c256_174, %c0_175] : memref<432x1024xbf16, #tpu.memory_space<vmem>>, vector<16x1024xbf16>
    tpu.vector_store %arg7[%c256_174, %c0_175], %154 {strides = array<i32>} : memref<432x1024xbf16, #tpu.memory_space<vmem>>, vector<16x1024xbf16>,
    %c0_176 = arith.constant 0 : index
    %c139_177 = arith.constant 139 : index
    %156 = vector.load %arg8[%c0_176, %c139_177] : memref<16x1280xbf16, #tpu.memory_space<vmem>>, vector<16x1024xbf16>
    %c272_178 = arith.constant 272 : index
    %c0_179 = arith.constant 0 : index
    %157 = vector.load %arg7[%c272_178, %c0_179] : memref<432x1024xbf16, #tpu.memory_space<vmem>>, vector<16x1024xbf16>
    tpu.vector_store %arg7[%c272_178, %c0_179], %156 {strides = array<i32>} : memref<432x1024xbf16, #tpu.memory_space<vmem>>, vector<16x1024xbf16>,
    %c0_180 = arith.constant 0 : index
    %c217_181 = arith.constant 217 : index
    %158 = vector.load %arg8[%c0_180, %c217_181] : memref<16x1280xbf16, #tpu.memory_space<vmem>>, vector<16x1024xbf16>
    %c288_182 = arith.constant 288 : index
    %c0_183 = arith.constant 0 : index
    %159 = vector.load %arg7[%c288_182, %c0_183] : memref<432x1024xbf16, #tpu.memory_space<vmem>>, vector<16x1024xbf16>
    tpu.vector_store %arg7[%c288_182, %c0_183], %158 {strides = array<i32>} : memref<432x1024xbf16, #tpu.memory_space<vmem>>, vector<16x1024xbf16>,
    %c0_184 = arith.constant 0 : index
    %c218_185 = arith.constant 218 : index
    %160 = vector.load %arg8[%c0_184, %c218_185] : memref<16x1280xbf16, #tpu.memory_space<vmem>>, vector<16x1024xbf16>
    %c304_186 = arith.constant 304 : index
    %c0_187 = arith.constant 0 : index
    %161 = vector.load %arg7[%c304_186, %c0_187] : memref<432x1024xbf16, #tpu.memory_space<vmem>>, vector<16x1024xbf16>
    tpu.vector_store %arg7[%c304_186, %c0_187], %160 {strides = array<i32>} : memref<432x1024xbf16, #tpu.memory_space<vmem>>, vector<16x1024xbf16>,
    %c0_188 = arith.constant 0 : index
    %c219_189 = arith.constant 219 : index
    %162 = vector.load %arg8[%c0_188, %c219_189] : memref<16x1280xbf16, #tpu.memory_space<vmem>>, vector<16x1024xbf16>
    %c320_190 = arith.constant 320 : index
    %c0_191 = arith.constant 0 : index
    %163 = vector.load %arg7[%c320_190, %c0_191] : memref<432x1024xbf16, #tpu.memory_space<vmem>>, vector<16x1024xbf16>
    tpu.vector_store %arg7[%c320_190, %c0_191], %162 {strides = array<i32>} : memref<432x1024xbf16, #tpu.memory_space<vmem>>, vector<16x1024xbf16>,
    %c0_192 = arith.constant 0 : index
    %c227_193 = arith.constant 227 : index
    %164 = vector.load %arg8[%c0_192, %c227_193] : memref<16x1280xbf16, #tpu.memory_space<vmem>>, vector<16x1024xbf16>
    %c336_194 = arith.constant 336 : index
    %c0_195 = arith.constant 0 : index
    %165 = vector.load %arg7[%c336_194, %c0_195] : memref<432x1024xbf16, #tpu.memory_space<vmem>>, vector<16x1024xbf16>
    tpu.vector_store %arg7[%c336_194, %c0_195], %164 {strides = array<i32>} : memref<432x1024xbf16, #tpu.memory_space<vmem>>, vector<16x1024xbf16>,
    %c0_196 = arith.constant 0 : index
    %c228_197 = arith.constant 228 : index
    %166 = vector.load %arg8[%c0_196, %c228_197] : memref<16x1280xbf16, #tpu.memory_space<vmem>>, vector<16x1024xbf16>
    %c352_198 = arith.constant 352 : index
    %c0_199 = arith.constant 0 : index
    %167 = vector.load %arg7[%c352_198, %c0_199] : memref<432x1024xbf16, #tpu.memory_space<vmem>>, vector<16x1024xbf16>
    tpu.vector_store %arg7[%c352_198, %c0_199], %166 {strides = array<i32>} : memref<432x1024xbf16, #tpu.memory_space<vmem>>, vector<16x1024xbf16>,
    %c0_200 = arith.constant 0 : index
    %c229_201 = arith.constant 229 : index
    %168 = vector.load %arg8[%c0_200, %c229_201] : memref<16x1280xbf16, #tpu.memory_space<vmem>>, vector<16x1024xbf16>
    %c368_202 = arith.constant 368 : index
    %c0_203 = arith.constant 0 : index
    %169 = vector.load %arg7[%c368_202, %c0_203] : memref<432x1024xbf16, #tpu.memory_space<vmem>>, vector<16x1024xbf16>
    tpu.vector_store %arg7[%c368_202, %c0_203], %168 {strides = array<i32>} : memref<432x1024xbf16, #tpu.memory_space<vmem>>, vector<16x1024xbf16>,
    %c0_204 = arith.constant 0 : index
    %c237_205 = arith.constant 237 : index
    %170 = vector.load %arg8[%c0_204, %c237_205] : memref<16x1280xbf16, #tpu.memory_space<vmem>>, vector<16x1024xbf16>
    %c384_206 = arith.constant 384 : index
    %c0_207 = arith.constant 0 : index
    %171 = vector.load %arg7[%c384_206, %c0_207] : memref<432x1024xbf16, #tpu.memory_space<vmem>>, vector<16x1024xbf16>
    tpu.vector_store %arg7[%c384_206, %c0_207], %170 {strides = array<i32>} : memref<432x1024xbf16, #tpu.memory_space<vmem>>, vector<16x1024xbf16>,
    %c0_208 = arith.constant 0 : index
    %c238_209 = arith.constant 238 : index
    %172 = vector.load %arg8[%c0_208, %c238_209] : memref<16x1280xbf16, #tpu.memory_space<vmem>>, vector<16x1024xbf16>
    %c400_210 = arith.constant 400 : index
    %c0_211 = arith.constant 0 : index
    %173 = vector.load %arg7[%c400_210, %c0_211] : memref<432x1024xbf16, #tpu.memory_space<vmem>>, vector<16x1024xbf16>
    tpu.vector_store %arg7[%c400_210, %c0_211], %172 {strides = array<i32>} : memref<432x1024xbf16, #tpu.memory_space<vmem>>, vector<16x1024xbf16>,
    %c0_212 = arith.constant 0 : index
    %c239_213 = arith.constant 239 : index
    %174 = vector.load %arg8[%c0_212, %c239_213] : memref<16x1280xbf16, #tpu.memory_space<vmem>>, vector<16x1024xbf16>
    %c416_214 = arith.constant 416 : index
    %c0_215 = arith.constant 0 : index
    %175 = vector.load %arg7[%c416_214, %c0_215] : memref<432x1024xbf16, #tpu.memory_space<vmem>>, vector<16x1024xbf16>
    tpu.vector_store %arg7[%c416_214, %c0_215], %174 {strides = array<i32>} : memref<432x1024xbf16, #tpu.memory_space<vmem>>, vector<16x1024xbf16>,
    %c0_216 = arith.constant 0 : index
    %c0_217 = arith.constant 0 : index
    %176 = vector.load %arg3[%c0_216, %c0_217] : memref<16x432xbf16, #tpu.memory_space<vmem>>, vector<16x432xbf16>
    %c0_218 = arith.constant 0 : index
    %c0_219 = arith.constant 0 : index
    %177 = vector.load %arg7[%c0_218, %c0_219] : memref<432x1024xbf16, #tpu.memory_space<vmem>>, vector<432x1024xbf16>
    %cst_220 = arith.constant dense<0.000000e+00> : vector<16x1024xf32>
    %178 = tpu.matmul %176, %177, %cst_220 {dimension_numbers = #tpu.dot_dimension_numbers<[1], [0], [0], [1], [0, 0, 1, 1], [], []>} : vector<16x432xbf16>, vector<432x1024xbf16>, vector<16x1024xf32> -> vector<16x1024xf32>
    %179 = arith.mulf %178, %2 : vector<16x1024xf32>
    %cst_221 = arith.constant dense<0.000000e+00> : vector<16xf32>
    %180 = vector.multi_reduction <add>, %179, %cst_221 [1] : vector<16x1024xf32> to vector<16xf32>
    %181 = vector.shape_cast %180 : vector<16xf32> to vector<16x1xf32>
    %cst_222 = arith.constant 0.001953125 : f32
    %182 = vector.broadcast %cst_222 : f32 to vector<16x1xf32>
    %183 = arith.mulf %181, %182 : vector<16x1xf32>
    %184 = arith.mulf %179, %179 : vector<16x1024xf32>
    %cst_223 = arith.constant dense<0.000000e+00> : vector<16xf32>
    %185 = vector.multi_reduction <add>, %184, %cst_223 [1] : vector<16x1024xf32> to vector<16xf32>
    %186 = vector.shape_cast %185 : vector<16xf32> to vector<16x1xf32>
    %cst_224 = arith.constant 0.001953125 : f32
    %187 = vector.broadcast %cst_224 : f32 to vector<16x1xf32>
    %188 = arith.mulf %186, %187 : vector<16x1xf32>
    %189 = arith.mulf %183, %183 : vector<16x1xf32>
    %190 = arith.subf %188, %189 : vector<16x1xf32>
    %191 = vector.broadcast %183 : vector<16x1xf32> to vector<16x1024xf32>
    %192 = arith.subf %179, %191 : vector<16x1024xf32>
    %cst_225 = arith.constant 9.99999974E-6 : f32
    %193 = vector.broadcast %cst_225 : f32 to vector<16x1xf32>
    %194 = arith.addf %190, %193 : vector<16x1xf32>
    %195 = math.rsqrt %194 : vector<16x1xf32>
    %196 = vector.broadcast %195 : vector<16x1xf32> to vector<16x1024xf32>
    %197 = arith.mulf %192, %196 : vector<16x1024xf32>
    %cst_226 = arith.constant 0.000000e+00 : f32
    %198 = vector.broadcast %cst_226 : f32 to vector<16x1024xf32>
    %199 = arith.cmpf oge, %197, %198 : vector<16x1024xf32>
    %cst_227 = arith.constant 0.00999999977 : f32
    %200 = vector.broadcast %cst_227 : f32 to vector<16x1024xf32>
    %201 = arith.mulf %200, %197 : vector<16x1024xf32>
    %202 = arith.select %199, %197, %201 : vector<16x1024xi1>, vector<16x1024xf32>
    %203 = arith.addf %202, %6 : vector<16x1024xf32>
    %204 = arith.truncf %203 : vector<16x1024xf32> to vector<16x1024xbf16>
    %c0_228 = arith.constant 0 : index
    %c0_229 = arith.constant 0 : index
    %c0_230 = arith.constant 0 : index
    %205 = vector.load %arg6[%c0_228, %c0_229, %c0_230] : memref<1x16x1024xbf16, #tpu.memory_space<vmem>>, vector<1x16x1024xbf16>
    %206 = vector.shape_cast %205 : vector<1x16x1024xbf16> to vector<16x1024xbf16>
    %207 = vector.shape_cast %204 : vector<16x1024xbf16> to vector<1x16x1024xbf16>
    tpu.vector_store %arg6[%c0_228, %c0_229, %c0_230], %207 {strides = array<i32>} : memref<1x16x1024xbf16, #tpu.memory_space<vmem>>, vector<1x16x1024xbf16>,
    return
  }
  func.func @transform_0(%arg0: i32) -> (i32, i32, i32) {
    %c0_i32 = arith.constant 0 : i32
    %c0_i32_0 = arith.constant 0 : i32
    %c0_i32_1 = arith.constant 0 : i32
    return %arg0, %c0_i32, %c0_i32_0 : i32, i32, i32
  }
  func.func @transform_1(%arg0: i32) -> (i32, i32) {
    %c0_i32 = arith.constant 0 : i32
    %c0_i32_0 = arith.constant 0 : i32
    %c0_i32_1 = arith.constant 0 : i32
    return %c0_i32, %c0_i32_0 : i32, i32
  }
  func.func @transform_2(%arg0: i32) -> (i32, i32) {
    %c0_i32 = arith.constant 0 : i32
    %c0_i32_0 = arith.constant 0 : i32
    %c0_i32_1 = arith.constant 0 : i32
    return %c0_i32, %c0_i32_0 : i32, i32
  }
  func.func @transform_3(%arg0: i32) -> (i32, i32) {
    %c0_i32 = arith.constant 0 : i32
    %c0_i32_0 = arith.constant 0 : i32
    %c0_i32_1 = arith.constant 0 : i32
    return %c0_i32, %c0_i32_0 : i32, i32
  }
  func.func @transform_4(%arg0: i32) -> (i32, i32) {
    %c0_i32 = arith.constant 0 : i32
    %c0_i32_0 = arith.constant 0 : i32
    %c0_i32_1 = arith.constant 0 : i32
    return %c0_i32, %c0_i32_0 : i32, i32
  }
  func.func @transform_5(%arg0: i32) -> (i32, i32, i32) {
    %c0_i32 = arith.constant 0 : i32
    %c0_i32_0 = arith.constant 0 : i32
    %c0_i32_1 = arith.constant 0 : i32
    return %arg0, %c0_i32, %c0_i32_0 : i32, i32, i32
  }
}

</mosaic_0001>

<llo_original>
// kernel: residual_block_forward.1
$region0: #{residual_block_forward.1}
  #allocation0 [shape = 'u32[]', space=smem, size = 0x4, offset = 0x4, fixed_abs, tag = 'smem constant byte address 0x4 - core index']
  #allocation1 [shape = 'u32[72,128]{1,0:T(1,128)}', space=vmem, size = 0x9000, scoped, tag = 'internal scratch']
  #allocation2 [shape = 'bf16[432,1024]{1,0:T(8,128)(2,1)}', space=vmem, size = 0xd8000, scoped, tag = 'scratch operand']
  #allocation3 [shape = 'bf16[16,1280]{1,0:T(8,128)(2,1)}', space=vmem, size = 0xa000, scoped, tag = 'scratch operand']
  %s0 = inlined_call_operand.vmem [shape: bf16[2,16,1280], index: 0, kind: input, shape index: {}]
  %s1 = inlined_call_operand.vmem [shape: bf16[16,432], index: 1, kind: input, shape index: {}]
  %s2 = inlined_call_operand.vmem [shape: bf16[16,432], index: 2, kind: input, shape index: {}]
  %s3 = inlined_call_operand.vmem [shape: bf16[16,16], index: 3, kind: input, shape index: {}]
  %s4 = inlined_call_operand.vmem [shape: f32[1,1024], index: 4, kind: input, shape index: {}]
  %s5 = inlined_call_operand.vmem [shape: bf16[2,16,1024], index: 5, kind: output, shape index: {}]
  %s6 = sld [smem:[#allocation0]]
  $region53: #{residual_block_forward.1} parent=0
    _
  %s8 = ssub.s32 1, %s6
  %s9 = scalar_select 0, %s8, %s6
  loop: start=0, step=1, limit=4
  $region2: #{residual_block_forward.1} parent=0 // loop_pre_header
    _
  $region3: #{residual_block_forward.1} parent=0 // loop_header
    %s11 = sphi 0, %s15
    %p12 = scmp.ge.s32.totalorder %s11, 4
    %s21 = sphi 0, %s23
    %s24 = sphi 0, %s21
    %s25 = sphi 0, %s24
    %s41 = sphi 0, %s25
    %s45 = sphi 0, %s45
    %s47 = sphi 0, %s45
    %s48 = sphi 0, %s47
    %s62 = sphi 0, %s48
    %s66 = sphi 0, %s66
    %s68 = sphi 0, %s66
    %s69 = sphi 0, %s68
    %s83 = sphi 0, %s69
    %s87 = sphi 0, %s87
    %s89 = sphi 0, %s87
    %s90 = sphi 0, %s89
    %s104 = sphi 0, %s90
    %s108 = sphi 0, %s108
    %s110 = sphi 0, %s108
    %s111 = sphi 0, %s110
    %s125 = sphi 0, %s111
    %s131 = sphi 0, %s133
    %s134 = sphi 0, %s131
    %s135 = sphi 0, %s134
    %s151 = sphi 0, %s135
  $region4: #{residual_block_forward.1} parent=0 // loop_header_branch
    %14 = sbr.rel (%p12) target = $region8
  $region5: #{residual_block_forward.1} parent=0 // loop_body
    %s16 = ssub.s32 %s11, 1
    %s17 = ssub.s32 %s11, 2
    %s18 = sadd.s32 %s11, 1
    %s19 = ssub.s32 %s11, %s18
    %p20 = scmp.eq.s32.totalorder %s19, 0
    %s22 = sadd.s32 %s21, 1
    %s23 = scalar_select %p20, %s21, %s22
    %p26 = pneg %p20
    %p27 = scmp.eq.s32.totalorder %s11, 1
    %p28 = por %p26, %p27
    %p29 = scmp.ne.s32.totalorder %s21, %s24
    %p30 = scmp.eq.s32.totalorder %s11, 0
    %p31 = por %p29, %p30
    %p32 = scmp.ne.s32.totalorder %s21, %s24
    %p33 = scmp.eq.s32.totalorder %s16, 1
    %p34 = por %p32, %p33
    %p35 = scmp.ne.s32.totalorder %s24, %s25
    %p36 = scmp.eq.s32.totalorder %s16, 0
    %p37 = por %p35, %p36
    %p38 = scmp.ne.s32.totalorder %s24, %s25
    %p39 = scmp.eq.s32.totalorder %s17, 1
    %p40 = por %p38, %p39
    %p42 = scmp.ne.s32.totalorder %s25, %s41
    %p43 = scmp.eq.s32.totalorder %s17, 0
    %p44 = por %p42, %p43
    %s46 = sadd.s32 %s45, 1
    %p49 = scmp.eq.s32.totalorder %s11, 1
    %p50 = scmp.ne.s32.totalorder %s45, %s47
    %p51 = scmp.eq.s32.totalorder %s11, 0
    %p52 = por %p50, %p51
    %p53 = scmp.ne.s32.totalorder %s45, %s47
    %p54 = scmp.eq.s32.totalorder %s16, 1
    %p55 = por %p53, %p54
    %p56 = scmp.ne.s32.totalorder %s47, %s48
    %p57 = scmp.eq.s32.totalorder %s16, 0
    %p58 = por %p56, %p57
    %p59 = scmp.ne.s32.totalorder %s47, %s48
    %p60 = scmp.eq.s32.totalorder %s17, 1
    %p61 = por %p59, %p60
    %p63 = scmp.ne.s32.totalorder %s48, %s62
    %p64 = scmp.eq.s32.totalorder %s17, 0
    %p65 = por %p63, %p64
    %s67 = sadd.s32 %s66, 1
    %p70 = scmp.eq.s32.totalorder %s11, 1
    %p71 = scmp.ne.s32.totalorder %s66, %s68
    %p72 = scmp.eq.s32.totalorder %s11, 0
    %p73 = por %p71, %p72
    %p74 = scmp.ne.s32.totalorder %s66, %s68
    %p75 = scmp.eq.s32.totalorder %s16, 1
    %p76 = por %p74, %p75
    %p77 = scmp.ne.s32.totalorder %s68, %s69
    %p78 = scmp.eq.s32.totalorder %s16, 0
    %p79 = por %p77, %p78
    %p80 = scmp.ne.s32.totalorder %s68, %s69
    %p81 = scmp.eq.s32.totalorder %s17, 1
    %p82 = por %p80, %p81
    %p84 = scmp.ne.s32.totalorder %s69, %s83
    %p85 = scmp.eq.s32.totalorder %s17, 0
    %p86 = por %p84, %p85
    %s88 = sadd.s32 %s87, 1
    %p91 = scmp.eq.s32.totalorder %s11, 1
    %p92 = scmp.ne.s32.totalorder %s87, %s89
    %p93 = scmp.eq.s32.totalorder %s11, 0
    %p94 = por %p92, %p93
    %p95 = scmp.ne.s32.totalorder %s87, %s89
    %p96 = scmp.eq.s32.totalorder %s16, 1
    %p97 = por %p95, %p96
    %p98 = scmp.ne.s32.totalorder %s89, %s90
    %p99 = scmp.eq.s32.totalorder %s16, 0
    %p100 = por %p98, %p99
    %p101 = scmp.ne.s32.totalorder %s89, %s90
    %p102 = scmp.eq.s32.totalorder %s17, 1
    %p103 = por %p101, %p102
    %p105 = scmp.ne.s32.totalorder %s90, %s104
    %p106 = scmp.eq.s32.totalorder %s17, 0
    %p107 = por %p105, %p106
    %s109 = sadd.s32 %s108, 1
    %p112 = scmp.eq.s32.totalorder %s11, 1
    %p113 = scmp.ne.s32.totalorder %s108, %s110
    %p114 = scmp.eq.s32.totalorder %s11, 0
    %p115 = por %p113, %p114
    %p116 = scmp.ne.s32.totalorder %s108, %s110
    %p117 = scmp.eq.s32.totalorder %s16, 1
    %p118 = por %p116, %p117
    %p119 = scmp.ne.s32.totalorder %s110, %s111
    %p120 = scmp.eq.s32.totalorder %s16, 0
    %p121 = por %p119, %p120
    %p122 = scmp.ne.s32.totalorder %s110, %s111
    %p123 = scmp.eq.s32.totalorder %s17, 1
    %p124 = por %p122, %p123
    %p126 = scmp.ne.s32.totalorder %s111, %s125
    %p127 = scmp.eq.s32.totalorder %s17, 0
    %p128 = por %p126, %p127
    %s129 = ssub.s32 %s11, %s18
    %p130 = scmp.eq.s32.totalorder %s129, 0
    %s132 = sadd.s32 %s131, 1
    %s133 = scalar_select %p130, %s131, %s132
    %p136 = pneg %p130
    %p137 = scmp.eq.s32.totalorder %s11, 1
    %p138 = por %p136, %p137
    %p139 = scmp.ne.s32.totalorder %s131, %s134
    %p140 = scmp.eq.s32.totalorder %s11, 0
    %p141 = por %p139, %p140
    %p142 = scmp.ne.s32.totalorder %s131, %s134
    %p143 = scmp.eq.s32.totalorder %s16, 1
    %p144 = por %p142, %p143
    %p145 = scmp.ne.s32.totalorder %s134, %s135
    %p146 = scmp.eq.s32.totalorder %s16, 0
    %p147 = por %p145, %p146
    %p148 = scmp.ne.s32.totalorder %s134, %s135
    %p149 = scmp.eq.s32.totalorder %s17, 1
    %p150 = por %p148, %p149
    %p152 = scmp.ne.s32.totalorder %s135, %s151
    %p153 = scmp.eq.s32.totalorder %s17, 0
    %p154 = por %p152, %p153
    %p155 = scmp.le.s32.totalorder 1, %s11
    %p156 = scmp.lt.s32.totalorder %s11, 3
    %p157 = pnand %p155, %p156
    %p158 = pneg %p157
    // Predicated region
    $region9: #{residual_block_forward.1} parent=5 // pred_check
      _
    $region10: #{residual_block_forward.1} parent=5 // pred_check_branch
      %160 = sbr.rel (%p157) target = $region12
    $region11: #{residual_block_forward.1} parent=5 // pred_region
      %s161 = ssub.s32 %s11, 1
      // Predicated region
      $region13: #{residual_block_forward.1} parent=11 // pred_check
        %p162 = pneg %p58
      $region14: #{residual_block_forward.1} parent=11 // pred_check_branch
        %164 = sbr.rel (%p162) target = $region16
      $region15: #{residual_block_forward.1} parent=11 // pred_region
        _
      $region16: #{residual_block_forward.1} parent=11 // pred_fallthru
        _
      // Predicated region
      $region17: #{residual_block_forward.1} parent=11 // pred_check
        %p165 = pneg %p79
      $region18: #{residual_block_forward.1} parent=11 // pred_check_branch
        %167 = sbr.rel (%p165) target = $region20
      $region19: #{residual_block_forward.1} parent=11 // pred_region
        _
      $region20: #{residual_block_forward.1} parent=11 // pred_fallthru
        _
      // Predicated region
      $region21: #{residual_block_forward.1} parent=11 // pred_check
        %p168 = pneg %p100
      $region22: #{residual_block_forward.1} parent=11 // pred_check_branch
        %170 = sbr.rel (%p168) target = $region24
      $region23: #{residual_block_forward.1} parent=11 // pred_region
        _
      $region24: #{residual_block_forward.1} parent=11 // pred_fallthru
        _
      // Predicated region
      $region25: #{residual_block_forward.1} parent=11 // pred_check
        %p171 = pneg %p121
      $region26: #{residual_block_forward.1} parent=11 // pred_check_branch
        %173 = sbr.rel (%p171) target = $region28
      $region27: #{residual_block_forward.1} parent=11 // pred_region
        _
      $region28: #{residual_block_forward.1} parent=11 // pred_fallthru
        _
    $region12: #{residual_block_forward.1} parent=5 // pred_fallthru
      _
    %p174 = scmp.lt.s32.totalorder %s11, 2
    // Predicated region
    $region29: #{residual_block_forward.1} parent=5 // pred_check
      %p175 = pneg %p174
    $region30: #{residual_block_forward.1} parent=5 // pred_check_branch
      %177 = sbr.rel (%p175) target = $region32
    $region31: #{residual_block_forward.1} parent=5 // pred_region
      // Predicated region
      $region33: #{residual_block_forward.1} parent=31 // pred_check
        %p178 = pneg %p31
      $region34: #{residual_block_forward.1} parent=31 // pred_check_branch
        %180 = sbr.rel (%p178) target = $region36
      $region35: #{residual_block_forward.1} parent=31 // pred_region
        %p181 = scmp.lt.s32.totalorder %s11, 1
        %s182 = scalar_select %p181, %s11, 1
        %s183 = smul.addr %s182, 20
        %s184 = smul.addr %s183, 4
        %s185 = scalar_lea.vmem %s0, %s184
      $region36: #{residual_block_forward.1} parent=31 // pred_fallthru
        _
    $region32: #{residual_block_forward.1} parent=5 // pred_fallthru
      _
    %p186 = scmp.le.s32.totalorder 1, %s11
    %p187 = scmp.lt.s32.totalorder %s11, 3
    %p188 = pnand %p186, %p187
    %p189 = pneg %p188
    // Predicated region
    $region37: #{residual_block_forward.1} parent=5 // pred_check
      _
    $region38: #{residual_block_forward.1} parent=5 // pred_check_branch
      %191 = sbr.rel (%p188) target = $region40
    $region39: #{residual_block_forward.1} parent=5 // pred_region
      %s192 = ssub.s32 %s11, 1
      %p193 = scmp.lt.s32.totalorder %s16, 1
      %s194 = scalar_select %p193, %s16, 1
      %s195 = smul.addr %s194, 20
      %s196 = smul.addr %s195, 4
      %s197 = scalar_lea.vmem %s0, %s196
      %p198 = pneg %p37
      %p199 = pneg %p34
      %p200 = pneg %p58
      %p201 = pneg %p55
      %p202 = pneg %p79
      %p203 = pneg %p76
      %p204 = pneg %p100
      %p205 = pneg %p97
      %p206 = pneg %p121
      %p207 = pneg %p118
      %p208 = pneg %p147
      %p209 = pneg %p144
      %p210 = scmp.lt.s32.totalorder %s16, 1
      %s211 = scalar_select %p210, %s16, 1
      %s212 = smul.addr %s211, 16
      %s213 = smul.addr %s212, 4
      %s214 = scalar_lea.vmem %s5, %s213
      %p215 = scmp.lt.s32.totalorder %s16, 1
      %s216 = scalar_select %p215, %s16, 1
      %s217 = smul.addr %s216, 20
      %s218 = smul.addr %s217, 4
      %s219 = scalar_lea.vmem %s0, %s218
      %p220 = scmp.lt.s32.totalorder %s16, 1
      %s221 = scalar_select %p220, %s16, 1
      %s222 = smul.addr %s221, 16
      %s223 = smul.addr %s222, 4
      %s224 = scalar_lea.vmem %s5, %s223
      %v226 = vld [vmem:[%s4] sm:$0xff]
      %v228 = vperm.slane %v226, 0
      %v229 = vperm.slane %v226, 1
      %v230 = vperm.slane %v226, 2
      %v231 = vperm.slane %v226, 3
      %v232 = vperm.slane %v226, 4
      %v233 = vperm.slane %v226, 5
      %v234 = vperm.slane %v226, 6
      %v235 = vperm.slane %v226, 7
      %v244 = vld [vmem:[%s3] sm:$0xf]
      %v245 = vld [vmem:[%s3 + $0x4] sm:$0xf]
      %v246 = vld [vmem:[%s219 + $0x4] sm:$0xff]
      %v247 = vld [vmem:[%s219 + $0xc] sm:$0xff]
      %v248 = vld [vmem:[%s219 + $0x14] sm:$0xff]
      %v249 = vld [vmem:[%s219 + $0x1c] sm:$0xff]
      %v250 = vld [vmem:[%s219 + $0x2c] sm:$0xff]
      %v251 = vld [vmem:[%s219 + $0x34] sm:$0xff]
      %v252 = vld [vmem:[%s219 + $0x3c] sm:$0xff]
      %v253 = vld [vmem:[%s219 + $0x44] sm:$0xff]
      %v256 = vunpack.c.l.b16 %v244
      %v257 = vunpack.c.l.b16 %v245
      %v258 = vpack.c.b16 %v257, %v256
      %v267 = vunpack.c.l.b16 %v246
      %v268 = vunpack.c.h.b16 %v246
      %v269 = vunpack.c.l.b16 %v247
      %v270 = vunpack.c.h.b16 %v247
      %v271 = vunpack.c.l.b16 %v248
      %v272 = vunpack.c.h.b16 %v248
      %v273 = vunpack.c.l.b16 %v249
      %v274 = vunpack.c.h.b16 %v249
      %v275 = vunpack.c.l.b16 %v250
      %v276 = vunpack.c.h.b16 %v250
      %v277 = vunpack.c.l.b16 %v251
      %v278 = vunpack.c.h.b16 %v251
      %v279 = vunpack.c.l.b16 %v252
      %v280 = vunpack.c.h.b16 %v252
      %v281 = vunpack.c.l.b16 %v253
      %v282 = vunpack.c.h.b16 %v253
      %v283 = vpack.c.b16 %v275, %v267
      %v284 = vpack.c.b16 %v276, %v268
      %v285 = vpack.c.b16 %v277, %v269
      %v286 = vpack.c.b16 %v278, %v270
      %v287 = vpack.c.b16 %v279, %v271
      %v288 = vpack.c.b16 %v280, %v272
      %v289 = vpack.c.b16 %v281, %v273
      %v290 = vpack.c.b16 %v282, %v274
      %vm299 = vcmask 130048
      %v301 = vsel %vm299, %v258, 0
      %303 = vmatpush.bf16.msra.mxu0 0
      %304 = vmatpush.bf16.msra.mxu0 0
      %305 = vmatpush.bf16.msra.mxu0 0
      %306 = vmatpush.bf16.msra.mxu0 0
      %307 = vmatpush.bf16.msra.mxu0 0
      %308 = vmatpush.bf16.msra.mxu0 0
      %309 = vmatpush.bf16.msra.mxu0 0
      %310 = vmatpush.bf16.msra.mxu0 %v283
      %311 = vmatmul.bf16.gmra.mxu0 %v301
      %v312 = vpop.f32.mrf.mxu0
      %v313 = vadd.f32 0.0, %v312
      %v314 = vpop.f32.mrf.mxu0
      %v315 = vadd.f32 0.0, %v314
      %316 = vdwg.mxu0
      %317 = vmatpush.bf16.msra.mxu0 0
      %318 = vmatpush.bf16.msra.mxu0 0
      %319 = vmatpush.bf16.msra.mxu0 0
      %320 = vmatpush.bf16.msra.mxu0 0
      %321 = vmatpush.bf16.msra.mxu0 0
      %322 = vmatpush.bf16.msra.mxu0 0
      %323 = vmatpush.bf16.msra.mxu0 0
      %324 = vmatpush.bf16.msra.mxu0 %v284
      %325 = vmatmul.bf16.gmra.mxu0 %v301
      %v326 = vpop.f32.mrf.mxu0
      %v327 = vadd.f32 0.0, %v326
      %v328 = vpop.f32.mrf.mxu0
      %v329 = vadd.f32 0.0, %v328
      %330 = vdwg.mxu0
      %331 = vmatpush.bf16.msra.mxu0 0
      %332 = vmatpush.bf16.msra.mxu0 0
      %333 = vmatpush.bf16.msra.mxu0 0
      %334 = vmatpush.bf16.msra.mxu0 0
      %335 = vmatpush.bf16.msra.mxu0 0
      %336 = vmatpush.bf16.msra.mxu0 0
      %337 = vmatpush.bf16.msra.mxu0 0
      %338 = vmatpush.bf16.msra.mxu0 %v285
      %339 = vmatmul.bf16.gmra.mxu0 %v301
      %v340 = vpop.f32.mrf.mxu0
      %v341 = vadd.f32 0.0, %v340
      %v342 = vpop.f32.mrf.mxu0
      %v343 = vadd.f32 0.0, %v342
      %344 = vdwg.mxu0
      %345 = vmatpush.bf16.msra.mxu0 0
      %346 = vmatpush.bf16.msra.mxu0 0
      %347 = vmatpush.bf16.msra.mxu0 0
      %348 = vmatpush.bf16.msra.mxu0 0
      %349 = vmatpush.bf16.msra.mxu0 0
      %350 = vmatpush.bf16.msra.mxu0 0
      %351 = vmatpush.bf16.msra.mxu0 0
      %352 = vmatpush.bf16.msra.mxu0 %v286
      %353 = vmatmul.bf16.gmra.mxu0 %v301
      %v354 = vpop.f32.mrf.mxu0
      %v355 = vadd.f32 0.0, %v354
      %v356 = vpop.f32.mrf.mxu0
      %v357 = vadd.f32 0.0, %v356
      %358 = vdwg.mxu0
      %359 = vmatpush.bf16.msra.mxu0 0
      %360 = vmatpush.bf16.msra.mxu0 0
      %361 = vmatpush.bf16.msra.mxu0 0
      %362 = vmatpush.bf16.msra.mxu0 0
      %363 = vmatpush.bf16.msra.mxu0 0
      %364 = vmatpush.bf16.msra.mxu0 0
      %365 = vmatpush.bf16.msra.mxu0 0
      %366 = vmatpush.bf16.msra.mxu0 %v287
      %367 = vmatmul.bf16.gmra.mxu0 %v301
      %v368 = vpop.f32.mrf.mxu0
      %v369 = vadd.f32 0.0, %v368
      %v370 = vpop.f32.mrf.mxu0
      %v371 = vadd.f32 0.0, %v370
      %372 = vdwg.mxu0
      %373 = vmatpush.bf16.msra.mxu0 0
      %374 = vmatpush.bf16.msra.mxu0 0
      %375 = vmatpush.bf16.msra.mxu0 0
      %376 = vmatpush.bf16.msra.mxu0 0
      %377 = vmatpush.bf16.msra.mxu0 0
      %378 = vmatpush.bf16.msra.mxu0 0
      %379 = vmatpush.bf16.msra.mxu0 0
      %380 = vmatpush.bf16.msra.mxu0 %v288
      %381 = vmatmul.bf16.gmra.mxu0 %v301
      %v382 = vpop.f32.mrf.mxu0
      %v383 = vadd.f32 0.0, %v382
      %v384 = vpop.f32.mrf.mxu0
      %v385 = vadd.f32 0.0, %v384
      %386 = vdwg.mxu0
      %387 = vmatpush.bf16.msra.mxu0 0
      %388 = vmatpush.bf16.msra.mxu0 0
      %389 = vmatpush.bf16.msra.mxu0 0
      %390 = vmatpush.bf16.msra.mxu0 0
      %391 = vmatpush.bf16.msra.mxu0 0
      %392 = vmatpush.bf16.msra.mxu0 0
      %393 = vmatpush.bf16.msra.mxu0 0
      %394 = vmatpush.bf16.msra.mxu0 %v289
      %395 = vmatmul.bf16.gmra.mxu0 %v301
      %v396 = vpop.f32.mrf.mxu0
      %v397 = vadd.f32 0.0, %v396
      %v398 = vpop.f32.mrf.mxu0
      %v399 = vadd.f32 0.0, %v398
      %400 = vdwg.mxu0
      %401 = vmatpush.bf16.msra.mxu0 0
      %402 = vmatpush.bf16.msra.mxu0 0
      %403 = vmatpush.bf16.msra.mxu0 0
      %404 = vmatpush.bf16.msra.mxu0 0
      %405 = vmatpush.bf16.msra.mxu0 0
      %406 = vmatpush.bf16.msra.mxu0 0
      %407 = vmatpush.bf16.msra.mxu0 0
      %408 = vmatpush.bf16.msra.mxu0 %v290
      %409 = vmatmul.bf16.gmra.mxu0 %v301
      %v410 = vpop.f32.mrf.mxu0
      %v411 = vadd.f32 0.0, %v410
      %v412 = vpop.f32.mrf.mxu0
      %v413 = vadd.f32 0.0, %v412
      %414 = vdwg.mxu0
      %v415 = vld [vmem:[%s219] sm:$0xff]
      %v416 = vld [vmem:[%s219 + $0x8] sm:$0xff]
      %v417 = vld [vmem:[%s219 + $0x10] sm:$0xff]
      %v418 = vld [vmem:[%s219 + $0x18] sm:$0xff]
      %v419 = vld [vmem:[%s219 + $0x20] sm:$0xf]
      %v420 = vld [vmem:[%s219 + $0x28] sm:$0xff]
      %v421 = vld [vmem:[%s219 + $0x30] sm:$0xff]
      %v422 = vld [vmem:[%s219 + $0x38] sm:$0xff]
      %v423 = vld [vmem:[%s219 + $0x40] sm:$0xff]
      %v424 = vld [vmem:[%s219 + $0x48] sm:$0xf]
      %435 = vrot.lane.b32.xlu0 %v415, 111
      %v436 = vpop.permute.xlu0 %435
      %437 = vrot.lane.b32.xlu0 %v416, 111
      %v438 = vpop.permute.xlu0 %437
      %439 = vrot.lane.b32.xlu0 %v417, 111
      %v440 = vpop.permute.xlu0 %439
      %441 = vrot.lane.b32.xlu0 %v418, 111
      %v442 = vpop.permute.xlu0 %441
      %443 = vrot.lane.b32.xlu0 %v419, 111
      %v444 = vpop.permute.xlu0 %443
      %445 = vrot.lane.b32.xlu0 %v420, 111
      %v446 = vpop.permute.xlu0 %445
      %447 = vrot.lane.b32.xlu0 %v421, 111
      %v448 = vpop.permute.xlu0 %447
      %449 = vrot.lane.b32.xlu0 %v422, 111
      %v450 = vpop.permute.xlu0 %449
      %451 = vrot.lane.b32.xlu0 %v423, 111
      %v452 = vpop.permute.xlu0 %451
      %453 = vrot.lane.b32.xlu0 %v424, 111
      %v454 = vpop.permute.xlu0 %453
      %v455 = vrot.slane %v436, 4
      %v456 = vrot.slane %v438, 4
      %v457 = vrot.slane %v440, 4
      %v458 = vrot.slane %v442, 4
      %v459 = vrot.slane %v444, 4
      %v460 = vrot.slane %v446, 4
      %v461 = vrot.slane %v448, 4
      %v462 = vrot.slane %v450, 4
      %v463 = vrot.slane %v452, 4
      %v464 = vrot.slane %v454, 4
      %vm465 = vcmask 1043456
      %v466 = vsel %vm465, %v455, %v456
      %vm467 = vcmask 908288
      %v468 = vsel %vm467, %v436, %v466
      %v469 = vsel %vm465, %v456, %v457
      %v470 = vsel %vm467, %v438, %v469
      %v471 = vsel %vm465, %v457, %v458
      %v472 = vsel %vm467, %v440, %v471
      %v473 = vsel %vm465, %v458, %v459
      %v474 = vsel %vm467, %v442, %v473
      %v475 = vsel %vm465, %v460, %v461
      %v476 = vsel %vm467, %v446, %v475
      %v477 = vsel %vm465, %v461, %v462
      %v478 = vsel %vm467, %v448, %v477
      %v479 = vsel %vm465, %v462, %v463
      %v480 = vsel %vm467, %v450, %v479
      %v481 = vsel %vm465, %v463, %v464
      %v482 = vsel %vm467, %v452, %v481
      %491 = vst [vmem:[#allocation2] sm:$0xff] %v468
      %492 = vst [vmem:[#allocation2 + $0x8] sm:$0xff] %v470
      %493 = vst [vmem:[#allocation2 + $0x10] sm:$0xff] %v472
      %494 = vst [vmem:[#allocation2 + $0x18] sm:$0xff] %v474
      %495 = vst [vmem:[#allocation2 + $0x20] sm:$0xff] %v476
      %496 = vst [vmem:[#allocation2 + $0x28] sm:$0xff] %v478
      %497 = vst [vmem:[#allocation2 + $0x30] sm:$0xff] %v480
      %498 = vst [vmem:[#allocation2 + $0x38] sm:$0xff] %v482
      %v499 = vld [vmem:[%s219] sm:$0xff]
      %v500 = vld [vmem:[%s219 + $0x8] sm:$0xff]
      %v501 = vld [vmem:[%s219 + $0x10] sm:$0xff]
      %v502 = vld [vmem:[%s219 + $0x18] sm:$0xff]
      %v503 = vld [vmem:[%s219 + $0x20] sm:$0xf]
      %v504 = vld [vmem:[%s219 + $0x28] sm:$0xff]
      %v505 = vld [vmem:[%s219 + $0x30] sm:$0xff]
      %v506 = vld [vmem:[%s219 + $0x38] sm:$0xff]
      %v507 = vld [vmem:[%s219 + $0x40] sm:$0xff]
      %v508 = vld [vmem:[%s219 + $0x48] sm:$0xf]
      %519 = vrot.lane.b32.xlu0 %v499, 110
      %v520 = vpop.permute.xlu0 %519
      %521 = vrot.lane.b32.xlu0 %v500, 110
      %v522 = vpop.permute.xlu0 %521
      %523 = vrot.lane.b32.xlu0 %v501, 110
      %v524 = vpop.permute.xlu0 %523
      %525 = vrot.lane.b32.xlu0 %v502, 110
      %v526 = vpop.permute.xlu0 %525
      %527 = vrot.lane.b32.xlu0 %v503, 110
      %v528 = vpop.permute.xlu0 %527
      %529 = vrot.lane.b32.xlu0 %v504, 110
      %v530 = vpop.permute.xlu0 %529
      %531 = vrot.lane.b32.xlu0 %v505, 110
      %v532 = vpop.permute.xlu0 %531
      %533 = vrot.lane.b32.xlu0 %v506, 110
      %v534 = vpop.permute.xlu0 %533
      %535 = vrot.lane.b32.xlu0 %v507, 110
      %v536 = vpop.permute.xlu0 %535
      %537 = vrot.lane.b32.xlu0 %v508, 110
      %v538 = vpop.permute.xlu0 %537
      %v539 = vrot.slane %v520, 4
      %v540 = vrot.slane %v522, 4
      %v541 = vrot.slane %v524, 4
      %v542 = vrot.slane %v526, 4
      %v543 = vrot.slane %v528, 4
      %v544 = vrot.slane %v530, 4
      %v545 = vrot.slane %v532, 4
      %v546 = vrot.slane %v534, 4
      %v547 = vrot.slane %v536, 4
      %v548 = vrot.slane %v538, 4
      %v549 = vsel %vm465, %v539, %v540
      %vm550 = vcmask 900096
      %v551 = vsel %vm550, %v520, %v549
      %v552 = vsel %vm465, %v540, %v541
      %v553 = vsel %vm550, %v522, %v552
      %v554 = vsel %vm465, %v541, %v542
      %v555 = vsel %vm550, %v524, %v554
      %v556 = vsel %vm465, %v542, %v543
      %v557 = vsel %vm550, %v526, %v556
      %v558 = vsel %vm465, %v544, %v545
      %v559 = vsel %vm550, %v530, %v558
      %v560 = vsel %vm465, %v545, %v546
      %v561 = vsel %vm550, %v532, %v560
      %v562 = vsel %vm465, %v546, %v547
      %v563 = vsel %vm550, %v534, %v562
      %v564 = vsel %vm465, %v547, %v548
      %v565 = vsel %vm550, %v536, %v564
      %574 = vst [vmem:[#allocation2 + $0x40] sm:$0xff] %v551
      %575 = vst [vmem:[#allocation2 + $0x48] sm:$0xff] %v553
      %576 = vst [vmem:[#allocation2 + $0x50] sm:$0xff] %v555
      %577 = vst [vmem:[#allocation2 + $0x58] sm:$0xff] %v557
      %578 = vst [vmem:[#allocation2 + $0x60] sm:$0xff] %v559
      %579 = vst [vmem:[#allocation2 + $0x68] sm:$0xff] %v561
      %580 = vst [vmem:[#allocation2 + $0x70] sm:$0xff] %v563
      %581 = vst [vmem:[#allocation2 + $0x78] sm:$0xff] %v565
      %v582 = vld [vmem:[%s219] sm:$0xff]
      %v583 = vld [vmem:[%s219 + $0x8] sm:$0xff]
      %v584 = vld [vmem:[%s219 + $0x10] sm:$0xff]
      %v585 = vld [vmem:[%s219 + $0x18] sm:$0xff]
      %v586 = vld [vmem:[%s219 + $0x20] sm:$0xf]
      %v587 = vld [vmem:[%s219 + $0x28] sm:$0xff]
      %v588 = vld [vmem:[%s219 + $0x30] sm:$0xff]
      %v589 = vld [vmem:[%s219 + $0x38] sm:$0xff]
      %v590 = vld [vmem:[%s219 + $0x40] sm:$0xff]
      %v591 = vld [vmem:[%s219 + $0x48] sm:$0xf]
      %602 = vrot.lane.b32.xlu0 %v582, 109
      %v603 = vpop.permute.xlu0 %602
      %604 = vrot.lane.b32.xlu0 %v583, 109
      %v605 = vpop.permute.xlu0 %604
      %606 = vrot.lane.b32.xlu0 %v584, 109
      %v607 = vpop.permute.xlu0 %606
      %608 = vrot.lane.b32.xlu0 %v585, 109
      %v609 = vpop.permute.xlu0 %608
      %610 = vrot.lane.b32.xlu0 %v586, 109
      %v611 = vpop.permute.xlu0 %610
      %612 = vrot.lane.b32.xlu0 %v587, 109
      %v613 = vpop.permute.xlu0 %612
      %614 = vrot.lane.b32.xlu0 %v588, 109
      %v615 = vpop.permute.xlu0 %614
      %616 = vrot.lane.b32.xlu0 %v589, 109
      %v617 = vpop.permute.xlu0 %616
      %618 = vrot.lane.b32.xlu0 %v590, 109
      %v619 = vpop.permute.xlu0 %618
      %620 = vrot.lane.b32.xlu0 %v591, 109
      %v621 = vpop.permute.xlu0 %620
      %v622 = vrot.slane %v603, 4
      %v623 = vrot.slane %v605, 4
      %v624 = vrot.slane %v607, 4
      %v625 = vrot.slane %v609, 4
      %v626 = vrot.slane %v611, 4
      %v627 = vrot.slane %v613, 4
      %v628 = vrot.slane %v615, 4
      %v629 = vrot.slane %v617, 4
      %v630 = vrot.slane %v619, 4
      %v631 = vrot.slane %v621, 4
      %v632 = vsel %vm465, %v622, %v623
      %vm633 = vcmask 891904
      %v634 = vsel %vm633, %v603, %v632
      %v635 = vsel %vm465, %v623, %v624
      %v636 = vsel %vm633, %v605, %v635
      %v637 = vsel %vm465, %v624, %v625
      %v638 = vsel %vm633, %v607, %v637
      %v639 = vsel %vm465, %v625, %v626
      %v640 = vsel %vm633, %v609, %v639
      %v641 = vsel %vm465, %v627, %v628
      %v642 = vsel %vm633, %v613, %v641
      %v643 = vsel %vm465, %v628, %v629
      %v644 = vsel %vm633, %v615, %v643
      %v645 = vsel %vm465, %v629, %v630
      %v646 = vsel %vm633, %v617, %v645
      %v647 = vsel %vm465, %v630, %v631
      %v648 = vsel %vm633, %v619, %v647
      %657 = vst [vmem:[#allocation2 + $0x80] sm:$0xff] %v634
      %658 = vst [vmem:[#allocation2 + $0x88] sm:$0xff] %v636
      %659 = vst [vmem:[#allocation2 + $0x90] sm:$0xff] %v638
      %660 = vst [vmem:[#allocation2 + $0x98] sm:$0xff] %v640
      %661 = vst [vmem:[#allocation2 + $0xa0] sm:$0xff] %v642
      %662 = vst [vmem:[#allocation2 + $0xa8] sm:$0xff] %v644
      %663 = vst [vmem:[#allocation2 + $0xb0] sm:$0xff] %v646
      %664 = vst [vmem:[#allocation2 + $0xb8] sm:$0xff] %v648
      %v665 = vld [vmem:[%s219] sm:$0xff]
      %v666 = vld [vmem:[%s219 + $0x8] sm:$0xff]
      %v667 = vld [vmem:[%s219 + $0x10] sm:$0xff]
      %v668 = vld [vmem:[%s219 + $0x18] sm:$0xff]
      %v669 = vld [vmem:[%s219 + $0x20] sm:$0xf]
      %v670 = vld [vmem:[%s219 + $0x28] sm:$0xff]
      %v671 = vld [vmem:[%s219 + $0x30] sm:$0xff]
      %v672 = vld [vmem:[%s219 + $0x38] sm:$0xff]
      %v673 = vld [vmem:[%s219 + $0x40] sm:$0xff]
      %v674 = vld [vmem:[%s219 + $0x48] sm:$0xf]
      %685 = vrot.lane.b32.xlu0 %v665, 101
      %v686 = vpop.permute.xlu0 %685
      %687 = vrot.lane.b32.xlu0 %v666, 101
      %v688 = vpop.permute.xlu0 %687
      %689 = vrot.lane.b32.xlu0 %v667, 101
      %v690 = vpop.permute.xlu0 %689
      %691 = vrot.lane.b32.xlu0 %v668, 101
      %v692 = vpop.permute.xlu0 %691
      %693 = vrot.lane.b32.xlu0 %v669, 101
      %v694 = vpop.permute.xlu0 %693
      %695 = vrot.lane.b32.xlu0 %v670, 101
      %v696 = vpop.permute.xlu0 %695
      %697 = vrot.lane.b32.xlu0 %v671, 101
      %v698 = vpop.permute.xlu0 %697
      %699 = vrot.lane.b32.xlu0 %v672, 101
      %v700 = vpop.permute.xlu0 %699
      %701 = vrot.lane.b32.xlu0 %v673, 101
      %v702 = vpop.permute.xlu0 %701
      %703 = vrot.lane.b32.xlu0 %v674, 101
      %v704 = vpop.permute.xlu0 %703
      %v705 = vrot.slane %v686, 4
      %v706 = vrot.slane %v688, 4
      %v707 = vrot.slane %v690, 4
      %v708 = vrot.slane %v692, 4
      %v709 = vrot.slane %v694, 4
      %v710 = vrot.slane %v696, 4
      %v711 = vrot.slane %v698, 4
      %v712 = vrot.slane %v700, 4
      %v713 = vrot.slane %v702, 4
      %v714 = vrot.slane %v704, 4
      %v715 = vsel %vm465, %v705, %v706
      %vm716 = vcmask 826368
      %v717 = vsel %vm716, %v686, %v715
      %v718 = vsel %vm465, %v706, %v707
      %v719 = vsel %vm716, %v688, %v718
      %v720 = vsel %vm465, %v707, %v708
      %v721 = vsel %vm716, %v690, %v720
      %v722 = vsel %vm465, %v708, %v709
      %v723 = vsel %vm716, %v692, %v722
      %v724 = vsel %vm465, %v710, %v711
      %v725 = vsel %vm716, %v696, %v724
      %v726 = vsel %vm465, %v711, %v712
      %v727 = vsel %vm716, %v698, %v726
      %v728 = vsel %vm465, %v712, %v713
      %v729 = vsel %vm716, %v700, %v728
      %v730 = vsel %vm465, %v713, %v714
      %v731 = vsel %vm716, %v702, %v730
      %740 = vst [vmem:[#allocation2 + $0xc0] sm:$0xff] %v717
      %741 = vst [vmem:[#allocation2 + $0xc8] sm:$0xff] %v719
      %742 = vst [vmem:[#allocation2 + $0xd0] sm:$0xff] %v721
      %743 = vst [vmem:[#allocation2 + $0xd8] sm:$0xff] %v723
      %744 = vst [vmem:[#allocation2 + $0xe0] sm:$0xff] %v725
      %745 = vst [vmem:[#allocation2 + $0xe8] sm:$0xff] %v727
      %746 = vst [vmem:[#allocation2 + $0xf0] sm:$0xff] %v729
      %747 = vst [vmem:[#allocation2 + $0xf8] sm:$0xff] %v731
      %v748 = vld [vmem:[%s219] sm:$0xff]
      %v749 = vld [vmem:[%s219 + $0x8] sm:$0xff]
      %v750 = vld [vmem:[%s219 + $0x10] sm:$0xff]
      %v751 = vld [vmem:[%s219 + $0x18] sm:$0xff]
      %v752 = vld [vmem:[%s219 + $0x20] sm:$0xf]
      %v753 = vld [vmem:[%s219 + $0x28] sm:$0xff]
      %v754 = vld [vmem:[%s219 + $0x30] sm:$0xff]
      %v755 = vld [vmem:[%s219 + $0x38] sm:$0xff]
      %v756 = vld [vmem:[%s219 + $0x40] sm:$0xff]
      %v757 = vld [vmem:[%s219 + $0x48] sm:$0xf]
      %768 = vrot.lane.b32.xlu0 %v748, 100
      %v769 = vpop.permute.xlu0 %768
      %770 = vrot.lane.b32.xlu0 %v749, 100
      %v771 = vpop.permute.xlu0 %770
      %772 = vrot.lane.b32.xlu0 %v750, 100
      %v773 = vpop.permute.xlu0 %772
      %774 = vrot.lane.b32.xlu0 %v751, 100
      %v775 = vpop.permute.xlu0 %774
      %776 = vrot.lane.b32.xlu0 %v752, 100
      %v777 = vpop.permute.xlu0 %776
      %778 = vrot.lane.b32.xlu0 %v753, 100
      %v779 = vpop.permute.xlu0 %778
      %780 = vrot.lane.b32.xlu0 %v754, 100
      %v781 = vpop.permute.xlu0 %780
      %782 = vrot.lane.b32.xlu0 %v755, 100
      %v783 = vpop.permute.xlu0 %782
      %784 = vrot.lane.b32.xlu0 %v756, 100
      %v785 = vpop.permute.xlu0 %784
      %786 = vrot.lane.b32.xlu0 %v757, 100
      %v787 = vpop.permute.xlu0 %786
      %v788 = vrot.slane %v769, 4
      %v789 = vrot.slane %v771, 4
      %v790 = vrot.slane %v773, 4
      %v791 = vrot.slane %v775, 4
      %v792 = vrot.slane %v777, 4
      %v793 = vrot.slane %v779, 4
      %v794 = vrot.slane %v781, 4
      %v795 = vrot.slane %v783, 4
      %v796 = vrot.slane %v785, 4
      %v797 = vrot.slane %v787, 4
      %v798 = vsel %vm465, %v788, %v789
      %vm799 = vcmask 818176
      %v800 = vsel %vm799, %v769, %v798
      %v801 = vsel %vm465, %v789, %v790
      %v802 = vsel %vm799, %v771, %v801
      %v803 = vsel %vm465, %v790, %v791
      %v804 = vsel %vm799, %v773, %v803
      %v805 = vsel %vm465, %v791, %v792
      %v806 = vsel %vm799, %v775, %v805
      %v807 = vsel %vm465, %v793, %v794
      %v808 = vsel %vm799, %v779, %v807
      %v809 = vsel %vm465, %v794, %v795
      %v810 = vsel %vm799, %v781, %v809
      %v811 = vsel %vm465, %v795, %v796
      %v812 = vsel %vm799, %v783, %v811
      %v813 = vsel %vm465, %v796, %v797
      %v814 = vsel %vm799, %v785, %v813
      %823 = vst [vmem:[#allocation2 + $0x100] sm:$0xff] %v800
      %824 = vst [vmem:[#allocation2 + $0x108] sm:$0xff] %v802
      %825 = vst [vmem:[#allocation2 + $0x110] sm:$0xff] %v804
      %826 = vst [vmem:[#allocation2 + $0x118] sm:$0xff] %v806
      %827 = vst [vmem:[#allocation2 + $0x120] sm:$0xff] %v808
      %828 = vst [vmem:[#allocation2 + $0x128] sm:$0xff] %v810
      %829 = vst [vmem:[#allocation2 + $0x130] sm:$0xff] %v812
      %830 = vst [vmem:[#allocation2 + $0x138] sm:$0xff] %v814
      %v831 = vld [vmem:[%s219] sm:$0xff]
      %v832 = vld [vmem:[%s219 + $0x8] sm:$0xff]
      %v833 = vld [vmem:[%s219 + $0x10] sm:$0xff]
      %v834 = vld [vmem:[%s219 + $0x18] sm:$0xff]
      %v835 = vld [vmem:[%s219 + $0x20] sm:$0xf]
      %v836 = vld [vmem:[%s219 + $0x28] sm:$0xff]
      %v837 = vld [vmem:[%s219 + $0x30] sm:$0xff]
      %v838 = vld [vmem:[%s219 + $0x38] sm:$0xff]
      %v839 = vld [vmem:[%s219 + $0x40] sm:$0xff]
      %v840 = vld [vmem:[%s219 + $0x48] sm:$0xf]
      %851 = vrot.lane.b32.xlu0 %v831, 99
      %v852 = vpop.permute.xlu0 %851
      %853 = vrot.lane.b32.xlu0 %v832, 99
      %v854 = vpop.permute.xlu0 %853
      %855 = vrot.lane.b32.xlu0 %v833, 99
      %v856 = vpop.permute.xlu0 %855
      %857 = vrot.lane.b32.xlu0 %v834, 99
      %v858 = vpop.permute.xlu0 %857
      %859 = vrot.lane.b32.xlu0 %v835, 99
      %v860 = vpop.permute.xlu0 %859
      %861 = vrot.lane.b32.xlu0 %v836, 99
      %v862 = vpop.permute.xlu0 %861
      %863 = vrot.lane.b32.xlu0 %v837, 99
      %v864 = vpop.permute.xlu0 %863
      %865 = vrot.lane.b32.xlu0 %v838, 99
      %v866 = vpop.permute.xlu0 %865
      %867 = vrot.lane.b32.xlu0 %v839, 99
      %v868 = vpop.permute.xlu0 %867
      %869 = vrot.lane.b32.xlu0 %v840, 99
      %v870 = vpop.permute.xlu0 %869
      %v871 = vrot.slane %v852, 4
      %v872 = vrot.slane %v854, 4
      %v873 = vrot.slane %v856, 4
      %v874 = vrot.slane %v858, 4
      %v875 = vrot.slane %v860, 4
      %v876 = vrot.slane %v862, 4
      %v877 = vrot.slane %v864, 4
      %v878 = vrot.slane %v866, 4
      %v879 = vrot.slane %v868, 4
      %v880 = vrot.slane %v870, 4
      %v881 = vsel %vm465, %v871, %v872
      %vm882 = vcmask 809984
      %v883 = vsel %vm882, %v852, %v881
      %v884 = vsel %vm465, %v872, %v873
      %v885 = vsel %vm882, %v854, %v884
      %v886 = vsel %vm465, %v873, %v874
      %v887 = vsel %vm882, %v856, %v886
      %v888 = vsel %vm465, %v874, %v875
      %v889 = vsel %vm882, %v858, %v888
      %v890 = vsel %vm465, %v876, %v877
      %v891 = vsel %vm882, %v862, %v890
      %v892 = vsel %vm465, %v877, %v878
      %v893 = vsel %vm882, %v864, %v892
      %v894 = vsel %vm465, %v878, %v879
      %v895 = vsel %vm882, %v866, %v894
      %v896 = vsel %vm465, %v879, %v880
      %v897 = vsel %vm882, %v868, %v896
      %906 = vst [vmem:[#allocation2 + $0x140] sm:$0xff] %v883
      %907 = vst [vmem:[#allocation2 + $0x148] sm:$0xff] %v885
      %908 = vst [vmem:[#allocation2 + $0x150] sm:$0xff] %v887
      %909 = vst [vmem:[#allocation2 + $0x158] sm:$0xff] %v889
      %910 = vst [vmem:[#allocation2 + $0x160] sm:$0xff] %v891
      %911 = vst [vmem:[#allocation2 + $0x168] sm:$0xff] %v893
      %912 = vst [vmem:[#allocation2 + $0x170] sm:$0xff] %v895
      %913 = vst [vmem:[#allocation2 + $0x178] sm:$0xff] %v897
      %v914 = vld [vmem:[%s219] sm:$0xff]
      %v915 = vld [vmem:[%s219 + $0x8] sm:$0xff]
      %v916 = vld [vmem:[%s219 + $0x10] sm:$0xff]
      %v917 = vld [vmem:[%s219 + $0x18] sm:$0xff]
      %v918 = vld [vmem:[%s219 + $0x20] sm:$0xf]
      %v919 = vld [vmem:[%s219 + $0x28] sm:$0xff]
      %v920 = vld [vmem:[%s219 + $0x30] sm:$0xff]
      %v921 = vld [vmem:[%s219 + $0x38] sm:$0xff]
      %v922 = vld [vmem:[%s219 + $0x40] sm:$0xff]
      %v923 = vld [vmem:[%s219 + $0x48] sm:$0xf]
      %934 = vrot.lane.b32.xlu0 %v914, 91
      %v935 = vpop.permute.xlu0 %934
      %936 = vrot.lane.b32.xlu0 %v915, 91
      %v937 = vpop.permute.xlu0 %936
      %938 = vrot.lane.b32.xlu0 %v916, 91
      %v939 = vpop.permute.xlu0 %938
      %940 = vrot.lane.b32.xlu0 %v917, 91
      %v941 = vpop.permute.xlu0 %940
      %942 = vrot.lane.b32.xlu0 %v918, 91
      %v943 = vpop.permute.xlu0 %942
      %944 = vrot.lane.b32.xlu0 %v919, 91
      %v945 = vpop.permute.xlu0 %944
      %946 = vrot.lane.b32.xlu0 %v920, 91
      %v947 = vpop.permute.xlu0 %946
      %948 = vrot.lane.b32.xlu0 %v921, 91
      %v949 = vpop.permute.xlu0 %948
      %950 = vrot.lane.b32.xlu0 %v922, 91
      %v951 = vpop.permute.xlu0 %950
      %952 = vrot.lane.b32.xlu0 %v923, 91
      %v953 = vpop.permute.xlu0 %952
      %v954 = vrot.slane %v935, 4
      %v955 = vrot.slane %v937, 4
      %v956 = vrot.slane %v939, 4
      %v957 = vrot.slane %v941, 4
      %v958 = vrot.slane %v943, 4
      %v959 = vrot.slane %v945, 4
      %v960 = vrot.slane %v947, 4
      %v961 = vrot.slane %v949, 4
      %v962 = vrot.slane %v951, 4
      %v963 = vrot.slane %v953, 4
      %v964 = vsel %vm465, %v954, %v955
      %vm965 = vcmask 744448
      %v966 = vsel %vm965, %v935, %v964
      %v967 = vsel %vm465, %v955, %v956
      %v968 = vsel %vm965, %v937, %v967
      %v969 = vsel %vm465, %v956, %v957
      %v970 = vsel %vm965, %v939, %v969
      %v971 = vsel %vm465, %v957, %v958
      %v972 = vsel %vm965, %v941, %v971
      %v973 = vsel %vm465, %v959, %v960
      %v974 = vsel %vm965, %v945, %v973
      %v975 = vsel %vm465, %v960, %v961
      %v976 = vsel %vm965, %v947, %v975
      %v977 = vsel %vm465, %v961, %v962
      %v978 = vsel %vm965, %v949, %v977
      %v979 = vsel %vm465, %v962, %v963
      %v980 = vsel %vm965, %v951, %v979
      %989 = vst [vmem:[#allocation2 + $0x180] sm:$0xff] %v966
      %990 = vst [vmem:[#allocation2 + $0x188] sm:$0xff] %v968
      %991 = vst [vmem:[#allocation2 + $0x190] sm:$0xff] %v970
      %992 = vst [vmem:[#allocation2 + $0x198] sm:$0xff] %v972
      %993 = vst [vmem:[#allocation2 + $0x1a0] sm:$0xff] %v974
      %994 = vst [vmem:[#allocation2 + $0x1a8] sm:$0xff] %v976
      %995 = vst [vmem:[#allocation2 + $0x1b0] sm:$0xff] %v978
      %996 = vst [vmem:[#allocation2 + $0x1b8] sm:$0xff] %v980
      %v997 = vld [vmem:[%s219] sm:$0xff]
      %v998 = vld [vmem:[%s219 + $0x8] sm:$0xff]
      %v999 = vld [vmem:[%s219 + $0x10] sm:$0xff]
      %v1000 = vld [vmem:[%s219 + $0x18] sm:$0xff]
      %v1001 = vld [vmem:[%s219 + $0x20] sm:$0xf]
      %v1002 = vld [vmem:[%s219 + $0x28] sm:$0xff]
      %v1003 = vld [vmem:[%s219 + $0x30] sm:$0xff]
      %v1004 = vld [vmem:[%s219 + $0x38] sm:$0xff]
      %v1005 = vld [vmem:[%s219 + $0x40] sm:$0xff]
      %v1006 = vld [vmem:[%s219 + $0x48] sm:$0xf]
      %1017 = vrot.lane.b32.xlu0 %v997, 90
      %v1018 = vpop.permute.xlu0 %1017
      %1019 = vrot.lane.b32.xlu0 %v998, 90
      %v1020 = vpop.permute.xlu0 %1019
      %1021 = vrot.lane.b32.xlu0 %v999, 90
      %v1022 = vpop.permute.xlu0 %1021
      %1023 = vrot.lane.b32.xlu0 %v1000, 90
      %v1024 = vpop.permute.xlu0 %1023
      %1025 = vrot.lane.b32.xlu0 %v1001, 90
      %v1026 = vpop.permute.xlu0 %1025
      %1027 = vrot.lane.b32.xlu0 %v1002, 90
      %v1028 = vpop.permute.xlu0 %1027
      %1029 = vrot.lane.b32.xlu0 %v1003, 90
      %v1030 = vpop.permute.xlu0 %1029
      %1031 = vrot.lane.b32.xlu0 %v1004, 90
      %v1032 = vpop.permute.xlu0 %1031
      %1033 = vrot.lane.b32.xlu0 %v1005, 90
      %v1034 = vpop.permute.xlu0 %1033
      %1035 = vrot.lane.b32.xlu0 %v1006, 90
      %v1036 = vpop.permute.xlu0 %1035
      %v1037 = vrot.slane %v1018, 4
      %v1038 = vrot.slane %v1020, 4
      %v1039 = vrot.slane %v1022, 4
      %v1040 = vrot.slane %v1024, 4
      %v1041 = vrot.slane %v1026, 4
      %v1042 = vrot.slane %v1028, 4
      %v1043 = vrot.slane %v1030, 4
      %v1044 = vrot.slane %v1032, 4
      %v1045 = vrot.slane %v1034, 4
      %v1046 = vrot.slane %v1036, 4
      %v1047 = vsel %vm465, %v1037, %v1038
      %vm1048 = vcmask 736256
      %v1049 = vsel %vm1048, %v1018, %v1047
      %v1050 = vsel %vm465, %v1038, %v1039
      %v1051 = vsel %vm1048, %v1020, %v1050
      %v1052 = vsel %vm465, %v1039, %v1040
      %v1053 = vsel %vm1048, %v1022, %v1052
      %v1054 = vsel %vm465, %v1040, %v1041
      %v1055 = vsel %vm1048, %v1024, %v1054
      %v1056 = vsel %vm465, %v1042, %v1043
      %v1057 = vsel %vm1048, %v1028, %v1056
      %v1058 = vsel %vm465, %v1043, %v1044
      %v1059 = vsel %vm1048, %v1030, %v1058
      %v1060 = vsel %vm465, %v1044, %v1045
      %v1061 = vsel %vm1048, %v1032, %v1060
      %v1062 = vsel %vm465, %v1045, %v1046
      %v1063 = vsel %vm1048, %v1034, %v1062
      %1072 = vst [vmem:[#allocation2 + $0x1c0] sm:$0xff] %v1049
      %1073 = vst [vmem:[#allocation2 + $0x1c8] sm:$0xff] %v1051
      %1074 = vst [vmem:[#allocation2 + $0x1d0] sm:$0xff] %v1053
      %1075 = vst [vmem:[#allocation2 + $0x1d8] sm:$0xff] %v1055
      %1076 = vst [vmem:[#allocation2 + $0x1e0] sm:$0xff] %v1057
      %1077 = vst [vmem:[#allocation2 + $0x1e8] sm:$0xff] %v1059
      %1078 = vst [vmem:[#allocation2 + $0x1f0] sm:$0xff] %v1061
      %1079 = vst [vmem:[#allocation2 + $0x1f8] sm:$0xff] %v1063
      %v1080 = vld [vmem:[%s219] sm:$0xff]
      %v1081 = vld [vmem:[%s219 + $0x8] sm:$0xff]
      %v1082 = vld [vmem:[%s219 + $0x10] sm:$0xff]
      %v1083 = vld [vmem:[%s219 + $0x18] sm:$0xff]
      %v1084 = vld [vmem:[%s219 + $0x20] sm:$0xf]
      %v1085 = vld [vmem:[%s219 + $0x28] sm:$0xff]
      %v1086 = vld [vmem:[%s219 + $0x30] sm:$0xff]
      %v1087 = vld [vmem:[%s219 + $0x38] sm:$0xff]
      %v1088 = vld [vmem:[%s219 + $0x40] sm:$0xff]
      %v1089 = vld [vmem:[%s219 + $0x48] sm:$0xf]
      %1100 = vrot.lane.b32.xlu0 %v1080, 89
      %v1101 = vpop.permute.xlu0 %1100
      %1102 = vrot.lane.b32.xlu0 %v1081, 89
      %v1103 = vpop.permute.xlu0 %1102
      %1104 = vrot.lane.b32.xlu0 %v1082, 89
      %v1105 = vpop.permute.xlu0 %1104
      %1106 = vrot.lane.b32.xlu0 %v1083, 89
      %v1107 = vpop.permute.xlu0 %1106
      %1108 = vrot.lane.b32.xlu0 %v1084, 89
      %v1109 = vpop.permute.xlu0 %1108
      %1110 = vrot.lane.b32.xlu0 %v1085, 89
      %v1111 = vpop.permute.xlu0 %1110
      %1112 = vrot.lane.b32.xlu0 %v1086, 89
      %v1113 = vpop.permute.xlu0 %1112
      %1114 = vrot.lane.b32.xlu0 %v1087, 89
      %v1115 = vpop.permute.xlu0 %1114
      %1116 = vrot.lane.b32.xlu0 %v1088, 89
      %v1117 = vpop.permute.xlu0 %1116
      %1118 = vrot.lane.b32.xlu0 %v1089, 89
      %v1119 = vpop.permute.xlu0 %1118
      %v1120 = vrot.slane %v1101, 4
      %v1121 = vrot.slane %v1103, 4
      %v1122 = vrot.slane %v1105, 4
      %v1123 = vrot.slane %v1107, 4
      %v1124 = vrot.slane %v1109, 4
      %v1125 = vrot.slane %v1111, 4
      %v1126 = vrot.slane %v1113, 4
      %v1127 = vrot.slane %v1115, 4
      %v1128 = vrot.slane %v1117, 4
      %v1129 = vrot.slane %v1119, 4
      %v1130 = vsel %vm465, %v1120, %v1121
      %vm1131 = vcmask 728064
      %v1132 = vsel %vm1131, %v1101, %v1130
      %v1133 = vsel %vm465, %v1121, %v1122
      %v1134 = vsel %vm1131, %v1103, %v1133
      %v1135 = vsel %vm465, %v1122, %v1123
      %v1136 = vsel %vm1131, %v1105, %v1135
      %v1137 = vsel %vm465, %v1123, %v1124
      %v1138 = vsel %vm1131, %v1107, %v1137
      %v1139 = vsel %vm465, %v1125, %v1126
      %v1140 = vsel %vm1131, %v1111, %v1139
      %v1141 = vsel %vm465, %v1126, %v1127
      %v1142 = vsel %vm1131, %v1113, %v1141
      %v1143 = vsel %vm465, %v1127, %v1128
      %v1144 = vsel %vm1131, %v1115, %v1143
      %v1145 = vsel %vm465, %v1128, %v1129
      %v1146 = vsel %vm1131, %v1117, %v1145
      %1155 = vst [vmem:[#allocation2 + $0x200] sm:$0xff] %v1132
      %1156 = vst [vmem:[#allocation2 + $0x208] sm:$0xff] %v1134
      %1157 = vst [vmem:[#allocation2 + $0x210] sm:$0xff] %v1136
      %1158 = vst [vmem:[#allocation2 + $0x218] sm:$0xff] %v1138
      %1159 = vst [vmem:[#allocation2 + $0x220] sm:$0xff] %v1140
      %1160 = vst [vmem:[#allocation2 + $0x228] sm:$0xff] %v1142
      %1161 = vst [vmem:[#allocation2 + $0x230] sm:$0xff] %v1144
      %1162 = vst [vmem:[#allocation2 + $0x238] sm:$0xff] %v1146
      %v1163 = vld [vmem:[%s219] sm:$0xff]
      %v1164 = vld [vmem:[%s219 + $0x8] sm:$0xff]
      %v1165 = vld [vmem:[%s219 + $0x10] sm:$0xff]
      %v1166 = vld [vmem:[%s219 + $0x18] sm:$0xff]
      %v1167 = vld [vmem:[%s219 + $0x20] sm:$0xf]
      %v1168 = vld [vmem:[%s219 + $0x28] sm:$0xff]
      %v1169 = vld [vmem:[%s219 + $0x30] sm:$0xff]
      %v1170 = vld [vmem:[%s219 + $0x38] sm:$0xff]
      %v1171 = vld [vmem:[%s219 + $0x40] sm:$0xff]
      %v1172 = vld [vmem:[%s219 + $0x48] sm:$0xf]
      %1183 = vrot.lane.b32.xlu0 %v1163, 11
      %v1184 = vpop.permute.xlu0 %1183
      %1185 = vrot.lane.b32.xlu0 %v1164, 11
      %v1186 = vpop.permute.xlu0 %1185
      %1187 = vrot.lane.b32.xlu0 %v1165, 11
      %v1188 = vpop.permute.xlu0 %1187
      %1189 = vrot.lane.b32.xlu0 %v1166, 11
      %v1190 = vpop.permute.xlu0 %1189
      %1191 = vrot.lane.b32.xlu0 %v1167, 11
      %v1192 = vpop.permute.xlu0 %1191
      %1193 = vrot.lane.b32.xlu0 %v1168, 11
      %v1194 = vpop.permute.xlu0 %1193
      %1195 = vrot.lane.b32.xlu0 %v1169, 11
      %v1196 = vpop.permute.xlu0 %1195
      %1197 = vrot.lane.b32.xlu0 %v1170, 11
      %v1198 = vpop.permute.xlu0 %1197
      %1199 = vrot.lane.b32.xlu0 %v1171, 11
      %v1200 = vpop.permute.xlu0 %1199
      %1201 = vrot.lane.b32.xlu0 %v1172, 11
      %v1202 = vpop.permute.xlu0 %1201
      %v1203 = vrot.slane %v1184, 4
      %v1204 = vrot.slane %v1186, 4
      %v1205 = vrot.slane %v1188, 4
      %v1206 = vrot.slane %v1190, 4
      %v1207 = vrot.slane %v1192, 4
      %v1208 = vrot.slane %v1194, 4
      %v1209 = vrot.slane %v1196, 4
      %v1210 = vrot.slane %v1198, 4
      %v1211 = vrot.slane %v1200, 4
      %v1212 = vrot.slane %v1202, 4
      %v1213 = vsel %vm465, %v1203, %v1204
      %vm1214 = vcmask 89088
      %v1215 = vsel %vm1214, %v1184, %v1213
      %v1216 = vsel %vm465, %v1204, %v1205
      %v1217 = vsel %vm1214, %v1186, %v1216
      %v1218 = vsel %vm465, %v1205, %v1206
      %v1219 = vsel %vm1214, %v1188, %v1218
      %v1220 = vsel %vm465, %v1206, %v1207
      %v1221 = vsel %vm1214, %v1190, %v1220
      %v1222 = vsel %vm465, %v1208, %v1209
      %v1223 = vsel %vm1214, %v1194, %v1222
      %v1224 = vsel %vm465, %v1209, %v1210
      %v1225 = vsel %vm1214, %v1196, %v1224
      %v1226 = vsel %vm465, %v1210, %v1211
      %v1227 = vsel %vm1214, %v1198, %v1226
      %v1228 = vsel %vm465, %v1211, %v1212
      %v1229 = vsel %vm1214, %v1200, %v1228
      %1238 = vst [vmem:[#allocation2 + $0x240] sm:$0xff] %v1215
      %1239 = vst [vmem:[#allocation2 + $0x248] sm:$0xff] %v1217
      %1240 = vst [vmem:[#allocation2 + $0x250] sm:$0xff] %v1219
      %1241 = vst [vmem:[#allocation2 + $0x258] sm:$0xff] %v1221
      %1242 = vst [vmem:[#allocation2 + $0x260] sm:$0xff] %v1223
      %1243 = vst [vmem:[#allocation2 + $0x268] sm:$0xff] %v1225
      %1244 = vst [vmem:[#allocation2 + $0x270] sm:$0xff] %v1227
      %1245 = vst [vmem:[#allocation2 + $0x278] sm:$0xff] %v1229
      %v1246 = vld [vmem:[%s219] sm:$0xff]
      %v1247 = vld [vmem:[%s219 + $0x8] sm:$0xff]
      %v1248 = vld [vmem:[%s219 + $0x10] sm:$0xff]
      %v1249 = vld [vmem:[%s219 + $0x18] sm:$0xff]
      %v1250 = vld [vmem:[%s219 + $0x20] sm:$0xf]
      %v1251 = vld [vmem:[%s219 + $0x28] sm:$0xff]
      %v1252 = vld [vmem:[%s219 + $0x30] sm:$0xff]
      %v1253 = vld [vmem:[%s219 + $0x38] sm:$0xff]
      %v1254 = vld [vmem:[%s219 + $0x40] sm:$0xff]
      %v1255 = vld [vmem:[%s219 + $0x48] sm:$0xf]
      %1266 = vrot.lane.b32.xlu0 %v1246, 10
      %v1267 = vpop.permute.xlu0 %1266
      %1268 = vrot.lane.b32.xlu0 %v1247, 10
      %v1269 = vpop.permute.xlu0 %1268
      %1270 = vrot.lane.b32.xlu0 %v1248, 10
      %v1271 = vpop.permute.xlu0 %1270
      %1272 = vrot.lane.b32.xlu0 %v1249, 10
      %v1273 = vpop.permute.xlu0 %1272
      %1274 = vrot.lane.b32.xlu0 %v1250, 10
      %v1275 = vpop.permute.xlu0 %1274
      %1276 = vrot.lane.b32.xlu0 %v1251, 10
      %v1277 = vpop.permute.xlu0 %1276
      %1278 = vrot.lane.b32.xlu0 %v1252, 10
      %v1279 = vpop.permute.xlu0 %1278
      %1280 = vrot.lane.b32.xlu0 %v1253, 10
      %v1281 = vpop.permute.xlu0 %1280
      %1282 = vrot.lane.b32.xlu0 %v1254, 10
      %v1283 = vpop.permute.xlu0 %1282
      %1284 = vrot.lane.b32.xlu0 %v1255, 10
      %v1285 = vpop.permute.xlu0 %1284
      %v1286 = vrot.slane %v1267, 4
      %v1287 = vrot.slane %v1269, 4
      %v1288 = vrot.slane %v1271, 4
      %v1289 = vrot.slane %v1273, 4
      %v1290 = vrot.slane %v1275, 4
      %v1291 = vrot.slane %v1277, 4
      %v1292 = vrot.slane %v1279, 4
      %v1293 = vrot.slane %v1281, 4
      %v1294 = vrot.slane %v1283, 4
      %v1295 = vrot.slane %v1285, 4
      %v1296 = vsel %vm465, %v1286, %v1287
      %vm1297 = vcmask 80896
      %v1298 = vsel %vm1297, %v1267, %v1296
      %v1299 = vsel %vm465, %v1287, %v1288
      %v1300 = vsel %vm1297, %v1269, %v1299
      %v1301 = vsel %vm465, %v1288, %v1289
      %v1302 = vsel %vm1297, %v1271, %v1301
      %v1303 = vsel %vm465, %v1289, %v1290
      %v1304 = vsel %vm1297, %v1273, %v1303
      %v1305 = vsel %vm465, %v1291, %v1292
      %v1306 = vsel %vm1297, %v1277, %v1305
      %v1307 = vsel %vm465, %v1292, %v1293
      %v1308 = vsel %vm1297, %v1279, %v1307
      %v1309 = vsel %vm465, %v1293, %v1294
      %v1310 = vsel %vm1297, %v1281, %v1309
      %v1311 = vsel %vm465, %v1294, %v1295
      %v1312 = vsel %vm1297, %v1283, %v1311
      %1321 = vst [vmem:[#allocation2 + $0x280] sm:$0xff] %v1298
      %1322 = vst [vmem:[#allocation2 + $0x288] sm:$0xff] %v1300
      %1323 = vst [vmem:[#allocation2 + $0x290] sm:$0xff] %v1302
      %1324 = vst [vmem:[#allocation2 + $0x298] sm:$0xff] %v1304
      %1325 = vst [vmem:[#allocation2 + $0x2a0] sm:$0xff] %v1306
      %1326 = vst [vmem:[#allocation2 + $0x2a8] sm:$0xff] %v1308
      %1327 = vst [vmem:[#allocation2 + $0x2b0] sm:$0xff] %v1310
      %1328 = vst [vmem:[#allocation2 + $0x2b8] sm:$0xff] %v1312
      %v1329 = vld [vmem:[%s219] sm:$0xff]
      %v1330 = vld [vmem:[%s219 + $0x8] sm:$0xff]
      %v1331 = vld [vmem:[%s219 + $0x10] sm:$0xff]
      %v1332 = vld [vmem:[%s219 + $0x18] sm:$0xff]
      %v1333 = vld [vmem:[%s219 + $0x20] sm:$0xf]
      %v1334 = vld [vmem:[%s219 + $0x28] sm:$0xff]
      %v1335 = vld [vmem:[%s219 + $0x30] sm:$0xff]
      %v1336 = vld [vmem:[%s219 + $0x38] sm:$0xff]
      %v1337 = vld [vmem:[%s219 + $0x40] sm:$0xff]
      %v1338 = vld [vmem:[%s219 + $0x48] sm:$0xf]
      %1349 = vrot.lane.b32.xlu0 %v1329, 9
      %v1350 = vpop.permute.xlu0 %1349
      %1351 = vrot.lane.b32.xlu0 %v1330, 9
      %v1352 = vpop.permute.xlu0 %1351
      %1353 = vrot.lane.b32.xlu0 %v1331, 9
      %v1354 = vpop.permute.xlu0 %1353
      %1355 = vrot.lane.b32.xlu0 %v1332, 9
      %v1356 = vpop.permute.xlu0 %1355
      %1357 = vrot.lane.b32.xlu0 %v1333, 9
      %v1358 = vpop.permute.xlu0 %1357
      %1359 = vrot.lane.b32.xlu0 %v1334, 9
      %v1360 = vpop.permute.xlu0 %1359
      %1361 = vrot.lane.b32.xlu0 %v1335, 9
      %v1362 = vpop.permute.xlu0 %1361
      %1363 = vrot.lane.b32.xlu0 %v1336, 9
      %v1364 = vpop.permute.xlu0 %1363
      %1365 = vrot.lane.b32.xlu0 %v1337, 9
      %v1366 = vpop.permute.xlu0 %1365
      %1367 = vrot.lane.b32.xlu0 %v1338, 9
      %v1368 = vpop.permute.xlu0 %1367
      %v1369 = vrot.slane %v1350, 4
      %v1370 = vrot.slane %v1352, 4
      %v1371 = vrot.slane %v1354, 4
      %v1372 = vrot.slane %v1356, 4
      %v1373 = vrot.slane %v1358, 4
      %v1374 = vrot.slane %v1360, 4
      %v1375 = vrot.slane %v1362, 4
      %v1376 = vrot.slane %v1364, 4
      %v1377 = vrot.slane %v1366, 4
      %v1378 = vrot.slane %v1368, 4
      %v1379 = vsel %vm465, %v1369, %v1370
      %vm1380 = vcmask 72704
      %v1381 = vsel %vm1380, %v1350, %v1379
      %v1382 = vsel %vm465, %v1370, %v1371
      %v1383 = vsel %vm1380, %v1352, %v1382
      %v1384 = vsel %vm465, %v1371, %v1372
      %v1385 = vsel %vm1380, %v1354, %v1384
      %v1386 = vsel %vm465, %v1372, %v1373
      %v1387 = vsel %vm1380, %v1356, %v1386
      %v1388 = vsel %vm465, %v1374, %v1375
      %v1389 = vsel %vm1380, %v1360, %v1388
      %v1390 = vsel %vm465, %v1375, %v1376
      %v1391 = vsel %vm1380, %v1362, %v1390
      %v1392 = vsel %vm465, %v1376, %v1377
      %v1393 = vsel %vm1380, %v1364, %v1392
      %v1394 = vsel %vm465, %v1377, %v1378
      %v1395 = vsel %vm1380, %v1366, %v1394
      %1404 = vst [vmem:[#allocation2 + $0x2c0] sm:$0xff] %v1381
      %1405 = vst [vmem:[#allocation2 + $0x2c8] sm:$0xff] %v1383
      %1406 = vst [vmem:[#allocation2 + $0x2d0] sm:$0xff] %v1385
      %1407 = vst [vmem:[#allocation2 + $0x2d8] sm:$0xff] %v1387
      %1408 = vst [vmem:[#allocation2 + $0x2e0] sm:$0xff] %v1389
      %1409 = vst [vmem:[#allocation2 + $0x2e8] sm:$0xff] %v1391
      %1410 = vst [vmem:[#allocation2 + $0x2f0] sm:$0xff] %v1393
      %1411 = vst [vmem:[#allocation2 + $0x2f8] sm:$0xff] %v1395
      %v1412 = vld [vmem:[%s219] sm:$0xff]
      %v1413 = vld [vmem:[%s219 + $0x8] sm:$0xff]
      %v1414 = vld [vmem:[%s219 + $0x10] sm:$0xff]
      %v1415 = vld [vmem:[%s219 + $0x18] sm:$0xff]
      %v1416 = vld [vmem:[%s219 + $0x20] sm:$0xf]
      %v1417 = vld [vmem:[%s219 + $0x28] sm:$0xff]
      %v1418 = vld [vmem:[%s219 + $0x30] sm:$0xff]
      %v1419 = vld [vmem:[%s219 + $0x38] sm:$0xff]
      %v1420 = vld [vmem:[%s219 + $0x40] sm:$0xff]
      %v1421 = vld [vmem:[%s219 + $0x48] sm:$0xf]
      %1432 = vrot.lane.b32.xlu0 %v1412, 1
      %v1433 = vpop.permute.xlu0 %1432
      %1434 = vrot.lane.b32.xlu0 %v1413, 1
      %v1435 = vpop.permute.xlu0 %1434
      %1436 = vrot.lane.b32.xlu0 %v1414, 1
      %v1437 = vpop.permute.xlu0 %1436
      %1438 = vrot.lane.b32.xlu0 %v1415, 1
      %v1439 = vpop.permute.xlu0 %1438
      %1440 = vrot.lane.b32.xlu0 %v1416, 1
      %v1441 = vpop.permute.xlu0 %1440
      %1442 = vrot.lane.b32.xlu0 %v1417, 1
      %v1443 = vpop.permute.xlu0 %1442
      %1444 = vrot.lane.b32.xlu0 %v1418, 1
      %v1445 = vpop.permute.xlu0 %1444
      %1446 = vrot.lane.b32.xlu0 %v1419, 1
      %v1447 = vpop.permute.xlu0 %1446
      %1448 = vrot.lane.b32.xlu0 %v1420, 1
      %v1449 = vpop.permute.xlu0 %1448
      %1450 = vrot.lane.b32.xlu0 %v1421, 1
      %v1451 = vpop.permute.xlu0 %1450
      %v1452 = vrot.slane %v1433, 4
      %v1453 = vrot.slane %v1435, 4
      %v1454 = vrot.slane %v1437, 4
      %v1455 = vrot.slane %v1439, 4
      %v1456 = vrot.slane %v1441, 4
      %v1457 = vrot.slane %v1443, 4
      %v1458 = vrot.slane %v1445, 4
      %v1459 = vrot.slane %v1447, 4
      %v1460 = vrot.slane %v1449, 4
      %v1461 = vrot.slane %v1451, 4
      %v1462 = vsel %vm465, %v1452, %v1453
      %vm1463 = vcmask 7168
      %v1464 = vsel %vm1463, %v1433, %v1462
      %v1465 = vsel %vm465, %v1453, %v1454
      %v1466 = vsel %vm1463, %v1435, %v1465
      %v1467 = vsel %vm465, %v1454, %v1455
      %v1468 = vsel %vm1463, %v1437, %v1467
      %v1469 = vsel %vm465, %v1455, %v1456
      %v1470 = vsel %vm1463, %v1439, %v1469
      %v1471 = vsel %vm465, %v1457, %v1458
      %v1472 = vsel %vm1463, %v1443, %v1471
      %v1473 = vsel %vm465, %v1458, %v1459
      %v1474 = vsel %vm1463, %v1445, %v1473
      %v1475 = vsel %vm465, %v1459, %v1460
      %v1476 = vsel %vm1463, %v1447, %v1475
      %v1477 = vsel %vm465, %v1460, %v1461
      %v1478 = vsel %vm1463, %v1449, %v1477
      %1487 = vst [vmem:[#allocation2 + $0x300] sm:$0xff] %v1464
      %1488 = vst [vmem:[#allocation2 + $0x308] sm:$0xff] %v1466
      %1489 = vst [vmem:[#allocation2 + $0x310] sm:$0xff] %v1468
      %1490 = vst [vmem:[#allocation2 + $0x318] sm:$0xff] %v1470
      %1491 = vst [vmem:[#allocation2 + $0x320] sm:$0xff] %v1472
      %1492 = vst [vmem:[#allocation2 + $0x328] sm:$0xff] %v1474
      %1493 = vst [vmem:[#allocation2 + $0x330] sm:$0xff] %v1476
      %1494 = vst [vmem:[#allocation2 + $0x338] sm:$0xff] %v1478
      %v1495 = vld [vmem:[%s219 + $0x4] sm:$0xff]
      %v1496 = vld [vmem:[%s219 + $0xc] sm:$0xff]
      %v1497 = vld [vmem:[%s219 + $0x14] sm:$0xff]
      %v1498 = vld [vmem:[%s219 + $0x1c] sm:$0xff]
      %v1499 = vld [vmem:[%s219 + $0x2c] sm:$0xff]
      %v1500 = vld [vmem:[%s219 + $0x34] sm:$0xff]
      %v1501 = vld [vmem:[%s219 + $0x3c] sm:$0xff]
      %v1502 = vld [vmem:[%s219 + $0x44] sm:$0xff]
      %1503 = vst [vmem:[#allocation2 + $0x340] sm:$0xff] %v1495
      %1504 = vst [vmem:[#allocation2 + $0x348] sm:$0xff] %v1496
      %1505 = vst [vmem:[#allocation2 + $0x350] sm:$0xff] %v1497
      %1506 = vst [vmem:[#allocation2 + $0x358] sm:$0xff] %v1498
      %1507 = vst [vmem:[#allocation2 + $0x360] sm:$0xff] %v1499
      %1508 = vst [vmem:[#allocation2 + $0x368] sm:$0xff] %v1500
      %1509 = vst [vmem:[#allocation2 + $0x370] sm:$0xff] %v1501
      %1510 = vst [vmem:[#allocation2 + $0x378] sm:$0xff] %v1502
      %v1511 = vld [vmem:[%s219 + $0x4] sm:$0xff]
      %v1512 = vld [vmem:[%s219 + $0xc] sm:$0xff]
      %v1513 = vld [vmem:[%s219 + $0x14] sm:$0xff]
      %v1514 = vld [vmem:[%s219 + $0x1c] sm:$0xff]
      %v1515 = vld [vmem:[%s219 + $0x24] sm:$0xf]
      %v1516 = vld [vmem:[%s219 + $0x2c] sm:$0xff]
      %v1517 = vld [vmem:[%s219 + $0x34] sm:$0xff]
      %v1518 = vld [vmem:[%s219 + $0x3c] sm:$0xff]
      %v1519 = vld [vmem:[%s219 + $0x44] sm:$0xff]
      %v1520 = vld [vmem:[%s219 + $0x4c] sm:$0xf]
      %1531 = vrot.lane.b32.xlu0 %v1511, 127
      %v1532 = vpop.permute.xlu0 %1531
      %1533 = vrot.lane.b32.xlu0 %v1512, 127
      %v1534 = vpop.permute.xlu0 %1533
      %1535 = vrot.lane.b32.xlu0 %v1513, 127
      %v1536 = vpop.permute.xlu0 %1535
      %1537 = vrot.lane.b32.xlu0 %v1514, 127
      %v1538 = vpop.permute.xlu0 %1537
      %1539 = vrot.lane.b32.xlu0 %v1515, 127
      %v1540 = vpop.permute.xlu0 %1539
      %1541 = vrot.lane.b32.xlu0 %v1516, 127
      %v1542 = vpop.permute.xlu0 %1541
      %1543 = vrot.lane.b32.xlu0 %v1517, 127
      %v1544 = vpop.permute.xlu0 %1543
      %1545 = vrot.lane.b32.xlu0 %v1518, 127
      %v1546 = vpop.permute.xlu0 %1545
      %1547 = vrot.lane.b32.xlu0 %v1519, 127
      %v1548 = vpop.permute.xlu0 %1547
      %1549 = vrot.lane.b32.xlu0 %v1520, 127
      %v1550 = vpop.permute.xlu0 %1549
      %v1551 = vrot.slane %v1532, 4
      %v1552 = vrot.slane %v1534, 4
      %v1553 = vrot.slane %v1536, 4
      %v1554 = vrot.slane %v1538, 4
      %v1555 = vrot.slane %v1540, 4
      %v1556 = vrot.slane %v1542, 4
      %v1557 = vrot.slane %v1544, 4
      %v1558 = vrot.slane %v1546, 4
      %v1559 = vrot.slane %v1548, 4
      %v1560 = vrot.slane %v1550, 4
      %v1561 = vsel %vm465, %v1551, %v1552
      %vm1562 = vcmask 1039360
      %v1563 = vsel %vm1562, %v1532, %v1561
      %v1564 = vsel %vm465, %v1552, %v1553
      %v1565 = vsel %vm1562, %v1534, %v1564
      %v1566 = vsel %vm465, %v1553, %v1554
      %v1567 = vsel %vm1562, %v1536, %v1566
      %v1568 = vsel %vm465, %v1554, %v1555
      %v1569 = vsel %vm1562, %v1538, %v1568
      %v1570 = vsel %vm465, %v1556, %v1557
      %v1571 = vsel %vm1562, %v1542, %v1570
      %v1572 = vsel %vm465, %v1557, %v1558
      %v1573 = vsel %vm1562, %v1544, %v1572
      %v1574 = vsel %vm465, %v1558, %v1559
      %v1575 = vsel %vm1562, %v1546, %v1574
      %v1576 = vsel %vm465, %v1559, %v1560
      %v1577 = vsel %vm1562, %v1548, %v1576
      %1586 = vst [vmem:[#allocation2 + $0x380] sm:$0xff] %v1563
      %1587 = vst [vmem:[#allocation2 + $0x388] sm:$0xff] %v1565
      %1588 = vst [vmem:[#allocation2 + $0x390] sm:$0xff] %v1567
      %1589 = vst [vmem:[#allocation2 + $0x398] sm:$0xff] %v1569
      %1590 = vst [vmem:[#allocation2 + $0x3a0] sm:$0xff] %v1571
      %1591 = vst [vmem:[#allocation2 + $0x3a8] sm:$0xff] %v1573
      %1592 = vst [vmem:[#allocation2 + $0x3b0] sm:$0xff] %v1575
      %1593 = vst [vmem:[#allocation2 + $0x3b8] sm:$0xff] %v1577
      %v1594 = vld [vmem:[%s219 + $0x4] sm:$0xff]
      %v1595 = vld [vmem:[%s219 + $0xc] sm:$0xff]
      %v1596 = vld [vmem:[%s219 + $0x14] sm:$0xff]
      %v1597 = vld [vmem:[%s219 + $0x1c] sm:$0xff]
      %v1598 = vld [vmem:[%s219 + $0x24] sm:$0xf]
      %v1599 = vld [vmem:[%s219 + $0x2c] sm:$0xff]
      %v1600 = vld [vmem:[%s219 + $0x34] sm:$0xff]
      %v1601 = vld [vmem:[%s219 + $0x3c] sm:$0xff]
      %v1602 = vld [vmem:[%s219 + $0x44] sm:$0xff]
      %v1603 = vld [vmem:[%s219 + $0x4c] sm:$0xf]
      %1614 = vrot.lane.b32.xlu0 %v1594, 119
      %v1615 = vpop.permute.xlu0 %1614
      %1616 = vrot.lane.b32.xlu0 %v1595, 119
      %v1617 = vpop.permute.xlu0 %1616
      %1618 = vrot.lane.b32.xlu0 %v1596, 119
      %v1619 = vpop.permute.xlu0 %1618
      %1620 = vrot.lane.b32.xlu0 %v1597, 119
      %v1621 = vpop.permute.xlu0 %1620
      %1622 = vrot.lane.b32.xlu0 %v1598, 119
      %v1623 = vpop.permute.xlu0 %1622
      %1624 = vrot.lane.b32.xlu0 %v1599, 119
      %v1625 = vpop.permute.xlu0 %1624
      %1626 = vrot.lane.b32.xlu0 %v1600, 119
      %v1627 = vpop.permute.xlu0 %1626
      %1628 = vrot.lane.b32.xlu0 %v1601, 119
      %v1629 = vpop.permute.xlu0 %1628
      %1630 = vrot.lane.b32.xlu0 %v1602, 119
      %v1631 = vpop.permute.xlu0 %1630
      %1632 = vrot.lane.b32.xlu0 %v1603, 119
      %v1633 = vpop.permute.xlu0 %1632
      %v1634 = vrot.slane %v1615, 4
      %v1635 = vrot.slane %v1617, 4
      %v1636 = vrot.slane %v1619, 4
      %v1637 = vrot.slane %v1621, 4
      %v1638 = vrot.slane %v1623, 4
      %v1639 = vrot.slane %v1625, 4
      %v1640 = vrot.slane %v1627, 4
      %v1641 = vrot.slane %v1629, 4
      %v1642 = vrot.slane %v1631, 4
      %v1643 = vrot.slane %v1633, 4
      %v1644 = vsel %vm465, %v1634, %v1635
      %vm1645 = vcmask 973824
      %v1646 = vsel %vm1645, %v1615, %v1644
      %v1647 = vsel %vm465, %v1635, %v1636
      %v1648 = vsel %vm1645, %v1617, %v1647
      %v1649 = vsel %vm465, %v1636, %v1637
      %v1650 = vsel %vm1645, %v1619, %v1649
      %v1651 = vsel %vm465, %v1637, %v1638
      %v1652 = vsel %vm1645, %v1621, %v1651
      %v1653 = vsel %vm465, %v1639, %v1640
      %v1654 = vsel %vm1645, %v1625, %v1653
      %v1655 = vsel %vm465, %v1640, %v1641
      %v1656 = vsel %vm1645, %v1627, %v1655
      %v1657 = vsel %vm465, %v1641, %v1642
      %v1658 = vsel %vm1645, %v1629, %v1657
      %v1659 = vsel %vm465, %v1642, %v1643
      %v1660 = vsel %vm1645, %v1631, %v1659
      %1669 = vst [vmem:[#allocation2 + $0x3c0] sm:$0xff] %v1646
      %1670 = vst [vmem:[#allocation2 + $0x3c8] sm:$0xff] %v1648
      %1671 = vst [vmem:[#allocation2 + $0x3d0] sm:$0xff] %v1650
      %1672 = vst [vmem:[#allocation2 + $0x3d8] sm:$0xff] %v1652
      %1673 = vst [vmem:[#allocation2 + $0x3e0] sm:$0xff] %v1654
      %1674 = vst [vmem:[#allocation2 + $0x3e8] sm:$0xff] %v1656
      %1675 = vst [vmem:[#allocation2 + $0x3f0] sm:$0xff] %v1658
      %1676 = vst [vmem:[#allocation2 + $0x3f8] sm:$0xff] %v1660
      %v1677 = vld [vmem:[%s219 + $0x4] sm:$0xff]
      %v1678 = vld [vmem:[%s219 + $0xc] sm:$0xff]
      %v1679 = vld [vmem:[%s219 + $0x14] sm:$0xff]
      %v1680 = vld [vmem:[%s219 + $0x1c] sm:$0xff]
      %v1681 = vld [vmem:[%s219 + $0x24] sm:$0xf]
      %v1682 = vld [vmem:[%s219 + $0x2c] sm:$0xff]
      %v1683 = vld [vmem:[%s219 + $0x34] sm:$0xff]
      %v1684 = vld [vmem:[%s219 + $0x3c] sm:$0xff]
      %v1685 = vld [vmem:[%s219 + $0x44] sm:$0xff]
      %v1686 = vld [vmem:[%s219 + $0x4c] sm:$0xf]
      %1697 = vrot.lane.b32.xlu0 %v1677, 118
      %v1698 = vpop.permute.xlu0 %1697
      %1699 = vrot.lane.b32.xlu0 %v1678, 118
      %v1700 = vpop.permute.xlu0 %1699
      %1701 = vrot.lane.b32.xlu0 %v1679, 118
      %v1702 = vpop.permute.xlu0 %1701
      %1703 = vrot.lane.b32.xlu0 %v1680, 118
      %v1704 = vpop.permute.xlu0 %1703
      %1705 = vrot.lane.b32.xlu0 %v1681, 118
      %v1706 = vpop.permute.xlu0 %1705
      %1707 = vrot.lane.b32.xlu0 %v1682, 118
      %v1708 = vpop.permute.xlu0 %1707
      %1709 = vrot.lane.b32.xlu0 %v1683, 118
      %v1710 = vpop.permute.xlu0 %1709
      %1711 = vrot.lane.b32.xlu0 %v1684, 118
      %v1712 = vpop.permute.xlu0 %1711
      %1713 = vrot.lane.b32.xlu0 %v1685, 118
      %v1714 = vpop.permute.xlu0 %1713
      %1715 = vrot.lane.b32.xlu0 %v1686, 118
      %v1716 = vpop.permute.xlu0 %1715
      %v1717 = vrot.slane %v1698, 4
      %v1718 = vrot.slane %v1700, 4
      %v1719 = vrot.slane %v1702, 4
      %v1720 = vrot.slane %v1704, 4
      %v1721 = vrot.slane %v1706, 4
      %v1722 = vrot.slane %v1708, 4
      %v1723 = vrot.slane %v1710, 4
      %v1724 = vrot.slane %v1712, 4
      %v1725 = vrot.slane %v1714, 4
      %v1726 = vrot.slane %v1716, 4
      %v1727 = vsel %vm465, %v1717, %v1718
      %vm1728 = vcmask 965632
      %v1729 = vsel %vm1728, %v1698, %v1727
      %v1730 = vsel %vm465, %v1718, %v1719
      %v1731 = vsel %vm1728, %v1700, %v1730
      %v1732 = vsel %vm465, %v1719, %v1720
      %v1733 = vsel %vm1728, %v1702, %v1732
      %v1734 = vsel %vm465, %v1720, %v1721
      %v1735 = vsel %vm1728, %v1704, %v1734
      %v1736 = vsel %vm465, %v1722, %v1723
      %v1737 = vsel %vm1728, %v1708, %v1736
      %v1738 = vsel %vm465, %v1723, %v1724
      %v1739 = vsel %vm1728, %v1710, %v1738
      %v1740 = vsel %vm465, %v1724, %v1725
      %v1741 = vsel %vm1728, %v1712, %v1740
      %v1742 = vsel %vm465, %v1725, %v1726
      %v1743 = vsel %vm1728, %v1714, %v1742
      %1752 = vst [vmem:[#allocation2 + $0x400] sm:$0xff] %v1729
      %1753 = vst [vmem:[#allocation2 + $0x408] sm:$0xff] %v1731
      %1754 = vst [vmem:[#allocation2 + $0x410] sm:$0xff] %v1733
      %1755 = vst [vmem:[#allocation2 + $0x418] sm:$0xff] %v1735
      %1756 = vst [vmem:[#allocation2 + $0x420] sm:$0xff] %v1737
      %1757 = vst [vmem:[#allocation2 + $0x428] sm:$0xff] %v1739
      %1758 = vst [vmem:[#allocation2 + $0x430] sm:$0xff] %v1741
      %1759 = vst [vmem:[#allocation2 + $0x438] sm:$0xff] %v1743
      %v1760 = vld [vmem:[%s219 + $0x4] sm:$0xff]
      %v1761 = vld [vmem:[%s219 + $0xc] sm:$0xff]
      %v1762 = vld [vmem:[%s219 + $0x14] sm:$0xff]
      %v1763 = vld [vmem:[%s219 + $0x1c] sm:$0xff]
      %v1764 = vld [vmem:[%s219 + $0x24] sm:$0xf]
      %v1765 = vld [vmem:[%s219 + $0x2c] sm:$0xff]
      %v1766 = vld [vmem:[%s219 + $0x34] sm:$0xff]
      %v1767 = vld [vmem:[%s219 + $0x3c] sm:$0xff]
      %v1768 = vld [vmem:[%s219 + $0x44] sm:$0xff]
      %v1769 = vld [vmem:[%s219 + $0x4c] sm:$0xf]
      %1780 = vrot.lane.b32.xlu0 %v1760, 117
      %v1781 = vpop.permute.xlu0 %1780
      %1782 = vrot.lane.b32.xlu0 %v1761, 117
      %v1783 = vpop.permute.xlu0 %1782
      %1784 = vrot.lane.b32.xlu0 %v1762, 117
      %v1785 = vpop.permute.xlu0 %1784
      %1786 = vrot.lane.b32.xlu0 %v1763, 117
      %v1787 = vpop.permute.xlu0 %1786
      %1788 = vrot.lane.b32.xlu0 %v1764, 117
      %v1789 = vpop.permute.xlu0 %1788
      %1790 = vrot.lane.b32.xlu0 %v1765, 117
      %v1791 = vpop.permute.xlu0 %1790
      %1792 = vrot.lane.b32.xlu0 %v1766, 117
      %v1793 = vpop.permute.xlu0 %1792
      %1794 = vrot.lane.b32.xlu0 %v1767, 117
      %v1795 = vpop.permute.xlu0 %1794
      %1796 = vrot.lane.b32.xlu0 %v1768, 117
      %v1797 = vpop.permute.xlu0 %1796
      %1798 = vrot.lane.b32.xlu0 %v1769, 117
      %v1799 = vpop.permute.xlu0 %1798
      %v1800 = vrot.slane %v1781, 4
      %v1801 = vrot.slane %v1783, 4
      %v1802 = vrot.slane %v1785, 4
      %v1803 = vrot.slane %v1787, 4
      %v1804 = vrot.slane %v1789, 4
      %v1805 = vrot.slane %v1791, 4
      %v1806 = vrot.slane %v1793, 4
      %v1807 = vrot.slane %v1795, 4
      %v1808 = vrot.slane %v1797, 4
      %v1809 = vrot.slane %v1799, 4
      %v1810 = vsel %vm465, %v1800, %v1801
      %vm1811 = vcmask 957440
      %v1812 = vsel %vm1811, %v1781, %v1810
      %v1813 = vsel %vm465, %v1801, %v1802
      %v1814 = vsel %vm1811, %v1783, %v1813
      %v1815 = vsel %vm465, %v1802, %v1803
      %v1816 = vsel %vm1811, %v1785, %v1815
      %v1817 = vsel %vm465, %v1803, %v1804
      %v1818 = vsel %vm1811, %v1787, %v1817
      %v1819 = vsel %vm465, %v1805, %v1806
      %v1820 = vsel %vm1811, %v1791, %v1819
      %v1821 = vsel %vm465, %v1806, %v1807
      %v1822 = vsel %vm1811, %v1793, %v1821
      %v1823 = vsel %vm465, %v1807, %v1808
      %v1824 = vsel %vm1811, %v1795, %v1823
      %v1825 = vsel %vm465, %v1808, %v1809
      %v1826 = vsel %vm1811, %v1797, %v1825
      %1835 = vst [vmem:[#allocation2 + $0x440] sm:$0xff] %v1812
      %1836 = vst [vmem:[#allocation2 + $0x448] sm:$0xff] %v1814
      %1837 = vst [vmem:[#allocation2 + $0x450] sm:$0xff] %v1816
      %1838 = vst [vmem:[#allocation2 + $0x458] sm:$0xff] %v1818
      %1839 = vst [vmem:[#allocation2 + $0x460] sm:$0xff] %v1820
      %1840 = vst [vmem:[#allocation2 + $0x468] sm:$0xff] %v1822
      %1841 = vst [vmem:[#allocation2 + $0x470] sm:$0xff] %v1824
      %1842 = vst [vmem:[#allocation2 + $0x478] sm:$0xff] %v1826
      %v1843 = vld [vmem:[%s219 + $0x4] sm:$0xff]
      %v1844 = vld [vmem:[%s219 + $0xc] sm:$0xff]
      %v1845 = vld [vmem:[%s219 + $0x14] sm:$0xff]
      %v1846 = vld [vmem:[%s219 + $0x1c] sm:$0xff]
      %v1847 = vld [vmem:[%s219 + $0x24] sm:$0xf]
      %v1848 = vld [vmem:[%s219 + $0x2c] sm:$0xff]
      %v1849 = vld [vmem:[%s219 + $0x34] sm:$0xff]
      %v1850 = vld [vmem:[%s219 + $0x3c] sm:$0xff]
      %v1851 = vld [vmem:[%s219 + $0x44] sm:$0xff]
      %v1852 = vld [vmem:[%s219 + $0x4c] sm:$0xf]
      %1863 = vrot.lane.b32.xlu0 %v1843, 39
      %v1864 = vpop.permute.xlu0 %1863
      %1865 = vrot.lane.b32.xlu0 %v1844, 39
      %v1866 = vpop.permute.xlu0 %1865
      %1867 = vrot.lane.b32.xlu0 %v1845, 39
      %v1868 = vpop.permute.xlu0 %1867
      %1869 = vrot.lane.b32.xlu0 %v1846, 39
      %v1870 = vpop.permute.xlu0 %1869
      %1871 = vrot.lane.b32.xlu0 %v1847, 39
      %v1872 = vpop.permute.xlu0 %1871
      %1873 = vrot.lane.b32.xlu0 %v1848, 39
      %v1874 = vpop.permute.xlu0 %1873
      %1875 = vrot.lane.b32.xlu0 %v1849, 39
      %v1876 = vpop.permute.xlu0 %1875
      %1877 = vrot.lane.b32.xlu0 %v1850, 39
      %v1878 = vpop.permute.xlu0 %1877
      %1879 = vrot.lane.b32.xlu0 %v1851, 39
      %v1880 = vpop.permute.xlu0 %1879
      %1881 = vrot.lane.b32.xlu0 %v1852, 39
      %v1882 = vpop.permute.xlu0 %1881
      %v1883 = vrot.slane %v1864, 4
      %v1884 = vrot.slane %v1866, 4
      %v1885 = vrot.slane %v1868, 4
      %v1886 = vrot.slane %v1870, 4
      %v1887 = vrot.slane %v1872, 4
      %v1888 = vrot.slane %v1874, 4
      %v1889 = vrot.slane %v1876, 4
      %v1890 = vrot.slane %v1878, 4
      %v1891 = vrot.slane %v1880, 4
      %v1892 = vrot.slane %v1882, 4
      %v1893 = vsel %vm465, %v1883, %v1884
      %vm1894 = vcmask 318464
      %v1895 = vsel %vm1894, %v1864, %v1893
      %v1896 = vsel %vm465, %v1884, %v1885
      %v1897 = vsel %vm1894, %v1866, %v1896
      %v1898 = vsel %vm465, %v1885, %v1886
      %v1899 = vsel %vm1894, %v1868, %v1898
      %v1900 = vsel %vm465, %v1886, %v1887
      %v1901 = vsel %vm1894, %v1870, %v1900
      %v1902 = vsel %vm465, %v1888, %v1889
      %v1903 = vsel %vm1894, %v1874, %v1902
      %v1904 = vsel %vm465, %v1889, %v1890
      %v1905 = vsel %vm1894, %v1876, %v1904
      %v1906 = vsel %vm465, %v1890, %v1891
      %v1907 = vsel %vm1894, %v1878, %v1906
      %v1908 = vsel %vm465, %v1891, %v1892
      %v1909 = vsel %vm1894, %v1880, %v1908
      %1918 = vst [vmem:[#allocation2 + $0x480] sm:$0xff] %v1895
      %1919 = vst [vmem:[#allocation2 + $0x488] sm:$0xff] %v1897
      %1920 = vst [vmem:[#allocation2 + $0x490] sm:$0xff] %v1899
      %1921 = vst [vmem:[#allocation2 + $0x498] sm:$0xff] %v1901
      %1922 = vst [vmem:[#allocation2 + $0x4a0] sm:$0xff] %v1903
      %1923 = vst [vmem:[#allocation2 + $0x4a8] sm:$0xff] %v1905
      %1924 = vst [vmem:[#allocation2 + $0x4b0] sm:$0xff] %v1907
      %1925 = vst [vmem:[#allocation2 + $0x4b8] sm:$0xff] %v1909
      %v1926 = vld [vmem:[%s219 + $0x4] sm:$0xff]
      %v1927 = vld [vmem:[%s219 + $0xc] sm:$0xff]
      %v1928 = vld [vmem:[%s219 + $0x14] sm:$0xff]
      %v1929 = vld [vmem:[%s219 + $0x1c] sm:$0xff]
      %v1930 = vld [vmem:[%s219 + $0x24] sm:$0xf]
      %v1931 = vld [vmem:[%s219 + $0x2c] sm:$0xff]
      %v1932 = vld [vmem:[%s219 + $0x34] sm:$0xff]
      %v1933 = vld [vmem:[%s219 + $0x3c] sm:$0xff]
      %v1934 = vld [vmem:[%s219 + $0x44] sm:$0xff]
      %v1935 = vld [vmem:[%s219 + $0x4c] sm:$0xf]
      %1946 = vrot.lane.b32.xlu0 %v1926, 38
      %v1947 = vpop.permute.xlu0 %1946
      %1948 = vrot.lane.b32.xlu0 %v1927, 38
      %v1949 = vpop.permute.xlu0 %1948
      %1950 = vrot.lane.b32.xlu0 %v1928, 38
      %v1951 = vpop.permute.xlu0 %1950
      %1952 = vrot.lane.b32.xlu0 %v1929, 38
      %v1953 = vpop.permute.xlu0 %1952
      %1954 = vrot.lane.b32.xlu0 %v1930, 38
      %v1955 = vpop.permute.xlu0 %1954
      %1956 = vrot.lane.b32.xlu0 %v1931, 38
      %v1957 = vpop.permute.xlu0 %1956
      %1958 = vrot.lane.b32.xlu0 %v1932, 38
      %v1959 = vpop.permute.xlu0 %1958
      %1960 = vrot.lane.b32.xlu0 %v1933, 38
      %v1961 = vpop.permute.xlu0 %1960
      %1962 = vrot.lane.b32.xlu0 %v1934, 38
      %v1963 = vpop.permute.xlu0 %1962
      %1964 = vrot.lane.b32.xlu0 %v1935, 38
      %v1965 = vpop.permute.xlu0 %1964
      %v1966 = vrot.slane %v1947, 4
      %v1967 = vrot.slane %v1949, 4
      %v1968 = vrot.slane %v1951, 4
      %v1969 = vrot.slane %v1953, 4
      %v1970 = vrot.slane %v1955, 4
      %v1971 = vrot.slane %v1957, 4
      %v1972 = vrot.slane %v1959, 4
      %v1973 = vrot.slane %v1961, 4
      %v1974 = vrot.slane %v1963, 4
      %v1975 = vrot.slane %v1965, 4
      %v1976 = vsel %vm465, %v1966, %v1967
      %vm1977 = vcmask 310272
      %v1978 = vsel %vm1977, %v1947, %v1976
      %v1979 = vsel %vm465, %v1967, %v1968
      %v1980 = vsel %vm1977, %v1949, %v1979
      %v1981 = vsel %vm465, %v1968, %v1969
      %v1982 = vsel %vm1977, %v1951, %v1981
      %v1983 = vsel %vm465, %v1969, %v1970
      %v1984 = vsel %vm1977, %v1953, %v1983
      %v1985 = vsel %vm465, %v1971, %v1972
      %v1986 = vsel %vm1977, %v1957, %v1985
      %v1987 = vsel %vm465, %v1972, %v1973
      %v1988 = vsel %vm1977, %v1959, %v1987
      %v1989 = vsel %vm465, %v1973, %v1974
      %v1990 = vsel %vm1977, %v1961, %v1989
      %v1991 = vsel %vm465, %v1974, %v1975
      %v1992 = vsel %vm1977, %v1963, %v1991
      %2001 = vst [vmem:[#allocation2 + $0x4c0] sm:$0xff] %v1978
      %2002 = vst [vmem:[#allocation2 + $0x4c8] sm:$0xff] %v1980
      %2003 = vst [vmem:[#allocation2 + $0x4d0] sm:$0xff] %v1982
      %2004 = vst [vmem:[#allocation2 + $0x4d8] sm:$0xff] %v1984
      %2005 = vst [vmem:[#allocation2 + $0x4e0] sm:$0xff] %v1986
      %2006 = vst [vmem:[#allocation2 + $0x4e8] sm:$0xff] %v1988
      %2007 = vst [vmem:[#allocation2 + $0x4f0] sm:$0xff] %v1990
      %2008 = vst [vmem:[#allocation2 + $0x4f8] sm:$0xff] %v1992
      %v2009 = vld [vmem:[%s219 + $0x4] sm:$0xff]
      %v2010 = vld [vmem:[%s219 + $0xc] sm:$0xff]
      %v2011 = vld [vmem:[%s219 + $0x14] sm:$0xff]
      %v2012 = vld [vmem:[%s219 + $0x1c] sm:$0xff]
      %v2013 = vld [vmem:[%s219 + $0x24] sm:$0xf]
      %v2014 = vld [vmem:[%s219 + $0x2c] sm:$0xff]
      %v2015 = vld [vmem:[%s219 + $0x34] sm:$0xff]
      %v2016 = vld [vmem:[%s219 + $0x3c] sm:$0xff]
      %v2017 = vld [vmem:[%s219 + $0x44] sm:$0xff]
      %v2018 = vld [vmem:[%s219 + $0x4c] sm:$0xf]
      %2029 = vrot.lane.b32.xlu0 %v2009, 37
      %v2030 = vpop.permute.xlu0 %2029
      %2031 = vrot.lane.b32.xlu0 %v2010, 37
      %v2032 = vpop.permute.xlu0 %2031
      %2033 = vrot.lane.b32.xlu0 %v2011, 37
      %v2034 = vpop.permute.xlu0 %2033
      %2035 = vrot.lane.b32.xlu0 %v2012, 37
      %v2036 = vpop.permute.xlu0 %2035
      %2037 = vrot.lane.b32.xlu0 %v2013, 37
      %v2038 = vpop.permute.xlu0 %2037
      %2039 = vrot.lane.b32.xlu0 %v2014, 37
      %v2040 = vpop.permute.xlu0 %2039
      %2041 = vrot.lane.b32.xlu0 %v2015, 37
      %v2042 = vpop.permute.xlu0 %2041
      %2043 = vrot.lane.b32.xlu0 %v2016, 37
      %v2044 = vpop.permute.xlu0 %2043
      %2045 = vrot.lane.b32.xlu0 %v2017, 37
      %v2046 = vpop.permute.xlu0 %2045
      %2047 = vrot.lane.b32.xlu0 %v2018, 37
      %v2048 = vpop.permute.xlu0 %2047
      %v2049 = vrot.slane %v2030, 4
      %v2050 = vrot.slane %v2032, 4
      %v2051 = vrot.slane %v2034, 4
      %v2052 = vrot.slane %v2036, 4
      %v2053 = vrot.slane %v2038, 4
      %v2054 = vrot.slane %v2040, 4
      %v2055 = vrot.slane %v2042, 4
      %v2056 = vrot.slane %v2044, 4
      %v2057 = vrot.slane %v2046, 4
      %v2058 = vrot.slane %v2048, 4
      %v2059 = vsel %vm465, %v2049, %v2050
      %vm2060 = vcmask 302080
      %v2061 = vsel %vm2060, %v2030, %v2059
      %v2062 = vsel %vm465, %v2050, %v2051
      %v2063 = vsel %vm2060, %v2032, %v2062
      %v2064 = vsel %vm465, %v2051, %v2052
      %v2065 = vsel %vm2060, %v2034, %v2064
      %v2066 = vsel %vm465, %v2052, %v2053
      %v2067 = vsel %vm2060, %v2036, %v2066
      %v2068 = vsel %vm465, %v2054, %v2055
      %v2069 = vsel %vm2060, %v2040, %v2068
      %v2070 = vsel %vm465, %v2055, %v2056
      %v2071 = vsel %vm2060, %v2042, %v2070
      %v2072 = vsel %vm465, %v2056, %v2057
      %v2073 = vsel %vm2060, %v2044, %v2072
      %v2074 = vsel %vm465, %v2057, %v2058
      %v2075 = vsel %vm2060, %v2046, %v2074
      %2084 = vst [vmem:[#allocation2 + $0x500] sm:$0xff] %v2061
      %2085 = vst [vmem:[#allocation2 + $0x508] sm:$0xff] %v2063
      %2086 = vst [vmem:[#allocation2 + $0x510] sm:$0xff] %v2065
      %2087 = vst [vmem:[#allocation2 + $0x518] sm:$0xff] %v2067
      %2088 = vst [vmem:[#allocation2 + $0x520] sm:$0xff] %v2069
      %2089 = vst [vmem:[#allocation2 + $0x528] sm:$0xff] %v2071
      %2090 = vst [vmem:[#allocation2 + $0x530] sm:$0xff] %v2073
      %2091 = vst [vmem:[#allocation2 + $0x538] sm:$0xff] %v2075
      %v2092 = vld [vmem:[%s219 + $0x4] sm:$0xff]
      %v2093 = vld [vmem:[%s219 + $0xc] sm:$0xff]
      %v2094 = vld [vmem:[%s219 + $0x14] sm:$0xff]
      %v2095 = vld [vmem:[%s219 + $0x1c] sm:$0xff]
      %v2096 = vld [vmem:[%s219 + $0x24] sm:$0xf]
      %v2097 = vld [vmem:[%s219 + $0x2c] sm:$0xff]
      %v2098 = vld [vmem:[%s219 + $0x34] sm:$0xff]
      %v2099 = vld [vmem:[%s219 + $0x3c] sm:$0xff]
      %v2100 = vld [vmem:[%s219 + $0x44] sm:$0xff]
      %v2101 = vld [vmem:[%s219 + $0x4c] sm:$0xf]
      %2112 = vrot.lane.b32.xlu0 %v2092, 29
      %v2113 = vpop.permute.xlu0 %2112
      %2114 = vrot.lane.b32.xlu0 %v2093, 29
      %v2115 = vpop.permute.xlu0 %2114
      %2116 = vrot.lane.b32.xlu0 %v2094, 29
      %v2117 = vpop.permute.xlu0 %2116
      %2118 = vrot.lane.b32.xlu0 %v2095, 29
      %v2119 = vpop.permute.xlu0 %2118
      %2120 = vrot.lane.b32.xlu0 %v2096, 29
      %v2121 = vpop.permute.xlu0 %2120
      %2122 = vrot.lane.b32.xlu0 %v2097, 29
      %v2123 = vpop.permute.xlu0 %2122
      %2124 = vrot.lane.b32.xlu0 %v2098, 29
      %v2125 = vpop.permute.xlu0 %2124
      %2126 = vrot.lane.b32.xlu0 %v2099, 29
      %v2127 = vpop.permute.xlu0 %2126
      %2128 = vrot.lane.b32.xlu0 %v2100, 29
      %v2129 = vpop.permute.xlu0 %2128
      %2130 = vrot.lane.b32.xlu0 %v2101, 29
      %v2131 = vpop.permute.xlu0 %2130
      %v2132 = vrot.slane %v2113, 4
      %v2133 = vrot.slane %v2115, 4
      %v2134 = vrot.slane %v2117, 4
      %v2135 = vrot.slane %v2119, 4
      %v2136 = vrot.slane %v2121, 4
      %v2137 = vrot.slane %v2123, 4
      %v2138 = vrot.slane %v2125, 4
      %v2139 = vrot.slane %v2127, 4
      %v2140 = vrot.slane %v2129, 4
      %v2141 = vrot.slane %v2131, 4
      %v2142 = vsel %vm465, %v2132, %v2133
      %vm2143 = vcmask 236544
      %v2144 = vsel %vm2143, %v2113, %v2142
      %v2145 = vsel %vm465, %v2133, %v2134
      %v2146 = vsel %vm2143, %v2115, %v2145
      %v2147 = vsel %vm465, %v2134, %v2135
      %v2148 = vsel %vm2143, %v2117, %v2147
      %v2149 = vsel %vm465, %v2135, %v2136
      %v2150 = vsel %vm2143, %v2119, %v2149
      %v2151 = vsel %vm465, %v2137, %v2138
      %v2152 = vsel %vm2143, %v2123, %v2151
      %v2153 = vsel %vm465, %v2138, %v2139
      %v2154 = vsel %vm2143, %v2125, %v2153
      %v2155 = vsel %vm465, %v2139, %v2140
      %v2156 = vsel %vm2143, %v2127, %v2155
      %v2157 = vsel %vm465, %v2140, %v2141
      %v2158 = vsel %vm2143, %v2129, %v2157
      %2167 = vst [vmem:[#allocation2 + $0x540] sm:$0xff] %v2144
      %2168 = vst [vmem:[#allocation2 + $0x548] sm:$0xff] %v2146
      %2169 = vst [vmem:[#allocation2 + $0x550] sm:$0xff] %v2148
      %2170 = vst [vmem:[#allocation2 + $0x558] sm:$0xff] %v2150
      %2171 = vst [vmem:[#allocation2 + $0x560] sm:$0xff] %v2152
      %2172 = vst [vmem:[#allocation2 + $0x568] sm:$0xff] %v2154
      %2173 = vst [vmem:[#allocation2 + $0x570] sm:$0xff] %v2156
      %2174 = vst [vmem:[#allocation2 + $0x578] sm:$0xff] %v2158
      %v2175 = vld [vmem:[%s219 + $0x4] sm:$0xff]
      %v2176 = vld [vmem:[%s219 + $0xc] sm:$0xff]
      %v2177 = vld [vmem:[%s219 + $0x14] sm:$0xff]
      %v2178 = vld [vmem:[%s219 + $0x1c] sm:$0xff]
      %v2179 = vld [vmem:[%s219 + $0x24] sm:$0xf]
      %v2180 = vld [vmem:[%s219 + $0x2c] sm:$0xff]
      %v2181 = vld [vmem:[%s219 + $0x34] sm:$0xff]
      %v2182 = vld [vmem:[%s219 + $0x3c] sm:$0xff]
      %v2183 = vld [vmem:[%s219 + $0x44] sm:$0xff]
      %v2184 = vld [vmem:[%s219 + $0x4c] sm:$0xf]
      %2195 = vrot.lane.b32.xlu0 %v2175, 28
      %v2196 = vpop.permute.xlu0 %2195
      %2197 = vrot.lane.b32.xlu0 %v2176, 28
      %v2198 = vpop.permute.xlu0 %2197
      %2199 = vrot.lane.b32.xlu0 %v2177, 28
      %v2200 = vpop.permute.xlu0 %2199
      %2201 = vrot.lane.b32.xlu0 %v2178, 28
      %v2202 = vpop.permute.xlu0 %2201
      %2203 = vrot.lane.b32.xlu0 %v2179, 28
      %v2204 = vpop.permute.xlu0 %2203
      %2205 = vrot.lane.b32.xlu0 %v2180, 28
      %v2206 = vpop.permute.xlu0 %2205
      %2207 = vrot.lane.b32.xlu0 %v2181, 28
      %v2208 = vpop.permute.xlu0 %2207
      %2209 = vrot.lane.b32.xlu0 %v2182, 28
      %v2210 = vpop.permute.xlu0 %2209
      %2211 = vrot.lane.b32.xlu0 %v2183, 28
      %v2212 = vpop.permute.xlu0 %2211
      %2213 = vrot.lane.b32.xlu0 %v2184, 28
      %v2214 = vpop.permute.xlu0 %2213
      %v2215 = vrot.slane %v2196, 4
      %v2216 = vrot.slane %v2198, 4
      %v2217 = vrot.slane %v2200, 4
      %v2218 = vrot.slane %v2202, 4
      %v2219 = vrot.slane %v2204, 4
      %v2220 = vrot.slane %v2206, 4
      %v2221 = vrot.slane %v2208, 4
      %v2222 = vrot.slane %v2210, 4
      %v2223 = vrot.slane %v2212, 4
      %v2224 = vrot.slane %v2214, 4
      %v2225 = vsel %vm465, %v2215, %v2216
      %vm2226 = vcmask 228352
      %v2227 = vsel %vm2226, %v2196, %v2225
      %v2228 = vsel %vm465, %v2216, %v2217
      %v2229 = vsel %vm2226, %v2198, %v2228
      %v2230 = vsel %vm465, %v2217, %v2218
      %v2231 = vsel %vm2226, %v2200, %v2230
      %v2232 = vsel %vm465, %v2218, %v2219
      %v2233 = vsel %vm2226, %v2202, %v2232
      %v2234 = vsel %vm465, %v2220, %v2221
      %v2235 = vsel %vm2226, %v2206, %v2234
      %v2236 = vsel %vm465, %v2221, %v2222
      %v2237 = vsel %vm2226, %v2208, %v2236
      %v2238 = vsel %vm465, %v2222, %v2223
      %v2239 = vsel %vm2226, %v2210, %v2238
      %v2240 = vsel %vm465, %v2223, %v2224
      %v2241 = vsel %vm2226, %v2212, %v2240
      %2250 = vst [vmem:[#allocation2 + $0x580] sm:$0xff] %v2227
      %2251 = vst [vmem:[#allocation2 + $0x588] sm:$0xff] %v2229
      %2252 = vst [vmem:[#allocation2 + $0x590] sm:$0xff] %v2231
      %2253 = vst [vmem:[#allocation2 + $0x598] sm:$0xff] %v2233
      %2254 = vst [vmem:[#allocation2 + $0x5a0] sm:$0xff] %v2235
      %2255 = vst [vmem:[#allocation2 + $0x5a8] sm:$0xff] %v2237
      %2256 = vst [vmem:[#allocation2 + $0x5b0] sm:$0xff] %v2239
      %2257 = vst [vmem:[#allocation2 + $0x5b8] sm:$0xff] %v2241
      %v2258 = vld [vmem:[%s219 + $0x4] sm:$0xff]
      %v2259 = vld [vmem:[%s219 + $0xc] sm:$0xff]
      %v2260 = vld [vmem:[%s219 + $0x14] sm:$0xff]
      %v2261 = vld [vmem:[%s219 + $0x1c] sm:$0xff]
      %v2262 = vld [vmem:[%s219 + $0x24] sm:$0xf]
      %v2263 = vld [vmem:[%s219 + $0x2c] sm:$0xff]
      %v2264 = vld [vmem:[%s219 + $0x34] sm:$0xff]
      %v2265 = vld [vmem:[%s219 + $0x3c] sm:$0xff]
      %v2266 = vld [vmem:[%s219 + $0x44] sm:$0xff]
      %v2267 = vld [vmem:[%s219 + $0x4c] sm:$0xf]
      %2278 = vrot.lane.b32.xlu0 %v2258, 27
      %v2279 = vpop.permute.xlu0 %2278
      %2280 = vrot.lane.b32.xlu0 %v2259, 27
      %v2281 = vpop.permute.xlu0 %2280
      %2282 = vrot.lane.b32.xlu0 %v2260, 27
      %v2283 = vpop.permute.xlu0 %2282
      %2284 = vrot.lane.b32.xlu0 %v2261, 27
      %v2285 = vpop.permute.xlu0 %2284
      %2286 = vrot.lane.b32.xlu0 %v2262, 27
      %v2287 = vpop.permute.xlu0 %2286
      %2288 = vrot.lane.b32.xlu0 %v2263, 27
      %v2289 = vpop.permute.xlu0 %2288
      %2290 = vrot.lane.b32.xlu0 %v2264, 27
      %v2291 = vpop.permute.xlu0 %2290
      %2292 = vrot.lane.b32.xlu0 %v2265, 27
      %v2293 = vpop.permute.xlu0 %2292
      %2294 = vrot.lane.b32.xlu0 %v2266, 27
      %v2295 = vpop.permute.xlu0 %2294
      %2296 = vrot.lane.b32.xlu0 %v2267, 27
      %v2297 = vpop.permute.xlu0 %2296
      %v2298 = vrot.slane %v2279, 4
      %v2299 = vrot.slane %v2281, 4
      %v2300 = vrot.slane %v2283, 4
      %v2301 = vrot.slane %v2285, 4
      %v2302 = vrot.slane %v2287, 4
      %v2303 = vrot.slane %v2289, 4
      %v2304 = vrot.slane %v2291, 4
      %v2305 = vrot.slane %v2293, 4
      %v2306 = vrot.slane %v2295, 4
      %v2307 = vrot.slane %v2297, 4
      %v2308 = vsel %vm465, %v2298, %v2299
      %vm2309 = vcmask 220160
      %v2310 = vsel %vm2309, %v2279, %v2308
      %v2311 = vsel %vm465, %v2299, %v2300
      %v2312 = vsel %vm2309, %v2281, %v2311
      %v2313 = vsel %vm465, %v2300, %v2301
      %v2314 = vsel %vm2309, %v2283, %v2313
      %v2315 = vsel %vm465, %v2301, %v2302
      %v2316 = vsel %vm2309, %v2285, %v2315
      %v2317 = vsel %vm465, %v2303, %v2304
      %v2318 = vsel %vm2309, %v2289, %v2317
      %v2319 = vsel %vm465, %v2304, %v2305
      %v2320 = vsel %vm2309, %v2291, %v2319
      %v2321 = vsel %vm465, %v2305, %v2306
      %v2322 = vsel %vm2309, %v2293, %v2321
      %v2323 = vsel %vm465, %v2306, %v2307
      %v2324 = vsel %vm2309, %v2295, %v2323
      %2333 = vst [vmem:[#allocation2 + $0x5c0] sm:$0xff] %v2310
      %2334 = vst [vmem:[#allocation2 + $0x5c8] sm:$0xff] %v2312
      %2335 = vst [vmem:[#allocation2 + $0x5d0] sm:$0xff] %v2314
      %2336 = vst [vmem:[#allocation2 + $0x5d8] sm:$0xff] %v2316
      %2337 = vst [vmem:[#allocation2 + $0x5e0] sm:$0xff] %v2318
      %2338 = vst [vmem:[#allocation2 + $0x5e8] sm:$0xff] %v2320
      %2339 = vst [vmem:[#allocation2 + $0x5f0] sm:$0xff] %v2322
      %2340 = vst [vmem:[#allocation2 + $0x5f8] sm:$0xff] %v2324
      %v2341 = vld [vmem:[%s219 + $0x4] sm:$0xff]
      %v2342 = vld [vmem:[%s219 + $0xc] sm:$0xff]
      %v2343 = vld [vmem:[%s219 + $0x14] sm:$0xff]
      %v2344 = vld [vmem:[%s219 + $0x1c] sm:$0xff]
      %v2345 = vld [vmem:[%s219 + $0x24] sm:$0xf]
      %v2346 = vld [vmem:[%s219 + $0x2c] sm:$0xff]
      %v2347 = vld [vmem:[%s219 + $0x34] sm:$0xff]
      %v2348 = vld [vmem:[%s219 + $0x3c] sm:$0xff]
      %v2349 = vld [vmem:[%s219 + $0x44] sm:$0xff]
      %v2350 = vld [vmem:[%s219 + $0x4c] sm:$0xf]
      %2361 = vrot.lane.b32.xlu0 %v2341, 19
      %v2362 = vpop.permute.xlu0 %2361
      %2363 = vrot.lane.b32.xlu0 %v2342, 19
      %v2364 = vpop.permute.xlu0 %2363
      %2365 = vrot.lane.b32.xlu0 %v2343, 19
      %v2366 = vpop.permute.xlu0 %2365
      %2367 = vrot.lane.b32.xlu0 %v2344, 19
      %v2368 = vpop.permute.xlu0 %2367
      %2369 = vrot.lane.b32.xlu0 %v2345, 19
      %v2370 = vpop.permute.xlu0 %2369
      %2371 = vrot.lane.b32.xlu0 %v2346, 19
      %v2372 = vpop.permute.xlu0 %2371
      %2373 = vrot.lane.b32.xlu0 %v2347, 19
      %v2374 = vpop.permute.xlu0 %2373
      %2375 = vrot.lane.b32.xlu0 %v2348, 19
      %v2376 = vpop.permute.xlu0 %2375
      %2377 = vrot.lane.b32.xlu0 %v2349, 19
      %v2378 = vpop.permute.xlu0 %2377
      %2379 = vrot.lane.b32.xlu0 %v2350, 19
      %v2380 = vpop.permute.xlu0 %2379
      %v2381 = vrot.slane %v2362, 4
      %v2382 = vrot.slane %v2364, 4
      %v2383 = vrot.slane %v2366, 4
      %v2384 = vrot.slane %v2368, 4
      %v2385 = vrot.slane %v2370, 4
      %v2386 = vrot.slane %v2372, 4
      %v2387 = vrot.slane %v2374, 4
      %v2388 = vrot.slane %v2376, 4
      %v2389 = vrot.slane %v2378, 4
      %v2390 = vrot.slane %v2380, 4
      %v2391 = vsel %vm465, %v2381, %v2382
      %vm2392 = vcmask 154624
      %v2393 = vsel %vm2392, %v2362, %v2391
      %v2394 = vsel %vm465, %v2382, %v2383
      %v2395 = vsel %vm2392, %v2364, %v2394
      %v2396 = vsel %vm465, %v2383, %v2384
      %v2397 = vsel %vm2392, %v2366, %v2396
      %v2398 = vsel %vm465, %v2384, %v2385
      %v2399 = vsel %vm2392, %v2368, %v2398
      %v2400 = vsel %vm465, %v2386, %v2387
      %v2401 = vsel %vm2392, %v2372, %v2400
      %v2402 = vsel %vm465, %v2387, %v2388
      %v2403 = vsel %vm2392, %v2374, %v2402
      %v2404 = vsel %vm465, %v2388, %v2389
      %v2405 = vsel %vm2392, %v2376, %v2404
      %v2406 = vsel %vm465, %v2389, %v2390
      %v2407 = vsel %vm2392, %v2378, %v2406
      %2416 = vst [vmem:[#allocation2 + $0x600] sm:$0xff] %v2393
      %2417 = vst [vmem:[#allocation2 + $0x608] sm:$0xff] %v2395
      %2418 = vst [vmem:[#allocation2 + $0x610] sm:$0xff] %v2397
      %2419 = vst [vmem:[#allocation2 + $0x618] sm:$0xff] %v2399
      %2420 = vst [vmem:[#allocation2 + $0x620] sm:$0xff] %v2401
      %2421 = vst [vmem:[#allocation2 + $0x628] sm:$0xff] %v2403
      %2422 = vst [vmem:[#allocation2 + $0x630] sm:$0xff] %v2405
      %2423 = vst [vmem:[#allocation2 + $0x638] sm:$0xff] %v2407
      %v2424 = vld [vmem:[%s219 + $0x4] sm:$0xff]
      %v2425 = vld [vmem:[%s219 + $0xc] sm:$0xff]
      %v2426 = vld [vmem:[%s219 + $0x14] sm:$0xff]
      %v2427 = vld [vmem:[%s219 + $0x1c] sm:$0xff]
      %v2428 = vld [vmem:[%s219 + $0x24] sm:$0xf]
      %v2429 = vld [vmem:[%s219 + $0x2c] sm:$0xff]
      %v2430 = vld [vmem:[%s219 + $0x34] sm:$0xff]
      %v2431 = vld [vmem:[%s219 + $0x3c] sm:$0xff]
      %v2432 = vld [vmem:[%s219 + $0x44] sm:$0xff]
      %v2433 = vld [vmem:[%s219 + $0x4c] sm:$0xf]
      %2444 = vrot.lane.b32.xlu0 %v2424, 18
      %v2445 = vpop.permute.xlu0 %2444
      %2446 = vrot.lane.b32.xlu0 %v2425, 18
      %v2447 = vpop.permute.xlu0 %2446
      %2448 = vrot.lane.b32.xlu0 %v2426, 18
      %v2449 = vpop.permute.xlu0 %2448
      %2450 = vrot.lane.b32.xlu0 %v2427, 18
      %v2451 = vpop.permute.xlu0 %2450
      %2452 = vrot.lane.b32.xlu0 %v2428, 18
      %v2453 = vpop.permute.xlu0 %2452
      %2454 = vrot.lane.b32.xlu0 %v2429, 18
      %v2455 = vpop.permute.xlu0 %2454
      %2456 = vrot.lane.b32.xlu0 %v2430, 18
      %v2457 = vpop.permute.xlu0 %2456
      %2458 = vrot.lane.b32.xlu0 %v2431, 18
      %v2459 = vpop.permute.xlu0 %2458
      %2460 = vrot.lane.b32.xlu0 %v2432, 18
      %v2461 = vpop.permute.xlu0 %2460
      %2462 = vrot.lane.b32.xlu0 %v2433, 18
      %v2463 = vpop.permute.xlu0 %2462
      %v2464 = vrot.slane %v2445, 4
      %v2465 = vrot.slane %v2447, 4
      %v2466 = vrot.slane %v2449, 4
      %v2467 = vrot.slane %v2451, 4
      %v2468 = vrot.slane %v2453, 4
      %v2469 = vrot.slane %v2455, 4
      %v2470 = vrot.slane %v2457, 4
      %v2471 = vrot.slane %v2459, 4
      %v2472 = vrot.slane %v2461, 4
      %v2473 = vrot.slane %v2463, 4
      %v2474 = vsel %vm465, %v2464, %v2465
      %vm2475 = vcmask 146432
      %v2476 = vsel %vm2475, %v2445, %v2474
      %v2477 = vsel %vm465, %v2465, %v2466
      %v2478 = vsel %vm2475, %v2447, %v2477
      %v2479 = vsel %vm465, %v2466, %v2467
      %v2480 = vsel %vm2475, %v2449, %v2479
      %v2481 = vsel %vm465, %v2467, %v2468
      %v2482 = vsel %vm2475, %v2451, %v2481
      %v2483 = vsel %vm465, %v2469, %v2470
      %v2484 = vsel %vm2475, %v2455, %v2483
      %v2485 = vsel %vm465, %v2470, %v2471
      %v2486 = vsel %vm2475, %v2457, %v2485
      %v2487 = vsel %vm465, %v2471, %v2472
      %v2488 = vsel %vm2475, %v2459, %v2487
      %v2489 = vsel %vm465, %v2472, %v2473
      %v2490 = vsel %vm2475, %v2461, %v2489
      %2499 = vst [vmem:[#allocation2 + $0x640] sm:$0xff] %v2476
      %2500 = vst [vmem:[#allocation2 + $0x648] sm:$0xff] %v2478
      %2501 = vst [vmem:[#allocation2 + $0x650] sm:$0xff] %v2480
      %2502 = vst [vmem:[#allocation2 + $0x658] sm:$0xff] %v2482
      %2503 = vst [vmem:[#allocation2 + $0x660] sm:$0xff] %v2484
      %2504 = vst [vmem:[#allocation2 + $0x668] sm:$0xff] %v2486
      %2505 = vst [vmem:[#allocation2 + $0x670] sm:$0xff] %v2488
      %2506 = vst [vmem:[#allocation2 + $0x678] sm:$0xff] %v2490
      %v2507 = vld [vmem:[%s219 + $0x4] sm:$0xff]
      %v2508 = vld [vmem:[%s219 + $0xc] sm:$0xff]
      %v2509 = vld [vmem:[%s219 + $0x14] sm:$0xff]
      %v2510 = vld [vmem:[%s219 + $0x1c] sm:$0xff]
      %v2511 = vld [vmem:[%s219 + $0x24] sm:$0xf]
      %v2512 = vld [vmem:[%s219 + $0x2c] sm:$0xff]
      %v2513 = vld [vmem:[%s219 + $0x34] sm:$0xff]
      %v2514 = vld [vmem:[%s219 + $0x3c] sm:$0xff]
      %v2515 = vld [vmem:[%s219 + $0x44] sm:$0xff]
      %v2516 = vld [vmem:[%s219 + $0x4c] sm:$0xf]
      %2527 = vrot.lane.b32.xlu0 %v2507, 17
      %v2528 = vpop.permute.xlu0 %2527
      %2529 = vrot.lane.b32.xlu0 %v2508, 17
      %v2530 = vpop.permute.xlu0 %2529
      %2531 = vrot.lane.b32.xlu0 %v2509, 17
      %v2532 = vpop.permute.xlu0 %2531
      %2533 = vrot.lane.b32.xlu0 %v2510, 17
      %v2534 = vpop.permute.xlu0 %2533
      %2535 = vrot.lane.b32.xlu0 %v2511, 17
      %v2536 = vpop.permute.xlu0 %2535
      %2537 = vrot.lane.b32.xlu0 %v2512, 17
      %v2538 = vpop.permute.xlu0 %2537
      %2539 = vrot.lane.b32.xlu0 %v2513, 17
      %v2540 = vpop.permute.xlu0 %2539
      %2541 = vrot.lane.b32.xlu0 %v2514, 17
      %v2542 = vpop.permute.xlu0 %2541
      %2543 = vrot.lane.b32.xlu0 %v2515, 17
      %v2544 = vpop.permute.xlu0 %2543
      %2545 = vrot.lane.b32.xlu0 %v2516, 17
      %v2546 = vpop.permute.xlu0 %2545
      %v2547 = vrot.slane %v2528, 4
      %v2548 = vrot.slane %v2530, 4
      %v2549 = vrot.slane %v2532, 4
      %v2550 = vrot.slane %v2534, 4
      %v2551 = vrot.slane %v2536, 4
      %v2552 = vrot.slane %v2538, 4
      %v2553 = vrot.slane %v2540, 4
      %v2554 = vrot.slane %v2542, 4
      %v2555 = vrot.slane %v2544, 4
      %v2556 = vrot.slane %v2546, 4
      %v2557 = vsel %vm465, %v2547, %v2548
      %vm2558 = vcmask 138240
      %v2559 = vsel %vm2558, %v2528, %v2557
      %v2560 = vsel %vm465, %v2548, %v2549
      %v2561 = vsel %vm2558, %v2530, %v2560
      %v2562 = vsel %vm465, %v2549, %v2550
      %v2563 = vsel %vm2558, %v2532, %v2562
      %v2564 = vsel %vm465, %v2550, %v2551
      %v2565 = vsel %vm2558, %v2534, %v2564
      %v2566 = vsel %vm465, %v2552, %v2553
      %v2567 = vsel %vm2558, %v2538, %v2566
      %v2568 = vsel %vm465, %v2553, %v2554
      %v2569 = vsel %vm2558, %v2540, %v2568
      %v2570 = vsel %vm465, %v2554, %v2555
      %v2571 = vsel %vm2558, %v2542, %v2570
      %v2572 = vsel %vm465, %v2555, %v2556
      %v2573 = vsel %vm2558, %v2544, %v2572
      %2582 = vst [vmem:[#allocation2 + $0x680] sm:$0xff] %v2559
      %2583 = vst [vmem:[#allocation2 + $0x688] sm:$0xff] %v2561
      %2584 = vst [vmem:[#allocation2 + $0x690] sm:$0xff] %v2563
      %2585 = vst [vmem:[#allocation2 + $0x698] sm:$0xff] %v2565
      %2586 = vst [vmem:[#allocation2 + $0x6a0] sm:$0xff] %v2567
      %2587 = vst [vmem:[#allocation2 + $0x6a8] sm:$0xff] %v2569
      %2588 = vst [vmem:[#allocation2 + $0x6b0] sm:$0xff] %v2571
      %2589 = vst [vmem:[#allocation2 + $0x6b8] sm:$0xff] %v2573
      %v2590 = vld [vmem:[%s1] sm:$0xff]
      %v2591 = vld [vmem:[%s1 + $0x8] sm:$0xff]
      %v2592 = vld [vmem:[%s1 + $0x10] sm:$0xff]
      %v2593 = vld [vmem:[%s1 + $0x18] sm:$0xff]
      %v2594 = vld [vmem:[#allocation2] sm:$0xff]
      %v2595 = vld [vmem:[#allocation2 + $0x8] sm:$0xff]
      %v2596 = vld [vmem:[#allocation2 + $0x10] sm:$0xff]
      %v2597 = vld [vmem:[#allocation2 + $0x18] sm:$0xff]
      %v2598 = vld [vmem:[#allocation2 + $0x20] sm:$0xff]
      %v2599 = vld [vmem:[#allocation2 + $0x28] sm:$0xff]
      %v2600 = vld [vmem:[#allocation2 + $0x30] sm:$0xff]
      %v2601 = vld [vmem:[#allocation2 + $0x38] sm:$0xff]
      %v2602 = vld [vmem:[#allocation2 + $0x40] sm:$0xff]
      %v2603 = vld [vmem:[#allocation2 + $0x48] sm:$0xff]
      %v2604 = vld [vmem:[#allocation2 + $0x50] sm:$0xff]
      %v2605 = vld [vmem:[#allocation2 + $0x58] sm:$0xff]
      %v2606 = vld [vmem:[#allocation2 + $0x60] sm:$0xff]
      %v2607 = vld [vmem:[#allocation2 + $0x68] sm:$0xff]
      %v2608 = vld [vmem:[#allocation2 + $0x70] sm:$0xff]
      %v2609 = vld [vmem:[#allocation2 + $0x78] sm:$0xff]
      %v2610 = vld [vmem:[#allocation2 + $0x80] sm:$0xff]
      %v2611 = vld [vmem:[#allocation2 + $0x88] sm:$0xff]
      %v2612 = vld [vmem:[#allocation2 + $0x90] sm:$0xff]
      %v2613 = vld [vmem:[#allocation2 + $0x98] sm:$0xff]
      %v2614 = vld [vmem:[#allocation2 + $0xa0] sm:$0xff]
      %v2615 = vld [vmem:[#allocation2 + $0xa8] sm:$0xff]
      %v2616 = vld [vmem:[#allocation2 + $0xb0] sm:$0xff]
      %v2617 = vld [vmem:[#allocation2 + $0xb8] sm:$0xff]
      %v2618 = vld [vmem:[#allocation2 + $0xc0] sm:$0xff]
      %v2619 = vld [vmem:[#allocation2 + $0xc8] sm:$0xff]
      %v2620 = vld [vmem:[#allocation2 + $0xd0] sm:$0xff]
      %v2621 = vld [vmem:[#allocation2 + $0xd8] sm:$0xff]
      %v2622 = vld [vmem:[#allocation2 + $0xe0] sm:$0xff]
      %v2623 = vld [vmem:[#allocation2 + $0xe8] sm:$0xff]
      %v2624 = vld [vmem:[#allocation2 + $0xf0] sm:$0xff]
      %v2625 = vld [vmem:[#allocation2 + $0xf8] sm:$0xff]
      %v2626 = vld [vmem:[#allocation2 + $0x100] sm:$0xff]
      %v2627 = vld [vmem:[#allocation2 + $0x108] sm:$0xff]
      %v2628 = vld [vmem:[#allocation2 + $0x110] sm:$0xff]
      %v2629 = vld [vmem:[#allocation2 + $0x118] sm:$0xff]
      %v2630 = vld [vmem:[#allocation2 + $0x120] sm:$0xff]
      %v2631 = vld [vmem:[#allocation2 + $0x128] sm:$0xff]
      %v2632 = vld [vmem:[#allocation2 + $0x130] sm:$0xff]
      %v2633 = vld [vmem:[#allocation2 + $0x138] sm:$0xff]
      %v2634 = vld [vmem:[#allocation2 + $0x140] sm:$0xff]
      %v2635 = vld [vmem:[#allocation2 + $0x148] sm:$0xff]
      %v2636 = vld [vmem:[#allocation2 + $0x150] sm:$0xff]
      %v2637 = vld [vmem:[#allocation2 + $0x158] sm:$0xff]
      %v2638 = vld [vmem:[#allocation2 + $0x160] sm:$0xff]
      %v2639 = vld [vmem:[#allocation2 + $0x168] sm:$0xff]
      %v2640 = vld [vmem:[#allocation2 + $0x170] sm:$0xff]
      %v2641 = vld [vmem:[#allocation2 + $0x178] sm:$0xff]
      %v2642 = vld [vmem:[#allocation2 + $0x180] sm:$0xff]
      %v2643 = vld [vmem:[#allocation2 + $0x188] sm:$0xff]
      %v2644 = vld [vmem:[#allocation2 + $0x190] sm:$0xff]
      %v2645 = vld [vmem:[#allocation2 + $0x198] sm:$0xff]
      %v2646 = vld [vmem:[#allocation2 + $0x1a0] sm:$0xff]
      %v2647 = vld [vmem:[#allocation2 + $0x1a8] sm:$0xff]
      %v2648 = vld [vmem:[#allocation2 + $0x1b0] sm:$0xff]
      %v2649 = vld [vmem:[#allocation2 + $0x1b8] sm:$0xff]
      %v2650 = vld [vmem:[#allocation2 + $0x1c0] sm:$0xff]
      %v2651 = vld [vmem:[#allocation2 + $0x1c8] sm:$0xff]
      %v2652 = vld [vmem:[#allocation2 + $0x1d0] sm:$0xff]
      %v2653 = vld [vmem:[#allocation2 + $0x1d8] sm:$0xff]
      %v2654 = vld [vmem:[#allocation2 + $0x1e0] sm:$0xff]
      %v2655 = vld [vmem:[#allocation2 + $0x1e8] sm:$0xff]
      %v2656 = vld [vmem:[#allocation2 + $0x1f0] sm:$0xff]
      %v2657 = vld [vmem:[#allocation2 + $0x1f8] sm:$0xff]
      %v2658 = vld [vmem:[#allocation2 + $0x200] sm:$0xff]
      %v2659 = vld [vmem:[#allocation2 + $0x208] sm:$0xff]
      %v2660 = vld [vmem:[#allocation2 + $0x210] sm:$0xff]
      %v2661 = vld [vmem:[#allocation2 + $0x218] sm:$0xff]
      %v2662 = vld [vmem:[#allocation2 + $0x220] sm:$0xff]
      %v2663 = vld [vmem:[#allocation2 + $0x228] sm:$0xff]
      %v2664 = vld [vmem:[#allocation2 + $0x230] sm:$0xff]
      %v2665 = vld [vmem:[#allocation2 + $0x238] sm:$0xff]
      %v2666 = vld [vmem:[#allocation2 + $0x240] sm:$0xff]
      %v2667 = vld [vmem:[#allocation2 + $0x248] sm:$0xff]
      %v2668 = vld [vmem:[#allocation2 + $0x250] sm:$0xff]
      %v2669 = vld [vmem:[#allocation2 + $0x258] sm:$0xff]
      %v2670 = vld [vmem:[#allocation2 + $0x260] sm:$0xff]
      %v2671 = vld [vmem:[#allocation2 + $0x268] sm:$0xff]
      %v2672 = vld [vmem:[#allocation2 + $0x270] sm:$0xff]
      %v2673 = vld [vmem:[#allocation2 + $0x278] sm:$0xff]
      %v2674 = vld [vmem:[#allocation2 + $0x280] sm:$0xff]
      %v2675 = vld [vmem:[#allocation2 + $0x288] sm:$0xff]
      %v2676 = vld [vmem:[#allocation2 + $0x290] sm:$0xff]
      %v2677 = vld [vmem:[#allocation2 + $0x298] sm:$0xff]
      %v2678 = vld [vmem:[#allocation2 + $0x2a0] sm:$0xff]
      %v2679 = vld [vmem:[#allocation2 + $0x2a8] sm:$0xff]
      %v2680 = vld [vmem:[#allocation2 + $0x2b0] sm:$0xff]
      %v2681 = vld [vmem:[#allocation2 + $0x2b8] sm:$0xff]
      %v2682 = vld [vmem:[#allocation2 + $0x2c0] sm:$0xff]
      %v2683 = vld [vmem:[#allocation2 + $0x2c8] sm:$0xff]
      %v2684 = vld [vmem:[#allocation2 + $0x2d0] sm:$0xff]
      %v2685 = vld [vmem:[#allocation2 + $0x2d8] sm:$0xff]
      %v2686 = vld [vmem:[#allocation2 + $0x2e0] sm:$0xff]
      %v2687 = vld [vmem:[#allocation2 + $0x2e8] sm:$0xff]
      %v2688 = vld [vmem:[#allocation2 + $0x2f0] sm:$0xff]
      %v2689 = vld [vmem:[#allocation2 + $0x2f8] sm:$0xff]
      %v2690 = vld [vmem:[#allocation2 + $0x300] sm:$0xff]
      %v2691 = vld [vmem:[#allocation2 + $0x308] sm:$0xff]
      %v2692 = vld [vmem:[#allocation2 + $0x310] sm:$0xff]
      %v2693 = vld [vmem:[#allocation2 + $0x318] sm:$0xff]
      %v2694 = vld [vmem:[#allocation2 + $0x320] sm:$0xff]
      %v2695 = vld [vmem:[#allocation2 + $0x328] sm:$0xff]
      %v2696 = vld [vmem:[#allocation2 + $0x330] sm:$0xff]
      %v2697 = vld [vmem:[#allocation2 + $0x338] sm:$0xff]
      %v2698 = vld [vmem:[#allocation2 + $0x340] sm:$0xff]
      %v2699 = vld [vmem:[#allocation2 + $0x348] sm:$0xff]
      %v2700 = vld [vmem:[#allocation2 + $0x350] sm:$0xff]
      %v2701 = vld [vmem:[#allocation2 + $0x358] sm:$0xff]
      %v2702 = vld [vmem:[#allocation2 + $0x360] sm:$0xff]
      %v2703 = vld [vmem:[#allocation2 + $0x368] sm:$0xff]
      %v2704 = vld [vmem:[#allocation2 + $0x370] sm:$0xff]
      %v2705 = vld [vmem:[#allocation2 + $0x378] sm:$0xff]
      %v2706 = vld [vmem:[#allocation2 + $0x380] sm:$0xff]
      %v2707 = vld [vmem:[#allocation2 + $0x388] sm:$0xff]
      %v2708 = vld [vmem:[#allocation2 + $0x390] sm:$0xff]
      %v2709 = vld [vmem:[#allocation2 + $0x398] sm:$0xff]
      %v2710 = vld [vmem:[#allocation2 + $0x3a0] sm:$0xff]
      %v2711 = vld [vmem:[#allocation2 + $0x3a8] sm:$0xff]
      %v2712 = vld [vmem:[#allocation2 + $0x3b0] sm:$0xff]
      %v2713 = vld [vmem:[#allocation2 + $0x3b8] sm:$0xff]
      %v2714 = vld [vmem:[#allocation2 + $0x3c0] sm:$0xff]
      %v2715 = vld [vmem:[#allocation2 + $0x3c8] sm:$0xff]
      %v2716 = vld [vmem:[#allocation2 + $0x3d0] sm:$0xff]
      %v2717 = vld [vmem:[#allocation2 + $0x3d8] sm:$0xff]
      %v2718 = vld [vmem:[#allocation2 + $0x3e0] sm:$0xff]
      %v2719 = vld [vmem:[#allocation2 + $0x3e8] sm:$0xff]
      %v2720 = vld [vmem:[#allocation2 + $0x3f0] sm:$0xff]
      %v2721 = vld [vmem:[#allocation2 + $0x3f8] sm:$0xff]
      %v2722 = vld [vmem:[#allocation2 + $0x400] sm:$0xff]
      %v2723 = vld [vmem:[#allocation2 + $0x408] sm:$0xff]
      %v2724 = vld [vmem:[#allocation2 + $0x410] sm:$0xff]
      %v2725 = vld [vmem:[#allocation2 + $0x418] sm:$0xff]
      %v2726 = vld [vmem:[#allocation2 + $0x420] sm:$0xff]
      %v2727 = vld [vmem:[#allocation2 + $0x428] sm:$0xff]
      %v2728 = vld [vmem:[#allocation2 + $0x430] sm:$0xff]
      %v2729 = vld [vmem:[#allocation2 + $0x438] sm:$0xff]
      %v2730 = vld [vmem:[#allocation2 + $0x440] sm:$0xff]
      %v2731 = vld [vmem:[#allocation2 + $0x448] sm:$0xff]
      %v2732 = vld [vmem:[#allocation2 + $0x450] sm:$0xff]
      %v2733 = vld [vmem:[#allocation2 + $0x458] sm:$0xff]
      %v2734 = vld [vmem:[#allocation2 + $0x460] sm:$0xff]
      %v2735 = vld [vmem:[#allocation2 + $0x468] sm:$0xff]
      %v2736 = vld [vmem:[#allocation2 + $0x470] sm:$0xff]
      %v2737 = vld [vmem:[#allocation2 + $0x478] sm:$0xff]
      %v2738 = vld [vmem:[#allocation2 + $0x480] sm:$0xff]
      %v2739 = vld [vmem:[#allocation2 + $0x488] sm:$0xff]
      %v2740 = vld [vmem:[#allocation2 + $0x490] sm:$0xff]
      %v2741 = vld [vmem:[#allocation2 + $0x498] sm:$0xff]
      %v2742 = vld [vmem:[#allocation2 + $0x4a0] sm:$0xff]
      %v2743 = vld [vmem:[#allocation2 + $0x4a8] sm:$0xff]
      %v2744 = vld [vmem:[#allocation2 + $0x4b0] sm:$0xff]
      %v2745 = vld [vmem:[#allocation2 + $0x4b8] sm:$0xff]
      %v2746 = vld [vmem:[#allocation2 + $0x4c0] sm:$0xff]
      %v2747 = vld [vmem:[#allocation2 + $0x4c8] sm:$0xff]
      %v2748 = vld [vmem:[#allocation2 + $0x4d0] sm:$0xff]
      %v2749 = vld [vmem:[#allocation2 + $0x4d8] sm:$0xff]
      %v2750 = vld [vmem:[#allocation2 + $0x4e0] sm:$0xff]
      %v2751 = vld [vmem:[#allocation2 + $0x4e8] sm:$0xff]
      %v2752 = vld [vmem:[#allocation2 + $0x4f0] sm:$0xff]
      %v2753 = vld [vmem:[#allocation2 + $0x4f8] sm:$0xff]
      %v2754 = vld [vmem:[#allocation2 + $0x500] sm:$0xff]
      %v2755 = vld [vmem:[#allocation2 + $0x508] sm:$0xff]
      %v2756 = vld [vmem:[#allocation2 + $0x510] sm:$0xff]
      %v2757 = vld [vmem:[#allocation2 + $0x518] sm:$0xff]
      %v2758 = vld [vmem:[#allocation2 + $0x520] sm:$0xff]
      %v2759 = vld [vmem:[#allocation2 + $0x528] sm:$0xff]
      %v2760 = vld [vmem:[#allocation2 + $0x530] sm:$0xff]
      %v2761 = vld [vmem:[#allocation2 + $0x538] sm:$0xff]
      %v2762 = vld [vmem:[#allocation2 + $0x540] sm:$0xff]
      %v2763 = vld [vmem:[#allocation2 + $0x548] sm:$0xff]
      %v2764 = vld [vmem:[#allocation2 + $0x550] sm:$0xff]
      %v2765 = vld [vmem:[#allocation2 + $0x558] sm:$0xff]
      %v2766 = vld [vmem:[#allocation2 + $0x560] sm:$0xff]
      %v2767 = vld [vmem:[#allocation2 + $0x568] sm:$0xff]
      %v2768 = vld [vmem:[#allocation2 + $0x570] sm:$0xff]
      %v2769 = vld [vmem:[#allocation2 + $0x578] sm:$0xff]
      %v2770 = vld [vmem:[#allocation2 + $0x580] sm:$0xff]
      %v2771 = vld [vmem:[#allocation2 + $0x588] sm:$0xff]
      %v2772 = vld [vmem:[#allocation2 + $0x590] sm:$0xff]
      %v2773 = vld [vmem:[#allocation2 + $0x598] sm:$0xff]
      %v2774 = vld [vmem:[#allocation2 + $0x5a0] sm:$0xff]
      %v2775 = vld [vmem:[#allocation2 + $0x5a8] sm:$0xff]
      %v2776 = vld [vmem:[#allocation2 + $0x5b0] sm:$0xff]
      %v2777 = vld [vmem:[#allocation2 + $0x5b8] sm:$0xff]
      %v2778 = vld [vmem:[#allocation2 + $0x5c0] sm:$0xff]
      %v2779 = vld [vmem:[#allocation2 + $0x5c8] sm:$0xff]
      %v2780 = vld [vmem:[#allocation2 + $0x5d0] sm:$0xff]
      %v2781 = vld [vmem:[#allocation2 + $0x5d8] sm:$0xff]
      %v2782 = vld [vmem:[#allocation2 + $0x5e0] sm:$0xff]
      %v2783 = vld [vmem:[#allocation2 + $0x5e8] sm:$0xff]
      %v2784 = vld [vmem:[#allocation2 + $0x5f0] sm:$0xff]
      %v2785 = vld [vmem:[#allocation2 + $0x5f8] sm:$0xff]
      %v2786 = vld [vmem:[#allocation2 + $0x600] sm:$0xff]
      %v2787 = vld [vmem:[#allocation2 + $0x608] sm:$0xff]
      %v2788 = vld [vmem:[#allocation2 + $0x610] sm:$0xff]
      %v2789 = vld [vmem:[#allocation2 + $0x618] sm:$0xff]
      %v2790 = vld [vmem:[#allocation2 + $0x620] sm:$0xff]
      %v2791 = vld [vmem:[#allocation2 + $0x628] sm:$0xff]
      %v2792 = vld [vmem:[#allocation2 + $0x630] sm:$0xff]
      %v2793 = vld [vmem:[#allocation2 + $0x638] sm:$0xff]
      %v2794 = vld [vmem:[#allocation2 + $0x640] sm:$0xff]
      %v2795 = vld [vmem:[#allocation2 + $0x648] sm:$0xff]
      %v2796 = vld [vmem:[#allocation2 + $0x650] sm:$0xff]
      %v2797 = vld [vmem:[#allocation2 + $0x658] sm:$0xff]
      %v2798 = vld [vmem:[#allocation2 + $0x660] sm:$0xff]
      %v2799 = vld [vmem:[#allocation2 + $0x668] sm:$0xff]
      %v2800 = vld [vmem:[#allocation2 + $0x670] sm:$0xff]
      %v2801 = vld [vmem:[#allocation2 + $0x678] sm:$0xff]
      %v2802 = vld [vmem:[#allocation2 + $0x680] sm:$0xff]
      %v2803 = vld [vmem:[#allocation2 + $0x688] sm:$0xff]
      %v2804 = vld [vmem:[#allocation2 + $0x690] sm:$0xff]
      %v2805 = vld [vmem:[#allocation2 + $0x698] sm:$0xff]
      %v2806 = vld [vmem:[#allocation2 + $0x6a0] sm:$0xff]
      %v2807 = vld [vmem:[#allocation2 + $0x6a8] sm:$0xff]
      %v2808 = vld [vmem:[#allocation2 + $0x6b0] sm:$0xff]
      %v2809 = vld [vmem:[#allocation2 + $0x6b8] sm:$0xff]
      %v2814 = vunpack.c.l.b16 %v2590
      %v2815 = vunpack.c.h.b16 %v2590
      %v2816 = vunpack.c.l.b16 %v2591
      %v2817 = vunpack.c.h.b16 %v2591
      %v2818 = vunpack.c.l.b16 %v2592
      %v2819 = vunpack.c.h.b16 %v2592
      %v2820 = vunpack.c.l.b16 %v2593
      %v2821 = vunpack.c.h.b16 %v2593
      %v2822 = vpack.c.b16 %v2818, %v2814
      %v2823 = vpack.c.b16 %v2819, %v2815
      %v2824 = vpack.c.b16 %v2820, %v2816
      %v2825 = vpack.c.b16 %v2821, %v2817
      %v3045 = vunpack.c.l.b16 %v2594
      %v3046 = vunpack.c.h.b16 %v2594
      %v3047 = vunpack.c.l.b16 %v2595
      %v3048 = vunpack.c.h.b16 %v2595
      %v3049 = vunpack.c.l.b16 %v2596
      %v3050 = vunpack.c.h.b16 %v2596
      %v3051 = vunpack.c.l.b16 %v2597
      %v3052 = vunpack.c.h.b16 %v2597
      %v3053 = vunpack.c.l.b16 %v2598
      %v3054 = vunpack.c.h.b16 %v2598
      %v3055 = vunpack.c.l.b16 %v2599
      %v3056 = vunpack.c.h.b16 %v2599
      %v3057 = vunpack.c.l.b16 %v2600
      %v3058 = vunpack.c.h.b16 %v2600
      %v3059 = vunpack.c.l.b16 %v2601
      %v3060 = vunpack.c.h.b16 %v2601
      %v3061 = vunpack.c.l.b16 %v2602
      %v3062 = vunpack.c.h.b16 %v2602
      %v3063 = vunpack.c.l.b16 %v2603
      %v3064 = vunpack.c.h.b16 %v2603
      %v3065 = vunpack.c.l.b16 %v2604
      %v3066 = vunpack.c.h.b16 %v2604
      %v3067 = vunpack.c.l.b16 %v2605
      %v3068 = vunpack.c.h.b16 %v2605
      %v3069 = vunpack.c.l.b16 %v2606
      %v3070 = vunpack.c.h.b16 %v2606
      %v3071 = vunpack.c.l.b16 %v2607
      %v3072 = vunpack.c.h.b16 %v2607
      %v3073 = vunpack.c.l.b16 %v2608
      %v3074 = vunpack.c.h.b16 %v2608
      %v3075 = vunpack.c.l.b16 %v2609
      %v3076 = vunpack.c.h.b16 %v2609
      %v3077 = vunpack.c.l.b16 %v2610
      %v3078 = vunpack.c.h.b16 %v2610
      %v3079 = vunpack.c.l.b16 %v2611
      %v3080 = vunpack.c.h.b16 %v2611
      %v3081 = vunpack.c.l.b16 %v2612
      %v3082 = vunpack.c.h.b16 %v2612
      %v3083 = vunpack.c.l.b16 %v2613
      %v3084 = vunpack.c.h.b16 %v2613
      %v3085 = vunpack.c.l.b16 %v2614
      %v3086 = vunpack.c.h.b16 %v2614
      %v3087 = vunpack.c.l.b16 %v2615
      %v3088 = vunpack.c.h.b16 %v2615
      %v3089 = vunpack.c.l.b16 %v2616
      %v3090 = vunpack.c.h.b16 %v2616
      %v3091 = vunpack.c.l.b16 %v2617
      %v3092 = vunpack.c.h.b16 %v2617
      %v3093 = vunpack.c.l.b16 %v2618
      %v3094 = vunpack.c.h.b16 %v2618
      %v3095 = vunpack.c.l.b16 %v2619
      %v3096 = vunpack.c.h.b16 %v2619
      %v3097 = vunpack.c.l.b16 %v2620
      %v3098 = vunpack.c.h.b16 %v2620
      %v3099 = vunpack.c.l.b16 %v2621
      %v3100 = vunpack.c.h.b16 %v2621
      %v3101 = vunpack.c.l.b16 %v2622
      %v3102 = vunpack.c.h.b16 %v2622
      %v3103 = vunpack.c.l.b16 %v2623
      %v3104 = vunpack.c.h.b16 %v2623
      %v3105 = vunpack.c.l.b16 %v2624
      %v3106 = vunpack.c.h.b16 %v2624
      %v3107 = vunpack.c.l.b16 %v2625
      %v3108 = vunpack.c.h.b16 %v2625
      %v3109 = vunpack.c.l.b16 %v2626
      %v3110 = vunpack.c.h.b16 %v2626
      %v3111 = vunpack.c.l.b16 %v2627
      %v3112 = vunpack.c.h.b16 %v2627
      %v3113 = vunpack.c.l.b16 %v2628
      %v3114 = vunpack.c.h.b16 %v2628
      %v3115 = vunpack.c.l.b16 %v2629
      %v3116 = vunpack.c.h.b16 %v2629
      %v3117 = vunpack.c.l.b16 %v2630
      %v3118 = vunpack.c.h.b16 %v2630
      %v3119 = vunpack.c.l.b16 %v2631
      %v3120 = vunpack.c.h.b16 %v2631
      %v3121 = vunpack.c.l.b16 %v2632
      %v3122 = vunpack.c.h.b16 %v2632
      %v3123 = vunpack.c.l.b16 %v2633
      %v3124 = vunpack.c.h.b16 %v2633
      %v3125 = vunpack.c.l.b16 %v2634
      %v3126 = vunpack.c.h.b16 %v2634
      %v3127 = vunpack.c.l.b16 %v2635
      %v3128 = vunpack.c.h.b16 %v2635
      %v3129 = vunpack.c.l.b16 %v2636
      %v3130 = vunpack.c.h.b16 %v2636
      %v3131 = vunpack.c.l.b16 %v2637
      %v3132 = vunpack.c.h.b16 %v2637
      %v3133 = vunpack.c.l.b16 %v2638
      %v3134 = vunpack.c.h.b16 %v2638
      %v3135 = vunpack.c.l.b16 %v2639
      %v3136 = vunpack.c.h.b16 %v2639
      %v3137 = vunpack.c.l.b16 %v2640
      %v3138 = vunpack.c.h.b16 %v2640
      %v3139 = vunpack.c.l.b16 %v2641
      %v3140 = vunpack.c.h.b16 %v2641
      %v3141 = vunpack.c.l.b16 %v2642
      %v3142 = vunpack.c.h.b16 %v2642
      %v3143 = vunpack.c.l.b16 %v2643
      %v3144 = vunpack.c.h.b16 %v2643
      %v3145 = vunpack.c.l.b16 %v2644
      %v3146 = vunpack.c.h.b16 %v2644
      %v3147 = vunpack.c.l.b16 %v2645
      %v3148 = vunpack.c.h.b16 %v2645
      %v3149 = vunpack.c.l.b16 %v2646
      %v3150 = vunpack.c.h.b16 %v2646
      %v3151 = vunpack.c.l.b16 %v2647
      %v3152 = vunpack.c.h.b16 %v2647
      %v3153 = vunpack.c.l.b16 %v2648
      %v3154 = vunpack.c.h.b16 %v2648
      %v3155 = vunpack.c.l.b16 %v2649
      %v3156 = vunpack.c.h.b16 %v2649
      %v3157 = vunpack.c.l.b16 %v2650
      %v3158 = vunpack.c.h.b16 %v2650
      %v3159 = vunpack.c.l.b16 %v2651
      %v3160 = vunpack.c.h.b16 %v2651
      %v3161 = vunpack.c.l.b16 %v2652
      %v3162 = vunpack.c.h.b16 %v2652
      %v3163 = vunpack.c.l.b16 %v2653
      %v3164 = vunpack.c.h.b16 %v2653
      %v3165 = vunpack.c.l.b16 %v2654
      %v3166 = vunpack.c.h.b16 %v2654
      %v3167 = vunpack.c.l.b16 %v2655
      %v3168 = vunpack.c.h.b16 %v2655
      %v3169 = vunpack.c.l.b16 %v2656
      %v3170 = vunpack.c.h.b16 %v2656
      %v3171 = vunpack.c.l.b16 %v2657
      %v3172 = vunpack.c.h.b16 %v2657
      %v3173 = vunpack.c.l.b16 %v2658
      %v3174 = vunpack.c.h.b16 %v2658
      %v3175 = vunpack.c.l.b16 %v2659
      %v3176 = vunpack.c.h.b16 %v2659
      %v3177 = vunpack.c.l.b16 %v2660
      %v3178 = vunpack.c.h.b16 %v2660
      %v3179 = vunpack.c.l.b16 %v2661
      %v3180 = vunpack.c.h.b16 %v2661
      %v3181 = vunpack.c.l.b16 %v2662
      %v3182 = vunpack.c.h.b16 %v2662
      %v3183 = vunpack.c.l.b16 %v2663
      %v3184 = vunpack.c.h.b16 %v2663
      %v3185 = vunpack.c.l.b16 %v2664
      %v3186 = vunpack.c.h.b16 %v2664
      %v3187 = vunpack.c.l.b16 %v2665
      %v3188 = vunpack.c.h.b16 %v2665
      %v3189 = vunpack.c.l.b16 %v2666
      %v3190 = vunpack.c.h.b16 %v2666
      %v3191 = vunpack.c.l.b16 %v2667
      %v3192 = vunpack.c.h.b16 %v2667
      %v3193 = vunpack.c.l.b16 %v2668
      %v3194 = vunpack.c.h.b16 %v2668
      %v3195 = vunpack.c.l.b16 %v2669
      %v3196 = vunpack.c.h.b16 %v2669
      %v3197 = vunpack.c.l.b16 %v2670
      %v3198 = vunpack.c.h.b16 %v2670
      %v3199 = vunpack.c.l.b16 %v2671
      %v3200 = vunpack.c.h.b16 %v2671
      %v3201 = vunpack.c.l.b16 %v2672
      %v3202 = vunpack.c.h.b16 %v2672
      %v3203 = vunpack.c.l.b16 %v2673
      %v3204 = vunpack.c.h.b16 %v2673
      %v3205 = vunpack.c.l.b16 %v2674
      %v3206 = vunpack.c.h.b16 %v2674
      %v3207 = vunpack.c.l.b16 %v2675
      %v3208 = vunpack.c.h.b16 %v2675
      %v3209 = vunpack.c.l.b16 %v2676
      %v3210 = vunpack.c.h.b16 %v2676
      %v3211 = vunpack.c.l.b16 %v2677
      %v3212 = vunpack.c.h.b16 %v2677
      %v3213 = vunpack.c.l.b16 %v2678
      %v3214 = vunpack.c.h.b16 %v2678
      %v3215 = vunpack.c.l.b16 %v2679
      %v3216 = vunpack.c.h.b16 %v2679
      %v3217 = vunpack.c.l.b16 %v2680
      %v3218 = vunpack.c.h.b16 %v2680
      %v3219 = vunpack.c.l.b16 %v2681
      %v3220 = vunpack.c.h.b16 %v2681
      %v3221 = vunpack.c.l.b16 %v2682
      %v3222 = vunpack.c.h.b16 %v2682
      %v3223 = vunpack.c.l.b16 %v2683
      %v3224 = vunpack.c.h.b16 %v2683
      %v3225 = vunpack.c.l.b16 %v2684
      %v3226 = vunpack.c.h.b16 %v2684
      %v3227 = vunpack.c.l.b16 %v2685
      %v3228 = vunpack.c.h.b16 %v2685
      %v3229 = vunpack.c.l.b16 %v2686
      %v3230 = vunpack.c.h.b16 %v2686
      %v3231 = vunpack.c.l.b16 %v2687
      %v3232 = vunpack.c.h.b16 %v2687
      %v3233 = vunpack.c.l.b16 %v2688
      %v3234 = vunpack.c.h.b16 %v2688
      %v3235 = vunpack.c.l.b16 %v2689
      %v3236 = vunpack.c.h.b16 %v2689
      %v3237 = vunpack.c.l.b16 %v2690
      %v3238 = vunpack.c.h.b16 %v2690
      %v3239 = vunpack.c.l.b16 %v2691
      %v3240 = vunpack.c.h.b16 %v2691
      %v3241 = vunpack.c.l.b16 %v2692
      %v3242 = vunpack.c.h.b16 %v2692
      %v3243 = vunpack.c.l.b16 %v2693
      %v3244 = vunpack.c.h.b16 %v2693
      %v3245 = vunpack.c.l.b16 %v2694
      %v3246 = vunpack.c.h.b16 %v2694
      %v3247 = vunpack.c.l.b16 %v2695
      %v3248 = vunpack.c.h.b16 %v2695
      %v3249 = vunpack.c.l.b16 %v2696
      %v3250 = vunpack.c.h.b16 %v2696
      %v3251 = vunpack.c.l.b16 %v2697
      %v3252 = vunpack.c.h.b16 %v2697
      %v3253 = vunpack.c.l.b16 %v2698
      %v3254 = vunpack.c.h.b16 %v2698
      %v3255 = vunpack.c.l.b16 %v2699
      %v3256 = vunpack.c.h.b16 %v2699
      %v3257 = vunpack.c.l.b16 %v2700
      %v3258 = vunpack.c.h.b16 %v2700
      %v3259 = vunpack.c.l.b16 %v2701
      %v3260 = vunpack.c.h.b16 %v2701
      %v3261 = vunpack.c.l.b16 %v2702
      %v3262 = vunpack.c.h.b16 %v2702
      %v3263 = vunpack.c.l.b16 %v2703
      %v3264 = vunpack.c.h.b16 %v2703
      %v3265 = vunpack.c.l.b16 %v2704
      %v3266 = vunpack.c.h.b16 %v2704
      %v3267 = vunpack.c.l.b16 %v2705
      %v3268 = vunpack.c.h.b16 %v2705
      %v3269 = vunpack.c.l.b16 %v2706
      %v3270 = vunpack.c.h.b16 %v2706
      %v3271 = vunpack.c.l.b16 %v2707
      %v3272 = vunpack.c.h.b16 %v2707
      %v3273 = vunpack.c.l.b16 %v2708
      %v3274 = vunpack.c.h.b16 %v2708
      %v3275 = vunpack.c.l.b16 %v2709
      %v3276 = vunpack.c.h.b16 %v2709
      %v3277 = vunpack.c.l.b16 %v2710
      %v3278 = vunpack.c.h.b16 %v2710
      %v3279 = vunpack.c.l.b16 %v2711
      %v3280 = vunpack.c.h.b16 %v2711
      %v3281 = vunpack.c.l.b16 %v2712
      %v3282 = vunpack.c.h.b16 %v2712
      %v3283 = vunpack.c.l.b16 %v2713
      %v3284 = vunpack.c.h.b16 %v2713
      %v3285 = vunpack.c.l.b16 %v2714
      %v3286 = vunpack.c.h.b16 %v2714
      %v3287 = vunpack.c.l.b16 %v2715
      %v3288 = vunpack.c.h.b16 %v2715
      %v3289 = vunpack.c.l.b16 %v2716
      %v3290 = vunpack.c.h.b16 %v2716
      %v3291 = vunpack.c.l.b16 %v2717
      %v3292 = vunpack.c.h.b16 %v2717
      %v3293 = vunpack.c.l.b16 %v2718
      %v3294 = vunpack.c.h.b16 %v2718
      %v3295 = vunpack.c.l.b16 %v2719
      %v3296 = vunpack.c.h.b16 %v2719
      %v3297 = vunpack.c.l.b16 %v2720
      %v3298 = vunpack.c.h.b16 %v2720
      %v3299 = vunpack.c.l.b16 %v2721
      %v3300 = vunpack.c.h.b16 %v2721
      %v3301 = vunpack.c.l.b16 %v2722
      %v3302 = vunpack.c.h.b16 %v2722
      %v3303 = vunpack.c.l.b16 %v2723
      %v3304 = vunpack.c.h.b16 %v2723
      %v3305 = vunpack.c.l.b16 %v2724
      %v3306 = vunpack.c.h.b16 %v2724
      %v3307 = vunpack.c.l.b16 %v2725
      %v3308 = vunpack.c.h.b16 %v2725
      %v3309 = vunpack.c.l.b16 %v2726
      %v3310 = vunpack.c.h.b16 %v2726
      %v3311 = vunpack.c.l.b16 %v2727
      %v3312 = vunpack.c.h.b16 %v2727
      %v3313 = vunpack.c.l.b16 %v2728
      %v3314 = vunpack.c.h.b16 %v2728
      %v3315 = vunpack.c.l.b16 %v2729
      %v3316 = vunpack.c.h.b16 %v2729
      %v3317 = vunpack.c.l.b16 %v2730
      %v3318 = vunpack.c.h.b16 %v2730
      %v3319 = vunpack.c.l.b16 %v2731
      %v3320 = vunpack.c.h.b16 %v2731
      %v3321 = vunpack.c.l.b16 %v2732
      %v3322 = vunpack.c.h.b16 %v2732
      %v3323 = vunpack.c.l.b16 %v2733
      %v3324 = vunpack.c.h.b16 %v2733
      %v3325 = vunpack.c.l.b16 %v2734
      %v3326 = vunpack.c.h.b16 %v2734
      %v3327 = vunpack.c.l.b16 %v2735
      %v3328 = vunpack.c.h.b16 %v2735
      %v3329 = vunpack.c.l.b16 %v2736
      %v3330 = vunpack.c.h.b16 %v2736
      %v3331 = vunpack.c.l.b16 %v2737
      %v3332 = vunpack.c.h.b16 %v2737
      %v3333 = vunpack.c.l.b16 %v2738
      %v3334 = vunpack.c.h.b16 %v2738
      %v3335 = vunpack.c.l.b16 %v2739
      %v3336 = vunpack.c.h.b16 %v2739
      %v3337 = vunpack.c.l.b16 %v2740
      %v3338 = vunpack.c.h.b16 %v2740
      %v3339 = vunpack.c.l.b16 %v2741
      %v3340 = vunpack.c.h.b16 %v2741
      %v3341 = vunpack.c.l.b16 %v2742
      %v3342 = vunpack.c.h.b16 %v2742
      %v3343 = vunpack.c.l.b16 %v2743
      %v3344 = vunpack.c.h.b16 %v2743
      %v3345 = vunpack.c.l.b16 %v2744
      %v3346 = vunpack.c.h.b16 %v2744
      %v3347 = vunpack.c.l.b16 %v2745
      %v3348 = vunpack.c.h.b16 %v2745
      %v3349 = vunpack.c.l.b16 %v2746
      %v3350 = vunpack.c.h.b16 %v2746
      %v3351 = vunpack.c.l.b16 %v2747
      %v3352 = vunpack.c.h.b16 %v2747
      %v3353 = vunpack.c.l.b16 %v2748
      %v3354 = vunpack.c.h.b16 %v2748
      %v3355 = vunpack.c.l.b16 %v2749
      %v3356 = vunpack.c.h.b16 %v2749
      %v3357 = vunpack.c.l.b16 %v2750
      %v3358 = vunpack.c.h.b16 %v2750
      %v3359 = vunpack.c.l.b16 %v2751
      %v3360 = vunpack.c.h.b16 %v2751
      %v3361 = vunpack.c.l.b16 %v2752
      %v3362 = vunpack.c.h.b16 %v2752
      %v3363 = vunpack.c.l.b16 %v2753
      %v3364 = vunpack.c.h.b16 %v2753
      %v3365 = vunpack.c.l.b16 %v2754
      %v3366 = vunpack.c.h.b16 %v2754
      %v3367 = vunpack.c.l.b16 %v2755
      %v3368 = vunpack.c.h.b16 %v2755
      %v3369 = vunpack.c.l.b16 %v2756
      %v3370 = vunpack.c.h.b16 %v2756
      %v3371 = vunpack.c.l.b16 %v2757
      %v3372 = vunpack.c.h.b16 %v2757
      %v3373 = vunpack.c.l.b16 %v2758
      %v3374 = vunpack.c.h.b16 %v2758
      %v3375 = vunpack.c.l.b16 %v2759
      %v3376 = vunpack.c.h.b16 %v2759
      %v3377 = vunpack.c.l.b16 %v2760
      %v3378 = vunpack.c.h.b16 %v2760
      %v3379 = vunpack.c.l.b16 %v2761
      %v3380 = vunpack.c.h.b16 %v2761
      %v3381 = vunpack.c.l.b16 %v2762
      %v3382 = vunpack.c.h.b16 %v2762
      %v3383 = vunpack.c.l.b16 %v2763
      %v3384 = vunpack.c.h.b16 %v2763
      %v3385 = vunpack.c.l.b16 %v2764
      %v3386 = vunpack.c.h.b16 %v2764
      %v3387 = vunpack.c.l.b16 %v2765
      %v3388 = vunpack.c.h.b16 %v2765
      %v3389 = vunpack.c.l.b16 %v2766
      %v3390 = vunpack.c.h.b16 %v2766
      %v3391 = vunpack.c.l.b16 %v2767
      %v3392 = vunpack.c.h.b16 %v2767
      %v3393 = vunpack.c.l.b16 %v2768
      %v3394 = vunpack.c.h.b16 %v2768
      %v3395 = vunpack.c.l.b16 %v2769
      %v3396 = vunpack.c.h.b16 %v2769
      %v3397 = vunpack.c.l.b16 %v2770
      %v3398 = vunpack.c.h.b16 %v2770
      %v3399 = vunpack.c.l.b16 %v2771
      %v3400 = vunpack.c.h.b16 %v2771
      %v3401 = vunpack.c.l.b16 %v2772
      %v3402 = vunpack.c.h.b16 %v2772
      %v3403 = vunpack.c.l.b16 %v2773
      %v3404 = vunpack.c.h.b16 %v2773
      %v3405 = vunpack.c.l.b16 %v2774
      %v3406 = vunpack.c.h.b16 %v2774
      %v3407 = vunpack.c.l.b16 %v2775
      %v3408 = vunpack.c.h.b16 %v2775
      %v3409 = vunpack.c.l.b16 %v2776
      %v3410 = vunpack.c.h.b16 %v2776
      %v3411 = vunpack.c.l.b16 %v2777
      %v3412 = vunpack.c.h.b16 %v2777
      %v3413 = vunpack.c.l.b16 %v2778
      %v3414 = vunpack.c.h.b16 %v2778
      %v3415 = vunpack.c.l.b16 %v2779
      %v3416 = vunpack.c.h.b16 %v2779
      %v3417 = vunpack.c.l.b16 %v2780
      %v3418 = vunpack.c.h.b16 %v2780
      %v3419 = vunpack.c.l.b16 %v2781
      %v3420 = vunpack.c.h.b16 %v2781
      %v3421 = vunpack.c.l.b16 %v2782
      %v3422 = vunpack.c.h.b16 %v2782
      %v3423 = vunpack.c.l.b16 %v2783
      %v3424 = vunpack.c.h.b16 %v2783
      %v3425 = vunpack.c.l.b16 %v2784
      %v3426 = vunpack.c.h.b16 %v2784
      %v3427 = vunpack.c.l.b16 %v2785
      %v3428 = vunpack.c.h.b16 %v2785
      %v3429 = vunpack.c.l.b16 %v2786
      %v3430 = vunpack.c.h.b16 %v2786
      %v3431 = vunpack.c.l.b16 %v2787
      %v3432 = vunpack.c.h.b16 %v2787
      %v3433 = vunpack.c.l.b16 %v2788
      %v3434 = vunpack.c.h.b16 %v2788
      %v3435 = vunpack.c.l.b16 %v2789
      %v3436 = vunpack.c.h.b16 %v2789
      %v3437 = vunpack.c.l.b16 %v2790
      %v3438 = vunpack.c.h.b16 %v2790
      %v3439 = vunpack.c.l.b16 %v2791
      %v3440 = vunpack.c.h.b16 %v2791
      %v3441 = vunpack.c.l.b16 %v2792
      %v3442 = vunpack.c.h.b16 %v2792
      %v3443 = vunpack.c.l.b16 %v2793
      %v3444 = vunpack.c.h.b16 %v2793
      %v3445 = vunpack.c.l.b16 %v2794
      %v3446 = vunpack.c.h.b16 %v2794
      %v3447 = vunpack.c.l.b16 %v2795
      %v3448 = vunpack.c.h.b16 %v2795
      %v3449 = vunpack.c.l.b16 %v2796
      %v3450 = vunpack.c.h.b16 %v2796
      %v3451 = vunpack.c.l.b16 %v2797
      %v3452 = vunpack.c.h.b16 %v2797
      %v3453 = vunpack.c.l.b16 %v2798
      %v3454 = vunpack.c.h.b16 %v2798
      %v3455 = vunpack.c.l.b16 %v2799
      %v3456 = vunpack.c.h.b16 %v2799
      %v3457 = vunpack.c.l.b16 %v2800
      %v3458 = vunpack.c.h.b16 %v2800
      %v3459 = vunpack.c.l.b16 %v2801
      %v3460 = vunpack.c.h.b16 %v2801
      %v3461 = vunpack.c.l.b16 %v2802
      %v3462 = vunpack.c.h.b16 %v2802
      %v3463 = vunpack.c.l.b16 %v2803
      %v3464 = vunpack.c.h.b16 %v2803
      %v3465 = vunpack.c.l.b16 %v2804
      %v3466 = vunpack.c.h.b16 %v2804
      %v3467 = vunpack.c.l.b16 %v2805
      %v3468 = vunpack.c.h.b16 %v2805
      %v3469 = vunpack.c.l.b16 %v2806
      %v3470 = vunpack.c.h.b16 %v2806
      %v3471 = vunpack.c.l.b16 %v2807
      %v3472 = vunpack.c.h.b16 %v2807
      %v3473 = vunpack.c.l.b16 %v2808
      %v3474 = vunpack.c.h.b16 %v2808
      %v3475 = vunpack.c.l.b16 %v2809
      %v3476 = vunpack.c.h.b16 %v2809
      %v3477 = vpack.c.b16 %v3053, %v3045
      %v3478 = vpack.c.b16 %v3054, %v3046
      %v3479 = vpack.c.b16 %v3055, %v3047
      %v3480 = vpack.c.b16 %v3056, %v3048
      %v3481 = vpack.c.b16 %v3057, %v3049
      %v3482 = vpack.c.b16 %v3058, %v3050
      %v3483 = vpack.c.b16 %v3059, %v3051
      %v3484 = vpack.c.b16 %v3060, %v3052
      %v3485 = vpack.c.b16 %v3069, %v3061
      %v3486 = vpack.c.b16 %v3070, %v3062
      %v3487 = vpack.c.b16 %v3071, %v3063
      %v3488 = vpack.c.b16 %v3072, %v3064
      %v3489 = vpack.c.b16 %v3073, %v3065
      %v3490 = vpack.c.b16 %v3074, %v3066
      %v3491 = vpack.c.b16 %v3075, %v3067
      %v3492 = vpack.c.b16 %v3076, %v3068
      %v3493 = vpack.c.b16 %v3085, %v3077
      %v3494 = vpack.c.b16 %v3086, %v3078
      %v3495 = vpack.c.b16 %v3087, %v3079
      %v3496 = vpack.c.b16 %v3088, %v3080
      %v3497 = vpack.c.b16 %v3089, %v3081
      %v3498 = vpack.c.b16 %v3090, %v3082
      %v3499 = vpack.c.b16 %v3091, %v3083
      %v3500 = vpack.c.b16 %v3092, %v3084
      %v3501 = vpack.c.b16 %v3101, %v3093
      %v3502 = vpack.c.b16 %v3102, %v3094
      %v3503 = vpack.c.b16 %v3103, %v3095
      %v3504 = vpack.c.b16 %v3104, %v3096
      %v3505 = vpack.c.b16 %v3105, %v3097
      %v3506 = vpack.c.b16 %v3106, %v3098
      %v3507 = vpack.c.b16 %v3107, %v3099
      %v3508 = vpack.c.b16 %v3108, %v3100
      %v3509 = vpack.c.b16 %v3117, %v3109
      %v3510 = vpack.c.b16 %v3118, %v3110
      %v3511 = vpack.c.b16 %v3119, %v3111
      %v3512 = vpack.c.b16 %v3120, %v3112
      %v3513 = vpack.c.b16 %v3121, %v3113
      %v3514 = vpack.c.b16 %v3122, %v3114
      %v3515 = vpack.c.b16 %v3123, %v3115
      %v3516 = vpack.c.b16 %v3124, %v3116
      %v3517 = vpack.c.b16 %v3133, %v3125
      %v3518 = vpack.c.b16 %v3134, %v3126
      %v3519 = vpack.c.b16 %v3135, %v3127
      %v3520 = vpack.c.b16 %v3136, %v3128
      %v3521 = vpack.c.b16 %v3137, %v3129
      %v3522 = vpack.c.b16 %v3138, %v3130
      %v3523 = vpack.c.b16 %v3139, %v3131
      %v3524 = vpack.c.b16 %v3140, %v3132
      %v3525 = vpack.c.b16 %v3149, %v3141
      %v3526 = vpack.c.b16 %v3150, %v3142
      %v3527 = vpack.c.b16 %v3151, %v3143
      %v3528 = vpack.c.b16 %v3152, %v3144
      %v3529 = vpack.c.b16 %v3153, %v3145
      %v3530 = vpack.c.b16 %v3154, %v3146
      %v3531 = vpack.c.b16 %v3155, %v3147
      %v3532 = vpack.c.b16 %v3156, %v3148
      %v3533 = vpack.c.b16 %v3165, %v3157
      %v3534 = vpack.c.b16 %v3166, %v3158
      %v3535 = vpack.c.b16 %v3167, %v3159
      %v3536 = vpack.c.b16 %v3168, %v3160
      %v3537 = vpack.c.b16 %v3169, %v3161
      %v3538 = vpack.c.b16 %v3170, %v3162
      %v3539 = vpack.c.b16 %v3171, %v3163
      %v3540 = vpack.c.b16 %v3172, %v3164
      %v3541 = vpack.c.b16 %v3181, %v3173
      %v3542 = vpack.c.b16 %v3182, %v3174
      %v3543 = vpack.c.b16 %v3183, %v3175
      %v3544 = vpack.c.b16 %v3184, %v3176
      %v3545 = vpack.c.b16 %v3185, %v3177
      %v3546 = vpack.c.b16 %v3186, %v3178
      %v3547 = vpack.c.b16 %v3187, %v3179
      %v3548 = vpack.c.b16 %v3188, %v3180
      %v3549 = vpack.c.b16 %v3197, %v3189
      %v3550 = vpack.c.b16 %v3198, %v3190
      %v3551 = vpack.c.b16 %v3199, %v3191
      %v3552 = vpack.c.b16 %v3200, %v3192
      %v3553 = vpack.c.b16 %v3201, %v3193
      %v3554 = vpack.c.b16 %v3202, %v3194
      %v3555 = vpack.c.b16 %v3203, %v3195
      %v3556 = vpack.c.b16 %v3204, %v3196
      %v3557 = vpack.c.b16 %v3213, %v3205
      %v3558 = vpack.c.b16 %v3214, %v3206
      %v3559 = vpack.c.b16 %v3215, %v3207
      %v3560 = vpack.c.b16 %v3216, %v3208
      %v3561 = vpack.c.b16 %v3217, %v3209
      %v3562 = vpack.c.b16 %v3218, %v3210
      %v3563 = vpack.c.b16 %v3219, %v3211
      %v3564 = vpack.c.b16 %v3220, %v3212
      %v3565 = vpack.c.b16 %v3229, %v3221
      %v3566 = vpack.c.b16 %v3230, %v3222
      %v3567 = vpack.c.b16 %v3231, %v3223
      %v3568 = vpack.c.b16 %v3232, %v3224
      %v3569 = vpack.c.b16 %v3233, %v3225
      %v3570 = vpack.c.b16 %v3234, %v3226
      %v3571 = vpack.c.b16 %v3235, %v3227
      %v3572 = vpack.c.b16 %v3236, %v3228
      %v3573 = vpack.c.b16 %v3245, %v3237
      %v3574 = vpack.c.b16 %v3246, %v3238
      %v3575 = vpack.c.b16 %v3247, %v3239
      %v3576 = vpack.c.b16 %v3248, %v3240
      %v3577 = vpack.c.b16 %v3249, %v3241
      %v3578 = vpack.c.b16 %v3250, %v3242
      %v3579 = vpack.c.b16 %v3251, %v3243
      %v3580 = vpack.c.b16 %v3252, %v3244
      %v3581 = vpack.c.b16 %v3261, %v3253
      %v3582 = vpack.c.b16 %v3262, %v3254
      %v3583 = vpack.c.b16 %v3263, %v3255
      %v3584 = vpack.c.b16 %v3264, %v3256
      %v3585 = vpack.c.b16 %v3265, %v3257
      %v3586 = vpack.c.b16 %v3266, %v3258
      %v3587 = vpack.c.b16 %v3267, %v3259
      %v3588 = vpack.c.b16 %v3268, %v3260
      %v3589 = vpack.c.b16 %v3277, %v3269
      %v3590 = vpack.c.b16 %v3278, %v3270
      %v3591 = vpack.c.b16 %v3279, %v3271
      %v3592 = vpack.c.b16 %v3280, %v3272
      %v3593 = vpack.c.b16 %v3281, %v3273
      %v3594 = vpack.c.b16 %v3282, %v3274
      %v3595 = vpack.c.b16 %v3283, %v3275
      %v3596 = vpack.c.b16 %v3284, %v3276
      %v3597 = vpack.c.b16 %v3293, %v3285
      %v3598 = vpack.c.b16 %v3294, %v3286
      %v3599 = vpack.c.b16 %v3295, %v3287
      %v3600 = vpack.c.b16 %v3296, %v3288
      %v3601 = vpack.c.b16 %v3297, %v3289
      %v3602 = vpack.c.b16 %v3298, %v3290
      %v3603 = vpack.c.b16 %v3299, %v3291
      %v3604 = vpack.c.b16 %v3300, %v3292
      %v3605 = vpack.c.b16 %v3309, %v3301
      %v3606 = vpack.c.b16 %v3310, %v3302
      %v3607 = vpack.c.b16 %v3311, %v3303
      %v3608 = vpack.c.b16 %v3312, %v3304
      %v3609 = vpack.c.b16 %v3313, %v3305
      %v3610 = vpack.c.b16 %v3314, %v3306
      %v3611 = vpack.c.b16 %v3315, %v3307
      %v3612 = vpack.c.b16 %v3316, %v3308
      %v3613 = vpack.c.b16 %v3325, %v3317
      %v3614 = vpack.c.b16 %v3326, %v3318
      %v3615 = vpack.c.b16 %v3327, %v3319
      %v3616 = vpack.c.b16 %v3328, %v3320
      %v3617 = vpack.c.b16 %v3329, %v3321
      %v3618 = vpack.c.b16 %v3330, %v3322
      %v3619 = vpack.c.b16 %v3331, %v3323
      %v3620 = vpack.c.b16 %v3332, %v3324
      %v3621 = vpack.c.b16 %v3341, %v3333
      %v3622 = vpack.c.b16 %v3342, %v3334
      %v3623 = vpack.c.b16 %v3343, %v3335
      %v3624 = vpack.c.b16 %v3344, %v3336
      %v3625 = vpack.c.b16 %v3345, %v3337
      %v3626 = vpack.c.b16 %v3346, %v3338
      %v3627 = vpack.c.b16 %v3347, %v3339
      %v3628 = vpack.c.b16 %v3348, %v3340
      %v3629 = vpack.c.b16 %v3357, %v3349
      %v3630 = vpack.c.b16 %v3358, %v3350
      %v3631 = vpack.c.b16 %v3359, %v3351
      %v3632 = vpack.c.b16 %v3360, %v3352
      %v3633 = vpack.c.b16 %v3361, %v3353
      %v3634 = vpack.c.b16 %v3362, %v3354
      %v3635 = vpack.c.b16 %v3363, %v3355
      %v3636 = vpack.c.b16 %v3364, %v3356
      %v3637 = vpack.c.b16 %v3373, %v3365
      %v3638 = vpack.c.b16 %v3374, %v3366
      %v3639 = vpack.c.b16 %v3375, %v3367
      %v3640 = vpack.c.b16 %v3376, %v3368
      %v3641 = vpack.c.b16 %v3377, %v3369
      %v3642 = vpack.c.b16 %v3378, %v3370
      %v3643 = vpack.c.b16 %v3379, %v3371
      %v3644 = vpack.c.b16 %v3380, %v3372
      %v3645 = vpack.c.b16 %v3389, %v3381
      %v3646 = vpack.c.b16 %v3390, %v3382
      %v3647 = vpack.c.b16 %v3391, %v3383
      %v3648 = vpack.c.b16 %v3392, %v3384
      %v3649 = vpack.c.b16 %v3393, %v3385
      %v3650 = vpack.c.b16 %v3394, %v3386
      %v3651 = vpack.c.b16 %v3395, %v3387
      %v3652 = vpack.c.b16 %v3396, %v3388
      %v3653 = vpack.c.b16 %v3405, %v3397
      %v3654 = vpack.c.b16 %v3406, %v3398
      %v3655 = vpack.c.b16 %v3407, %v3399
      %v3656 = vpack.c.b16 %v3408, %v3400
      %v3657 = vpack.c.b16 %v3409, %v3401
      %v3658 = vpack.c.b16 %v3410, %v3402
      %v3659 = vpack.c.b16 %v3411, %v3403
      %v3660 = vpack.c.b16 %v3412, %v3404
      %v3661 = vpack.c.b16 %v3421, %v3413
      %v3662 = vpack.c.b16 %v3422, %v3414
      %v3663 = vpack.c.b16 %v3423, %v3415
      %v3664 = vpack.c.b16 %v3424, %v3416
      %v3665 = vpack.c.b16 %v3425, %v3417
      %v3666 = vpack.c.b16 %v3426, %v3418
      %v3667 = vpack.c.b16 %v3427, %v3419
      %v3668 = vpack.c.b16 %v3428, %v3420
      %v3669 = vpack.c.b16 %v3437, %v3429
      %v3670 = vpack.c.b16 %v3438, %v3430
      %v3671 = vpack.c.b16 %v3439, %v3431
      %v3672 = vpack.c.b16 %v3440, %v3432
      %v3673 = vpack.c.b16 %v3441, %v3433
      %v3674 = vpack.c.b16 %v3442, %v3434
      %v3675 = vpack.c.b16 %v3443, %v3435
      %v3676 = vpack.c.b16 %v3444, %v3436
      %v3677 = vpack.c.b16 %v3453, %v3445
      %v3678 = vpack.c.b16 %v3454, %v3446
      %v3679 = vpack.c.b16 %v3455, %v3447
      %v3680 = vpack.c.b16 %v3456, %v3448
      %v3681 = vpack.c.b16 %v3457, %v3449
      %v3682 = vpack.c.b16 %v3458, %v3450
      %v3683 = vpack.c.b16 %v3459, %v3451
      %v3684 = vpack.c.b16 %v3460, %v3452
      %v3685 = vpack.c.b16 %v3469, %v3461
      %v3686 = vpack.c.b16 %v3470, %v3462
      %v3687 = vpack.c.b16 %v3471, %v3463
      %v3688 = vpack.c.b16 %v3472, %v3464
      %v3689 = vpack.c.b16 %v3473, %v3465
      %v3690 = vpack.c.b16 %v3474, %v3466
      %v3691 = vpack.c.b16 %v3475, %v3467
      %v3692 = vpack.c.b16 %v3476, %v3468
      %vm3909 = vcmask 392192
      %v3911 = vsel %vm3909, %v2825, 0
      %3913 = vmatpush.bf16.msra.mxu0 %v3533
      %3914 = vmatpush.bf16.msra.mxu0 %v3525
      %3915 = vmatpush.bf16.msra.mxu0 %v3517
      %3916 = vmatpush.bf16.msra.mxu0 %v3509
      %3917 = vmatpush.bf16.msra.mxu0 %v3501
      %3918 = vmatpush.bf16.msra.mxu0 %v3493
      %3919 = vmatpush.bf16.msra.mxu0 %v3485
      %3920 = vmatpush.bf16.msra.mxu0 %v3477
      %3921 = vmatmul.bf16.gmra.mxu0 %v2822
      %v3922 = vpop.f32.mrf.mxu0
      %v3923 = vadd.f32 0.0, %v3922
      %v3924 = vpop.f32.mrf.mxu0
      %v3925 = vadd.f32 0.0, %v3924
      %3926 = vdwg.mxu0
      %3927 = vmatpush.bf16.msra.mxu0 %v3597
      %3928 = vmatpush.bf16.msra.mxu0 %v3589
      %3929 = vmatpush.bf16.msra.mxu0 %v3581
      %3930 = vmatpush.bf16.msra.mxu0 %v3573
      %3931 = vmatpush.bf16.msra.mxu0 %v3565
      %3932 = vmatpush.bf16.msra.mxu0 %v3557
      %3933 = vmatpush.bf16.msra.mxu0 %v3549
      %3934 = vmatpush.bf16.msra.mxu0 %v3541
      %3935 = vmatmul.bf16.gmra.mxu0 %v2823
      %v3936 = vpop.f32.mrf.mxu0
      %v3937 = vadd.f32 %v3923, %v3936
      %v3938 = vpop.f32.mrf.mxu0
      %v3939 = vadd.f32 %v3925, %v3938
      %3940 = vdwg.mxu0
      %3941 = vmatpush.bf16.msra.mxu0 %v3661
      %3942 = vmatpush.bf16.msra.mxu0 %v3653
      %3943 = vmatpush.bf16.msra.mxu0 %v3645
      %3944 = vmatpush.bf16.msra.mxu0 %v3637
      %3945 = vmatpush.bf16.msra.mxu0 %v3629
      %3946 = vmatpush.bf16.msra.mxu0 %v3621
      %3947 = vmatpush.bf16.msra.mxu0 %v3613
      %3948 = vmatpush.bf16.msra.mxu0 %v3605
      %3949 = vmatmul.bf16.gmra.mxu0 %v2824
      %v3950 = vpop.f32.mrf.mxu0
      %v3951 = vadd.f32 %v3937, %v3950
      %v3952 = vpop.f32.mrf.mxu0
      %v3953 = vadd.f32 %v3939, %v3952
      %3954 = vdwg.mxu0
      %3955 = vmatpush.bf16.msra.mxu0 0
      %3956 = vmatpush.bf16.msra.mxu0 0
      %3957 = vmatpush.bf16.msra.mxu0 0
      %3958 = vmatpush.bf16.msra.mxu0 0
      %3959 = vmatpush.bf16.msra.mxu0 0
      %3960 = vmatpush.bf16.msra.mxu0 %v3685
      %3961 = vmatpush.bf16.msra.mxu0 %v3677
      %3962 = vmatpush.bf16.msra.mxu0 %v3669
      %3963 = vmatmul.bf16.gmra.mxu0 %v3911
      %v3964 = vpop.f32.mrf.mxu0
      %v3965 = vadd.f32 %v3951, %v3964
      %v3966 = vpop.f32.mrf.mxu0
      %v3967 = vadd.f32 %v3953, %v3966
      %3968 = vdwg.mxu0
      %3969 = vmatpush.bf16.msra.mxu0 %v3534
      %3970 = vmatpush.bf16.msra.mxu0 %v3526
      %3971 = vmatpush.bf16.msra.mxu0 %v3518
      %3972 = vmatpush.bf16.msra.mxu0 %v3510
      %3973 = vmatpush.bf16.msra.mxu0 %v3502
      %3974 = vmatpush.bf16.msra.mxu0 %v3494
      %3975 = vmatpush.bf16.msra.mxu0 %v3486
      %3976 = vmatpush.bf16.msra.mxu0 %v3478
      %3977 = vmatmul.bf16.gmra.mxu0 %v2822
      %v3978 = vpop.f32.mrf.mxu0
      %v3979 = vadd.f32 0.0, %v3978
      %v3980 = vpop.f32.mrf.mxu0
      %v3981 = vadd.f32 0.0, %v3980
      %3982 = vdwg.mxu0
      %3983 = vmatpush.bf16.msra.mxu0 %v3598
      %3984 = vmatpush.bf16.msra.mxu0 %v3590
      %3985 = vmatpush.bf16.msra.mxu0 %v3582
      %3986 = vmatpush.bf16.msra.mxu0 %v3574
      %3987 = vmatpush.bf16.msra.mxu0 %v3566
      %3988 = vmatpush.bf16.msra.mxu0 %v3558
      %3989 = vmatpush.bf16.msra.mxu0 %v3550
      %3990 = vmatpush.bf16.msra.mxu0 %v3542
      %3991 = vmatmul.bf16.gmra.mxu0 %v2823
      %v3992 = vpop.f32.mrf.mxu0
      %v3993 = vadd.f32 %v3979, %v3992
      %v3994 = vpop.f32.mrf.mxu0
      %v3995 = vadd.f32 %v3981, %v3994
      %3996 = vdwg.mxu0
      %3997 = vmatpush.bf16.msra.mxu0 %v3662
      %3998 = vmatpush.bf16.msra.mxu0 %v3654
      %3999 = vmatpush.bf16.msra.mxu0 %v3646
      %4000 = vmatpush.bf16.msra.mxu0 %v3638
      %4001 = vmatpush.bf16.msra.mxu0 %v3630
      %4002 = vmatpush.bf16.msra.mxu0 %v3622
      %4003 = vmatpush.bf16.msra.mxu0 %v3614
      %4004 = vmatpush.bf16.msra.mxu0 %v3606
      %4005 = vmatmul.bf16.gmra.mxu0 %v2824
      %v4006 = vpop.f32.mrf.mxu0
      %v4007 = vadd.f32 %v3993, %v4006
      %v4008 = vpop.f32.mrf.mxu0
      %v4009 = vadd.f32 %v3995, %v4008
      %4010 = vdwg.mxu0
      %4011 = vmatpush.bf16.msra.mxu0 0
      %4012 = vmatpush.bf16.msra.mxu0 0
      %4013 = vmatpush.bf16.msra.mxu0 0
      %4014 = vmatpush.bf16.msra.mxu0 0
      %4015 = vmatpush.bf16.msra.mxu0 0
      %4016 = vmatpush.bf16.msra.mxu0 %v3686
      %4017 = vmatpush.bf16.msra.mxu0 %v3678
      %4018 = vmatpush.bf16.msra.mxu0 %v3670
      %4019 = vmatmul.bf16.gmra.mxu0 %v3911
      %v4020 = vpop.f32.mrf.mxu0
      %v4021 = vadd.f32 %v4007, %v4020
      %v4022 = vpop.f32.mrf.mxu0
      %v4023 = vadd.f32 %v4009, %v4022
      %4024 = vdwg.mxu0
      %4025 = vmatpush.bf16.msra.mxu0 %v3535
      %4026 = vmatpush.bf16.msra.mxu0 %v3527
      %4027 = vmatpush.bf16.msra.mxu0 %v3519
      %4028 = vmatpush.bf16.msra.mxu0 %v3511
      %4029 = vmatpush.bf16.msra.mxu0 %v3503
      %4030 = vmatpush.bf16.msra.mxu0 %v3495
      %4031 = vmatpush.bf16.msra.mxu0 %v3487
      %4032 = vmatpush.bf16.msra.mxu0 %v3479
      %4033 = vmatmul.bf16.gmra.mxu0 %v2822
      %v4034 = vpop.f32.mrf.mxu0
      %v4035 = vadd.f32 0.0, %v4034
      %v4036 = vpop.f32.mrf.mxu0
      %v4037 = vadd.f32 0.0, %v4036
      %4038 = vdwg.mxu0
      %4039 = vmatpush.bf16.msra.mxu0 %v3599
      %4040 = vmatpush.bf16.msra.mxu0 %v3591
      %4041 = vmatpush.bf16.msra.mxu0 %v3583
      %4042 = vmatpush.bf16.msra.mxu0 %v3575
      %4043 = vmatpush.bf16.msra.mxu0 %v3567
      %4044 = vmatpush.bf16.msra.mxu0 %v3559
      %4045 = vmatpush.bf16.msra.mxu0 %v3551
      %4046 = vmatpush.bf16.msra.mxu0 %v3543
      %4047 = vmatmul.bf16.gmra.mxu0 %v2823
      %v4048 = vpop.f32.mrf.mxu0
      %v4049 = vadd.f32 %v4035, %v4048
      %v4050 = vpop.f32.mrf.mxu0
      %v4051 = vadd.f32 %v4037, %v4050
      %4052 = vdwg.mxu0
      %4053 = vmatpush.bf16.msra.mxu0 %v3663
      %4054 = vmatpush.bf16.msra.mxu0 %v3655
      %4055 = vmatpush.bf16.msra.mxu0 %v3647
      %4056 = vmatpush.bf16.msra.mxu0 %v3639
      %4057 = vmatpush.bf16.msra.mxu0 %v3631
      %4058 = vmatpush.bf16.msra.mxu0 %v3623
      %4059 = vmatpush.bf16.msra.mxu0 %v3615
      %4060 = vmatpush.bf16.msra.mxu0 %v3607
      %4061 = vmatmul.bf16.gmra.mxu0 %v2824
      %v4062 = vpop.f32.mrf.mxu0
      %v4063 = vadd.f32 %v4049, %v4062
      %v4064 = vpop.f32.mrf.mxu0
      %v4065 = vadd.f32 %v4051, %v4064
      %4066 = vdwg.mxu0
      %4067 = vmatpush.bf16.msra.mxu0 0
      %4068 = vmatpush.bf16.msra.mxu0 0
      %4069 = vmatpush.bf16.msra.mxu0 0
      %4070 = vmatpush.bf16.msra.mxu0 0
      %4071 = vmatpush.bf16.msra.mxu0 0
      %4072 = vmatpush.bf16.msra.mxu0 %v3687
      %4073 = vmatpush.bf16.msra.mxu0 %v3679
      %4074 = vmatpush.bf16.msra.mxu0 %v3671
      %4075 = vmatmul.bf16.gmra.mxu0 %v3911
      %v4076 = vpop.f32.mrf.mxu0
      %v4077 = vadd.f32 %v4063, %v4076
      %v4078 = vpop.f32.mrf.mxu0
      %v4079 = vadd.f32 %v4065, %v4078
      %4080 = vdwg.mxu0
      %4081 = vmatpush.bf16.msra.mxu0 %v3536
      %4082 = vmatpush.bf16.msra.mxu0 %v3528
      %4083 = vmatpush.bf16.msra.mxu0 %v3520
      %4084 = vmatpush.bf16.msra.mxu0 %v3512
      %4085 = vmatpush.bf16.msra.mxu0 %v3504
      %4086 = vmatpush.bf16.msra.mxu0 %v3496
      %4087 = vmatpush.bf16.msra.mxu0 %v3488
      %4088 = vmatpush.bf16.msra.mxu0 %v3480
      %4089 = vmatmul.bf16.gmra.mxu0 %v2822
      %v4090 = vpop.f32.mrf.mxu0
      %v4091 = vadd.f32 0.0, %v4090
      %v4092 = vpop.f32.mrf.mxu0
      %v4093 = vadd.f32 0.0, %v4092
      %4094 = vdwg.mxu0
      %4095 = vmatpush.bf16.msra.mxu0 %v3600
      %4096 = vmatpush.bf16.msra.mxu0 %v3592
      %4097 = vmatpush.bf16.msra.mxu0 %v3584
      %4098 = vmatpush.bf16.msra.mxu0 %v3576
      %4099 = vmatpush.bf16.msra.mxu0 %v3568
      %4100 = vmatpush.bf16.msra.mxu0 %v3560
      %4101 = vmatpush.bf16.msra.mxu0 %v3552
      %4102 = vmatpush.bf16.msra.mxu0 %v3544
      %4103 = vmatmul.bf16.gmra.mxu0 %v2823
      %v4104 = vpop.f32.mrf.mxu0
      %v4105 = vadd.f32 %v4091, %v4104
      %v4106 = vpop.f32.mrf.mxu0
      %v4107 = vadd.f32 %v4093, %v4106
      %4108 = vdwg.mxu0
      %4109 = vmatpush.bf16.msra.mxu0 %v3664
      %4110 = vmatpush.bf16.msra.mxu0 %v3656
      %4111 = vmatpush.bf16.msra.mxu0 %v3648
      %4112 = vmatpush.bf16.msra.mxu0 %v3640
      %4113 = vmatpush.bf16.msra.mxu0 %v3632
      %4114 = vmatpush.bf16.msra.mxu0 %v3624
      %4115 = vmatpush.bf16.msra.mxu0 %v3616
      %4116 = vmatpush.bf16.msra.mxu0 %v3608
      %4117 = vmatmul.bf16.gmra.mxu0 %v2824
      %v4118 = vpop.f32.mrf.mxu0
      %v4119 = vadd.f32 %v4105, %v4118
      %v4120 = vpop.f32.mrf.mxu0
      %v4121 = vadd.f32 %v4107, %v4120
      %4122 = vdwg.mxu0
      %4123 = vmatpush.bf16.msra.mxu0 0
      %4124 = vmatpush.bf16.msra.mxu0 0
      %4125 = vmatpush.bf16.msra.mxu0 0
      %4126 = vmatpush.bf16.msra.mxu0 0
      %4127 = vmatpush.bf16.msra.mxu0 0
      %4128 = vmatpush.bf16.msra.mxu0 %v3688
      %4129 = vmatpush.bf16.msra.mxu0 %v3680
      %4130 = vmatpush.bf16.msra.mxu0 %v3672
      %4131 = vmatmul.bf16.gmra.mxu0 %v3911
      %v4132 = vpop.f32.mrf.mxu0
      %v4133 = vadd.f32 %v4119, %v4132
      %v4134 = vpop.f32.mrf.mxu0
      %v4135 = vadd.f32 %v4121, %v4134
      %4136 = vdwg.mxu0
      %4137 = vmatpush.bf16.msra.mxu0 %v3537
      %4138 = vmatpush.bf16.msra.mxu0 %v3529
      %4139 = vmatpush.bf16.msra.mxu0 %v3521
      %4140 = vmatpush.bf16.msra.mxu0 %v3513
      %4141 = vmatpush.bf16.msra.mxu0 %v3505
      %4142 = vmatpush.bf16.msra.mxu0 %v3497
      %4143 = vmatpush.bf16.msra.mxu0 %v3489
      %4144 = vmatpush.bf16.msra.mxu0 %v3481
      %4145 = vmatmul.bf16.gmra.mxu0 %v2822
      %v4146 = vpop.f32.mrf.mxu0
      %v4147 = vadd.f32 0.0, %v4146
      %v4148 = vpop.f32.mrf.mxu0
      %v4149 = vadd.f32 0.0, %v4148
      %4150 = vdwg.mxu0
      %4151 = vmatpush.bf16.msra.mxu0 %v3601
      %4152 = vmatpush.bf16.msra.mxu0 %v3593
      %4153 = vmatpush.bf16.msra.mxu0 %v3585
      %4154 = vmatpush.bf16.msra.mxu0 %v3577
      %4155 = vmatpush.bf16.msra.mxu0 %v3569
      %4156 = vmatpush.bf16.msra.mxu0 %v3561
      %4157 = vmatpush.bf16.msra.mxu0 %v3553
      %4158 = vmatpush.bf16.msra.mxu0 %v3545
      %4159 = vmatmul.bf16.gmra.mxu0 %v2823
      %v4160 = vpop.f32.mrf.mxu0
      %v4161 = vadd.f32 %v4147, %v4160
      %v4162 = vpop.f32.mrf.mxu0
      %v4163 = vadd.f32 %v4149, %v4162
      %4164 = vdwg.mxu0
      %4165 = vmatpush.bf16.msra.mxu0 %v3665
      %4166 = vmatpush.bf16.msra.mxu0 %v3657
      %4167 = vmatpush.bf16.msra.mxu0 %v3649
      %4168 = vmatpush.bf16.msra.mxu0 %v3641
      %4169 = vmatpush.bf16.msra.mxu0 %v3633
      %4170 = vmatpush.bf16.msra.mxu0 %v3625
      %4171 = vmatpush.bf16.msra.mxu0 %v3617
      %4172 = vmatpush.bf16.msra.mxu0 %v3609
      %4173 = vmatmul.bf16.gmra.mxu0 %v2824
      %v4174 = vpop.f32.mrf.mxu0
      %v4175 = vadd.f32 %v4161, %v4174
      %v4176 = vpop.f32.mrf.mxu0
      %v4177 = vadd.f32 %v4163, %v4176
      %4178 = vdwg.mxu0
      %4179 = vmatpush.bf16.msra.mxu0 0
      %4180 = vmatpush.bf16.msra.mxu0 0
      %4181 = vmatpush.bf16.msra.mxu0 0
      %4182 = vmatpush.bf16.msra.mxu0 0
      %4183 = vmatpush.bf16.msra.mxu0 0
      %4184 = vmatpush.bf16.msra.mxu0 %v3689
      %4185 = vmatpush.bf16.msra.mxu0 %v3681
      %4186 = vmatpush.bf16.msra.mxu0 %v3673
      %4187 = vmatmul.bf16.gmra.mxu0 %v3911
      %v4188 = vpop.f32.mrf.mxu0
      %v4189 = vadd.f32 %v4175, %v4188
      %v4190 = vpop.f32.mrf.mxu0
      %v4191 = vadd.f32 %v4177, %v4190
      %4192 = vdwg.mxu0
      %4193 = vmatpush.bf16.msra.mxu0 %v3538
      %4194 = vmatpush.bf16.msra.mxu0 %v3530
      %4195 = vmatpush.bf16.msra.mxu0 %v3522
      %4196 = vmatpush.bf16.msra.mxu0 %v3514
      %4197 = vmatpush.bf16.msra.mxu0 %v3506
      %4198 = vmatpush.bf16.msra.mxu0 %v3498
      %4199 = vmatpush.bf16.msra.mxu0 %v3490
      %4200 = vmatpush.bf16.msra.mxu0 %v3482
      %4201 = vmatmul.bf16.gmra.mxu0 %v2822
      %v4202 = vpop.f32.mrf.mxu0
      %v4203 = vadd.f32 0.0, %v4202
      %v4204 = vpop.f32.mrf.mxu0
      %v4205 = vadd.f32 0.0, %v4204
      %4206 = vdwg.mxu0
      %4207 = vmatpush.bf16.msra.mxu0 %v3602
      %4208 = vmatpush.bf16.msra.mxu0 %v3594
      %4209 = vmatpush.bf16.msra.mxu0 %v3586
      %4210 = vmatpush.bf16.msra.mxu0 %v3578
      %4211 = vmatpush.bf16.msra.mxu0 %v3570
      %4212 = vmatpush.bf16.msra.mxu0 %v3562
      %4213 = vmatpush.bf16.msra.mxu0 %v3554
      %4214 = vmatpush.bf16.msra.mxu0 %v3546
      %4215 = vmatmul.bf16.gmra.mxu0 %v2823
      %v4216 = vpop.f32.mrf.mxu0
      %v4217 = vadd.f32 %v4203, %v4216
      %v4218 = vpop.f32.mrf.mxu0
      %v4219 = vadd.f32 %v4205, %v4218
      %4220 = vdwg.mxu0
      %4221 = vmatpush.bf16.msra.mxu0 %v3666
      %4222 = vmatpush.bf16.msra.mxu0 %v3658
      %4223 = vmatpush.bf16.msra.mxu0 %v3650
      %4224 = vmatpush.bf16.msra.mxu0 %v3642
      %4225 = vmatpush.bf16.msra.mxu0 %v3634
      %4226 = vmatpush.bf16.msra.mxu0 %v3626
      %4227 = vmatpush.bf16.msra.mxu0 %v3618
      %4228 = vmatpush.bf16.msra.mxu0 %v3610
      %4229 = vmatmul.bf16.gmra.mxu0 %v2824
      %v4230 = vpop.f32.mrf.mxu0
      %v4231 = vadd.f32 %v4217, %v4230
      %v4232 = vpop.f32.mrf.mxu0
      %v4233 = vadd.f32 %v4219, %v4232
      %4234 = vdwg.mxu0
      %4235 = vmatpush.bf16.msra.mxu0 0
      %4236 = vmatpush.bf16.msra.mxu0 0
      %4237 = vmatpush.bf16.msra.mxu0 0
      %4238 = vmatpush.bf16.msra.mxu0 0
      %4239 = vmatpush.bf16.msra.mxu0 0
      %4240 = vmatpush.bf16.msra.mxu0 %v3690
      %4241 = vmatpush.bf16.msra.mxu0 %v3682
      %4242 = vmatpush.bf16.msra.mxu0 %v3674
      %4243 = vmatmul.bf16.gmra.mxu0 %v3911
      %v4244 = vpop.f32.mrf.mxu0
      %v4245 = vadd.f32 %v4231, %v4244
      %v4246 = vpop.f32.mrf.mxu0
      %v4247 = vadd.f32 %v4233, %v4246
      %4248 = vdwg.mxu0
      %4249 = vmatpush.bf16.msra.mxu0 %v3539
      %4250 = vmatpush.bf16.msra.mxu0 %v3531
      %4251 = vmatpush.bf16.msra.mxu0 %v3523
      %4252 = vmatpush.bf16.msra.mxu0 %v3515
      %4253 = vmatpush.bf16.msra.mxu0 %v3507
      %4254 = vmatpush.bf16.msra.mxu0 %v3499
      %4255 = vmatpush.bf16.msra.mxu0 %v3491
      %4256 = vmatpush.bf16.msra.mxu0 %v3483
      %4257 = vmatmul.bf16.gmra.mxu0 %v2822
      %v4258 = vpop.f32.mrf.mxu0
      %v4259 = vadd.f32 0.0, %v4258
      %v4260 = vpop.f32.mrf.mxu0
      %v4261 = vadd.f32 0.0, %v4260
      %4262 = vdwg.mxu0
      %4263 = vmatpush.bf16.msra.mxu0 %v3603
      %4264 = vmatpush.bf16.msra.mxu0 %v3595
      %4265 = vmatpush.bf16.msra.mxu0 %v3587
      %4266 = vmatpush.bf16.msra.mxu0 %v3579
      %4267 = vmatpush.bf16.msra.mxu0 %v3571
      %4268 = vmatpush.bf16.msra.mxu0 %v3563
      %4269 = vmatpush.bf16.msra.mxu0 %v3555
      %4270 = vmatpush.bf16.msra.mxu0 %v3547
      %4271 = vmatmul.bf16.gmra.mxu0 %v2823
      %v4272 = vpop.f32.mrf.mxu0
      %v4273 = vadd.f32 %v4259, %v4272
      %v4274 = vpop.f32.mrf.mxu0
      %v4275 = vadd.f32 %v4261, %v4274
      %4276 = vdwg.mxu0
      %4277 = vmatpush.bf16.msra.mxu0 %v3667
      %4278 = vmatpush.bf16.msra.mxu0 %v3659
      %4279 = vmatpush.bf16.msra.mxu0 %v3651
      %4280 = vmatpush.bf16.msra.mxu0 %v3643
      %4281 = vmatpush.bf16.msra.mxu0 %v3635
      %4282 = vmatpush.bf16.msra.mxu0 %v3627
      %4283 = vmatpush.bf16.msra.mxu0 %v3619
      %4284 = vmatpush.bf16.msra.mxu0 %v3611
      %4285 = vmatmul.bf16.gmra.mxu0 %v2824
      %v4286 = vpop.f32.mrf.mxu0
      %v4287 = vadd.f32 %v4273, %v4286
      %v4288 = vpop.f32.mrf.mxu0
      %v4289 = vadd.f32 %v4275, %v4288
      %4290 = vdwg.mxu0
      %4291 = vmatpush.bf16.msra.mxu0 0
      %4292 = vmatpush.bf16.msra.mxu0 0
      %4293 = vmatpush.bf16.msra.mxu0 0
      %4294 = vmatpush.bf16.msra.mxu0 0
      %4295 = vmatpush.bf16.msra.mxu0 0
      %4296 = vmatpush.bf16.msra.mxu0 %v3691
      %4297 = vmatpush.bf16.msra.mxu0 %v3683
      %4298 = vmatpush.bf16.msra.mxu0 %v3675
      %4299 = vmatmul.bf16.gmra.mxu0 %v3911
      %v4300 = vpop.f32.mrf.mxu0
      %v4301 = vadd.f32 %v4287, %v4300
      %v4302 = vpop.f32.mrf.mxu0
      %v4303 = vadd.f32 %v4289, %v4302
      %4304 = vdwg.mxu0
      %4305 = vmatpush.bf16.msra.mxu0 %v3540
      %4306 = vmatpush.bf16.msra.mxu0 %v3532
      %4307 = vmatpush.bf16.msra.mxu0 %v3524
      %4308 = vmatpush.bf16.msra.mxu0 %v3516
      %4309 = vmatpush.bf16.msra.mxu0 %v3508
      %4310 = vmatpush.bf16.msra.mxu0 %v3500
      %4311 = vmatpush.bf16.msra.mxu0 %v3492
      %4312 = vmatpush.bf16.msra.mxu0 %v3484
      %4313 = vmatmul.bf16.gmra.mxu0 %v2822
      %v4314 = vpop.f32.mrf.mxu0
      %v4315 = vadd.f32 0.0, %v4314
      %v4316 = vpop.f32.mrf.mxu0
      %v4317 = vadd.f32 0.0, %v4316
      %4318 = vdwg.mxu0
      %4319 = vmatpush.bf16.msra.mxu0 %v3604
      %4320 = vmatpush.bf16.msra.mxu0 %v3596
      %4321 = vmatpush.bf16.msra.mxu0 %v3588
      %4322 = vmatpush.bf16.msra.mxu0 %v3580
      %4323 = vmatpush.bf16.msra.mxu0 %v3572
      %4324 = vmatpush.bf16.msra.mxu0 %v3564
      %4325 = vmatpush.bf16.msra.mxu0 %v3556
      %4326 = vmatpush.bf16.msra.mxu0 %v3548
      %4327 = vmatmul.bf16.gmra.mxu0 %v2823
      %v4328 = vpop.f32.mrf.mxu0
      %v4329 = vadd.f32 %v4315, %v4328
      %v4330 = vpop.f32.mrf.mxu0
      %v4331 = vadd.f32 %v4317, %v4330
      %4332 = vdwg.mxu0
      %4333 = vmatpush.bf16.msra.mxu0 %v3668
      %4334 = vmatpush.bf16.msra.mxu0 %v3660
      %4335 = vmatpush.bf16.msra.mxu0 %v3652
      %4336 = vmatpush.bf16.msra.mxu0 %v3644
      %4337 = vmatpush.bf16.msra.mxu0 %v3636
      %4338 = vmatpush.bf16.msra.mxu0 %v3628
      %4339 = vmatpush.bf16.msra.mxu0 %v3620
      %4340 = vmatpush.bf16.msra.mxu0 %v3612
      %4341 = vmatmul.bf16.gmra.mxu0 %v2824
      %v4342 = vpop.f32.mrf.mxu0
      %v4343 = vadd.f32 %v4329, %v4342
      %v4344 = vpop.f32.mrf.mxu0
      %v4345 = vadd.f32 %v4331, %v4344
      %4346 = vdwg.mxu0
      %4347 = vmatpush.bf16.msra.mxu0 0
      %4348 = vmatpush.bf16.msra.mxu0 0
      %4349 = vmatpush.bf16.msra.mxu0 0
      %4350 = vmatpush.bf16.msra.mxu0 0
      %4351 = vmatpush.bf16.msra.mxu0 0
      %4352 = vmatpush.bf16.msra.mxu0 %v3692
      %4353 = vmatpush.bf16.msra.mxu0 %v3684
      %4354 = vmatpush.bf16.msra.mxu0 %v3676
      %4355 = vmatmul.bf16.gmra.mxu0 %v3911
      %v4356 = vpop.f32.mrf.mxu0
      %v4357 = vadd.f32 %v4343, %v4356
      %v4358 = vpop.f32.mrf.mxu0
      %v4359 = vadd.f32 %v4345, %v4358
      %4360 = vdwg.mxu0
      %v4361 = vmul.f32 %v3965, %v228
      %v4362 = vmul.f32 %v4021, %v229
      %v4363 = vmul.f32 %v4077, %v230
      %v4364 = vmul.f32 %v4133, %v231
      %v4365 = vmul.f32 %v4189, %v232
      %v4366 = vmul.f32 %v4245, %v233
      %v4367 = vmul.f32 %v4301, %v234
      %v4368 = vmul.f32 %v4357, %v235
      %v4369 = vmul.f32 %v3967, %v228
      %v4370 = vmul.f32 %v4023, %v229
      %v4371 = vmul.f32 %v4079, %v230
      %v4372 = vmul.f32 %v4135, %v231
      %v4373 = vmul.f32 %v4191, %v232
      %v4374 = vmul.f32 %v4247, %v233
      %v4375 = vmul.f32 %v4303, %v234
      %v4376 = vmul.f32 %v4359, %v235
      %v4377 = vadd.f32 %v4361, %v4362
      %v4378 = vadd.f32 %v4377, %v4363
      %v4379 = vadd.f32 %v4378, %v4364
      %v4380 = vadd.f32 %v4379, %v4365
      %v4381 = vadd.f32 %v4380, %v4366
      %v4382 = vadd.f32 %v4381, %v4367
      %v4383 = vadd.f32 %v4382, %v4368
      %4384 = vadd.xlane.f32.xlu0 %v4383
      %v4385 = vpop.xlane.xlu0 %4384
      %v4386 = vadd.f32 %v4369, %v4370
      %v4387 = vadd.f32 %v4386, %v4371
      %v4388 = vadd.f32 %v4387, %v4372
      %v4389 = vadd.f32 %v4388, %v4373
      %v4390 = vadd.f32 %v4389, %v4374
      %v4391 = vadd.f32 %v4390, %v4375
      %v4392 = vadd.f32 %v4391, %v4376
      %4393 = vadd.xlane.f32.xlu0 %v4392
      %v4394 = vpop.xlane.xlu0 %4393
      %v4395 = vmul.f32 %v4385, 0.001953125
      %v4396 = vmul.f32 %v4394, 0.001953125
      %v4397 = vmul.f32 %v4361, %v4361
      %v4398 = vmul.f32 %v4362, %v4362
      %v4399 = vmul.f32 %v4363, %v4363
      %v4400 = vmul.f32 %v4364, %v4364
      %v4401 = vmul.f32 %v4365, %v4365
      %v4402 = vmul.f32 %v4366, %v4366
      %v4403 = vmul.f32 %v4367, %v4367
      %v4404 = vmul.f32 %v4368, %v4368
      %v4405 = vmul.f32 %v4369, %v4369
      %v4406 = vmul.f32 %v4370, %v4370
      %v4407 = vmul.f32 %v4371, %v4371
      %v4408 = vmul.f32 %v4372, %v4372
      %v4409 = vmul.f32 %v4373, %v4373
      %v4410 = vmul.f32 %v4374, %v4374
      %v4411 = vmul.f32 %v4375, %v4375
      %v4412 = vmul.f32 %v4376, %v4376
      %v4413 = vadd.f32 %v4397, %v4398
      %v4414 = vadd.f32 %v4413, %v4399
      %v4415 = vadd.f32 %v4414, %v4400
      %v4416 = vadd.f32 %v4415, %v4401
      %v4417 = vadd.f32 %v4416, %v4402
      %v4418 = vadd.f32 %v4417, %v4403
      %v4419 = vadd.f32 %v4418, %v4404
      %4420 = vadd.xlane.f32.xlu0 %v4419
      %v4421 = vpop.xlane.xlu0 %4420
      %v4422 = vadd.f32 %v4405, %v4406
      %v4423 = vadd.f32 %v4422, %v4407
      %v4424 = vadd.f32 %v4423, %v4408
      %v4425 = vadd.f32 %v4424, %v4409
      %v4426 = vadd.f32 %v4425, %v4410
      %v4427 = vadd.f32 %v4426, %v4411
      %v4428 = vadd.f32 %v4427, %v4412
      %4429 = vadd.xlane.f32.xlu0 %v4428
      %v4430 = vpop.xlane.xlu0 %4429
      %v4431 = vmul.f32 %v4421, 0.001953125
      %v4432 = vmul.f32 %v4430, 0.001953125
      %v4433 = vmul.f32 %v4395, %v4395
      %v4434 = vmul.f32 %v4396, %v4396
      %v4435 = vsub.f32 %v4431, %v4433
      %v4436 = vsub.f32 %v4432, %v4434
      %v4437 = vsub.f32 %v4361, %v4395
      %v4438 = vsub.f32 %v4362, %v4395
      %v4439 = vsub.f32 %v4363, %v4395
      %v4440 = vsub.f32 %v4364, %v4395
      %v4441 = vsub.f32 %v4365, %v4395
      %v4442 = vsub.f32 %v4366, %v4395
      %v4443 = vsub.f32 %v4367, %v4395
      %v4444 = vsub.f32 %v4368, %v4395
      %v4445 = vsub.f32 %v4369, %v4396
      %v4446 = vsub.f32 %v4370, %v4396
      %v4447 = vsub.f32 %v4371, %v4396
      %v4448 = vsub.f32 %v4372, %v4396
      %v4449 = vsub.f32 %v4373, %v4396
      %v4450 = vsub.f32 %v4374, %v4396
      %v4451 = vsub.f32 %v4375, %v4396
      %v4452 = vsub.f32 %v4376, %v4396
      %v4453 = vadd.f32 %v4435, 1e-05
      %v4454 = vadd.f32 %v4436, 1e-05
      %v4455 = vrsqrt.pop %v4453
      %v4456 = vmul.f32 %v4455, %v4453
      %v4457 = vmul.f32 %v4456, %v4455
      %v4458 = vmul.f32 0.5, %v4457
      %v4459 = vsub.f32 1.5, %v4458
      %v4460 = vmul.f32 %v4455, %v4459
      %vm4461 = vweird.f32 %v4453
      %vm4462 = vweird.f32 %v4455
      %vm4463 = vmor %vm4461, %vm4462
      %v4464 = vsel %vm4463, %v4455, %v4460
      %v4465 = vrsqrt.pop %v4454
      %v4466 = vmul.f32 %v4465, %v4454
      %v4467 = vmul.f32 %v4466, %v4465
      %v4468 = vmul.f32 0.5, %v4467
      %v4469 = vsub.f32 1.5, %v4468
      %v4470 = vmul.f32 %v4465, %v4469
      %vm4471 = vweird.f32 %v4454
      %vm4472 = vweird.f32 %v4465
      %vm4473 = vmor %vm4471, %vm4472
      %v4474 = vsel %vm4473, %v4465, %v4470
      %v4475 = vmul.f32 %v4437, %v4464
      %v4476 = vmul.f32 %v4438, %v4464
      %v4477 = vmul.f32 %v4439, %v4464
      %v4478 = vmul.f32 %v4440, %v4464
      %v4479 = vmul.f32 %v4441, %v4464
      %v4480 = vmul.f32 %v4442, %v4464
      %v4481 = vmul.f32 %v4443, %v4464
      %v4482 = vmul.f32 %v4444, %v4464
      %v4483 = vmul.f32 %v4445, %v4474
      %v4484 = vmul.f32 %v4446, %v4474
      %v4485 = vmul.f32 %v4447, %v4474
      %v4486 = vmul.f32 %v4448, %v4474
      %v4487 = vmul.f32 %v4449, %v4474
      %v4488 = vmul.f32 %v4450, %v4474
      %v4489 = vmul.f32 %v4451, %v4474
      %v4490 = vmul.f32 %v4452, %v4474
      %vm4491 = vcmp.ge.f32.partialorder %v4475, 0.0
      %vm4492 = vcmp.ge.f32.partialorder %v4476, 0.0
      %vm4493 = vcmp.ge.f32.partialorder %v4477, 0.0
      %vm4494 = vcmp.ge.f32.partialorder %v4478, 0.0
      %vm4495 = vcmp.ge.f32.partialorder %v4479, 0.0
      %vm4496 = vcmp.ge.f32.partialorder %v4480, 0.0
      %vm4497 = vcmp.ge.f32.partialorder %v4481, 0.0
      %vm4498 = vcmp.ge.f32.partialorder %v4482, 0.0
      %vm4499 = vcmp.ge.f32.partialorder %v4483, 0.0
      %vm4500 = vcmp.ge.f32.partialorder %v4484, 0.0
      %vm4501 = vcmp.ge.f32.partialorder %v4485, 0.0
      %vm4502 = vcmp.ge.f32.partialorder %v4486, 0.0
      %vm4503 = vcmp.ge.f32.partialorder %v4487, 0.0
      %vm4504 = vcmp.ge.f32.partialorder %v4488, 0.0
      %vm4505 = vcmp.ge.f32.partialorder %v4489, 0.0
      %vm4506 = vcmp.ge.f32.partialorder %v4490, 0.0
      %v4507 = vmul.f32 %v4475, 0.01
      %v4508 = vmul.f32 %v4476, 0.01
      %v4509 = vmul.f32 %v4477, 0.01
      %v4510 = vmul.f32 %v4478, 0.01
      %v4511 = vmul.f32 %v4479, 0.01
      %v4512 = vmul.f32 %v4480, 0.01
      %v4513 = vmul.f32 %v4481, 0.01
      %v4514 = vmul.f32 %v4482, 0.01
      %v4515 = vmul.f32 %v4483, 0.01
      %v4516 = vmul.f32 %v4484, 0.01
      %v4517 = vmul.f32 %v4485, 0.01
      %v4518 = vmul.f32 %v4486, 0.01
      %v4519 = vmul.f32 %v4487, 0.01
      %v4520 = vmul.f32 %v4488, 0.01
      %v4521 = vmul.f32 %v4489, 0.01
      %v4522 = vmul.f32 %v4490, 0.01
      %v4523 = vsel %vm4491, %v4475, %v4507
      %v4524 = vsel %vm4492, %v4476, %v4508
      %v4525 = vsel %vm4493, %v4477, %v4509
      %v4526 = vsel %vm4494, %v4478, %v4510
      %v4527 = vsel %vm4495, %v4479, %v4511
      %v4528 = vsel %vm4496, %v4480, %v4512
      %v4529 = vsel %vm4497, %v4481, %v4513
      %v4530 = vsel %vm4498, %v4482, %v4514
      %v4531 = vsel %vm4499, %v4483, %v4515
      %v4532 = vsel %vm4500, %v4484, %v4516
      %v4533 = vsel %vm4501, %v4485, %v4517
      %v4534 = vsel %vm4502, %v4486, %v4518
      %v4535 = vsel %vm4503, %v4487, %v4519
      %v4536 = vsel %vm4504, %v4488, %v4520
      %v4537 = vsel %vm4505, %v4489, %v4521
      %v4538 = vsel %vm4506, %v4490, %v4522
      %v4539 = vmul.f32 %v4523, %v228
      %v4540 = vmul.f32 %v4524, %v229
      %v4541 = vmul.f32 %v4525, %v230
      %v4542 = vmul.f32 %v4526, %v231
      %v4543 = vmul.f32 %v4527, %v232
      %v4544 = vmul.f32 %v4528, %v233
      %v4545 = vmul.f32 %v4529, %v234
      %v4546 = vmul.f32 %v4530, %v235
      %v4547 = vmul.f32 %v4531, %v228
      %v4548 = vmul.f32 %v4532, %v229
      %v4549 = vmul.f32 %v4533, %v230
      %v4550 = vmul.f32 %v4534, %v231
      %v4551 = vmul.f32 %v4535, %v232
      %v4552 = vmul.f32 %v4536, %v233
      %v4553 = vmul.f32 %v4537, %v234
      %v4554 = vmul.f32 %v4538, %v235
      %4555 = vst [vmem:[#allocation3] sm:$0xf] 0
      %4556 = vst [vmem:[#allocation3 + $0x28] sm:$0xf] 0
      %4557 = vst [vmem:[#allocation3 + $0x24] sm:$0xf] 0
      %4558 = vst [vmem:[#allocation3 + $0x4c] sm:$0xf] 0
      %v4559 = vpack.c.bf16 %v4540, %v4539
      %v4560 = vpack.c.bf16 %v4542, %v4541
      %v4561 = vpack.c.bf16 %v4544, %v4543
      %v4562 = vpack.c.bf16 %v4546, %v4545
      %v4563 = vpack.c.bf16 %v4548, %v4547
      %v4564 = vpack.c.bf16 %v4550, %v4549
      %v4565 = vpack.c.bf16 %v4552, %v4551
      %v4566 = vpack.c.bf16 %v4554, %v4553
      %4567 = vst [vmem:[#allocation3 + $0x4] sm:$0xff] %v4559
      %4568 = vst [vmem:[#allocation3 + $0xc] sm:$0xff] %v4560
      %4569 = vst [vmem:[#allocation3 + $0x14] sm:$0xff] %v4561
      %4570 = vst [vmem:[#allocation3 + $0x1c] sm:$0xff] %v4562
      %4571 = vst [vmem:[#allocation3 + $0x2c] sm:$0xff] %v4563
      %4572 = vst [vmem:[#allocation3 + $0x34] sm:$0xff] %v4564
      %4573 = vst [vmem:[#allocation3 + $0x3c] sm:$0xff] %v4565
      %4574 = vst [vmem:[#allocation3 + $0x44] sm:$0xff] %v4566
      %v4575 = vld [vmem:[#allocation3] sm:$0xff]
      %v4576 = vld [vmem:[#allocation3 + $0x8] sm:$0xff]
      %v4577 = vld [vmem:[#allocation3 + $0x10] sm:$0xff]
      %v4578 = vld [vmem:[#allocation3 + $0x18] sm:$0xff]
      %v4579 = vld [vmem:[#allocation3 + $0x20] sm:$0xf]
      %v4580 = vld [vmem:[#allocation3 + $0x28] sm:$0xff]
      %v4581 = vld [vmem:[#allocation3 + $0x30] sm:$0xff]
      %v4582 = vld [vmem:[#allocation3 + $0x38] sm:$0xff]
      %v4583 = vld [vmem:[#allocation3 + $0x40] sm:$0xff]
      %v4584 = vld [vmem:[#allocation3 + $0x48] sm:$0xf]
      %4595 = vrot.lane.b32.xlu0 %v4575, 111
      %v4596 = vpop.permute.xlu0 %4595
      %4597 = vrot.lane.b32.xlu0 %v4576, 111
      %v4598 = vpop.permute.xlu0 %4597
      %4599 = vrot.lane.b32.xlu0 %v4577, 111
      %v4600 = vpop.permute.xlu0 %4599
      %4601 = vrot.lane.b32.xlu0 %v4578, 111
      %v4602 = vpop.permute.xlu0 %4601
      %4603 = vrot.lane.b32.xlu0 %v4579, 111
      %v4604 = vpop.permute.xlu0 %4603
      %4605 = vrot.lane.b32.xlu0 %v4580, 111
      %v4606 = vpop.permute.xlu0 %4605
      %4607 = vrot.lane.b32.xlu0 %v4581, 111
      %v4608 = vpop.permute.xlu0 %4607
      %4609 = vrot.lane.b32.xlu0 %v4582, 111
      %v4610 = vpop.permute.xlu0 %4609
      %4611 = vrot.lane.b32.xlu0 %v4583, 111
      %v4612 = vpop.permute.xlu0 %4611
      %4613 = vrot.lane.b32.xlu0 %v4584, 111
      %v4614 = vpop.permute.xlu0 %4613
      %v4615 = vrot.slane %v4596, 4
      %v4616 = vrot.slane %v4598, 4
      %v4617 = vrot.slane %v4600, 4
      %v4618 = vrot.slane %v4602, 4
      %v4619 = vrot.slane %v4604, 4
      %v4620 = vrot.slane %v4606, 4
      %v4621 = vrot.slane %v4608, 4
      %v4622 = vrot.slane %v4610, 4
      %v4623 = vrot.slane %v4612, 4
      %v4624 = vrot.slane %v4614, 4
      %v4625 = vsel %vm465, %v4615, %v4616
      %v4626 = vsel %vm467, %v4596, %v4625
      %v4627 = vsel %vm465, %v4616, %v4617
      %v4628 = vsel %vm467, %v4598, %v4627
      %v4629 = vsel %vm465, %v4617, %v4618
      %v4630 = vsel %vm467, %v4600, %v4629
      %v4631 = vsel %vm465, %v4618, %v4619
      %v4632 = vsel %vm467, %v4602, %v4631
      %v4633 = vsel %vm465, %v4620, %v4621
      %v4634 = vsel %vm467, %v4606, %v4633
      %v4635 = vsel %vm465, %v4621, %v4622
      %v4636 = vsel %vm467, %v4608, %v4635
      %v4637 = vsel %vm465, %v4622, %v4623
      %v4638 = vsel %vm467, %v4610, %v4637
      %v4639 = vsel %vm465, %v4623, %v4624
      %v4640 = vsel %vm467, %v4612, %v4639
      %4649 = vst [vmem:[#allocation2] sm:$0xff] %v4626
      %4650 = vst [vmem:[#allocation2 + $0x8] sm:$0xff] %v4628
      %4651 = vst [vmem:[#allocation2 + $0x10] sm:$0xff] %v4630
      %4652 = vst [vmem:[#allocation2 + $0x18] sm:$0xff] %v4632
      %4653 = vst [vmem:[#allocation2 + $0x20] sm:$0xff] %v4634
      %4654 = vst [vmem:[#allocation2 + $0x28] sm:$0xff] %v4636
      %4655 = vst [vmem:[#allocation2 + $0x30] sm:$0xff] %v4638
      %4656 = vst [vmem:[#allocation2 + $0x38] sm:$0xff] %v4640
      %v4657 = vld [vmem:[#allocation3] sm:$0xff]
      %v4658 = vld [vmem:[#allocation3 + $0x8] sm:$0xff]
      %v4659 = vld [vmem:[#allocation3 + $0x10] sm:$0xff]
      %v4660 = vld [vmem:[#allocation3 + $0x18] sm:$0xff]
      %v4661 = vld [vmem:[#allocation3 + $0x20] sm:$0xf]
      %v4662 = vld [vmem:[#allocation3 + $0x28] sm:$0xff]
      %v4663 = vld [vmem:[#allocation3 + $0x30] sm:$0xff]
      %v4664 = vld [vmem:[#allocation3 + $0x38] sm:$0xff]
      %v4665 = vld [vmem:[#allocation3 + $0x40] sm:$0xff]
      %v4666 = vld [vmem:[#allocation3 + $0x48] sm:$0xf]
      %4677 = vrot.lane.b32.xlu0 %v4657, 110
      %v4678 = vpop.permute.xlu0 %4677
      %4679 = vrot.lane.b32.xlu0 %v4658, 110
      %v4680 = vpop.permute.xlu0 %4679
      %4681 = vrot.lane.b32.xlu0 %v4659, 110
      %v4682 = vpop.permute.xlu0 %4681
      %4683 = vrot.lane.b32.xlu0 %v4660, 110
      %v4684 = vpop.permute.xlu0 %4683
      %4685 = vrot.lane.b32.xlu0 %v4661, 110
      %v4686 = vpop.permute.xlu0 %4685
      %4687 = vrot.lane.b32.xlu0 %v4662, 110
      %v4688 = vpop.permute.xlu0 %4687
      %4689 = vrot.lane.b32.xlu0 %v4663, 110
      %v4690 = vpop.permute.xlu0 %4689
      %4691 = vrot.lane.b32.xlu0 %v4664, 110
      %v4692 = vpop.permute.xlu0 %4691
      %4693 = vrot.lane.b32.xlu0 %v4665, 110
      %v4694 = vpop.permute.xlu0 %4693
      %4695 = vrot.lane.b32.xlu0 %v4666, 110
      %v4696 = vpop.permute.xlu0 %4695
      %v4697 = vrot.slane %v4678, 4
      %v4698 = vrot.slane %v4680, 4
      %v4699 = vrot.slane %v4682, 4
      %v4700 = vrot.slane %v4684, 4
      %v4701 = vrot.slane %v4686, 4
      %v4702 = vrot.slane %v4688, 4
      %v4703 = vrot.slane %v4690, 4
      %v4704 = vrot.slane %v4692, 4
      %v4705 = vrot.slane %v4694, 4
      %v4706 = vrot.slane %v4696, 4
      %v4707 = vsel %vm465, %v4697, %v4698
      %v4708 = vsel %vm550, %v4678, %v4707
      %v4709 = vsel %vm465, %v4698, %v4699
      %v4710 = vsel %vm550, %v4680, %v4709
      %v4711 = vsel %vm465, %v4699, %v4700
      %v4712 = vsel %vm550, %v4682, %v4711
      %v4713 = vsel %vm465, %v4700, %v4701
      %v4714 = vsel %vm550, %v4684, %v4713
      %v4715 = vsel %vm465, %v4702, %v4703
      %v4716 = vsel %vm550, %v4688, %v4715
      %v4717 = vsel %vm465, %v4703, %v4704
      %v4718 = vsel %vm550, %v4690, %v4717
      %v4719 = vsel %vm465, %v4704, %v4705
      %v4720 = vsel %vm550, %v4692, %v4719
      %v4721 = vsel %vm465, %v4705, %v4706
      %v4722 = vsel %vm550, %v4694, %v4721
      %4731 = vst [vmem:[#allocation2 + $0x40] sm:$0xff] %v4708
      %4732 = vst [vmem:[#allocation2 + $0x48] sm:$0xff] %v4710
      %4733 = vst [vmem:[#allocation2 + $0x50] sm:$0xff] %v4712
      %4734 = vst [vmem:[#allocation2 + $0x58] sm:$0xff] %v4714
      %4735 = vst [vmem:[#allocation2 + $0x60] sm:$0xff] %v4716
      %4736 = vst [vmem:[#allocation2 + $0x68] sm:$0xff] %v4718
      %4737 = vst [vmem:[#allocation2 + $0x70] sm:$0xff] %v4720
      %4738 = vst [vmem:[#allocation2 + $0x78] sm:$0xff] %v4722
      %v4739 = vld [vmem:[#allocation3] sm:$0xff]
      %v4740 = vld [vmem:[#allocation3 + $0x8] sm:$0xff]
      %v4741 = vld [vmem:[#allocation3 + $0x10] sm:$0xff]
      %v4742 = vld [vmem:[#allocation3 + $0x18] sm:$0xff]
      %v4743 = vld [vmem:[#allocation3 + $0x20] sm:$0xf]
      %v4744 = vld [vmem:[#allocation3 + $0x28] sm:$0xff]
      %v4745 = vld [vmem:[#allocation3 + $0x30] sm:$0xff]
      %v4746 = vld [vmem:[#allocation3 + $0x38] sm:$0xff]
      %v4747 = vld [vmem:[#allocation3 + $0x40] sm:$0xff]
      %v4748 = vld [vmem:[#allocation3 + $0x48] sm:$0xf]
      %4759 = vrot.lane.b32.xlu0 %v4739, 109
      %v4760 = vpop.permute.xlu0 %4759
      %4761 = vrot.lane.b32.xlu0 %v4740, 109
      %v4762 = vpop.permute.xlu0 %4761
      %4763 = vrot.lane.b32.xlu0 %v4741, 109
      %v4764 = vpop.permute.xlu0 %4763
      %4765 = vrot.lane.b32.xlu0 %v4742, 109
      %v4766 = vpop.permute.xlu0 %4765
      %4767 = vrot.lane.b32.xlu0 %v4743, 109
      %v4768 = vpop.permute.xlu0 %4767
      %4769 = vrot.lane.b32.xlu0 %v4744, 109
      %v4770 = vpop.permute.xlu0 %4769
      %4771 = vrot.lane.b32.xlu0 %v4745, 109
      %v4772 = vpop.permute.xlu0 %4771
      %4773 = vrot.lane.b32.xlu0 %v4746, 109
      %v4774 = vpop.permute.xlu0 %4773
      %4775 = vrot.lane.b32.xlu0 %v4747, 109
      %v4776 = vpop.permute.xlu0 %4775
      %4777 = vrot.lane.b32.xlu0 %v4748, 109
      %v4778 = vpop.permute.xlu0 %4777
      %v4779 = vrot.slane %v4760, 4
      %v4780 = vrot.slane %v4762, 4
      %v4781 = vrot.slane %v4764, 4
      %v4782 = vrot.slane %v4766, 4
      %v4783 = vrot.slane %v4768, 4
      %v4784 = vrot.slane %v4770, 4
      %v4785 = vrot.slane %v4772, 4
      %v4786 = vrot.slane %v4774, 4
      %v4787 = vrot.slane %v4776, 4
      %v4788 = vrot.slane %v4778, 4
      %v4789 = vsel %vm465, %v4779, %v4780
      %v4790 = vsel %vm633, %v4760, %v4789
      %v4791 = vsel %vm465, %v4780, %v4781
      %v4792 = vsel %vm633, %v4762, %v4791
      %v4793 = vsel %vm465, %v4781, %v4782
      %v4794 = vsel %vm633, %v4764, %v4793
      %v4795 = vsel %vm465, %v4782, %v4783
      %v4796 = vsel %vm633, %v4766, %v4795
      %v4797 = vsel %vm465, %v4784, %v4785
      %v4798 = vsel %vm633, %v4770, %v4797
      %v4799 = vsel %vm465, %v4785, %v4786
      %v4800 = vsel %vm633, %v4772, %v4799
      %v4801 = vsel %vm465, %v4786, %v4787
      %v4802 = vsel %vm633, %v4774, %v4801
      %v4803 = vsel %vm465, %v4787, %v4788
      %v4804 = vsel %vm633, %v4776, %v4803
      %4813 = vst [vmem:[#allocation2 + $0x80] sm:$0xff] %v4790
      %4814 = vst [vmem:[#allocation2 + $0x88] sm:$0xff] %v4792
      %4815 = vst [vmem:[#allocation2 + $0x90] sm:$0xff] %v4794
      %4816 = vst [vmem:[#allocation2 + $0x98] sm:$0xff] %v4796
      %4817 = vst [vmem:[#allocation2 + $0xa0] sm:$0xff] %v4798
      %4818 = vst [vmem:[#allocation2 + $0xa8] sm:$0xff] %v4800
      %4819 = vst [vmem:[#allocation2 + $0xb0] sm:$0xff] %v4802
      %4820 = vst [vmem:[#allocation2 + $0xb8] sm:$0xff] %v4804
      %v4821 = vld [vmem:[#allocation3] sm:$0xff]
      %v4822 = vld [vmem:[#allocation3 + $0x8] sm:$0xff]
      %v4823 = vld [vmem:[#allocation3 + $0x10] sm:$0xff]
      %v4824 = vld [vmem:[#allocation3 + $0x18] sm:$0xff]
      %v4825 = vld [vmem:[#allocation3 + $0x20] sm:$0xf]
      %v4826 = vld [vmem:[#allocation3 + $0x28] sm:$0xff]
      %v4827 = vld [vmem:[#allocation3 + $0x30] sm:$0xff]
      %v4828 = vld [vmem:[#allocation3 + $0x38] sm:$0xff]
      %v4829 = vld [vmem:[#allocation3 + $0x40] sm:$0xff]
      %v4830 = vld [vmem:[#allocation3 + $0x48] sm:$0xf]
      %4841 = vrot.lane.b32.xlu0 %v4821, 101
      %v4842 = vpop.permute.xlu0 %4841
      %4843 = vrot.lane.b32.xlu0 %v4822, 101
      %v4844 = vpop.permute.xlu0 %4843
      %4845 = vrot.lane.b32.xlu0 %v4823, 101
      %v4846 = vpop.permute.xlu0 %4845
      %4847 = vrot.lane.b32.xlu0 %v4824, 101
      %v4848 = vpop.permute.xlu0 %4847
      %4849 = vrot.lane.b32.xlu0 %v4825, 101
      %v4850 = vpop.permute.xlu0 %4849
      %4851 = vrot.lane.b32.xlu0 %v4826, 101
      %v4852 = vpop.permute.xlu0 %4851
      %4853 = vrot.lane.b32.xlu0 %v4827, 101
      %v4854 = vpop.permute.xlu0 %4853
      %4855 = vrot.lane.b32.xlu0 %v4828, 101
      %v4856 = vpop.permute.xlu0 %4855
      %4857 = vrot.lane.b32.xlu0 %v4829, 101
      %v4858 = vpop.permute.xlu0 %4857
      %4859 = vrot.lane.b32.xlu0 %v4830, 101
      %v4860 = vpop.permute.xlu0 %4859
      %v4861 = vrot.slane %v4842, 4
      %v4862 = vrot.slane %v4844, 4
      %v4863 = vrot.slane %v4846, 4
      %v4864 = vrot.slane %v4848, 4
      %v4865 = vrot.slane %v4850, 4
      %v4866 = vrot.slane %v4852, 4
      %v4867 = vrot.slane %v4854, 4
      %v4868 = vrot.slane %v4856, 4
      %v4869 = vrot.slane %v4858, 4
      %v4870 = vrot.slane %v4860, 4
      %v4871 = vsel %vm465, %v4861, %v4862
      %v4872 = vsel %vm716, %v4842, %v4871
      %v4873 = vsel %vm465, %v4862, %v4863
      %v4874 = vsel %vm716, %v4844, %v4873
      %v4875 = vsel %vm465, %v4863, %v4864
      %v4876 = vsel %vm716, %v4846, %v4875
      %v4877 = vsel %vm465, %v4864, %v4865
      %v4878 = vsel %vm716, %v4848, %v4877
      %v4879 = vsel %vm465, %v4866, %v4867
      %v4880 = vsel %vm716, %v4852, %v4879
      %v4881 = vsel %vm465, %v4867, %v4868
      %v4882 = vsel %vm716, %v4854, %v4881
      %v4883 = vsel %vm465, %v4868, %v4869
      %v4884 = vsel %vm716, %v4856, %v4883
      %v4885 = vsel %vm465, %v4869, %v4870
      %v4886 = vsel %vm716, %v4858, %v4885
      %4895 = vst [vmem:[#allocation2 + $0xc0] sm:$0xff] %v4872
      %4896 = vst [vmem:[#allocation2 + $0xc8] sm:$0xff] %v4874
      %4897 = vst [vmem:[#allocation2 + $0xd0] sm:$0xff] %v4876
      %4898 = vst [vmem:[#allocation2 + $0xd8] sm:$0xff] %v4878
      %4899 = vst [vmem:[#allocation2 + $0xe0] sm:$0xff] %v4880
      %4900 = vst [vmem:[#allocation2 + $0xe8] sm:$0xff] %v4882
      %4901 = vst [vmem:[#allocation2 + $0xf0] sm:$0xff] %v4884
      %4902 = vst [vmem:[#allocation2 + $0xf8] sm:$0xff] %v4886
      %v4903 = vld [vmem:[#allocation3] sm:$0xff]
      %v4904 = vld [vmem:[#allocation3 + $0x8] sm:$0xff]
      %v4905 = vld [vmem:[#allocation3 + $0x10] sm:$0xff]
      %v4906 = vld [vmem:[#allocation3 + $0x18] sm:$0xff]
      %v4907 = vld [vmem:[#allocation3 + $0x20] sm:$0xf]
      %v4908 = vld [vmem:[#allocation3 + $0x28] sm:$0xff]
      %v4909 = vld [vmem:[#allocation3 + $0x30] sm:$0xff]
      %v4910 = vld [vmem:[#allocation3 + $0x38] sm:$0xff]
      %v4911 = vld [vmem:[#allocation3 + $0x40] sm:$0xff]
      %v4912 = vld [vmem:[#allocation3 + $0x48] sm:$0xf]
      %4923 = vrot.lane.b32.xlu0 %v4903, 100
      %v4924 = vpop.permute.xlu0 %4923
      %4925 = vrot.lane.b32.xlu0 %v4904, 100
      %v4926 = vpop.permute.xlu0 %4925
      %4927 = vrot.lane.b32.xlu0 %v4905, 100
      %v4928 = vpop.permute.xlu0 %4927
      %4929 = vrot.lane.b32.xlu0 %v4906, 100
      %v4930 = vpop.permute.xlu0 %4929
      %4931 = vrot.lane.b32.xlu0 %v4907, 100
      %v4932 = vpop.permute.xlu0 %4931
      %4933 = vrot.lane.b32.xlu0 %v4908, 100
      %v4934 = vpop.permute.xlu0 %4933
      %4935 = vrot.lane.b32.xlu0 %v4909, 100
      %v4936 = vpop.permute.xlu0 %4935
      %4937 = vrot.lane.b32.xlu0 %v4910, 100
      %v4938 = vpop.permute.xlu0 %4937
      %4939 = vrot.lane.b32.xlu0 %v4911, 100
      %v4940 = vpop.permute.xlu0 %4939
      %4941 = vrot.lane.b32.xlu0 %v4912, 100
      %v4942 = vpop.permute.xlu0 %4941
      %v4943 = vrot.slane %v4924, 4
      %v4944 = vrot.slane %v4926, 4
      %v4945 = vrot.slane %v4928, 4
      %v4946 = vrot.slane %v4930, 4
      %v4947 = vrot.slane %v4932, 4
      %v4948 = vrot.slane %v4934, 4
      %v4949 = vrot.slane %v4936, 4
      %v4950 = vrot.slane %v4938, 4
      %v4951 = vrot.slane %v4940, 4
      %v4952 = vrot.slane %v4942, 4
      %v4953 = vsel %vm465, %v4943, %v4944
      %v4954 = vsel %vm799, %v4924, %v4953
      %v4955 = vsel %vm465, %v4944, %v4945
      %v4956 = vsel %vm799, %v4926, %v4955
      %v4957 = vsel %vm465, %v4945, %v4946
      %v4958 = vsel %vm799, %v4928, %v4957
      %v4959 = vsel %vm465, %v4946, %v4947
      %v4960 = vsel %vm799, %v4930, %v4959
      %v4961 = vsel %vm465, %v4948, %v4949
      %v4962 = vsel %vm799, %v4934, %v4961
      %v4963 = vsel %vm465, %v4949, %v4950
      %v4964 = vsel %vm799, %v4936, %v4963
      %v4965 = vsel %vm465, %v4950, %v4951
      %v4966 = vsel %vm799, %v4938, %v4965
      %v4967 = vsel %vm465, %v4951, %v4952
      %v4968 = vsel %vm799, %v4940, %v4967
      %4977 = vst [vmem:[#allocation2 + $0x100] sm:$0xff] %v4954
      %4978 = vst [vmem:[#allocation2 + $0x108] sm:$0xff] %v4956
      %4979 = vst [vmem:[#allocation2 + $0x110] sm:$0xff] %v4958
      %4980 = vst [vmem:[#allocation2 + $0x118] sm:$0xff] %v4960
      %4981 = vst [vmem:[#allocation2 + $0x120] sm:$0xff] %v4962
      %4982 = vst [vmem:[#allocation2 + $0x128] sm:$0xff] %v4964
      %4983 = vst [vmem:[#allocation2 + $0x130] sm:$0xff] %v4966
      %4984 = vst [vmem:[#allocation2 + $0x138] sm:$0xff] %v4968
      %v4985 = vld [vmem:[#allocation3] sm:$0xff]
      %v4986 = vld [vmem:[#allocation3 + $0x8] sm:$0xff]
      %v4987 = vld [vmem:[#allocation3 + $0x10] sm:$0xff]
      %v4988 = vld [vmem:[#allocation3 + $0x18] sm:$0xff]
      %v4989 = vld [vmem:[#allocation3 + $0x20] sm:$0xf]
      %v4990 = vld [vmem:[#allocation3 + $0x28] sm:$0xff]
      %v4991 = vld [vmem:[#allocation3 + $0x30] sm:$0xff]
      %v4992 = vld [vmem:[#allocation3 + $0x38] sm:$0xff]
      %v4993 = vld [vmem:[#allocation3 + $0x40] sm:$0xff]
      %v4994 = vld [vmem:[#allocation3 + $0x48] sm:$0xf]
      %5005 = vrot.lane.b32.xlu0 %v4985, 99
      %v5006 = vpop.permute.xlu0 %5005
      %5007 = vrot.lane.b32.xlu0 %v4986, 99
      %v5008 = vpop.permute.xlu0 %5007
      %5009 = vrot.lane.b32.xlu0 %v4987, 99
      %v5010 = vpop.permute.xlu0 %5009
      %5011 = vrot.lane.b32.xlu0 %v4988, 99
      %v5012 = vpop.permute.xlu0 %5011
      %5013 = vrot.lane.b32.xlu0 %v4989, 99
      %v5014 = vpop.permute.xlu0 %5013
      %5015 = vrot.lane.b32.xlu0 %v4990, 99
      %v5016 = vpop.permute.xlu0 %5015
      %5017 = vrot.lane.b32.xlu0 %v4991, 99
      %v5018 = vpop.permute.xlu0 %5017
      %5019 = vrot.lane.b32.xlu0 %v4992, 99
      %v5020 = vpop.permute.xlu0 %5019
      %5021 = vrot.lane.b32.xlu0 %v4993, 99
      %v5022 = vpop.permute.xlu0 %5021
      %5023 = vrot.lane.b32.xlu0 %v4994, 99
      %v5024 = vpop.permute.xlu0 %5023
      %v5025 = vrot.slane %v5006, 4
      %v5026 = vrot.slane %v5008, 4
      %v5027 = vrot.slane %v5010, 4
      %v5028 = vrot.slane %v5012, 4
      %v5029 = vrot.slane %v5014, 4
      %v5030 = vrot.slane %v5016, 4
      %v5031 = vrot.slane %v5018, 4
      %v5032 = vrot.slane %v5020, 4
      %v5033 = vrot.slane %v5022, 4
      %v5034 = vrot.slane %v5024, 4
      %v5035 = vsel %vm465, %v5025, %v5026
      %v5036 = vsel %vm882, %v5006, %v5035
      %v5037 = vsel %vm465, %v5026, %v5027
      %v5038 = vsel %vm882, %v5008, %v5037
      %v5039 = vsel %vm465, %v5027, %v5028
      %v5040 = vsel %vm882, %v5010, %v5039
      %v5041 = vsel %vm465, %v5028, %v5029
      %v5042 = vsel %vm882, %v5012, %v5041
      %v5043 = vsel %vm465, %v5030, %v5031
      %v5044 = vsel %vm882, %v5016, %v5043
      %v5045 = vsel %vm465, %v5031, %v5032
      %v5046 = vsel %vm882, %v5018, %v5045
      %v5047 = vsel %vm465, %v5032, %v5033
      %v5048 = vsel %vm882, %v5020, %v5047
      %v5049 = vsel %vm465, %v5033, %v5034
      %v5050 = vsel %vm882, %v5022, %v5049
      %5059 = vst [vmem:[#allocation2 + $0x140] sm:$0xff] %v5036
      %5060 = vst [vmem:[#allocation2 + $0x148] sm:$0xff] %v5038
      %5061 = vst [vmem:[#allocation2 + $0x150] sm:$0xff] %v5040
      %5062 = vst [vmem:[#allocation2 + $0x158] sm:$0xff] %v5042
      %5063 = vst [vmem:[#allocation2 + $0x160] sm:$0xff] %v5044
      %5064 = vst [vmem:[#allocation2 + $0x168] sm:$0xff] %v5046
      %5065 = vst [vmem:[#allocation2 + $0x170] sm:$0xff] %v5048
      %5066 = vst [vmem:[#allocation2 + $0x178] sm:$0xff] %v5050
      %v5067 = vld [vmem:[#allocation3] sm:$0xff]
      %v5068 = vld [vmem:[#allocation3 + $0x8] sm:$0xff]
      %v5069 = vld [vmem:[#allocation3 + $0x10] sm:$0xff]
      %v5070 = vld [vmem:[#allocation3 + $0x18] sm:$0xff]
      %v5071 = vld [vmem:[#allocation3 + $0x20] sm:$0xf]
      %v5072 = vld [vmem:[#allocation3 + $0x28] sm:$0xff]
      %v5073 = vld [vmem:[#allocation3 + $0x30] sm:$0xff]
      %v5074 = vld [vmem:[#allocation3 + $0x38] sm:$0xff]
      %v5075 = vld [vmem:[#allocation3 + $0x40] sm:$0xff]
      %v5076 = vld [vmem:[#allocation3 + $0x48] sm:$0xf]
      %5087 = vrot.lane.b32.xlu0 %v5067, 91
      %v5088 = vpop.permute.xlu0 %5087
      %5089 = vrot.lane.b32.xlu0 %v5068, 91
      %v5090 = vpop.permute.xlu0 %5089
      %5091 = vrot.lane.b32.xlu0 %v5069, 91
      %v5092 = vpop.permute.xlu0 %5091
      %5093 = vrot.lane.b32.xlu0 %v5070, 91
      %v5094 = vpop.permute.xlu0 %5093
      %5095 = vrot.lane.b32.xlu0 %v5071, 91
      %v5096 = vpop.permute.xlu0 %5095
      %5097 = vrot.lane.b32.xlu0 %v5072, 91
      %v5098 = vpop.permute.xlu0 %5097
      %5099 = vrot.lane.b32.xlu0 %v5073, 91
      %v5100 = vpop.permute.xlu0 %5099
      %5101 = vrot.lane.b32.xlu0 %v5074, 91
      %v5102 = vpop.permute.xlu0 %5101
      %5103 = vrot.lane.b32.xlu0 %v5075, 91
      %v5104 = vpop.permute.xlu0 %5103
      %5105 = vrot.lane.b32.xlu0 %v5076, 91
      %v5106 = vpop.permute.xlu0 %5105
      %v5107 = vrot.slane %v5088, 4
      %v5108 = vrot.slane %v5090, 4
      %v5109 = vrot.slane %v5092, 4
      %v5110 = vrot.slane %v5094, 4
      %v5111 = vrot.slane %v5096, 4
      %v5112 = vrot.slane %v5098, 4
      %v5113 = vrot.slane %v5100, 4
      %v5114 = vrot.slane %v5102, 4
      %v5115 = vrot.slane %v5104, 4
      %v5116 = vrot.slane %v5106, 4
      %v5117 = vsel %vm465, %v5107, %v5108
      %v5118 = vsel %vm965, %v5088, %v5117
      %v5119 = vsel %vm465, %v5108, %v5109
      %v5120 = vsel %vm965, %v5090, %v5119
      %v5121 = vsel %vm465, %v5109, %v5110
      %v5122 = vsel %vm965, %v5092, %v5121
      %v5123 = vsel %vm465, %v5110, %v5111
      %v5124 = vsel %vm965, %v5094, %v5123
      %v5125 = vsel %vm465, %v5112, %v5113
      %v5126 = vsel %vm965, %v5098, %v5125
      %v5127 = vsel %vm465, %v5113, %v5114
      %v5128 = vsel %vm965, %v5100, %v5127
      %v5129 = vsel %vm465, %v5114, %v5115
      %v5130 = vsel %vm965, %v5102, %v5129
      %v5131 = vsel %vm465, %v5115, %v5116
      %v5132 = vsel %vm965, %v5104, %v5131
      %5141 = vst [vmem:[#allocation2 + $0x180] sm:$0xff] %v5118
      %5142 = vst [vmem:[#allocation2 + $0x188] sm:$0xff] %v5120
      %5143 = vst [vmem:[#allocation2 + $0x190] sm:$0xff] %v5122
      %5144 = vst [vmem:[#allocation2 + $0x198] sm:$0xff] %v5124
      %5145 = vst [vmem:[#allocation2 + $0x1a0] sm:$0xff] %v5126
      %5146 = vst [vmem:[#allocation2 + $0x1a8] sm:$0xff] %v5128
      %5147 = vst [vmem:[#allocation2 + $0x1b0] sm:$0xff] %v5130
      %5148 = vst [vmem:[#allocation2 + $0x1b8] sm:$0xff] %v5132
      %v5149 = vld [vmem:[#allocation3] sm:$0xff]
      %v5150 = vld [vmem:[#allocation3 + $0x8] sm:$0xff]
      %v5151 = vld [vmem:[#allocation3 + $0x10] sm:$0xff]
      %v5152 = vld [vmem:[#allocation3 + $0x18] sm:$0xff]
      %v5153 = vld [vmem:[#allocation3 + $0x20] sm:$0xf]
      %v5154 = vld [vmem:[#allocation3 + $0x28] sm:$0xff]
      %v5155 = vld [vmem:[#allocation3 + $0x30] sm:$0xff]
      %v5156 = vld [vmem:[#allocation3 + $0x38] sm:$0xff]
      %v5157 = vld [vmem:[#allocation3 + $0x40] sm:$0xff]
      %v5158 = vld [vmem:[#allocation3 + $0x48] sm:$0xf]
      %5169 = vrot.lane.b32.xlu0 %v5149, 90
      %v5170 = vpop.permute.xlu0 %5169
      %5171 = vrot.lane.b32.xlu0 %v5150, 90
      %v5172 = vpop.permute.xlu0 %5171
      %5173 = vrot.lane.b32.xlu0 %v5151, 90
      %v5174 = vpop.permute.xlu0 %5173
      %5175 = vrot.lane.b32.xlu0 %v5152, 90
      %v5176 = vpop.permute.xlu0 %5175
      %5177 = vrot.lane.b32.xlu0 %v5153, 90
      %v5178 = vpop.permute.xlu0 %5177
      %5179 = vrot.lane.b32.xlu0 %v5154, 90
      %v5180 = vpop.permute.xlu0 %5179
      %5181 = vrot.lane.b32.xlu0 %v5155, 90
      %v5182 = vpop.permute.xlu0 %5181
      %5183 = vrot.lane.b32.xlu0 %v5156, 90
      %v5184 = vpop.permute.xlu0 %5183
      %5185 = vrot.lane.b32.xlu0 %v5157, 90
      %v5186 = vpop.permute.xlu0 %5185
      %5187 = vrot.lane.b32.xlu0 %v5158, 90
      %v5188 = vpop.permute.xlu0 %5187
      %v5189 = vrot.slane %v5170, 4
      %v5190 = vrot.slane %v5172, 4
      %v5191 = vrot.slane %v5174, 4
      %v5192 = vrot.slane %v5176, 4
      %v5193 = vrot.slane %v5178, 4
      %v5194 = vrot.slane %v5180, 4
      %v5195 = vrot.slane %v5182, 4
      %v5196 = vrot.slane %v5184, 4
      %v5197 = vrot.slane %v5186, 4
      %v5198 = vrot.slane %v5188, 4
      %v5199 = vsel %vm465, %v5189, %v5190
      %v5200 = vsel %vm1048, %v5170, %v5199
      %v5201 = vsel %vm465, %v5190, %v5191
      %v5202 = vsel %vm1048, %v5172, %v5201
      %v5203 = vsel %vm465, %v5191, %v5192
      %v5204 = vsel %vm1048, %v5174, %v5203
      %v5205 = vsel %vm465, %v5192, %v5193
      %v5206 = vsel %vm1048, %v5176, %v5205
      %v5207 = vsel %vm465, %v5194, %v5195
      %v5208 = vsel %vm1048, %v5180, %v5207
      %v5209 = vsel %vm465, %v5195, %v5196
      %v5210 = vsel %vm1048, %v5182, %v5209
      %v5211 = vsel %vm465, %v5196, %v5197
      %v5212 = vsel %vm1048, %v5184, %v5211
      %v5213 = vsel %vm465, %v5197, %v5198
      %v5214 = vsel %vm1048, %v5186, %v5213
      %5223 = vst [vmem:[#allocation2 + $0x1c0] sm:$0xff] %v5200
      %5224 = vst [vmem:[#allocation2 + $0x1c8] sm:$0xff] %v5202
      %5225 = vst [vmem:[#allocation2 + $0x1d0] sm:$0xff] %v5204
      %5226 = vst [vmem:[#allocation2 + $0x1d8] sm:$0xff] %v5206
      %5227 = vst [vmem:[#allocation2 + $0x1e0] sm:$0xff] %v5208
      %5228 = vst [vmem:[#allocation2 + $0x1e8] sm:$0xff] %v5210
      %5229 = vst [vmem:[#allocation2 + $0x1f0] sm:$0xff] %v5212
      %5230 = vst [vmem:[#allocation2 + $0x1f8] sm:$0xff] %v5214
      %v5231 = vld [vmem:[#allocation3] sm:$0xff]
      %v5232 = vld [vmem:[#allocation3 + $0x8] sm:$0xff]
      %v5233 = vld [vmem:[#allocation3 + $0x10] sm:$0xff]
      %v5234 = vld [vmem:[#allocation3 + $0x18] sm:$0xff]
      %v5235 = vld [vmem:[#allocation3 + $0x20] sm:$0xf]
      %v5236 = vld [vmem:[#allocation3 + $0x28] sm:$0xff]
      %v5237 = vld [vmem:[#allocation3 + $0x30] sm:$0xff]
      %v5238 = vld [vmem:[#allocation3 + $0x38] sm:$0xff]
      %v5239 = vld [vmem:[#allocation3 + $0x40] sm:$0xff]
      %v5240 = vld [vmem:[#allocation3 + $0x48] sm:$0xf]
      %5251 = vrot.lane.b32.xlu0 %v5231, 89
      %v5252 = vpop.permute.xlu0 %5251
      %5253 = vrot.lane.b32.xlu0 %v5232, 89
      %v5254 = vpop.permute.xlu0 %5253
      %5255 = vrot.lane.b32.xlu0 %v5233, 89
      %v5256 = vpop.permute.xlu0 %5255
      %5257 = vrot.lane.b32.xlu0 %v5234, 89
      %v5258 = vpop.permute.xlu0 %5257
      %5259 = vrot.lane.b32.xlu0 %v5235, 89
      %v5260 = vpop.permute.xlu0 %5259
      %5261 = vrot.lane.b32.xlu0 %v5236, 89
      %v5262 = vpop.permute.xlu0 %5261
      %5263 = vrot.lane.b32.xlu0 %v5237, 89
      %v5264 = vpop.permute.xlu0 %5263
      %5265 = vrot.lane.b32.xlu0 %v5238, 89
      %v5266 = vpop.permute.xlu0 %5265
      %5267 = vrot.lane.b32.xlu0 %v5239, 89
      %v5268 = vpop.permute.xlu0 %5267
      %5269 = vrot.lane.b32.xlu0 %v5240, 89
      %v5270 = vpop.permute.xlu0 %5269
      %v5271 = vrot.slane %v5252, 4
      %v5272 = vrot.slane %v5254, 4
      %v5273 = vrot.slane %v5256, 4
      %v5274 = vrot.slane %v5258, 4
      %v5275 = vrot.slane %v5260, 4
      %v5276 = vrot.slane %v5262, 4
      %v5277 = vrot.slane %v5264, 4
      %v5278 = vrot.slane %v5266, 4
      %v5279 = vrot.slane %v5268, 4
      %v5280 = vrot.slane %v5270, 4
      %v5281 = vsel %vm465, %v5271, %v5272
      %v5282 = vsel %vm1131, %v5252, %v5281
      %v5283 = vsel %vm465, %v5272, %v5273
      %v5284 = vsel %vm1131, %v5254, %v5283
      %v5285 = vsel %vm465, %v5273, %v5274
      %v5286 = vsel %vm1131, %v5256, %v5285
      %v5287 = vsel %vm465, %v5274, %v5275
      %v5288 = vsel %vm1131, %v5258, %v5287
      %v5289 = vsel %vm465, %v5276, %v5277
      %v5290 = vsel %vm1131, %v5262, %v5289
      %v5291 = vsel %vm465, %v5277, %v5278
      %v5292 = vsel %vm1131, %v5264, %v5291
      %v5293 = vsel %vm465, %v5278, %v5279
      %v5294 = vsel %vm1131, %v5266, %v5293
      %v5295 = vsel %vm465, %v5279, %v5280
      %v5296 = vsel %vm1131, %v5268, %v5295
      %5305 = vst [vmem:[#allocation2 + $0x200] sm:$0xff] %v5282
      %5306 = vst [vmem:[#allocation2 + $0x208] sm:$0xff] %v5284
      %5307 = vst [vmem:[#allocation2 + $0x210] sm:$0xff] %v5286
      %5308 = vst [vmem:[#allocation2 + $0x218] sm:$0xff] %v5288
      %5309 = vst [vmem:[#allocation2 + $0x220] sm:$0xff] %v5290
      %5310 = vst [vmem:[#allocation2 + $0x228] sm:$0xff] %v5292
      %5311 = vst [vmem:[#allocation2 + $0x230] sm:$0xff] %v5294
      %5312 = vst [vmem:[#allocation2 + $0x238] sm:$0xff] %v5296
      %v5313 = vld [vmem:[#allocation3] sm:$0xff]
      %v5314 = vld [vmem:[#allocation3 + $0x8] sm:$0xff]
      %v5315 = vld [vmem:[#allocation3 + $0x10] sm:$0xff]
      %v5316 = vld [vmem:[#allocation3 + $0x18] sm:$0xff]
      %v5317 = vld [vmem:[#allocation3 + $0x20] sm:$0xf]
      %v5318 = vld [vmem:[#allocation3 + $0x28] sm:$0xff]
      %v5319 = vld [vmem:[#allocation3 + $0x30] sm:$0xff]
      %v5320 = vld [vmem:[#allocation3 + $0x38] sm:$0xff]
      %v5321 = vld [vmem:[#allocation3 + $0x40] sm:$0xff]
      %v5322 = vld [vmem:[#allocation3 + $0x48] sm:$0xf]
      %5333 = vrot.lane.b32.xlu0 %v5313, 11
      %v5334 = vpop.permute.xlu0 %5333
      %5335 = vrot.lane.b32.xlu0 %v5314, 11
      %v5336 = vpop.permute.xlu0 %5335
      %5337 = vrot.lane.b32.xlu0 %v5315, 11
      %v5338 = vpop.permute.xlu0 %5337
      %5339 = vrot.lane.b32.xlu0 %v5316, 11
      %v5340 = vpop.permute.xlu0 %5339
      %5341 = vrot.lane.b32.xlu0 %v5317, 11
      %v5342 = vpop.permute.xlu0 %5341
      %5343 = vrot.lane.b32.xlu0 %v5318, 11
      %v5344 = vpop.permute.xlu0 %5343
      %5345 = vrot.lane.b32.xlu0 %v5319, 11
      %v5346 = vpop.permute.xlu0 %5345
      %5347 = vrot.lane.b32.xlu0 %v5320, 11
      %v5348 = vpop.permute.xlu0 %5347
      %5349 = vrot.lane.b32.xlu0 %v5321, 11
      %v5350 = vpop.permute.xlu0 %5349
      %5351 = vrot.lane.b32.xlu0 %v5322, 11
      %v5352 = vpop.permute.xlu0 %5351
      %v5353 = vrot.slane %v5334, 4
      %v5354 = vrot.slane %v5336, 4
      %v5355 = vrot.slane %v5338, 4
      %v5356 = vrot.slane %v5340, 4
      %v5357 = vrot.slane %v5342, 4
      %v5358 = vrot.slane %v5344, 4
      %v5359 = vrot.slane %v5346, 4
      %v5360 = vrot.slane %v5348, 4
      %v5361 = vrot.slane %v5350, 4
      %v5362 = vrot.slane %v5352, 4
      %v5363 = vsel %vm465, %v5353, %v5354
      %v5364 = vsel %vm1214, %v5334, %v5363
      %v5365 = vsel %vm465, %v5354, %v5355
      %v5366 = vsel %vm1214, %v5336, %v5365
      %v5367 = vsel %vm465, %v5355, %v5356
      %v5368 = vsel %vm1214, %v5338, %v5367
      %v5369 = vsel %vm465, %v5356, %v5357
      %v5370 = vsel %vm1214, %v5340, %v5369
      %v5371 = vsel %vm465, %v5358, %v5359
      %v5372 = vsel %vm1214, %v5344, %v5371
      %v5373 = vsel %vm465, %v5359, %v5360
      %v5374 = vsel %vm1214, %v5346, %v5373
      %v5375 = vsel %vm465, %v5360, %v5361
      %v5376 = vsel %vm1214, %v5348, %v5375
      %v5377 = vsel %vm465, %v5361, %v5362
      %v5378 = vsel %vm1214, %v5350, %v5377
      %5387 = vst [vmem:[#allocation2 + $0x240] sm:$0xff] %v5364
      %5388 = vst [vmem:[#allocation2 + $0x248] sm:$0xff] %v5366
      %5389 = vst [vmem:[#allocation2 + $0x250] sm:$0xff] %v5368
      %5390 = vst [vmem:[#allocation2 + $0x258] sm:$0xff] %v5370
      %5391 = vst [vmem:[#allocation2 + $0x260] sm:$0xff] %v5372
      %5392 = vst [vmem:[#allocation2 + $0x268] sm:$0xff] %v5374
      %5393 = vst [vmem:[#allocation2 + $0x270] sm:$0xff] %v5376
      %5394 = vst [vmem:[#allocation2 + $0x278] sm:$0xff] %v5378
      %v5395 = vld [vmem:[#allocation3] sm:$0xff]
      %v5396 = vld [vmem:[#allocation3 + $0x8] sm:$0xff]
      %v5397 = vld [vmem:[#allocation3 + $0x10] sm:$0xff]
      %v5398 = vld [vmem:[#allocation3 + $0x18] sm:$0xff]
      %v5399 = vld [vmem:[#allocation3 + $0x20] sm:$0xf]
      %v5400 = vld [vmem:[#allocation3 + $0x28] sm:$0xff]
      %v5401 = vld [vmem:[#allocation3 + $0x30] sm:$0xff]
      %v5402 = vld [vmem:[#allocation3 + $0x38] sm:$0xff]
      %v5403 = vld [vmem:[#allocation3 + $0x40] sm:$0xff]
      %v5404 = vld [vmem:[#allocation3 + $0x48] sm:$0xf]
      %5415 = vrot.lane.b32.xlu0 %v5395, 10
      %v5416 = vpop.permute.xlu0 %5415
      %5417 = vrot.lane.b32.xlu0 %v5396, 10
      %v5418 = vpop.permute.xlu0 %5417
      %5419 = vrot.lane.b32.xlu0 %v5397, 10
      %v5420 = vpop.permute.xlu0 %5419
      %5421 = vrot.lane.b32.xlu0 %v5398, 10
      %v5422 = vpop.permute.xlu0 %5421
      %5423 = vrot.lane.b32.xlu0 %v5399, 10
      %v5424 = vpop.permute.xlu0 %5423
      %5425 = vrot.lane.b32.xlu0 %v5400, 10
      %v5426 = vpop.permute.xlu0 %5425
      %5427 = vrot.lane.b32.xlu0 %v5401, 10
      %v5428 = vpop.permute.xlu0 %5427
      %5429 = vrot.lane.b32.xlu0 %v5402, 10
      %v5430 = vpop.permute.xlu0 %5429
      %5431 = vrot.lane.b32.xlu0 %v5403, 10
      %v5432 = vpop.permute.xlu0 %5431
      %5433 = vrot.lane.b32.xlu0 %v5404, 10
      %v5434 = vpop.permute.xlu0 %5433
      %v5435 = vrot.slane %v5416, 4
      %v5436 = vrot.slane %v5418, 4
      %v5437 = vrot.slane %v5420, 4
      %v5438 = vrot.slane %v5422, 4
      %v5439 = vrot.slane %v5424, 4
      %v5440 = vrot.slane %v5426, 4
      %v5441 = vrot.slane %v5428, 4
      %v5442 = vrot.slane %v5430, 4
      %v5443 = vrot.slane %v5432, 4
      %v5444 = vrot.slane %v5434, 4
      %v5445 = vsel %vm465, %v5435, %v5436
      %v5446 = vsel %vm1297, %v5416, %v5445
      %v5447 = vsel %vm465, %v5436, %v5437
      %v5448 = vsel %vm1297, %v5418, %v5447
      %v5449 = vsel %vm465, %v5437, %v5438
      %v5450 = vsel %vm1297, %v5420, %v5449
      %v5451 = vsel %vm465, %v5438, %v5439
      %v5452 = vsel %vm1297, %v5422, %v5451
      %v5453 = vsel %vm465, %v5440, %v5441
      %v5454 = vsel %vm1297, %v5426, %v5453
      %v5455 = vsel %vm465, %v5441, %v5442
      %v5456 = vsel %vm1297, %v5428, %v5455
      %v5457 = vsel %vm465, %v5442, %v5443
      %v5458 = vsel %vm1297, %v5430, %v5457
      %v5459 = vsel %vm465, %v5443, %v5444
      %v5460 = vsel %vm1297, %v5432, %v5459
      %5469 = vst [vmem:[#allocation2 + $0x280] sm:$0xff] %v5446
      %5470 = vst [vmem:[#allocation2 + $0x288] sm:$0xff] %v5448
      %5471 = vst [vmem:[#allocation2 + $0x290] sm:$0xff] %v5450
      %5472 = vst [vmem:[#allocation2 + $0x298] sm:$0xff] %v5452
      %5473 = vst [vmem:[#allocation2 + $0x2a0] sm:$0xff] %v5454
      %5474 = vst [vmem:[#allocation2 + $0x2a8] sm:$0xff] %v5456
      %5475 = vst [vmem:[#allocation2 + $0x2b0] sm:$0xff] %v5458
      %5476 = vst [vmem:[#allocation2 + $0x2b8] sm:$0xff] %v5460
      %v5477 = vld [vmem:[#allocation3] sm:$0xff]
      %v5478 = vld [vmem:[#allocation3 + $0x8] sm:$0xff]
      %v5479 = vld [vmem:[#allocation3 + $0x10] sm:$0xff]
      %v5480 = vld [vmem:[#allocation3 + $0x18] sm:$0xff]
      %v5481 = vld [vmem:[#allocation3 + $0x20] sm:$0xf]
      %v5482 = vld [vmem:[#allocation3 + $0x28] sm:$0xff]
      %v5483 = vld [vmem:[#allocation3 + $0x30] sm:$0xff]
      %v5484 = vld [vmem:[#allocation3 + $0x38] sm:$0xff]
      %v5485 = vld [vmem:[#allocation3 + $0x40] sm:$0xff]
      %v5486 = vld [vmem:[#allocation3 + $0x48] sm:$0xf]
      %5497 = vrot.lane.b32.xlu0 %v5477, 9
      %v5498 = vpop.permute.xlu0 %5497
      %5499 = vrot.lane.b32.xlu0 %v5478, 9
      %v5500 = vpop.permute.xlu0 %5499
      %5501 = vrot.lane.b32.xlu0 %v5479, 9
      %v5502 = vpop.permute.xlu0 %5501
      %5503 = vrot.lane.b32.xlu0 %v5480, 9
      %v5504 = vpop.permute.xlu0 %5503
      %5505 = vrot.lane.b32.xlu0 %v5481, 9
      %v5506 = vpop.permute.xlu0 %5505
      %5507 = vrot.lane.b32.xlu0 %v5482, 9
      %v5508 = vpop.permute.xlu0 %5507
      %5509 = vrot.lane.b32.xlu0 %v5483, 9
      %v5510 = vpop.permute.xlu0 %5509
      %5511 = vrot.lane.b32.xlu0 %v5484, 9
      %v5512 = vpop.permute.xlu0 %5511
      %5513 = vrot.lane.b32.xlu0 %v5485, 9
      %v5514 = vpop.permute.xlu0 %5513
      %5515 = vrot.lane.b32.xlu0 %v5486, 9
      %v5516 = vpop.permute.xlu0 %5515
      %v5517 = vrot.slane %v5498, 4
      %v5518 = vrot.slane %v5500, 4
      %v5519 = vrot.slane %v5502, 4
      %v5520 = vrot.slane %v5504, 4
      %v5521 = vrot.slane %v5506, 4
      %v5522 = vrot.slane %v5508, 4
      %v5523 = vrot.slane %v5510, 4
      %v5524 = vrot.slane %v5512, 4
      %v5525 = vrot.slane %v5514, 4
      %v5526 = vrot.slane %v5516, 4
      %v5527 = vsel %vm465, %v5517, %v5518
      %v5528 = vsel %vm1380, %v5498, %v5527
      %v5529 = vsel %vm465, %v5518, %v5519
      %v5530 = vsel %vm1380, %v5500, %v5529
      %v5531 = vsel %vm465, %v5519, %v5520
      %v5532 = vsel %vm1380, %v5502, %v5531
      %v5533 = vsel %vm465, %v5520, %v5521
      %v5534 = vsel %vm1380, %v5504, %v5533
      %v5535 = vsel %vm465, %v5522, %v5523
      %v5536 = vsel %vm1380, %v5508, %v5535
      %v5537 = vsel %vm465, %v5523, %v5524
      %v5538 = vsel %vm1380, %v5510, %v5537
      %v5539 = vsel %vm465, %v5524, %v5525
      %v5540 = vsel %vm1380, %v5512, %v5539
      %v5541 = vsel %vm465, %v5525, %v5526
      %v5542 = vsel %vm1380, %v5514, %v5541
      %5551 = vst [vmem:[#allocation2 + $0x2c0] sm:$0xff] %v5528
      %5552 = vst [vmem:[#allocation2 + $0x2c8] sm:$0xff] %v5530
      %5553 = vst [vmem:[#allocation2 + $0x2d0] sm:$0xff] %v5532
      %5554 = vst [vmem:[#allocation2 + $0x2d8] sm:$0xff] %v5534
      %5555 = vst [vmem:[#allocation2 + $0x2e0] sm:$0xff] %v5536
      %5556 = vst [vmem:[#allocation2 + $0x2e8] sm:$0xff] %v5538
      %5557 = vst [vmem:[#allocation2 + $0x2f0] sm:$0xff] %v5540
      %5558 = vst [vmem:[#allocation2 + $0x2f8] sm:$0xff] %v5542
      %v5559 = vld [vmem:[#allocation3] sm:$0xff]
      %v5560 = vld [vmem:[#allocation3 + $0x8] sm:$0xff]
      %v5561 = vld [vmem:[#allocation3 + $0x10] sm:$0xff]
      %v5562 = vld [vmem:[#allocation3 + $0x18] sm:$0xff]
      %v5563 = vld [vmem:[#allocation3 + $0x20] sm:$0xf]
      %v5564 = vld [vmem:[#allocation3 + $0x28] sm:$0xff]
      %v5565 = vld [vmem:[#allocation3 + $0x30] sm:$0xff]
      %v5566 = vld [vmem:[#allocation3 + $0x38] sm:$0xff]
      %v5567 = vld [vmem:[#allocation3 + $0x40] sm:$0xff]
      %v5568 = vld [vmem:[#allocation3 + $0x48] sm:$0xf]
      %5579 = vrot.lane.b32.xlu0 %v5559, 1
      %v5580 = vpop.permute.xlu0 %5579
      %5581 = vrot.lane.b32.xlu0 %v5560, 1
      %v5582 = vpop.permute.xlu0 %5581
      %5583 = vrot.lane.b32.xlu0 %v5561, 1
      %v5584 = vpop.permute.xlu0 %5583
      %5585 = vrot.lane.b32.xlu0 %v5562, 1
      %v5586 = vpop.permute.xlu0 %5585
      %5587 = vrot.lane.b32.xlu0 %v5563, 1
      %v5588 = vpop.permute.xlu0 %5587
      %5589 = vrot.lane.b32.xlu0 %v5564, 1
      %v5590 = vpop.permute.xlu0 %5589
      %5591 = vrot.lane.b32.xlu0 %v5565, 1
      %v5592 = vpop.permute.xlu0 %5591
      %5593 = vrot.lane.b32.xlu0 %v5566, 1
      %v5594 = vpop.permute.xlu0 %5593
      %5595 = vrot.lane.b32.xlu0 %v5567, 1
      %v5596 = vpop.permute.xlu0 %5595
      %5597 = vrot.lane.b32.xlu0 %v5568, 1
      %v5598 = vpop.permute.xlu0 %5597
      %v5599 = vrot.slane %v5580, 4
      %v5600 = vrot.slane %v5582, 4
      %v5601 = vrot.slane %v5584, 4
      %v5602 = vrot.slane %v5586, 4
      %v5603 = vrot.slane %v5588, 4
      %v5604 = vrot.slane %v5590, 4
      %v5605 = vrot.slane %v5592, 4
      %v5606 = vrot.slane %v5594, 4
      %v5607 = vrot.slane %v5596, 4
      %v5608 = vrot.slane %v5598, 4
      %v5609 = vsel %vm465, %v5599, %v5600
      %v5610 = vsel %vm1463, %v5580, %v5609
      %v5611 = vsel %vm465, %v5600, %v5601
      %v5612 = vsel %vm1463, %v5582, %v5611
      %v5613 = vsel %vm465, %v5601, %v5602
      %v5614 = vsel %vm1463, %v5584, %v5613
      %v5615 = vsel %vm465, %v5602, %v5603
      %v5616 = vsel %vm1463, %v5586, %v5615
      %v5617 = vsel %vm465, %v5604, %v5605
      %v5618 = vsel %vm1463, %v5590, %v5617
      %v5619 = vsel %vm465, %v5605, %v5606
      %v5620 = vsel %vm1463, %v5592, %v5619
      %v5621 = vsel %vm465, %v5606, %v5607
      %v5622 = vsel %vm1463, %v5594, %v5621
      %v5623 = vsel %vm465, %v5607, %v5608
      %v5624 = vsel %vm1463, %v5596, %v5623
      %5633 = vst [vmem:[#allocation2 + $0x300] sm:$0xff] %v5610
      %5634 = vst [vmem:[#allocation2 + $0x308] sm:$0xff] %v5612
      %5635 = vst [vmem:[#allocation2 + $0x310] sm:$0xff] %v5614
      %5636 = vst [vmem:[#allocation2 + $0x318] sm:$0xff] %v5616
      %5637 = vst [vmem:[#allocation2 + $0x320] sm:$0xff] %v5618
      %5638 = vst [vmem:[#allocation2 + $0x328] sm:$0xff] %v5620
      %5639 = vst [vmem:[#allocation2 + $0x330] sm:$0xff] %v5622
      %5640 = vst [vmem:[#allocation2 + $0x338] sm:$0xff] %v5624
      %v5641 = vld [vmem:[#allocation3 + $0x4] sm:$0xff]
      %v5642 = vld [vmem:[#allocation3 + $0xc] sm:$0xff]
      %v5643 = vld [vmem:[#allocation3 + $0x14] sm:$0xff]
      %v5644 = vld [vmem:[#allocation3 + $0x1c] sm:$0xff]
      %v5645 = vld [vmem:[#allocation3 + $0x2c] sm:$0xff]
      %v5646 = vld [vmem:[#allocation3 + $0x34] sm:$0xff]
      %v5647 = vld [vmem:[#allocation3 + $0x3c] sm:$0xff]
      %v5648 = vld [vmem:[#allocation3 + $0x44] sm:$0xff]
      %5649 = vst [vmem:[#allocation2 + $0x340] sm:$0xff] %v5641
      %5650 = vst [vmem:[#allocation2 + $0x348] sm:$0xff] %v5642
      %5651 = vst [vmem:[#allocation2 + $0x350] sm:$0xff] %v5643
      %5652 = vst [vmem:[#allocation2 + $0x358] sm:$0xff] %v5644
      %5653 = vst [vmem:[#allocation2 + $0x360] sm:$0xff] %v5645
      %5654 = vst [vmem:[#allocation2 + $0x368] sm:$0xff] %v5646
      %5655 = vst [vmem:[#allocation2 + $0x370] sm:$0xff] %v5647
      %5656 = vst [vmem:[#allocation2 + $0x378] sm:$0xff] %v5648
      %v5657 = vld [vmem:[#allocation3 + $0x4] sm:$0xff]
      %v5658 = vld [vmem:[#allocation3 + $0xc] sm:$0xff]
      %v5659 = vld [vmem:[#allocation3 + $0x14] sm:$0xff]
      %v5660 = vld [vmem:[#allocation3 + $0x1c] sm:$0xff]
      %v5661 = vld [vmem:[#allocation3 + $0x24] sm:$0xf]
      %v5662 = vld [vmem:[#allocation3 + $0x2c] sm:$0xff]
      %v5663 = vld [vmem:[#allocation3 + $0x34] sm:$0xff]
      %v5664 = vld [vmem:[#allocation3 + $0x3c] sm:$0xff]
      %v5665 = vld [vmem:[#allocation3 + $0x44] sm:$0xff]
      %v5666 = vld [vmem:[#allocation3 + $0x4c] sm:$0xf]
      %5677 = vrot.lane.b32.xlu0 %v5657, 127
      %v5678 = vpop.permute.xlu0 %5677
      %5679 = vrot.lane.b32.xlu0 %v5658, 127
      %v5680 = vpop.permute.xlu0 %5679
      %5681 = vrot.lane.b32.xlu0 %v5659, 127
      %v5682 = vpop.permute.xlu0 %5681
      %5683 = vrot.lane.b32.xlu0 %v5660, 127
      %v5684 = vpop.permute.xlu0 %5683
      %5685 = vrot.lane.b32.xlu0 %v5661, 127
      %v5686 = vpop.permute.xlu0 %5685
      %5687 = vrot.lane.b32.xlu0 %v5662, 127
      %v5688 = vpop.permute.xlu0 %5687
      %5689 = vrot.lane.b32.xlu0 %v5663, 127
      %v5690 = vpop.permute.xlu0 %5689
      %5691 = vrot.lane.b32.xlu0 %v5664, 127
      %v5692 = vpop.permute.xlu0 %5691
      %5693 = vrot.lane.b32.xlu0 %v5665, 127
      %v5694 = vpop.permute.xlu0 %5693
      %5695 = vrot.lane.b32.xlu0 %v5666, 127
      %v5696 = vpop.permute.xlu0 %5695
      %v5697 = vrot.slane %v5678, 4
      %v5698 = vrot.slane %v5680, 4
      %v5699 = vrot.slane %v5682, 4
      %v5700 = vrot.slane %v5684, 4
      %v5701 = vrot.slane %v5686, 4
      %v5702 = vrot.slane %v5688, 4
      %v5703 = vrot.slane %v5690, 4
      %v5704 = vrot.slane %v5692, 4
      %v5705 = vrot.slane %v5694, 4
      %v5706 = vrot.slane %v5696, 4
      %v5707 = vsel %vm465, %v5697, %v5698
      %v5708 = vsel %vm1562, %v5678, %v5707
      %v5709 = vsel %vm465, %v5698, %v5699
      %v5710 = vsel %vm1562, %v5680, %v5709
      %v5711 = vsel %vm465, %v5699, %v5700
      %v5712 = vsel %vm1562, %v5682, %v5711
      %v5713 = vsel %vm465, %v5700, %v5701
      %v5714 = vsel %vm1562, %v5684, %v5713
      %v5715 = vsel %vm465, %v5702, %v5703
      %v5716 = vsel %vm1562, %v5688, %v5715
      %v5717 = vsel %vm465, %v5703, %v5704
      %v5718 = vsel %vm1562, %v5690, %v5717
      %v5719 = vsel %vm465, %v5704, %v5705
      %v5720 = vsel %vm1562, %v5692, %v5719
      %v5721 = vsel %vm465, %v5705, %v5706
      %v5722 = vsel %vm1562, %v5694, %v5721
      %5731 = vst [vmem:[#allocation2 + $0x380] sm:$0xff] %v5708
      %5732 = vst [vmem:[#allocation2 + $0x388] sm:$0xff] %v5710
      %5733 = vst [vmem:[#allocation2 + $0x390] sm:$0xff] %v5712
      %5734 = vst [vmem:[#allocation2 + $0x398] sm:$0xff] %v5714
      %5735 = vst [vmem:[#allocation2 + $0x3a0] sm:$0xff] %v5716
      %5736 = vst [vmem:[#allocation2 + $0x3a8] sm:$0xff] %v5718
      %5737 = vst [vmem:[#allocation2 + $0x3b0] sm:$0xff] %v5720
      %5738 = vst [vmem:[#allocation2 + $0x3b8] sm:$0xff] %v5722
      %v5739 = vld [vmem:[#allocation3 + $0x4] sm:$0xff]
      %v5740 = vld [vmem:[#allocation3 + $0xc] sm:$0xff]
      %v5741 = vld [vmem:[#allocation3 + $0x14] sm:$0xff]
      %v5742 = vld [vmem:[#allocation3 + $0x1c] sm:$0xff]
      %v5743 = vld [vmem:[#allocation3 + $0x24] sm:$0xf]
      %v5744 = vld [vmem:[#allocation3 + $0x2c] sm:$0xff]
      %v5745 = vld [vmem:[#allocation3 + $0x34] sm:$0xff]
      %v5746 = vld [vmem:[#allocation3 + $0x3c] sm:$0xff]
      %v5747 = vld [vmem:[#allocation3 + $0x44] sm:$0xff]
      %v5748 = vld [vmem:[#allocation3 + $0x4c] sm:$0xf]
      %5759 = vrot.lane.b32.xlu0 %v5739, 119
      %v5760 = vpop.permute.xlu0 %5759
      %5761 = vrot.lane.b32.xlu0 %v5740, 119
      %v5762 = vpop.permute.xlu0 %5761
      %5763 = vrot.lane.b32.xlu0 %v5741, 119
      %v5764 = vpop.permute.xlu0 %5763
      %5765 = vrot.lane.b32.xlu0 %v5742, 119
      %v5766 = vpop.permute.xlu0 %5765
      %5767 = vrot.lane.b32.xlu0 %v5743, 119
      %v5768 = vpop.permute.xlu0 %5767
      %5769 = vrot.lane.b32.xlu0 %v5744, 119
      %v5770 = vpop.permute.xlu0 %5769
      %5771 = vrot.lane.b32.xlu0 %v5745, 119
      %v5772 = vpop.permute.xlu0 %5771
      %5773 = vrot.lane.b32.xlu0 %v5746, 119
      %v5774 = vpop.permute.xlu0 %5773
      %5775 = vrot.lane.b32.xlu0 %v5747, 119
      %v5776 = vpop.permute.xlu0 %5775
      %5777 = vrot.lane.b32.xlu0 %v5748, 119
      %v5778 = vpop.permute.xlu0 %5777
      %v5779 = vrot.slane %v5760, 4
      %v5780 = vrot.slane %v5762, 4
      %v5781 = vrot.slane %v5764, 4
      %v5782 = vrot.slane %v5766, 4
      %v5783 = vrot.slane %v5768, 4
      %v5784 = vrot.slane %v5770, 4
      %v5785 = vrot.slane %v5772, 4
      %v5786 = vrot.slane %v5774, 4
      %v5787 = vrot.slane %v5776, 4
      %v5788 = vrot.slane %v5778, 4
      %v5789 = vsel %vm465, %v5779, %v5780
      %v5790 = vsel %vm1645, %v5760, %v5789
      %v5791 = vsel %vm465, %v5780, %v5781
      %v5792 = vsel %vm1645, %v5762, %v5791
      %v5793 = vsel %vm465, %v5781, %v5782
      %v5794 = vsel %vm1645, %v5764, %v5793
      %v5795 = vsel %vm465, %v5782, %v5783
      %v5796 = vsel %vm1645, %v5766, %v5795
      %v5797 = vsel %vm465, %v5784, %v5785
      %v5798 = vsel %vm1645, %v5770, %v5797
      %v5799 = vsel %vm465, %v5785, %v5786
      %v5800 = vsel %vm1645, %v5772, %v5799
      %v5801 = vsel %vm465, %v5786, %v5787
      %v5802 = vsel %vm1645, %v5774, %v5801
      %v5803 = vsel %vm465, %v5787, %v5788
      %v5804 = vsel %vm1645, %v5776, %v5803
      %5813 = vst [vmem:[#allocation2 + $0x3c0] sm:$0xff] %v5790
      %5814 = vst [vmem:[#allocation2 + $0x3c8] sm:$0xff] %v5792
      %5815 = vst [vmem:[#allocation2 + $0x3d0] sm:$0xff] %v5794
      %5816 = vst [vmem:[#allocation2 + $0x3d8] sm:$0xff] %v5796
      %5817 = vst [vmem:[#allocation2 + $0x3e0] sm:$0xff] %v5798
      %5818 = vst [vmem:[#allocation2 + $0x3e8] sm:$0xff] %v5800
      %5819 = vst [vmem:[#allocation2 + $0x3f0] sm:$0xff] %v5802
      %5820 = vst [vmem:[#allocation2 + $0x3f8] sm:$0xff] %v5804
      %v5821 = vld [vmem:[#allocation3 + $0x4] sm:$0xff]
      %v5822 = vld [vmem:[#allocation3 + $0xc] sm:$0xff]
      %v5823 = vld [vmem:[#allocation3 + $0x14] sm:$0xff]
      %v5824 = vld [vmem:[#allocation3 + $0x1c] sm:$0xff]
      %v5825 = vld [vmem:[#allocation3 + $0x24] sm:$0xf]
      %v5826 = vld [vmem:[#allocation3 + $0x2c] sm:$0xff]
      %v5827 = vld [vmem:[#allocation3 + $0x34] sm:$0xff]
      %v5828 = vld [vmem:[#allocation3 + $0x3c] sm:$0xff]
      %v5829 = vld [vmem:[#allocation3 + $0x44] sm:$0xff]
      %v5830 = vld [vmem:[#allocation3 + $0x4c] sm:$0xf]
      %5841 = vrot.lane.b32.xlu0 %v5821, 118
      %v5842 = vpop.permute.xlu0 %5841
      %5843 = vrot.lane.b32.xlu0 %v5822, 118
      %v5844 = vpop.permute.xlu0 %5843
      %5845 = vrot.lane.b32.xlu0 %v5823, 118
      %v5846 = vpop.permute.xlu0 %5845
      %5847 = vrot.lane.b32.xlu0 %v5824, 118
      %v5848 = vpop.permute.xlu0 %5847
      %5849 = vrot.lane.b32.xlu0 %v5825, 118
      %v5850 = vpop.permute.xlu0 %5849
      %5851 = vrot.lane.b32.xlu0 %v5826, 118
      %v5852 = vpop.permute.xlu0 %5851
      %5853 = vrot.lane.b32.xlu0 %v5827, 118
      %v5854 = vpop.permute.xlu0 %5853
      %5855 = vrot.lane.b32.xlu0 %v5828, 118
      %v5856 = vpop.permute.xlu0 %5855
      %5857 = vrot.lane.b32.xlu0 %v5829, 118
      %v5858 = vpop.permute.xlu0 %5857
      %5859 = vrot.lane.b32.xlu0 %v5830, 118
      %v5860 = vpop.permute.xlu0 %5859
      %v5861 = vrot.slane %v5842, 4
      %v5862 = vrot.slane %v5844, 4
      %v5863 = vrot.slane %v5846, 4
      %v5864 = vrot.slane %v5848, 4
      %v5865 = vrot.slane %v5850, 4
      %v5866 = vrot.slane %v5852, 4
      %v5867 = vrot.slane %v5854, 4
      %v5868 = vrot.slane %v5856, 4
      %v5869 = vrot.slane %v5858, 4
      %v5870 = vrot.slane %v5860, 4
      %v5871 = vsel %vm465, %v5861, %v5862
      %v5872 = vsel %vm1728, %v5842, %v5871
      %v5873 = vsel %vm465, %v5862, %v5863
      %v5874 = vsel %vm1728, %v5844, %v5873
      %v5875 = vsel %vm465, %v5863, %v5864
      %v5876 = vsel %vm1728, %v5846, %v5875
      %v5877 = vsel %vm465, %v5864, %v5865
      %v5878 = vsel %vm1728, %v5848, %v5877
      %v5879 = vsel %vm465, %v5866, %v5867
      %v5880 = vsel %vm1728, %v5852, %v5879
      %v5881 = vsel %vm465, %v5867, %v5868
      %v5882 = vsel %vm1728, %v5854, %v5881
      %v5883 = vsel %vm465, %v5868, %v5869
      %v5884 = vsel %vm1728, %v5856, %v5883
      %v5885 = vsel %vm465, %v5869, %v5870
      %v5886 = vsel %vm1728, %v5858, %v5885
      %5895 = vst [vmem:[#allocation2 + $0x400] sm:$0xff] %v5872
      %5896 = vst [vmem:[#allocation2 + $0x408] sm:$0xff] %v5874
      %5897 = vst [vmem:[#allocation2 + $0x410] sm:$0xff] %v5876
      %5898 = vst [vmem:[#allocation2 + $0x418] sm:$0xff] %v5878
      %5899 = vst [vmem:[#allocation2 + $0x420] sm:$0xff] %v5880
      %5900 = vst [vmem:[#allocation2 + $0x428] sm:$0xff] %v5882
      %5901 = vst [vmem:[#allocation2 + $0x430] sm:$0xff] %v5884
      %5902 = vst [vmem:[#allocation2 + $0x438] sm:$0xff] %v5886
      %v5903 = vld [vmem:[#allocation3 + $0x4] sm:$0xff]
      %v5904 = vld [vmem:[#allocation3 + $0xc] sm:$0xff]
      %v5905 = vld [vmem:[#allocation3 + $0x14] sm:$0xff]
      %v5906 = vld [vmem:[#allocation3 + $0x1c] sm:$0xff]
      %v5907 = vld [vmem:[#allocation3 + $0x24] sm:$0xf]
      %v5908 = vld [vmem:[#allocation3 + $0x2c] sm:$0xff]
      %v5909 = vld [vmem:[#allocation3 + $0x34] sm:$0xff]
      %v5910 = vld [vmem:[#allocation3 + $0x3c] sm:$0xff]
      %v5911 = vld [vmem:[#allocation3 + $0x44] sm:$0xff]
      %v5912 = vld [vmem:[#allocation3 + $0x4c] sm:$0xf]
      %5923 = vrot.lane.b32.xlu0 %v5903, 117
      %v5924 = vpop.permute.xlu0 %5923
      %5925 = vrot.lane.b32.xlu0 %v5904, 117
      %v5926 = vpop.permute.xlu0 %5925
      %5927 = vrot.lane.b32.xlu0 %v5905, 117
      %v5928 = vpop.permute.xlu0 %5927
      %5929 = vrot.lane.b32.xlu0 %v5906, 117
      %v5930 = vpop.permute.xlu0 %5929
      %5931 = vrot.lane.b32.xlu0 %v5907, 117
      %v5932 = vpop.permute.xlu0 %5931
      %5933 = vrot.lane.b32.xlu0 %v5908, 117
      %v5934 = vpop.permute.xlu0 %5933
      %5935 = vrot.lane.b32.xlu0 %v5909, 117
      %v5936 = vpop.permute.xlu0 %5935
      %5937 = vrot.lane.b32.xlu0 %v5910, 117
      %v5938 = vpop.permute.xlu0 %5937
      %5939 = vrot.lane.b32.xlu0 %v5911, 117
      %v5940 = vpop.permute.xlu0 %5939
      %5941 = vrot.lane.b32.xlu0 %v5912, 117
      %v5942 = vpop.permute.xlu0 %5941
      %v5943 = vrot.slane %v5924, 4
      %v5944 = vrot.slane %v5926, 4
      %v5945 = vrot.slane %v5928, 4
      %v5946 = vrot.slane %v5930, 4
      %v5947 = vrot.slane %v5932, 4
      %v5948 = vrot.slane %v5934, 4
      %v5949 = vrot.slane %v5936, 4
      %v5950 = vrot.slane %v5938, 4
      %v5951 = vrot.slane %v5940, 4
      %v5952 = vrot.slane %v5942, 4
      %v5953 = vsel %vm465, %v5943, %v5944
      %v5954 = vsel %vm1811, %v5924, %v5953
      %v5955 = vsel %vm465, %v5944, %v5945
      %v5956 = vsel %vm1811, %v5926, %v5955
      %v5957 = vsel %vm465, %v5945, %v5946
      %v5958 = vsel %vm1811, %v5928, %v5957
      %v5959 = vsel %vm465, %v5946, %v5947
      %v5960 = vsel %vm1811, %v5930, %v5959
      %v5961 = vsel %vm465, %v5948, %v5949
      %v5962 = vsel %vm1811, %v5934, %v5961
      %v5963 = vsel %vm465, %v5949, %v5950
      %v5964 = vsel %vm1811, %v5936, %v5963
      %v5965 = vsel %vm465, %v5950, %v5951
      %v5966 = vsel %vm1811, %v5938, %v5965
      %v5967 = vsel %vm465, %v5951, %v5952
      %v5968 = vsel %vm1811, %v5940, %v5967
      %5977 = vst [vmem:[#allocation2 + $0x440] sm:$0xff] %v5954
      %5978 = vst [vmem:[#allocation2 + $0x448] sm:$0xff] %v5956
      %5979 = vst [vmem:[#allocation2 + $0x450] sm:$0xff] %v5958
      %5980 = vst [vmem:[#allocation2 + $0x458] sm:$0xff] %v5960
      %5981 = vst [vmem:[#allocation2 + $0x460] sm:$0xff] %v5962
      %5982 = vst [vmem:[#allocation2 + $0x468] sm:$0xff] %v5964
      %5983 = vst [vmem:[#allocation2 + $0x470] sm:$0xff] %v5966
      %5984 = vst [vmem:[#allocation2 + $0x478] sm:$0xff] %v5968
      %v5985 = vld [vmem:[#allocation3 + $0x4] sm:$0xff]
      %v5986 = vld [vmem:[#allocation3 + $0xc] sm:$0xff]
      %v5987 = vld [vmem:[#allocation3 + $0x14] sm:$0xff]
      %v5988 = vld [vmem:[#allocation3 + $0x1c] sm:$0xff]
      %v5989 = vld [vmem:[#allocation3 + $0x24] sm:$0xf]
      %v5990 = vld [vmem:[#allocation3 + $0x2c] sm:$0xff]
      %v5991 = vld [vmem:[#allocation3 + $0x34] sm:$0xff]
      %v5992 = vld [vmem:[#allocation3 + $0x3c] sm:$0xff]
      %v5993 = vld [vmem:[#allocation3 + $0x44] sm:$0xff]
      %v5994 = vld [vmem:[#allocation3 + $0x4c] sm:$0xf]
      %6005 = vrot.lane.b32.xlu0 %v5985, 39
      %v6006 = vpop.permute.xlu0 %6005
      %6007 = vrot.lane.b32.xlu0 %v5986, 39
      %v6008 = vpop.permute.xlu0 %6007
      %6009 = vrot.lane.b32.xlu0 %v5987, 39
      %v6010 = vpop.permute.xlu0 %6009
      %6011 = vrot.lane.b32.xlu0 %v5988, 39
      %v6012 = vpop.permute.xlu0 %6011
      %6013 = vrot.lane.b32.xlu0 %v5989, 39
      %v6014 = vpop.permute.xlu0 %6013
      %6015 = vrot.lane.b32.xlu0 %v5990, 39
      %v6016 = vpop.permute.xlu0 %6015
      %6017 = vrot.lane.b32.xlu0 %v5991, 39
      %v6018 = vpop.permute.xlu0 %6017
      %6019 = vrot.lane.b32.xlu0 %v5992, 39
      %v6020 = vpop.permute.xlu0 %6019
      %6021 = vrot.lane.b32.xlu0 %v5993, 39
      %v6022 = vpop.permute.xlu0 %6021
      %6023 = vrot.lane.b32.xlu0 %v5994, 39
      %v6024 = vpop.permute.xlu0 %6023
      %v6025 = vrot.slane %v6006, 4
      %v6026 = vrot.slane %v6008, 4
      %v6027 = vrot.slane %v6010, 4
      %v6028 = vrot.slane %v6012, 4
      %v6029 = vrot.slane %v6014, 4
      %v6030 = vrot.slane %v6016, 4
      %v6031 = vrot.slane %v6018, 4
      %v6032 = vrot.slane %v6020, 4
      %v6033 = vrot.slane %v6022, 4
      %v6034 = vrot.slane %v6024, 4
      %v6035 = vsel %vm465, %v6025, %v6026
      %v6036 = vsel %vm1894, %v6006, %v6035
      %v6037 = vsel %vm465, %v6026, %v6027
      %v6038 = vsel %vm1894, %v6008, %v6037
      %v6039 = vsel %vm465, %v6027, %v6028
      %v6040 = vsel %vm1894, %v6010, %v6039
      %v6041 = vsel %vm465, %v6028, %v6029
      %v6042 = vsel %vm1894, %v6012, %v6041
      %v6043 = vsel %vm465, %v6030, %v6031
      %v6044 = vsel %vm1894, %v6016, %v6043
      %v6045 = vsel %vm465, %v6031, %v6032
      %v6046 = vsel %vm1894, %v6018, %v6045
      %v6047 = vsel %vm465, %v6032, %v6033
      %v6048 = vsel %vm1894, %v6020, %v6047
      %v6049 = vsel %vm465, %v6033, %v6034
      %v6050 = vsel %vm1894, %v6022, %v6049
      %6059 = vst [vmem:[#allocation2 + $0x480] sm:$0xff] %v6036
      %6060 = vst [vmem:[#allocation2 + $0x488] sm:$0xff] %v6038
      %6061 = vst [vmem:[#allocation2 + $0x490] sm:$0xff] %v6040
      %6062 = vst [vmem:[#allocation2 + $0x498] sm:$0xff] %v6042
      %6063 = vst [vmem:[#allocation2 + $0x4a0] sm:$0xff] %v6044
      %6064 = vst [vmem:[#allocation2 + $0x4a8] sm:$0xff] %v6046
      %6065 = vst [vmem:[#allocation2 + $0x4b0] sm:$0xff] %v6048
      %6066 = vst [vmem:[#allocation2 + $0x4b8] sm:$0xff] %v6050
      %v6067 = vld [vmem:[#allocation3 + $0x4] sm:$0xff]
      %v6068 = vld [vmem:[#allocation3 + $0xc] sm:$0xff]
      %v6069 = vld [vmem:[#allocation3 + $0x14] sm:$0xff]
      %v6070 = vld [vmem:[#allocation3 + $0x1c] sm:$0xff]
      %v6071 = vld [vmem:[#allocation3 + $0x24] sm:$0xf]
      %v6072 = vld [vmem:[#allocation3 + $0x2c] sm:$0xff]
      %v6073 = vld [vmem:[#allocation3 + $0x34] sm:$0xff]
      %v6074 = vld [vmem:[#allocation3 + $0x3c] sm:$0xff]
      %v6075 = vld [vmem:[#allocation3 + $0x44] sm:$0xff]
      %v6076 = vld [vmem:[#allocation3 + $0x4c] sm:$0xf]
      %6087 = vrot.lane.b32.xlu0 %v6067, 38
      %v6088 = vpop.permute.xlu0 %6087
      %6089 = vrot.lane.b32.xlu0 %v6068, 38
      %v6090 = vpop.permute.xlu0 %6089
      %6091 = vrot.lane.b32.xlu0 %v6069, 38
      %v6092 = vpop.permute.xlu0 %6091
      %6093 = vrot.lane.b32.xlu0 %v6070, 38
      %v6094 = vpop.permute.xlu0 %6093
      %6095 = vrot.lane.b32.xlu0 %v6071, 38
      %v6096 = vpop.permute.xlu0 %6095
      %6097 = vrot.lane.b32.xlu0 %v6072, 38
      %v6098 = vpop.permute.xlu0 %6097
      %6099 = vrot.lane.b32.xlu0 %v6073, 38
      %v6100 = vpop.permute.xlu0 %6099
      %6101 = vrot.lane.b32.xlu0 %v6074, 38
      %v6102 = vpop.permute.xlu0 %6101
      %6103 = vrot.lane.b32.xlu0 %v6075, 38
      %v6104 = vpop.permute.xlu0 %6103
      %6105 = vrot.lane.b32.xlu0 %v6076, 38
      %v6106 = vpop.permute.xlu0 %6105
      %v6107 = vrot.slane %v6088, 4
      %v6108 = vrot.slane %v6090, 4
      %v6109 = vrot.slane %v6092, 4
      %v6110 = vrot.slane %v6094, 4
      %v6111 = vrot.slane %v6096, 4
      %v6112 = vrot.slane %v6098, 4
      %v6113 = vrot.slane %v6100, 4
      %v6114 = vrot.slane %v6102, 4
      %v6115 = vrot.slane %v6104, 4
      %v6116 = vrot.slane %v6106, 4
      %v6117 = vsel %vm465, %v6107, %v6108
      %v6118 = vsel %vm1977, %v6088, %v6117
      %v6119 = vsel %vm465, %v6108, %v6109
      %v6120 = vsel %vm1977, %v6090, %v6119
      %v6121 = vsel %vm465, %v6109, %v6110
      %v6122 = vsel %vm1977, %v6092, %v6121
      %v6123 = vsel %vm465, %v6110, %v6111
      %v6124 = vsel %vm1977, %v6094, %v6123
      %v6125 = vsel %vm465, %v6112, %v6113
      %v6126 = vsel %vm1977, %v6098, %v6125
      %v6127 = vsel %vm465, %v6113, %v6114
      %v6128 = vsel %vm1977, %v6100, %v6127
      %v6129 = vsel %vm465, %v6114, %v6115
      %v6130 = vsel %vm1977, %v6102, %v6129
      %v6131 = vsel %vm465, %v6115, %v6116
      %v6132 = vsel %vm1977, %v6104, %v6131
      %6141 = vst [vmem:[#allocation2 + $0x4c0] sm:$0xff] %v6118
      %6142 = vst [vmem:[#allocation2 + $0x4c8] sm:$0xff] %v6120
      %6143 = vst [vmem:[#allocation2 + $0x4d0] sm:$0xff] %v6122
      %6144 = vst [vmem:[#allocation2 + $0x4d8] sm:$0xff] %v6124
      %6145 = vst [vmem:[#allocation2 + $0x4e0] sm:$0xff] %v6126
      %6146 = vst [vmem:[#allocation2 + $0x4e8] sm:$0xff] %v6128
      %6147 = vst [vmem:[#allocation2 + $0x4f0] sm:$0xff] %v6130
      %6148 = vst [vmem:[#allocation2 + $0x4f8] sm:$0xff] %v6132
      %v6149 = vld [vmem:[#allocation3 + $0x4] sm:$0xff]
      %v6150 = vld [vmem:[#allocation3 + $0xc] sm:$0xff]
      %v6151 = vld [vmem:[#allocation3 + $0x14] sm:$0xff]
      %v6152 = vld [vmem:[#allocation3 + $0x1c] sm:$0xff]
      %v6153 = vld [vmem:[#allocation3 + $0x24] sm:$0xf]
      %v6154 = vld [vmem:[#allocation3 + $0x2c] sm:$0xff]
      %v6155 = vld [vmem:[#allocation3 + $0x34] sm:$0xff]
      %v6156 = vld [vmem:[#allocation3 + $0x3c] sm:$0xff]
      %v6157 = vld [vmem:[#allocation3 + $0x44] sm:$0xff]
      %v6158 = vld [vmem:[#allocation3 + $0x4c] sm:$0xf]
      %6169 = vrot.lane.b32.xlu0 %v6149, 37
      %v6170 = vpop.permute.xlu0 %6169
      %6171 = vrot.lane.b32.xlu0 %v6150, 37
      %v6172 = vpop.permute.xlu0 %6171
      %6173 = vrot.lane.b32.xlu0 %v6151, 37
      %v6174 = vpop.permute.xlu0 %6173
      %6175 = vrot.lane.b32.xlu0 %v6152, 37
      %v6176 = vpop.permute.xlu0 %6175
      %6177 = vrot.lane.b32.xlu0 %v6153, 37
      %v6178 = vpop.permute.xlu0 %6177
      %6179 = vrot.lane.b32.xlu0 %v6154, 37
      %v6180 = vpop.permute.xlu0 %6179
      %6181 = vrot.lane.b32.xlu0 %v6155, 37
      %v6182 = vpop.permute.xlu0 %6181
      %6183 = vrot.lane.b32.xlu0 %v6156, 37
      %v6184 = vpop.permute.xlu0 %6183
      %6185 = vrot.lane.b32.xlu0 %v6157, 37
      %v6186 = vpop.permute.xlu0 %6185
      %6187 = vrot.lane.b32.xlu0 %v6158, 37
      %v6188 = vpop.permute.xlu0 %6187
      %v6189 = vrot.slane %v6170, 4
      %v6190 = vrot.slane %v6172, 4
      %v6191 = vrot.slane %v6174, 4
      %v6192 = vrot.slane %v6176, 4
      %v6193 = vrot.slane %v6178, 4
      %v6194 = vrot.slane %v6180, 4
      %v6195 = vrot.slane %v6182, 4
      %v6196 = vrot.slane %v6184, 4
      %v6197 = vrot.slane %v6186, 4
      %v6198 = vrot.slane %v6188, 4
      %v6199 = vsel %vm465, %v6189, %v6190
      %v6200 = vsel %vm2060, %v6170, %v6199
      %v6201 = vsel %vm465, %v6190, %v6191
      %v6202 = vsel %vm2060, %v6172, %v6201
      %v6203 = vsel %vm465, %v6191, %v6192
      %v6204 = vsel %vm2060, %v6174, %v6203
      %v6205 = vsel %vm465, %v6192, %v6193
      %v6206 = vsel %vm2060, %v6176, %v6205
      %v6207 = vsel %vm465, %v6194, %v6195
      %v6208 = vsel %vm2060, %v6180, %v6207
      %v6209 = vsel %vm465, %v6195, %v6196
      %v6210 = vsel %vm2060, %v6182, %v6209
      %v6211 = vsel %vm465, %v6196, %v6197
      %v6212 = vsel %vm2060, %v6184, %v6211
      %v6213 = vsel %vm465, %v6197, %v6198
      %v6214 = vsel %vm2060, %v6186, %v6213
      %6223 = vst [vmem:[#allocation2 + $0x500] sm:$0xff] %v6200
      %6224 = vst [vmem:[#allocation2 + $0x508] sm:$0xff] %v6202
      %6225 = vst [vmem:[#allocation2 + $0x510] sm:$0xff] %v6204
      %6226 = vst [vmem:[#allocation2 + $0x518] sm:$0xff] %v6206
      %6227 = vst [vmem:[#allocation2 + $0x520] sm:$0xff] %v6208
      %6228 = vst [vmem:[#allocation2 + $0x528] sm:$0xff] %v6210
      %6229 = vst [vmem:[#allocation2 + $0x530] sm:$0xff] %v6212
      %6230 = vst [vmem:[#allocation2 + $0x538] sm:$0xff] %v6214
      %v6231 = vld [vmem:[#allocation3 + $0x4] sm:$0xff]
      %v6232 = vld [vmem:[#allocation3 + $0xc] sm:$0xff]
      %v6233 = vld [vmem:[#allocation3 + $0x14] sm:$0xff]
      %v6234 = vld [vmem:[#allocation3 + $0x1c] sm:$0xff]
      %v6235 = vld [vmem:[#allocation3 + $0x24] sm:$0xf]
      %v6236 = vld [vmem:[#allocation3 + $0x2c] sm:$0xff]
      %v6237 = vld [vmem:[#allocation3 + $0x34] sm:$0xff]
      %v6238 = vld [vmem:[#allocation3 + $0x3c] sm:$0xff]
      %v6239 = vld [vmem:[#allocation3 + $0x44] sm:$0xff]
      %v6240 = vld [vmem:[#allocation3 + $0x4c] sm:$0xf]
      %6251 = vrot.lane.b32.xlu0 %v6231, 29
      %v6252 = vpop.permute.xlu0 %6251
      %6253 = vrot.lane.b32.xlu0 %v6232, 29
      %v6254 = vpop.permute.xlu0 %6253
      %6255 = vrot.lane.b32.xlu0 %v6233, 29
      %v6256 = vpop.permute.xlu0 %6255
      %6257 = vrot.lane.b32.xlu0 %v6234, 29
      %v6258 = vpop.permute.xlu0 %6257
      %6259 = vrot.lane.b32.xlu0 %v6235, 29
      %v6260 = vpop.permute.xlu0 %6259
      %6261 = vrot.lane.b32.xlu0 %v6236, 29
      %v6262 = vpop.permute.xlu0 %6261
      %6263 = vrot.lane.b32.xlu0 %v6237, 29
      %v6264 = vpop.permute.xlu0 %6263
      %6265 = vrot.lane.b32.xlu0 %v6238, 29
      %v6266 = vpop.permute.xlu0 %6265
      %6267 = vrot.lane.b32.xlu0 %v6239, 29
      %v6268 = vpop.permute.xlu0 %6267
      %6269 = vrot.lane.b32.xlu0 %v6240, 29
      %v6270 = vpop.permute.xlu0 %6269
      %v6271 = vrot.slane %v6252, 4
      %v6272 = vrot.slane %v6254, 4
      %v6273 = vrot.slane %v6256, 4
      %v6274 = vrot.slane %v6258, 4
      %v6275 = vrot.slane %v6260, 4
      %v6276 = vrot.slane %v6262, 4
      %v6277 = vrot.slane %v6264, 4
      %v6278 = vrot.slane %v6266, 4
      %v6279 = vrot.slane %v6268, 4
      %v6280 = vrot.slane %v6270, 4
      %v6281 = vsel %vm465, %v6271, %v6272
      %v6282 = vsel %vm2143, %v6252, %v6281
      %v6283 = vsel %vm465, %v6272, %v6273
      %v6284 = vsel %vm2143, %v6254, %v6283
      %v6285 = vsel %vm465, %v6273, %v6274
      %v6286 = vsel %vm2143, %v6256, %v6285
      %v6287 = vsel %vm465, %v6274, %v6275
      %v6288 = vsel %vm2143, %v6258, %v6287
      %v6289 = vsel %vm465, %v6276, %v6277
      %v6290 = vsel %vm2143, %v6262, %v6289
      %v6291 = vsel %vm465, %v6277, %v6278
      %v6292 = vsel %vm2143, %v6264, %v6291
      %v6293 = vsel %vm465, %v6278, %v6279
      %v6294 = vsel %vm2143, %v6266, %v6293
      %v6295 = vsel %vm465, %v6279, %v6280
      %v6296 = vsel %vm2143, %v6268, %v6295
      %6305 = vst [vmem:[#allocation2 + $0x540] sm:$0xff] %v6282
      %6306 = vst [vmem:[#allocation2 + $0x548] sm:$0xff] %v6284
      %6307 = vst [vmem:[#allocation2 + $0x550] sm:$0xff] %v6286
      %6308 = vst [vmem:[#allocation2 + $0x558] sm:$0xff] %v6288
      %6309 = vst [vmem:[#allocation2 + $0x560] sm:$0xff] %v6290
      %6310 = vst [vmem:[#allocation2 + $0x568] sm:$0xff] %v6292
      %6311 = vst [vmem:[#allocation2 + $0x570] sm:$0xff] %v6294
      %6312 = vst [vmem:[#allocation2 + $0x578] sm:$0xff] %v6296
      %v6313 = vld [vmem:[#allocation3 + $0x4] sm:$0xff]
      %v6314 = vld [vmem:[#allocation3 + $0xc] sm:$0xff]
      %v6315 = vld [vmem:[#allocation3 + $0x14] sm:$0xff]
      %v6316 = vld [vmem:[#allocation3 + $0x1c] sm:$0xff]
      %v6317 = vld [vmem:[#allocation3 + $0x24] sm:$0xf]
      %v6318 = vld [vmem:[#allocation3 + $0x2c] sm:$0xff]
      %v6319 = vld [vmem:[#allocation3 + $0x34] sm:$0xff]
      %v6320 = vld [vmem:[#allocation3 + $0x3c] sm:$0xff]
      %v6321 = vld [vmem:[#allocation3 + $0x44] sm:$0xff]
      %v6322 = vld [vmem:[#allocation3 + $0x4c] sm:$0xf]
      %6333 = vrot.lane.b32.xlu0 %v6313, 28
      %v6334 = vpop.permute.xlu0 %6333
      %6335 = vrot.lane.b32.xlu0 %v6314, 28
      %v6336 = vpop.permute.xlu0 %6335
      %6337 = vrot.lane.b32.xlu0 %v6315, 28
      %v6338 = vpop.permute.xlu0 %6337
      %6339 = vrot.lane.b32.xlu0 %v6316, 28
      %v6340 = vpop.permute.xlu0 %6339
      %6341 = vrot.lane.b32.xlu0 %v6317, 28
      %v6342 = vpop.permute.xlu0 %6341
      %6343 = vrot.lane.b32.xlu0 %v6318, 28
      %v6344 = vpop.permute.xlu0 %6343
      %6345 = vrot.lane.b32.xlu0 %v6319, 28
      %v6346 = vpop.permute.xlu0 %6345
      %6347 = vrot.lane.b32.xlu0 %v6320, 28
      %v6348 = vpop.permute.xlu0 %6347
      %6349 = vrot.lane.b32.xlu0 %v6321, 28
      %v6350 = vpop.permute.xlu0 %6349
      %6351 = vrot.lane.b32.xlu0 %v6322, 28
      %v6352 = vpop.permute.xlu0 %6351
      %v6353 = vrot.slane %v6334, 4
      %v6354 = vrot.slane %v6336, 4
      %v6355 = vrot.slane %v6338, 4
      %v6356 = vrot.slane %v6340, 4
      %v6357 = vrot.slane %v6342, 4
      %v6358 = vrot.slane %v6344, 4
      %v6359 = vrot.slane %v6346, 4
      %v6360 = vrot.slane %v6348, 4
      %v6361 = vrot.slane %v6350, 4
      %v6362 = vrot.slane %v6352, 4
      %v6363 = vsel %vm465, %v6353, %v6354
      %v6364 = vsel %vm2226, %v6334, %v6363
      %v6365 = vsel %vm465, %v6354, %v6355
      %v6366 = vsel %vm2226, %v6336, %v6365
      %v6367 = vsel %vm465, %v6355, %v6356
      %v6368 = vsel %vm2226, %v6338, %v6367
      %v6369 = vsel %vm465, %v6356, %v6357
      %v6370 = vsel %vm2226, %v6340, %v6369
      %v6371 = vsel %vm465, %v6358, %v6359
      %v6372 = vsel %vm2226, %v6344, %v6371
      %v6373 = vsel %vm465, %v6359, %v6360
      %v6374 = vsel %vm2226, %v6346, %v6373
      %v6375 = vsel %vm465, %v6360, %v6361
      %v6376 = vsel %vm2226, %v6348, %v6375
      %v6377 = vsel %vm465, %v6361, %v6362
      %v6378 = vsel %vm2226, %v6350, %v6377
      %6387 = vst [vmem:[#allocation2 + $0x580] sm:$0xff] %v6364
      %6388 = vst [vmem:[#allocation2 + $0x588] sm:$0xff] %v6366
      %6389 = vst [vmem:[#allocation2 + $0x590] sm:$0xff] %v6368
      %6390 = vst [vmem:[#allocation2 + $0x598] sm:$0xff] %v6370
      %6391 = vst [vmem:[#allocation2 + $0x5a0] sm:$0xff] %v6372
      %6392 = vst [vmem:[#allocation2 + $0x5a8] sm:$0xff] %v6374
      %6393 = vst [vmem:[#allocation2 + $0x5b0] sm:$0xff] %v6376
      %6394 = vst [vmem:[#allocation2 + $0x5b8] sm:$0xff] %v6378
      %v6395 = vld [vmem:[#allocation3 + $0x4] sm:$0xff]
      %v6396 = vld [vmem:[#allocation3 + $0xc] sm:$0xff]
      %v6397 = vld [vmem:[#allocation3 + $0x14] sm:$0xff]
      %v6398 = vld [vmem:[#allocation3 + $0x1c] sm:$0xff]
      %v6399 = vld [vmem:[#allocation3 + $0x24] sm:$0xf]
      %v6400 = vld [vmem:[#allocation3 + $0x2c] sm:$0xff]
      %v6401 = vld [vmem:[#allocation3 + $0x34] sm:$0xff]
      %v6402 = vld [vmem:[#allocation3 + $0x3c] sm:$0xff]
      %v6403 = vld [vmem:[#allocation3 + $0x44] sm:$0xff]
      %v6404 = vld [vmem:[#allocation3 + $0x4c] sm:$0xf]
      %6415 = vrot.lane.b32.xlu0 %v6395, 27
      %v6416 = vpop.permute.xlu0 %6415
      %6417 = vrot.lane.b32.xlu0 %v6396, 27
      %v6418 = vpop.permute.xlu0 %6417
      %6419 = vrot.lane.b32.xlu0 %v6397, 27
      %v6420 = vpop.permute.xlu0 %6419
      %6421 = vrot.lane.b32.xlu0 %v6398, 27
      %v6422 = vpop.permute.xlu0 %6421
      %6423 = vrot.lane.b32.xlu0 %v6399, 27
      %v6424 = vpop.permute.xlu0 %6423
      %6425 = vrot.lane.b32.xlu0 %v6400, 27
      %v6426 = vpop.permute.xlu0 %6425
      %6427 = vrot.lane.b32.xlu0 %v6401, 27
      %v6428 = vpop.permute.xlu0 %6427
      %6429 = vrot.lane.b32.xlu0 %v6402, 27
      %v6430 = vpop.permute.xlu0 %6429
      %6431 = vrot.lane.b32.xlu0 %v6403, 27
      %v6432 = vpop.permute.xlu0 %6431
      %6433 = vrot.lane.b32.xlu0 %v6404, 27
      %v6434 = vpop.permute.xlu0 %6433
      %v6435 = vrot.slane %v6416, 4
      %v6436 = vrot.slane %v6418, 4
      %v6437 = vrot.slane %v6420, 4
      %v6438 = vrot.slane %v6422, 4
      %v6439 = vrot.slane %v6424, 4
      %v6440 = vrot.slane %v6426, 4
      %v6441 = vrot.slane %v6428, 4
      %v6442 = vrot.slane %v6430, 4
      %v6443 = vrot.slane %v6432, 4
      %v6444 = vrot.slane %v6434, 4
      %v6445 = vsel %vm465, %v6435, %v6436
      %v6446 = vsel %vm2309, %v6416, %v6445
      %v6447 = vsel %vm465, %v6436, %v6437
      %v6448 = vsel %vm2309, %v6418, %v6447
      %v6449 = vsel %vm465, %v6437, %v6438
      %v6450 = vsel %vm2309, %v6420, %v6449
      %v6451 = vsel %vm465, %v6438, %v6439
      %v6452 = vsel %vm2309, %v6422, %v6451
      %v6453 = vsel %vm465, %v6440, %v6441
      %v6454 = vsel %vm2309, %v6426, %v6453
      %v6455 = vsel %vm465, %v6441, %v6442
      %v6456 = vsel %vm2309, %v6428, %v6455
      %v6457 = vsel %vm465, %v6442, %v6443
      %v6458 = vsel %vm2309, %v6430, %v6457
      %v6459 = vsel %vm465, %v6443, %v6444
      %v6460 = vsel %vm2309, %v6432, %v6459
      %6469 = vst [vmem:[#allocation2 + $0x5c0] sm:$0xff] %v6446
      %6470 = vst [vmem:[#allocation2 + $0x5c8] sm:$0xff] %v6448
      %6471 = vst [vmem:[#allocation2 + $0x5d0] sm:$0xff] %v6450
      %6472 = vst [vmem:[#allocation2 + $0x5d8] sm:$0xff] %v6452
      %6473 = vst [vmem:[#allocation2 + $0x5e0] sm:$0xff] %v6454
      %6474 = vst [vmem:[#allocation2 + $0x5e8] sm:$0xff] %v6456
      %6475 = vst [vmem:[#allocation2 + $0x5f0] sm:$0xff] %v6458
      %6476 = vst [vmem:[#allocation2 + $0x5f8] sm:$0xff] %v6460
      %v6477 = vld [vmem:[#allocation3 + $0x4] sm:$0xff]
      %v6478 = vld [vmem:[#allocation3 + $0xc] sm:$0xff]
      %v6479 = vld [vmem:[#allocation3 + $0x14] sm:$0xff]
      %v6480 = vld [vmem:[#allocation3 + $0x1c] sm:$0xff]
      %v6481 = vld [vmem:[#allocation3 + $0x24] sm:$0xf]
      %v6482 = vld [vmem:[#allocation3 + $0x2c] sm:$0xff]
      %v6483 = vld [vmem:[#allocation3 + $0x34] sm:$0xff]
      %v6484 = vld [vmem:[#allocation3 + $0x3c] sm:$0xff]
      %v6485 = vld [vmem:[#allocation3 + $0x44] sm:$0xff]
      %v6486 = vld [vmem:[#allocation3 + $0x4c] sm:$0xf]
      %6497 = vrot.lane.b32.xlu0 %v6477, 19
      %v6498 = vpop.permute.xlu0 %6497
      %6499 = vrot.lane.b32.xlu0 %v6478, 19
      %v6500 = vpop.permute.xlu0 %6499
      %6501 = vrot.lane.b32.xlu0 %v6479, 19
      %v6502 = vpop.permute.xlu0 %6501
      %6503 = vrot.lane.b32.xlu0 %v6480, 19
      %v6504 = vpop.permute.xlu0 %6503
      %6505 = vrot.lane.b32.xlu0 %v6481, 19
      %v6506 = vpop.permute.xlu0 %6505
      %6507 = vrot.lane.b32.xlu0 %v6482, 19
      %v6508 = vpop.permute.xlu0 %6507
      %6509 = vrot.lane.b32.xlu0 %v6483, 19
      %v6510 = vpop.permute.xlu0 %6509
      %6511 = vrot.lane.b32.xlu0 %v6484, 19
      %v6512 = vpop.permute.xlu0 %6511
      %6513 = vrot.lane.b32.xlu0 %v6485, 19
      %v6514 = vpop.permute.xlu0 %6513
      %6515 = vrot.lane.b32.xlu0 %v6486, 19
      %v6516 = vpop.permute.xlu0 %6515
      %v6517 = vrot.slane %v6498, 4
      %v6518 = vrot.slane %v6500, 4
      %v6519 = vrot.slane %v6502, 4
      %v6520 = vrot.slane %v6504, 4
      %v6521 = vrot.slane %v6506, 4
      %v6522 = vrot.slane %v6508, 4
      %v6523 = vrot.slane %v6510, 4
      %v6524 = vrot.slane %v6512, 4
      %v6525 = vrot.slane %v6514, 4
      %v6526 = vrot.slane %v6516, 4
      %v6527 = vsel %vm465, %v6517, %v6518
      %v6528 = vsel %vm2392, %v6498, %v6527
      %v6529 = vsel %vm465, %v6518, %v6519
      %v6530 = vsel %vm2392, %v6500, %v6529
      %v6531 = vsel %vm465, %v6519, %v6520
      %v6532 = vsel %vm2392, %v6502, %v6531
      %v6533 = vsel %vm465, %v6520, %v6521
      %v6534 = vsel %vm2392, %v6504, %v6533
      %v6535 = vsel %vm465, %v6522, %v6523
      %v6536 = vsel %vm2392, %v6508, %v6535
      %v6537 = vsel %vm465, %v6523, %v6524
      %v6538 = vsel %vm2392, %v6510, %v6537
      %v6539 = vsel %vm465, %v6524, %v6525
      %v6540 = vsel %vm2392, %v6512, %v6539
      %v6541 = vsel %vm465, %v6525, %v6526
      %v6542 = vsel %vm2392, %v6514, %v6541
      %6551 = vst [vmem:[#allocation2 + $0x600] sm:$0xff] %v6528
      %6552 = vst [vmem:[#allocation2 + $0x608] sm:$0xff] %v6530
      %6553 = vst [vmem:[#allocation2 + $0x610] sm:$0xff] %v6532
      %6554 = vst [vmem:[#allocation2 + $0x618] sm:$0xff] %v6534
      %6555 = vst [vmem:[#allocation2 + $0x620] sm:$0xff] %v6536
      %6556 = vst [vmem:[#allocation2 + $0x628] sm:$0xff] %v6538
      %6557 = vst [vmem:[#allocation2 + $0x630] sm:$0xff] %v6540
      %6558 = vst [vmem:[#allocation2 + $0x638] sm:$0xff] %v6542
      %v6559 = vld [vmem:[#allocation3 + $0x4] sm:$0xff]
      %v6560 = vld [vmem:[#allocation3 + $0xc] sm:$0xff]
      %v6561 = vld [vmem:[#allocation3 + $0x14] sm:$0xff]
      %v6562 = vld [vmem:[#allocation3 + $0x1c] sm:$0xff]
      %v6563 = vld [vmem:[#allocation3 + $0x24] sm:$0xf]
      %v6564 = vld [vmem:[#allocation3 + $0x2c] sm:$0xff]
      %v6565 = vld [vmem:[#allocation3 + $0x34] sm:$0xff]
      %v6566 = vld [vmem:[#allocation3 + $0x3c] sm:$0xff]
      %v6567 = vld [vmem:[#allocation3 + $0x44] sm:$0xff]
      %v6568 = vld [vmem:[#allocation3 + $0x4c] sm:$0xf]
      %6579 = vrot.lane.b32.xlu0 %v6559, 18
      %v6580 = vpop.permute.xlu0 %6579
      %6581 = vrot.lane.b32.xlu0 %v6560, 18
      %v6582 = vpop.permute.xlu0 %6581
      %6583 = vrot.lane.b32.xlu0 %v6561, 18
      %v6584 = vpop.permute.xlu0 %6583
      %6585 = vrot.lane.b32.xlu0 %v6562, 18
      %v6586 = vpop.permute.xlu0 %6585
      %6587 = vrot.lane.b32.xlu0 %v6563, 18
      %v6588 = vpop.permute.xlu0 %6587
      %6589 = vrot.lane.b32.xlu0 %v6564, 18
      %v6590 = vpop.permute.xlu0 %6589
      %6591 = vrot.lane.b32.xlu0 %v6565, 18
      %v6592 = vpop.permute.xlu0 %6591
      %6593 = vrot.lane.b32.xlu0 %v6566, 18
      %v6594 = vpop.permute.xlu0 %6593
      %6595 = vrot.lane.b32.xlu0 %v6567, 18
      %v6596 = vpop.permute.xlu0 %6595
      %6597 = vrot.lane.b32.xlu0 %v6568, 18
      %v6598 = vpop.permute.xlu0 %6597
      %v6599 = vrot.slane %v6580, 4
      %v6600 = vrot.slane %v6582, 4
      %v6601 = vrot.slane %v6584, 4
      %v6602 = vrot.slane %v6586, 4
      %v6603 = vrot.slane %v6588, 4
      %v6604 = vrot.slane %v6590, 4
      %v6605 = vrot.slane %v6592, 4
      %v6606 = vrot.slane %v6594, 4
      %v6607 = vrot.slane %v6596, 4
      %v6608 = vrot.slane %v6598, 4
      %v6609 = vsel %vm465, %v6599, %v6600
      %v6610 = vsel %vm2475, %v6580, %v6609
      %v6611 = vsel %vm465, %v6600, %v6601
      %v6612 = vsel %vm2475, %v6582, %v6611
      %v6613 = vsel %vm465, %v6601, %v6602
      %v6614 = vsel %vm2475, %v6584, %v6613
      %v6615 = vsel %vm465, %v6602, %v6603
      %v6616 = vsel %vm2475, %v6586, %v6615
      %v6617 = vsel %vm465, %v6604, %v6605
      %v6618 = vsel %vm2475, %v6590, %v6617
      %v6619 = vsel %vm465, %v6605, %v6606
      %v6620 = vsel %vm2475, %v6592, %v6619
      %v6621 = vsel %vm465, %v6606, %v6607
      %v6622 = vsel %vm2475, %v6594, %v6621
      %v6623 = vsel %vm465, %v6607, %v6608
      %v6624 = vsel %vm2475, %v6596, %v6623
      %6633 = vst [vmem:[#allocation2 + $0x640] sm:$0xff] %v6610
      %6634 = vst [vmem:[#allocation2 + $0x648] sm:$0xff] %v6612
      %6635 = vst [vmem:[#allocation2 + $0x650] sm:$0xff] %v6614
      %6636 = vst [vmem:[#allocation2 + $0x658] sm:$0xff] %v6616
      %6637 = vst [vmem:[#allocation2 + $0x660] sm:$0xff] %v6618
      %6638 = vst [vmem:[#allocation2 + $0x668] sm:$0xff] %v6620
      %6639 = vst [vmem:[#allocation2 + $0x670] sm:$0xff] %v6622
      %6640 = vst [vmem:[#allocation2 + $0x678] sm:$0xff] %v6624
      %v6641 = vld [vmem:[#allocation3 + $0x4] sm:$0xff]
      %v6642 = vld [vmem:[#allocation3 + $0xc] sm:$0xff]
      %v6643 = vld [vmem:[#allocation3 + $0x14] sm:$0xff]
      %v6644 = vld [vmem:[#allocation3 + $0x1c] sm:$0xff]
      %v6645 = vld [vmem:[#allocation3 + $0x24] sm:$0xf]
      %v6646 = vld [vmem:[#allocation3 + $0x2c] sm:$0xff]
      %v6647 = vld [vmem:[#allocation3 + $0x34] sm:$0xff]
      %v6648 = vld [vmem:[#allocation3 + $0x3c] sm:$0xff]
      %v6649 = vld [vmem:[#allocation3 + $0x44] sm:$0xff]
      %v6650 = vld [vmem:[#allocation3 + $0x4c] sm:$0xf]
      %6661 = vrot.lane.b32.xlu0 %v6641, 17
      %v6662 = vpop.permute.xlu0 %6661
      %6663 = vrot.lane.b32.xlu0 %v6642, 17
      %v6664 = vpop.permute.xlu0 %6663
      %6665 = vrot.lane.b32.xlu0 %v6643, 17
      %v6666 = vpop.permute.xlu0 %6665
      %6667 = vrot.lane.b32.xlu0 %v6644, 17
      %v6668 = vpop.permute.xlu0 %6667
      %6669 = vrot.lane.b32.xlu0 %v6645, 17
      %v6670 = vpop.permute.xlu0 %6669
      %6671 = vrot.lane.b32.xlu0 %v6646, 17
      %v6672 = vpop.permute.xlu0 %6671
      %6673 = vrot.lane.b32.xlu0 %v6647, 17
      %v6674 = vpop.permute.xlu0 %6673
      %6675 = vrot.lane.b32.xlu0 %v6648, 17
      %v6676 = vpop.permute.xlu0 %6675
      %6677 = vrot.lane.b32.xlu0 %v6649, 17
      %v6678 = vpop.permute.xlu0 %6677
      %6679 = vrot.lane.b32.xlu0 %v6650, 17
      %v6680 = vpop.permute.xlu0 %6679
      %v6681 = vrot.slane %v6662, 4
      %v6682 = vrot.slane %v6664, 4
      %v6683 = vrot.slane %v6666, 4
      %v6684 = vrot.slane %v6668, 4
      %v6685 = vrot.slane %v6670, 4
      %v6686 = vrot.slane %v6672, 4
      %v6687 = vrot.slane %v6674, 4
      %v6688 = vrot.slane %v6676, 4
      %v6689 = vrot.slane %v6678, 4
      %v6690 = vrot.slane %v6680, 4
      %v6691 = vsel %vm465, %v6681, %v6682
      %v6692 = vsel %vm2558, %v6662, %v6691
      %v6693 = vsel %vm465, %v6682, %v6683
      %v6694 = vsel %vm2558, %v6664, %v6693
      %v6695 = vsel %vm465, %v6683, %v6684
      %v6696 = vsel %vm2558, %v6666, %v6695
      %v6697 = vsel %vm465, %v6684, %v6685
      %v6698 = vsel %vm2558, %v6668, %v6697
      %v6699 = vsel %vm465, %v6686, %v6687
      %v6700 = vsel %vm2558, %v6672, %v6699
      %v6701 = vsel %vm465, %v6687, %v6688
      %v6702 = vsel %vm2558, %v6674, %v6701
      %v6703 = vsel %vm465, %v6688, %v6689
      %v6704 = vsel %vm2558, %v6676, %v6703
      %v6705 = vsel %vm465, %v6689, %v6690
      %v6706 = vsel %vm2558, %v6678, %v6705
      %6715 = vst [vmem:[#allocation2 + $0x680] sm:$0xff] %v6692
      %6716 = vst [vmem:[#allocation2 + $0x688] sm:$0xff] %v6694
      %6717 = vst [vmem:[#allocation2 + $0x690] sm:$0xff] %v6696
      %6718 = vst [vmem:[#allocation2 + $0x698] sm:$0xff] %v6698
      %6719 = vst [vmem:[#allocation2 + $0x6a0] sm:$0xff] %v6700
      %6720 = vst [vmem:[#allocation2 + $0x6a8] sm:$0xff] %v6702
      %6721 = vst [vmem:[#allocation2 + $0x6b0] sm:$0xff] %v6704
      %6722 = vst [vmem:[#allocation2 + $0x6b8] sm:$0xff] %v6706
      %v6723 = vld [vmem:[%s2] sm:$0xff]
      %v6724 = vld [vmem:[%s2 + $0x8] sm:$0xff]
      %v6725 = vld [vmem:[%s2 + $0x10] sm:$0xff]
      %v6726 = vld [vmem:[%s2 + $0x18] sm:$0xff]
      %v6727 = vld [vmem:[#allocation2] sm:$0xff]
      %v6728 = vld [vmem:[#allocation2 + $0x8] sm:$0xff]
      %v6729 = vld [vmem:[#allocation2 + $0x10] sm:$0xff]
      %v6730 = vld [vmem:[#allocation2 + $0x18] sm:$0xff]
      %v6731 = vld [vmem:[#allocation2 + $0x20] sm:$0xff]
      %v6732 = vld [vmem:[#allocation2 + $0x28] sm:$0xff]
      %v6733 = vld [vmem:[#allocation2 + $0x30] sm:$0xff]
      %v6734 = vld [vmem:[#allocation2 + $0x38] sm:$0xff]
      %v6735 = vld [vmem:[#allocation2 + $0x40] sm:$0xff]
      %v6736 = vld [vmem:[#allocation2 + $0x48] sm:$0xff]
      %v6737 = vld [vmem:[#allocation2 + $0x50] sm:$0xff]
      %v6738 = vld [vmem:[#allocation2 + $0x58] sm:$0xff]
      %v6739 = vld [vmem:[#allocation2 + $0x60] sm:$0xff]
      %v6740 = vld [vmem:[#allocation2 + $0x68] sm:$0xff]
      %v6741 = vld [vmem:[#allocation2 + $0x70] sm:$0xff]
      %v6742 = vld [vmem:[#allocation2 + $0x78] sm:$0xff]
      %v6743 = vld [vmem:[#allocation2 + $0x80] sm:$0xff]
      %v6744 = vld [vmem:[#allocation2 + $0x88] sm:$0xff]
      %v6745 = vld [vmem:[#allocation2 + $0x90] sm:$0xff]
      %v6746 = vld [vmem:[#allocation2 + $0x98] sm:$0xff]
      %v6747 = vld [vmem:[#allocation2 + $0xa0] sm:$0xff]
      %v6748 = vld [vmem:[#allocation2 + $0xa8] sm:$0xff]
      %v6749 = vld [vmem:[#allocation2 + $0xb0] sm:$0xff]
      %v6750 = vld [vmem:[#allocation2 + $0xb8] sm:$0xff]
      %v6751 = vld [vmem:[#allocation2 + $0xc0] sm:$0xff]
      %v6752 = vld [vmem:[#allocation2 + $0xc8] sm:$0xff]
      %v6753 = vld [vmem:[#allocation2 + $0xd0] sm:$0xff]
      %v6754 = vld [vmem:[#allocation2 + $0xd8] sm:$0xff]
      %v6755 = vld [vmem:[#allocation2 + $0xe0] sm:$0xff]
      %v6756 = vld [vmem:[#allocation2 + $0xe8] sm:$0xff]
      %v6757 = vld [vmem:[#allocation2 + $0xf0] sm:$0xff]
      %v6758 = vld [vmem:[#allocation2 + $0xf8] sm:$0xff]
      %v6759 = vld [vmem:[#allocation2 + $0x100] sm:$0xff]
      %v6760 = vld [vmem:[#allocation2 + $0x108] sm:$0xff]
      %v6761 = vld [vmem:[#allocation2 + $0x110] sm:$0xff]
      %v6762 = vld [vmem:[#allocation2 + $0x118] sm:$0xff]
      %v6763 = vld [vmem:[#allocation2 + $0x120] sm:$0xff]
      %v6764 = vld [vmem:[#allocation2 + $0x128] sm:$0xff]
      %v6765 = vld [vmem:[#allocation2 + $0x130] sm:$0xff]
      %v6766 = vld [vmem:[#allocation2 + $0x138] sm:$0xff]
      %v6767 = vld [vmem:[#allocation2 + $0x140] sm:$0xff]
      %v6768 = vld [vmem:[#allocation2 + $0x148] sm:$0xff]
      %v6769 = vld [vmem:[#allocation2 + $0x150] sm:$0xff]
      %v6770 = vld [vmem:[#allocation2 + $0x158] sm:$0xff]
      %v6771 = vld [vmem:[#allocation2 + $0x160] sm:$0xff]
      %v6772 = vld [vmem:[#allocation2 + $0x168] sm:$0xff]
      %v6773 = vld [vmem:[#allocation2 + $0x170] sm:$0xff]
      %v6774 = vld [vmem:[#allocation2 + $0x178] sm:$0xff]
      %v6775 = vld [vmem:[#allocation2 + $0x180] sm:$0xff]
      %v6776 = vld [vmem:[#allocation2 + $0x188] sm:$0xff]
      %v6777 = vld [vmem:[#allocation2 + $0x190] sm:$0xff]
      %v6778 = vld [vmem:[#allocation2 + $0x198] sm:$0xff]
      %v6779 = vld [vmem:[#allocation2 + $0x1a0] sm:$0xff]
      %v6780 = vld [vmem:[#allocation2 + $0x1a8] sm:$0xff]
      %v6781 = vld [vmem:[#allocation2 + $0x1b0] sm:$0xff]
      %v6782 = vld [vmem:[#allocation2 + $0x1b8] sm:$0xff]
      %v6783 = vld [vmem:[#allocation2 + $0x1c0] sm:$0xff]
      %v6784 = vld [vmem:[#allocation2 + $0x1c8] sm:$0xff]
      %v6785 = vld [vmem:[#allocation2 + $0x1d0] sm:$0xff]
      %v6786 = vld [vmem:[#allocation2 + $0x1d8] sm:$0xff]
      %v6787 = vld [vmem:[#allocation2 + $0x1e0] sm:$0xff]
      %v6788 = vld [vmem:[#allocation2 + $0x1e8] sm:$0xff]
      %v6789 = vld [vmem:[#allocation2 + $0x1f0] sm:$0xff]
      %v6790 = vld [vmem:[#allocation2 + $0x1f8] sm:$0xff]
      %v6791 = vld [vmem:[#allocation2 + $0x200] sm:$0xff]
      %v6792 = vld [vmem:[#allocation2 + $0x208] sm:$0xff]
      %v6793 = vld [vmem:[#allocation2 + $0x210] sm:$0xff]
      %v6794 = vld [vmem:[#allocation2 + $0x218] sm:$0xff]
      %v6795 = vld [vmem:[#allocation2 + $0x220] sm:$0xff]
      %v6796 = vld [vmem:[#allocation2 + $0x228] sm:$0xff]
      %v6797 = vld [vmem:[#allocation2 + $0x230] sm:$0xff]
      %v6798 = vld [vmem:[#allocation2 + $0x238] sm:$0xff]
      %v6799 = vld [vmem:[#allocation2 + $0x240] sm:$0xff]
      %v6800 = vld [vmem:[#allocation2 + $0x248] sm:$0xff]
      %v6801 = vld [vmem:[#allocation2 + $0x250] sm:$0xff]
      %v6802 = vld [vmem:[#allocation2 + $0x258] sm:$0xff]
      %v6803 = vld [vmem:[#allocation2 + $0x260] sm:$0xff]
      %v6804 = vld [vmem:[#allocation2 + $0x268] sm:$0xff]
      %v6805 = vld [vmem:[#allocation2 + $0x270] sm:$0xff]
      %v6806 = vld [vmem:[#allocation2 + $0x278] sm:$0xff]
      %v6807 = vld [vmem:[#allocation2 + $0x280] sm:$0xff]
      %v6808 = vld [vmem:[#allocation2 + $0x288] sm:$0xff]
      %v6809 = vld [vmem:[#allocation2 + $0x290] sm:$0xff]
      %v6810 = vld [vmem:[#allocation2 + $0x298] sm:$0xff]
      %v6811 = vld [vmem:[#allocation2 + $0x2a0] sm:$0xff]
      %v6812 = vld [vmem:[#allocation2 + $0x2a8] sm:$0xff]
      %v6813 = vld [vmem:[#allocation2 + $0x2b0] sm:$0xff]
      %v6814 = vld [vmem:[#allocation2 + $0x2b8] sm:$0xff]
      %v6815 = vld [vmem:[#allocation2 + $0x2c0] sm:$0xff]
      %v6816 = vld [vmem:[#allocation2 + $0x2c8] sm:$0xff]
      %v6817 = vld [vmem:[#allocation2 + $0x2d0] sm:$0xff]
      %v6818 = vld [vmem:[#allocation2 + $0x2d8] sm:$0xff]
      %v6819 = vld [vmem:[#allocation2 + $0x2e0] sm:$0xff]
      %v6820 = vld [vmem:[#allocation2 + $0x2e8] sm:$0xff]
      %v6821 = vld [vmem:[#allocation2 + $0x2f0] sm:$0xff]
      %v6822 = vld [vmem:[#allocation2 + $0x2f8] sm:$0xff]
      %v6823 = vld [vmem:[#allocation2 + $0x300] sm:$0xff]
      %v6824 = vld [vmem:[#allocation2 + $0x308] sm:$0xff]
      %v6825 = vld [vmem:[#allocation2 + $0x310] sm:$0xff]
      %v6826 = vld [vmem:[#allocation2 + $0x318] sm:$0xff]
      %v6827 = vld [vmem:[#allocation2 + $0x320] sm:$0xff]
      %v6828 = vld [vmem:[#allocation2 + $0x328] sm:$0xff]
      %v6829 = vld [vmem:[#allocation2 + $0x330] sm:$0xff]
      %v6830 = vld [vmem:[#allocation2 + $0x338] sm:$0xff]
      %v6831 = vld [vmem:[#allocation2 + $0x340] sm:$0xff]
      %v6832 = vld [vmem:[#allocation2 + $0x348] sm:$0xff]
      %v6833 = vld [vmem:[#allocation2 + $0x350] sm:$0xff]
      %v6834 = vld [vmem:[#allocation2 + $0x358] sm:$0xff]
      %v6835 = vld [vmem:[#allocation2 + $0x360] sm:$0xff]
      %v6836 = vld [vmem:[#allocation2 + $0x368] sm:$0xff]
      %v6837 = vld [vmem:[#allocation2 + $0x370] sm:$0xff]
      %v6838 = vld [vmem:[#allocation2 + $0x378] sm:$0xff]
      %v6839 = vld [vmem:[#allocation2 + $0x380] sm:$0xff]
      %v6840 = vld [vmem:[#allocation2 + $0x388] sm:$0xff]
      %v6841 = vld [vmem:[#allocation2 + $0x390] sm:$0xff]
      %v6842 = vld [vmem:[#allocation2 + $0x398] sm:$0xff]
      %v6843 = vld [vmem:[#allocation2 + $0x3a0] sm:$0xff]
      %v6844 = vld [vmem:[#allocation2 + $0x3a8] sm:$0xff]
      %v6845 = vld [vmem:[#allocation2 + $0x3b0] sm:$0xff]
      %v6846 = vld [vmem:[#allocation2 + $0x3b8] sm:$0xff]
      %v6847 = vld [vmem:[#allocation2 + $0x3c0] sm:$0xff]
      %v6848 = vld [vmem:[#allocation2 + $0x3c8] sm:$0xff]
      %v6849 = vld [vmem:[#allocation2 + $0x3d0] sm:$0xff]
      %v6850 = vld [vmem:[#allocation2 + $0x3d8] sm:$0xff]
      %v6851 = vld [vmem:[#allocation2 + $0x3e0] sm:$0xff]
      %v6852 = vld [vmem:[#allocation2 + $0x3e8] sm:$0xff]
      %v6853 = vld [vmem:[#allocation2 + $0x3f0] sm:$0xff]
      %v6854 = vld [vmem:[#allocation2 + $0x3f8] sm:$0xff]
      %v6855 = vld [vmem:[#allocation2 + $0x400] sm:$0xff]
      %v6856 = vld [vmem:[#allocation2 + $0x408] sm:$0xff]
      %v6857 = vld [vmem:[#allocation2 + $0x410] sm:$0xff]
      %v6858 = vld [vmem:[#allocation2 + $0x418] sm:$0xff]
      %v6859 = vld [vmem:[#allocation2 + $0x420] sm:$0xff]
      %v6860 = vld [vmem:[#allocation2 + $0x428] sm:$0xff]
      %v6861 = vld [vmem:[#allocation2 + $0x430] sm:$0xff]
      %v6862 = vld [vmem:[#allocation2 + $0x438] sm:$0xff]
      %v6863 = vld [vmem:[#allocation2 + $0x440] sm:$0xff]
      %v6864 = vld [vmem:[#allocation2 + $0x448] sm:$0xff]
      %v6865 = vld [vmem:[#allocation2 + $0x450] sm:$0xff]
      %v6866 = vld [vmem:[#allocation2 + $0x458] sm:$0xff]
      %v6867 = vld [vmem:[#allocation2 + $0x460] sm:$0xff]
      %v6868 = vld [vmem:[#allocation2 + $0x468] sm:$0xff]
      %v6869 = vld [vmem:[#allocation2 + $0x470] sm:$0xff]
      %v6870 = vld [vmem:[#allocation2 + $0x478] sm:$0xff]
      %v6871 = vld [vmem:[#allocation2 + $0x480] sm:$0xff]
      %v6872 = vld [vmem:[#allocation2 + $0x488] sm:$0xff]
      %v6873 = vld [vmem:[#allocation2 + $0x490] sm:$0xff]
      %v6874 = vld [vmem:[#allocation2 + $0x498] sm:$0xff]
      %v6875 = vld [vmem:[#allocation2 + $0x4a0] sm:$0xff]
      %v6876 = vld [vmem:[#allocation2 + $0x4a8] sm:$0xff]
      %v6877 = vld [vmem:[#allocation2 + $0x4b0] sm:$0xff]
      %v6878 = vld [vmem:[#allocation2 + $0x4b8] sm:$0xff]
      %v6879 = vld [vmem:[#allocation2 + $0x4c0] sm:$0xff]
      %v6880 = vld [vmem:[#allocation2 + $0x4c8] sm:$0xff]
      %v6881 = vld [vmem:[#allocation2 + $0x4d0] sm:$0xff]
      %v6882 = vld [vmem:[#allocation2 + $0x4d8] sm:$0xff]
      %v6883 = vld [vmem:[#allocation2 + $0x4e0] sm:$0xff]
      %v6884 = vld [vmem:[#allocation2 + $0x4e8] sm:$0xff]
      %v6885 = vld [vmem:[#allocation2 + $0x4f0] sm:$0xff]
      %v6886 = vld [vmem:[#allocation2 + $0x4f8] sm:$0xff]
      %v6887 = vld [vmem:[#allocation2 + $0x500] sm:$0xff]
      %v6888 = vld [vmem:[#allocation2 + $0x508] sm:$0xff]
      %v6889 = vld [vmem:[#allocation2 + $0x510] sm:$0xff]
      %v6890 = vld [vmem:[#allocation2 + $0x518] sm:$0xff]
      %v6891 = vld [vmem:[#allocation2 + $0x520] sm:$0xff]
      %v6892 = vld [vmem:[#allocation2 + $0x528] sm:$0xff]
      %v6893 = vld [vmem:[#allocation2 + $0x530] sm:$0xff]
      %v6894 = vld [vmem:[#allocation2 + $0x538] sm:$0xff]
      %v6895 = vld [vmem:[#allocation2 + $0x540] sm:$0xff]
      %v6896 = vld [vmem:[#allocation2 + $0x548] sm:$0xff]
      %v6897 = vld [vmem:[#allocation2 + $0x550] sm:$0xff]
      %v6898 = vld [vmem:[#allocation2 + $0x558] sm:$0xff]
      %v6899 = vld [vmem:[#allocation2 + $0x560] sm:$0xff]
      %v6900 = vld [vmem:[#allocation2 + $0x568] sm:$0xff]
      %v6901 = vld [vmem:[#allocation2 + $0x570] sm:$0xff]
      %v6902 = vld [vmem:[#allocation2 + $0x578] sm:$0xff]
      %v6903 = vld [vmem:[#allocation2 + $0x580] sm:$0xff]
      %v6904 = vld [vmem:[#allocation2 + $0x588] sm:$0xff]
      %v6905 = vld [vmem:[#allocation2 + $0x590] sm:$0xff]
      %v6906 = vld [vmem:[#allocation2 + $0x598] sm:$0xff]
      %v6907 = vld [vmem:[#allocation2 + $0x5a0] sm:$0xff]
      %v6908 = vld [vmem:[#allocation2 + $0x5a8] sm:$0xff]
      %v6909 = vld [vmem:[#allocation2 + $0x5b0] sm:$0xff]
      %v6910 = vld [vmem:[#allocation2 + $0x5b8] sm:$0xff]
      %v6911 = vld [vmem:[#allocation2 + $0x5c0] sm:$0xff]
      %v6912 = vld [vmem:[#allocation2 + $0x5c8] sm:$0xff]
      %v6913 = vld [vmem:[#allocation2 + $0x5d0] sm:$0xff]
      %v6914 = vld [vmem:[#allocation2 + $0x5d8] sm:$0xff]
      %v6915 = vld [vmem:[#allocation2 + $0x5e0] sm:$0xff]
      %v6916 = vld [vmem:[#allocation2 + $0x5e8] sm:$0xff]
      %v6917 = vld [vmem:[#allocation2 + $0x5f0] sm:$0xff]
      %v6918 = vld [vmem:[#allocation2 + $0x5f8] sm:$0xff]
      %v6919 = vld [vmem:[#allocation2 + $0x600] sm:$0xff]
      %v6920 = vld [vmem:[#allocation2 + $0x608] sm:$0xff]
      %v6921 = vld [vmem:[#allocation2 + $0x610] sm:$0xff]
      %v6922 = vld [vmem:[#allocation2 + $0x618] sm:$0xff]
      %v6923 = vld [vmem:[#allocation2 + $0x620] sm:$0xff]
      %v6924 = vld [vmem:[#allocation2 + $0x628] sm:$0xff]
      %v6925 = vld [vmem:[#allocation2 + $0x630] sm:$0xff]
      %v6926 = vld [vmem:[#allocation2 + $0x638] sm:$0xff]
      %v6927 = vld [vmem:[#allocation2 + $0x640] sm:$0xff]
      %v6928 = vld [vmem:[#allocation2 + $0x648] sm:$0xff]
      %v6929 = vld [vmem:[#allocation2 + $0x650] sm:$0xff]
      %v6930 = vld [vmem:[#allocation2 + $0x658] sm:$0xff]
      %v6931 = vld [vmem:[#allocation2 + $0x660] sm:$0xff]
      %v6932 = vld [vmem:[#allocation2 + $0x668] sm:$0xff]
      %v6933 = vld [vmem:[#allocation2 + $0x670] sm:$0xff]
      %v6934 = vld [vmem:[#allocation2 + $0x678] sm:$0xff]
      %v6935 = vld [vmem:[#allocation2 + $0x680] sm:$0xff]
      %v6936 = vld [vmem:[#allocation2 + $0x688] sm:$0xff]
      %v6937 = vld [vmem:[#allocation2 + $0x690] sm:$0xff]
      %v6938 = vld [vmem:[#allocation2 + $0x698] sm:$0xff]
      %v6939 = vld [vmem:[#allocation2 + $0x6a0] sm:$0xff]
      %v6940 = vld [vmem:[#allocation2 + $0x6a8] sm:$0xff]
      %v6941 = vld [vmem:[#allocation2 + $0x6b0] sm:$0xff]
      %v6942 = vld [vmem:[#allocation2 + $0x6b8] sm:$0xff]
      %v6947 = vunpack.c.l.b16 %v6723
      %v6948 = vunpack.c.h.b16 %v6723
      %v6949 = vunpack.c.l.b16 %v6724
      %v6950 = vunpack.c.h.b16 %v6724
      %v6951 = vunpack.c.l.b16 %v6725
      %v6952 = vunpack.c.h.b16 %v6725
      %v6953 = vunpack.c.l.b16 %v6726
      %v6954 = vunpack.c.h.b16 %v6726
      %v6955 = vpack.c.b16 %v6951, %v6947
      %v6956 = vpack.c.b16 %v6952, %v6948
      %v6957 = vpack.c.b16 %v6953, %v6949
      %v6958 = vpack.c.b16 %v6954, %v6950
      %v7178 = vunpack.c.l.b16 %v6727
      %v7179 = vunpack.c.h.b16 %v6727
      %v7180 = vunpack.c.l.b16 %v6728
      %v7181 = vunpack.c.h.b16 %v6728
      %v7182 = vunpack.c.l.b16 %v6729
      %v7183 = vunpack.c.h.b16 %v6729
      %v7184 = vunpack.c.l.b16 %v6730
      %v7185 = vunpack.c.h.b16 %v6730
      %v7186 = vunpack.c.l.b16 %v6731
      %v7187 = vunpack.c.h.b16 %v6731
      %v7188 = vunpack.c.l.b16 %v6732
      %v7189 = vunpack.c.h.b16 %v6732
      %v7190 = vunpack.c.l.b16 %v6733
      %v7191 = vunpack.c.h.b16 %v6733
      %v7192 = vunpack.c.l.b16 %v6734
      %v7193 = vunpack.c.h.b16 %v6734
      %v7194 = vunpack.c.l.b16 %v6735
      %v7195 = vunpack.c.h.b16 %v6735
      %v7196 = vunpack.c.l.b16 %v6736
      %v7197 = vunpack.c.h.b16 %v6736
      %v7198 = vunpack.c.l.b16 %v6737
      %v7199 = vunpack.c.h.b16 %v6737
      %v7200 = vunpack.c.l.b16 %v6738
      %v7201 = vunpack.c.h.b16 %v6738
      %v7202 = vunpack.c.l.b16 %v6739
      %v7203 = vunpack.c.h.b16 %v6739
      %v7204 = vunpack.c.l.b16 %v6740
      %v7205 = vunpack.c.h.b16 %v6740
      %v7206 = vunpack.c.l.b16 %v6741
      %v7207 = vunpack.c.h.b16 %v6741
      %v7208 = vunpack.c.l.b16 %v6742
      %v7209 = vunpack.c.h.b16 %v6742
      %v7210 = vunpack.c.l.b16 %v6743
      %v7211 = vunpack.c.h.b16 %v6743
      %v7212 = vunpack.c.l.b16 %v6744
      %v7213 = vunpack.c.h.b16 %v6744
      %v7214 = vunpack.c.l.b16 %v6745
      %v7215 = vunpack.c.h.b16 %v6745
      %v7216 = vunpack.c.l.b16 %v6746
      %v7217 = vunpack.c.h.b16 %v6746
      %v7218 = vunpack.c.l.b16 %v6747
      %v7219 = vunpack.c.h.b16 %v6747
      %v7220 = vunpack.c.l.b16 %v6748
      %v7221 = vunpack.c.h.b16 %v6748
      %v7222 = vunpack.c.l.b16 %v6749
      %v7223 = vunpack.c.h.b16 %v6749
      %v7224 = vunpack.c.l.b16 %v6750
      %v7225 = vunpack.c.h.b16 %v6750
      %v7226 = vunpack.c.l.b16 %v6751
      %v7227 = vunpack.c.h.b16 %v6751
      %v7228 = vunpack.c.l.b16 %v6752
      %v7229 = vunpack.c.h.b16 %v6752
      %v7230 = vunpack.c.l.b16 %v6753
      %v7231 = vunpack.c.h.b16 %v6753
      %v7232 = vunpack.c.l.b16 %v6754
      %v7233 = vunpack.c.h.b16 %v6754
      %v7234 = vunpack.c.l.b16 %v6755
      %v7235 = vunpack.c.h.b16 %v6755
      %v7236 = vunpack.c.l.b16 %v6756
      %v7237 = vunpack.c.h.b16 %v6756
      %v7238 = vunpack.c.l.b16 %v6757
      %v7239 = vunpack.c.h.b16 %v6757
      %v7240 = vunpack.c.l.b16 %v6758
      %v7241 = vunpack.c.h.b16 %v6758
      %v7242 = vunpack.c.l.b16 %v6759
      %v7243 = vunpack.c.h.b16 %v6759
      %v7244 = vunpack.c.l.b16 %v6760
      %v7245 = vunpack.c.h.b16 %v6760
      %v7246 = vunpack.c.l.b16 %v6761
      %v7247 = vunpack.c.h.b16 %v6761
      %v7248 = vunpack.c.l.b16 %v6762
      %v7249 = vunpack.c.h.b16 %v6762
      %v7250 = vunpack.c.l.b16 %v6763
      %v7251 = vunpack.c.h.b16 %v6763
      %v7252 = vunpack.c.l.b16 %v6764
      %v7253 = vunpack.c.h.b16 %v6764
      %v7254 = vunpack.c.l.b16 %v6765
      %v7255 = vunpack.c.h.b16 %v6765
      %v7256 = vunpack.c.l.b16 %v6766
      %v7257 = vunpack.c.h.b16 %v6766
      %v7258 = vunpack.c.l.b16 %v6767
      %v7259 = vunpack.c.h.b16 %v6767
      %v7260 = vunpack.c.l.b16 %v6768
      %v7261 = vunpack.c.h.b16 %v6768
      %v7262 = vunpack.c.l.b16 %v6769
      %v7263 = vunpack.c.h.b16 %v6769
      %v7264 = vunpack.c.l.b16 %v6770
      %v7265 = vunpack.c.h.b16 %v6770
      %v7266 = vunpack.c.l.b16 %v6771
      %v7267 = vunpack.c.h.b16 %v6771
      %v7268 = vunpack.c.l.b16 %v6772
      %v7269 = vunpack.c.h.b16 %v6772
      %v7270 = vunpack.c.l.b16 %v6773
      %v7271 = vunpack.c.h.b16 %v6773
      %v7272 = vunpack.c.l.b16 %v6774
      %v7273 = vunpack.c.h.b16 %v6774
      %v7274 = vunpack.c.l.b16 %v6775
      %v7275 = vunpack.c.h.b16 %v6775
      %v7276 = vunpack.c.l.b16 %v6776
      %v7277 = vunpack.c.h.b16 %v6776
      %v7278 = vunpack.c.l.b16 %v6777
      %v7279 = vunpack.c.h.b16 %v6777
      %v7280 = vunpack.c.l.b16 %v6778
      %v7281 = vunpack.c.h.b16 %v6778
      %v7282 = vunpack.c.l.b16 %v6779
      %v7283 = vunpack.c.h.b16 %v6779
      %v7284 = vunpack.c.l.b16 %v6780
      %v7285 = vunpack.c.h.b16 %v6780
      %v7286 = vunpack.c.l.b16 %v6781
      %v7287 = vunpack.c.h.b16 %v6781
      %v7288 = vunpack.c.l.b16 %v6782
      %v7289 = vunpack.c.h.b16 %v6782
      %v7290 = vunpack.c.l.b16 %v6783
      %v7291 = vunpack.c.h.b16 %v6783
      %v7292 = vunpack.c.l.b16 %v6784
      %v7293 = vunpack.c.h.b16 %v6784
      %v7294 = vunpack.c.l.b16 %v6785
      %v7295 = vunpack.c.h.b16 %v6785
      %v7296 = vunpack.c.l.b16 %v6786
      %v7297 = vunpack.c.h.b16 %v6786
      %v7298 = vunpack.c.l.b16 %v6787
      %v7299 = vunpack.c.h.b16 %v6787
      %v7300 = vunpack.c.l.b16 %v6788
      %v7301 = vunpack.c.h.b16 %v6788
      %v7302 = vunpack.c.l.b16 %v6789
      %v7303 = vunpack.c.h.b16 %v6789
      %v7304 = vunpack.c.l.b16 %v6790
      %v7305 = vunpack.c.h.b16 %v6790
      %v7306 = vunpack.c.l.b16 %v6791
      %v7307 = vunpack.c.h.b16 %v6791
      %v7308 = vunpack.c.l.b16 %v6792
      %v7309 = vunpack.c.h.b16 %v6792
      %v7310 = vunpack.c.l.b16 %v6793
      %v7311 = vunpack.c.h.b16 %v6793
      %v7312 = vunpack.c.l.b16 %v6794
      %v7313 = vunpack.c.h.b16 %v6794
      %v7314 = vunpack.c.l.b16 %v6795
      %v7315 = vunpack.c.h.b16 %v6795
      %v7316 = vunpack.c.l.b16 %v6796
      %v7317 = vunpack.c.h.b16 %v6796
      %v7318 = vunpack.c.l.b16 %v6797
      %v7319 = vunpack.c.h.b16 %v6797
      %v7320 = vunpack.c.l.b16 %v6798
      %v7321 = vunpack.c.h.b16 %v6798
      %v7322 = vunpack.c.l.b16 %v6799
      %v7323 = vunpack.c.h.b16 %v6799
      %v7324 = vunpack.c.l.b16 %v6800
      %v7325 = vunpack.c.h.b16 %v6800
      %v7326 = vunpack.c.l.b16 %v6801
      %v7327 = vunpack.c.h.b16 %v6801
      %v7328 = vunpack.c.l.b16 %v6802
      %v7329 = vunpack.c.h.b16 %v6802
      %v7330 = vunpack.c.l.b16 %v6803
      %v7331 = vunpack.c.h.b16 %v6803
      %v7332 = vunpack.c.l.b16 %v6804
      %v7333 = vunpack.c.h.b16 %v6804
      %v7334 = vunpack.c.l.b16 %v6805
      %v7335 = vunpack.c.h.b16 %v6805
      %v7336 = vunpack.c.l.b16 %v6806
      %v7337 = vunpack.c.h.b16 %v6806
      %v7338 = vunpack.c.l.b16 %v6807
      %v7339 = vunpack.c.h.b16 %v6807
      %v7340 = vunpack.c.l.b16 %v6808
      %v7341 = vunpack.c.h.b16 %v6808
      %v7342 = vunpack.c.l.b16 %v6809
      %v7343 = vunpack.c.h.b16 %v6809
      %v7344 = vunpack.c.l.b16 %v6810
      %v7345 = vunpack.c.h.b16 %v6810
      %v7346 = vunpack.c.l.b16 %v6811
      %v7347 = vunpack.c.h.b16 %v6811
      %v7348 = vunpack.c.l.b16 %v6812
      %v7349 = vunpack.c.h.b16 %v6812
      %v7350 = vunpack.c.l.b16 %v6813
      %v7351 = vunpack.c.h.b16 %v6813
      %v7352 = vunpack.c.l.b16 %v6814
      %v7353 = vunpack.c.h.b16 %v6814
      %v7354 = vunpack.c.l.b16 %v6815
      %v7355 = vunpack.c.h.b16 %v6815
      %v7356 = vunpack.c.l.b16 %v6816
      %v7357 = vunpack.c.h.b16 %v6816
      %v7358 = vunpack.c.l.b16 %v6817
      %v7359 = vunpack.c.h.b16 %v6817
      %v7360 = vunpack.c.l.b16 %v6818
      %v7361 = vunpack.c.h.b16 %v6818
      %v7362 = vunpack.c.l.b16 %v6819
      %v7363 = vunpack.c.h.b16 %v6819
      %v7364 = vunpack.c.l.b16 %v6820
      %v7365 = vunpack.c.h.b16 %v6820
      %v7366 = vunpack.c.l.b16 %v6821
      %v7367 = vunpack.c.h.b16 %v6821
      %v7368 = vunpack.c.l.b16 %v6822
      %v7369 = vunpack.c.h.b16 %v6822
      %v7370 = vunpack.c.l.b16 %v6823
      %v7371 = vunpack.c.h.b16 %v6823
      %v7372 = vunpack.c.l.b16 %v6824
      %v7373 = vunpack.c.h.b16 %v6824
      %v7374 = vunpack.c.l.b16 %v6825
      %v7375 = vunpack.c.h.b16 %v6825
      %v7376 = vunpack.c.l.b16 %v6826
      %v7377 = vunpack.c.h.b16 %v6826
      %v7378 = vunpack.c.l.b16 %v6827
      %v7379 = vunpack.c.h.b16 %v6827
      %v7380 = vunpack.c.l.b16 %v6828
      %v7381 = vunpack.c.h.b16 %v6828
      %v7382 = vunpack.c.l.b16 %v6829
      %v7383 = vunpack.c.h.b16 %v6829
      %v7384 = vunpack.c.l.b16 %v6830
      %v7385 = vunpack.c.h.b16 %v6830
      %v7386 = vunpack.c.l.b16 %v6831
      %v7387 = vunpack.c.h.b16 %v6831
      %v7388 = vunpack.c.l.b16 %v6832
      %v7389 = vunpack.c.h.b16 %v6832
      %v7390 = vunpack.c.l.b16 %v6833
      %v7391 = vunpack.c.h.b16 %v6833
      %v7392 = vunpack.c.l.b16 %v6834
      %v7393 = vunpack.c.h.b16 %v6834
      %v7394 = vunpack.c.l.b16 %v6835
      %v7395 = vunpack.c.h.b16 %v6835
      %v7396 = vunpack.c.l.b16 %v6836
      %v7397 = vunpack.c.h.b16 %v6836
      %v7398 = vunpack.c.l.b16 %v6837
      %v7399 = vunpack.c.h.b16 %v6837
      %v7400 = vunpack.c.l.b16 %v6838
      %v7401 = vunpack.c.h.b16 %v6838
      %v7402 = vunpack.c.l.b16 %v6839
      %v7403 = vunpack.c.h.b16 %v6839
      %v7404 = vunpack.c.l.b16 %v6840
      %v7405 = vunpack.c.h.b16 %v6840
      %v7406 = vunpack.c.l.b16 %v6841
      %v7407 = vunpack.c.h.b16 %v6841
      %v7408 = vunpack.c.l.b16 %v6842
      %v7409 = vunpack.c.h.b16 %v6842
      %v7410 = vunpack.c.l.b16 %v6843
      %v7411 = vunpack.c.h.b16 %v6843
      %v7412 = vunpack.c.l.b16 %v6844
      %v7413 = vunpack.c.h.b16 %v6844
      %v7414 = vunpack.c.l.b16 %v6845
      %v7415 = vunpack.c.h.b16 %v6845
      %v7416 = vunpack.c.l.b16 %v6846
      %v7417 = vunpack.c.h.b16 %v6846
      %v7418 = vunpack.c.l.b16 %v6847
      %v7419 = vunpack.c.h.b16 %v6847
      %v7420 = vunpack.c.l.b16 %v6848
      %v7421 = vunpack.c.h.b16 %v6848
      %v7422 = vunpack.c.l.b16 %v6849
      %v7423 = vunpack.c.h.b16 %v6849
      %v7424 = vunpack.c.l.b16 %v6850
      %v7425 = vunpack.c.h.b16 %v6850
      %v7426 = vunpack.c.l.b16 %v6851
      %v7427 = vunpack.c.h.b16 %v6851
      %v7428 = vunpack.c.l.b16 %v6852
      %v7429 = vunpack.c.h.b16 %v6852
      %v7430 = vunpack.c.l.b16 %v6853
      %v7431 = vunpack.c.h.b16 %v6853
      %v7432 = vunpack.c.l.b16 %v6854
      %v7433 = vunpack.c.h.b16 %v6854
      %v7434 = vunpack.c.l.b16 %v6855
      %v7435 = vunpack.c.h.b16 %v6855
      %v7436 = vunpack.c.l.b16 %v6856
      %v7437 = vunpack.c.h.b16 %v6856
      %v7438 = vunpack.c.l.b16 %v6857
      %v7439 = vunpack.c.h.b16 %v6857
      %v7440 = vunpack.c.l.b16 %v6858
      %v7441 = vunpack.c.h.b16 %v6858
      %v7442 = vunpack.c.l.b16 %v6859
      %v7443 = vunpack.c.h.b16 %v6859
      %v7444 = vunpack.c.l.b16 %v6860
      %v7445 = vunpack.c.h.b16 %v6860
      %v7446 = vunpack.c.l.b16 %v6861
      %v7447 = vunpack.c.h.b16 %v6861
      %v7448 = vunpack.c.l.b16 %v6862
      %v7449 = vunpack.c.h.b16 %v6862
      %v7450 = vunpack.c.l.b16 %v6863
      %v7451 = vunpack.c.h.b16 %v6863
      %v7452 = vunpack.c.l.b16 %v6864
      %v7453 = vunpack.c.h.b16 %v6864
      %v7454 = vunpack.c.l.b16 %v6865
      %v7455 = vunpack.c.h.b16 %v6865
      %v7456 = vunpack.c.l.b16 %v6866
      %v7457 = vunpack.c.h.b16 %v6866
      %v7458 = vunpack.c.l.b16 %v6867
      %v7459 = vunpack.c.h.b16 %v6867
      %v7460 = vunpack.c.l.b16 %v6868
      %v7461 = vunpack.c.h.b16 %v6868
      %v7462 = vunpack.c.l.b16 %v6869
      %v7463 = vunpack.c.h.b16 %v6869
      %v7464 = vunpack.c.l.b16 %v6870
      %v7465 = vunpack.c.h.b16 %v6870
      %v7466 = vunpack.c.l.b16 %v6871
      %v7467 = vunpack.c.h.b16 %v6871
      %v7468 = vunpack.c.l.b16 %v6872
      %v7469 = vunpack.c.h.b16 %v6872
      %v7470 = vunpack.c.l.b16 %v6873
      %v7471 = vunpack.c.h.b16 %v6873
      %v7472 = vunpack.c.l.b16 %v6874
      %v7473 = vunpack.c.h.b16 %v6874
      %v7474 = vunpack.c.l.b16 %v6875
      %v7475 = vunpack.c.h.b16 %v6875
      %v7476 = vunpack.c.l.b16 %v6876
      %v7477 = vunpack.c.h.b16 %v6876
      %v7478 = vunpack.c.l.b16 %v6877
      %v7479 = vunpack.c.h.b16 %v6877
      %v7480 = vunpack.c.l.b16 %v6878
      %v7481 = vunpack.c.h.b16 %v6878
      %v7482 = vunpack.c.l.b16 %v6879
      %v7483 = vunpack.c.h.b16 %v6879
      %v7484 = vunpack.c.l.b16 %v6880
      %v7485 = vunpack.c.h.b16 %v6880
      %v7486 = vunpack.c.l.b16 %v6881
      %v7487 = vunpack.c.h.b16 %v6881
      %v7488 = vunpack.c.l.b16 %v6882
      %v7489 = vunpack.c.h.b16 %v6882
      %v7490 = vunpack.c.l.b16 %v6883
      %v7491 = vunpack.c.h.b16 %v6883
      %v7492 = vunpack.c.l.b16 %v6884
      %v7493 = vunpack.c.h.b16 %v6884
      %v7494 = vunpack.c.l.b16 %v6885
      %v7495 = vunpack.c.h.b16 %v6885
      %v7496 = vunpack.c.l.b16 %v6886
      %v7497 = vunpack.c.h.b16 %v6886
      %v7498 = vunpack.c.l.b16 %v6887
      %v7499 = vunpack.c.h.b16 %v6887
      %v7500 = vunpack.c.l.b16 %v6888
      %v7501 = vunpack.c.h.b16 %v6888
      %v7502 = vunpack.c.l.b16 %v6889
      %v7503 = vunpack.c.h.b16 %v6889
      %v7504 = vunpack.c.l.b16 %v6890
      %v7505 = vunpack.c.h.b16 %v6890
      %v7506 = vunpack.c.l.b16 %v6891
      %v7507 = vunpack.c.h.b16 %v6891
      %v7508 = vunpack.c.l.b16 %v6892
      %v7509 = vunpack.c.h.b16 %v6892
      %v7510 = vunpack.c.l.b16 %v6893
      %v7511 = vunpack.c.h.b16 %v6893
      %v7512 = vunpack.c.l.b16 %v6894
      %v7513 = vunpack.c.h.b16 %v6894
      %v7514 = vunpack.c.l.b16 %v6895
      %v7515 = vunpack.c.h.b16 %v6895
      %v7516 = vunpack.c.l.b16 %v6896
      %v7517 = vunpack.c.h.b16 %v6896
      %v7518 = vunpack.c.l.b16 %v6897
      %v7519 = vunpack.c.h.b16 %v6897
      %v7520 = vunpack.c.l.b16 %v6898
      %v7521 = vunpack.c.h.b16 %v6898
      %v7522 = vunpack.c.l.b16 %v6899
      %v7523 = vunpack.c.h.b16 %v6899
      %v7524 = vunpack.c.l.b16 %v6900
      %v7525 = vunpack.c.h.b16 %v6900
      %v7526 = vunpack.c.l.b16 %v6901
      %v7527 = vunpack.c.h.b16 %v6901
      %v7528 = vunpack.c.l.b16 %v6902
      %v7529 = vunpack.c.h.b16 %v6902
      %v7530 = vunpack.c.l.b16 %v6903
      %v7531 = vunpack.c.h.b16 %v6903
      %v7532 = vunpack.c.l.b16 %v6904
      %v7533 = vunpack.c.h.b16 %v6904
      %v7534 = vunpack.c.l.b16 %v6905
      %v7535 = vunpack.c.h.b16 %v6905
      %v7536 = vunpack.c.l.b16 %v6906
      %v7537 = vunpack.c.h.b16 %v6906
      %v7538 = vunpack.c.l.b16 %v6907
      %v7539 = vunpack.c.h.b16 %v6907
      %v7540 = vunpack.c.l.b16 %v6908
      %v7541 = vunpack.c.h.b16 %v6908
      %v7542 = vunpack.c.l.b16 %v6909
      %v7543 = vunpack.c.h.b16 %v6909
      %v7544 = vunpack.c.l.b16 %v6910
      %v7545 = vunpack.c.h.b16 %v6910
      %v7546 = vunpack.c.l.b16 %v6911
      %v7547 = vunpack.c.h.b16 %v6911
      %v7548 = vunpack.c.l.b16 %v6912
      %v7549 = vunpack.c.h.b16 %v6912
      %v7550 = vunpack.c.l.b16 %v6913
      %v7551 = vunpack.c.h.b16 %v6913
      %v7552 = vunpack.c.l.b16 %v6914
      %v7553 = vunpack.c.h.b16 %v6914
      %v7554 = vunpack.c.l.b16 %v6915
      %v7555 = vunpack.c.h.b16 %v6915
      %v7556 = vunpack.c.l.b16 %v6916
      %v7557 = vunpack.c.h.b16 %v6916
      %v7558 = vunpack.c.l.b16 %v6917
      %v7559 = vunpack.c.h.b16 %v6917
      %v7560 = vunpack.c.l.b16 %v6918
      %v7561 = vunpack.c.h.b16 %v6918
      %v7562 = vunpack.c.l.b16 %v6919
      %v7563 = vunpack.c.h.b16 %v6919
      %v7564 = vunpack.c.l.b16 %v6920
      %v7565 = vunpack.c.h.b16 %v6920
      %v7566 = vunpack.c.l.b16 %v6921
      %v7567 = vunpack.c.h.b16 %v6921
      %v7568 = vunpack.c.l.b16 %v6922
      %v7569 = vunpack.c.h.b16 %v6922
      %v7570 = vunpack.c.l.b16 %v6923
      %v7571 = vunpack.c.h.b16 %v6923
      %v7572 = vunpack.c.l.b16 %v6924
      %v7573 = vunpack.c.h.b16 %v6924
      %v7574 = vunpack.c.l.b16 %v6925
      %v7575 = vunpack.c.h.b16 %v6925
      %v7576 = vunpack.c.l.b16 %v6926
      %v7577 = vunpack.c.h.b16 %v6926
      %v7578 = vunpack.c.l.b16 %v6927
      %v7579 = vunpack.c.h.b16 %v6927
      %v7580 = vunpack.c.l.b16 %v6928
      %v7581 = vunpack.c.h.b16 %v6928
      %v7582 = vunpack.c.l.b16 %v6929
      %v7583 = vunpack.c.h.b16 %v6929
      %v7584 = vunpack.c.l.b16 %v6930
      %v7585 = vunpack.c.h.b16 %v6930
      %v7586 = vunpack.c.l.b16 %v6931
      %v7587 = vunpack.c.h.b16 %v6931
      %v7588 = vunpack.c.l.b16 %v6932
      %v7589 = vunpack.c.h.b16 %v6932
      %v7590 = vunpack.c.l.b16 %v6933
      %v7591 = vunpack.c.h.b16 %v6933
      %v7592 = vunpack.c.l.b16 %v6934
      %v7593 = vunpack.c.h.b16 %v6934
      %v7594 = vunpack.c.l.b16 %v6935
      %v7595 = vunpack.c.h.b16 %v6935
      %v7596 = vunpack.c.l.b16 %v6936
      %v7597 = vunpack.c.h.b16 %v6936
      %v7598 = vunpack.c.l.b16 %v6937
      %v7599 = vunpack.c.h.b16 %v6937
      %v7600 = vunpack.c.l.b16 %v6938
      %v7601 = vunpack.c.h.b16 %v6938
      %v7602 = vunpack.c.l.b16 %v6939
      %v7603 = vunpack.c.h.b16 %v6939
      %v7604 = vunpack.c.l.b16 %v6940
      %v7605 = vunpack.c.h.b16 %v6940
      %v7606 = vunpack.c.l.b16 %v6941
      %v7607 = vunpack.c.h.b16 %v6941
      %v7608 = vunpack.c.l.b16 %v6942
      %v7609 = vunpack.c.h.b16 %v6942
      %v7610 = vpack.c.b16 %v7186, %v7178
      %v7611 = vpack.c.b16 %v7187, %v7179
      %v7612 = vpack.c.b16 %v7188, %v7180
      %v7613 = vpack.c.b16 %v7189, %v7181
      %v7614 = vpack.c.b16 %v7190, %v7182
      %v7615 = vpack.c.b16 %v7191, %v7183
      %v7616 = vpack.c.b16 %v7192, %v7184
      %v7617 = vpack.c.b16 %v7193, %v7185
      %v7618 = vpack.c.b16 %v7202, %v7194
      %v7619 = vpack.c.b16 %v7203, %v7195
      %v7620 = vpack.c.b16 %v7204, %v7196
      %v7621 = vpack.c.b16 %v7205, %v7197
      %v7622 = vpack.c.b16 %v7206, %v7198
      %v7623 = vpack.c.b16 %v7207, %v7199
      %v7624 = vpack.c.b16 %v7208, %v7200
      %v7625 = vpack.c.b16 %v7209, %v7201
      %v7626 = vpack.c.b16 %v7218, %v7210
      %v7627 = vpack.c.b16 %v7219, %v7211
      %v7628 = vpack.c.b16 %v7220, %v7212
      %v7629 = vpack.c.b16 %v7221, %v7213
      %v7630 = vpack.c.b16 %v7222, %v7214
      %v7631 = vpack.c.b16 %v7223, %v7215
      %v7632 = vpack.c.b16 %v7224, %v7216
      %v7633 = vpack.c.b16 %v7225, %v7217
      %v7634 = vpack.c.b16 %v7234, %v7226
      %v7635 = vpack.c.b16 %v7235, %v7227
      %v7636 = vpack.c.b16 %v7236, %v7228
      %v7637 = vpack.c.b16 %v7237, %v7229
      %v7638 = vpack.c.b16 %v7238, %v7230
      %v7639 = vpack.c.b16 %v7239, %v7231
      %v7640 = vpack.c.b16 %v7240, %v7232
      %v7641 = vpack.c.b16 %v7241, %v7233
      %v7642 = vpack.c.b16 %v7250, %v7242
      %v7643 = vpack.c.b16 %v7251, %v7243
      %v7644 = vpack.c.b16 %v7252, %v7244
      %v7645 = vpack.c.b16 %v7253, %v7245
      %v7646 = vpack.c.b16 %v7254, %v7246
      %v7647 = vpack.c.b16 %v7255, %v7247
      %v7648 = vpack.c.b16 %v7256, %v7248
      %v7649 = vpack.c.b16 %v7257, %v7249
      %v7650 = vpack.c.b16 %v7266, %v7258
      %v7651 = vpack.c.b16 %v7267, %v7259
      %v7652 = vpack.c.b16 %v7268, %v7260
      %v7653 = vpack.c.b16 %v7269, %v7261
      %v7654 = vpack.c.b16 %v7270, %v7262
      %v7655 = vpack.c.b16 %v7271, %v7263
      %v7656 = vpack.c.b16 %v7272, %v7264
      %v7657 = vpack.c.b16 %v7273, %v7265
      %v7658 = vpack.c.b16 %v7282, %v7274
      %v7659 = vpack.c.b16 %v7283, %v7275
      %v7660 = vpack.c.b16 %v7284, %v7276
      %v7661 = vpack.c.b16 %v7285, %v7277
      %v7662 = vpack.c.b16 %v7286, %v7278
      %v7663 = vpack.c.b16 %v7287, %v7279
      %v7664 = vpack.c.b16 %v7288, %v7280
      %v7665 = vpack.c.b16 %v7289, %v7281
      %v7666 = vpack.c.b16 %v7298, %v7290
      %v7667 = vpack.c.b16 %v7299, %v7291
      %v7668 = vpack.c.b16 %v7300, %v7292
      %v7669 = vpack.c.b16 %v7301, %v7293
      %v7670 = vpack.c.b16 %v7302, %v7294
      %v7671 = vpack.c.b16 %v7303, %v7295
      %v7672 = vpack.c.b16 %v7304, %v7296
      %v7673 = vpack.c.b16 %v7305, %v7297
      %v7674 = vpack.c.b16 %v7314, %v7306
      %v7675 = vpack.c.b16 %v7315, %v7307
      %v7676 = vpack.c.b16 %v7316, %v7308
      %v7677 = vpack.c.b16 %v7317, %v7309
      %v7678 = vpack.c.b16 %v7318, %v7310
      %v7679 = vpack.c.b16 %v7319, %v7311
      %v7680 = vpack.c.b16 %v7320, %v7312
      %v7681 = vpack.c.b16 %v7321, %v7313
      %v7682 = vpack.c.b16 %v7330, %v7322
      %v7683 = vpack.c.b16 %v7331, %v7323
      %v7684 = vpack.c.b16 %v7332, %v7324
      %v7685 = vpack.c.b16 %v7333, %v7325
      %v7686 = vpack.c.b16 %v7334, %v7326
      %v7687 = vpack.c.b16 %v7335, %v7327
      %v7688 = vpack.c.b16 %v7336, %v7328
      %v7689 = vpack.c.b16 %v7337, %v7329
      %v7690 = vpack.c.b16 %v7346, %v7338
      %v7691 = vpack.c.b16 %v7347, %v7339
      %v7692 = vpack.c.b16 %v7348, %v7340
      %v7693 = vpack.c.b16 %v7349, %v7341
      %v7694 = vpack.c.b16 %v7350, %v7342
      %v7695 = vpack.c.b16 %v7351, %v7343
      %v7696 = vpack.c.b16 %v7352, %v7344
      %v7697 = vpack.c.b16 %v7353, %v7345
      %v7698 = vpack.c.b16 %v7362, %v7354
      %v7699 = vpack.c.b16 %v7363, %v7355
      %v7700 = vpack.c.b16 %v7364, %v7356
      %v7701 = vpack.c.b16 %v7365, %v7357
      %v7702 = vpack.c.b16 %v7366, %v7358
      %v7703 = vpack.c.b16 %v7367, %v7359
      %v7704 = vpack.c.b16 %v7368, %v7360
      %v7705 = vpack.c.b16 %v7369, %v7361
      %v7706 = vpack.c.b16 %v7378, %v7370
      %v7707 = vpack.c.b16 %v7379, %v7371
      %v7708 = vpack.c.b16 %v7380, %v7372
      %v7709 = vpack.c.b16 %v7381, %v7373
      %v7710 = vpack.c.b16 %v7382, %v7374
      %v7711 = vpack.c.b16 %v7383, %v7375
      %v7712 = vpack.c.b16 %v7384, %v7376
      %v7713 = vpack.c.b16 %v7385, %v7377
      %v7714 = vpack.c.b16 %v7394, %v7386
      %v7715 = vpack.c.b16 %v7395, %v7387
      %v7716 = vpack.c.b16 %v7396, %v7388
      %v7717 = vpack.c.b16 %v7397, %v7389
      %v7718 = vpack.c.b16 %v7398, %v7390
      %v7719 = vpack.c.b16 %v7399, %v7391
      %v7720 = vpack.c.b16 %v7400, %v7392
      %v7721 = vpack.c.b16 %v7401, %v7393
      %v7722 = vpack.c.b16 %v7410, %v7402
      %v7723 = vpack.c.b16 %v7411, %v7403
      %v7724 = vpack.c.b16 %v7412, %v7404
      %v7725 = vpack.c.b16 %v7413, %v7405
      %v7726 = vpack.c.b16 %v7414, %v7406
      %v7727 = vpack.c.b16 %v7415, %v7407
      %v7728 = vpack.c.b16 %v7416, %v7408
      %v7729 = vpack.c.b16 %v7417, %v7409
      %v7730 = vpack.c.b16 %v7426, %v7418
      %v7731 = vpack.c.b16 %v7427, %v7419
      %v7732 = vpack.c.b16 %v7428, %v7420
      %v7733 = vpack.c.b16 %v7429, %v7421
      %v7734 = vpack.c.b16 %v7430, %v7422
      %v7735 = vpack.c.b16 %v7431, %v7423
      %v7736 = vpack.c.b16 %v7432, %v7424
      %v7737 = vpack.c.b16 %v7433, %v7425
      %v7738 = vpack.c.b16 %v7442, %v7434
      %v7739 = vpack.c.b16 %v7443, %v7435
      %v7740 = vpack.c.b16 %v7444, %v7436
      %v7741 = vpack.c.b16 %v7445, %v7437
      %v7742 = vpack.c.b16 %v7446, %v7438
      %v7743 = vpack.c.b16 %v7447, %v7439
      %v7744 = vpack.c.b16 %v7448, %v7440
      %v7745 = vpack.c.b16 %v7449, %v7441
      %v7746 = vpack.c.b16 %v7458, %v7450
      %v7747 = vpack.c.b16 %v7459, %v7451
      %v7748 = vpack.c.b16 %v7460, %v7452
      %v7749 = vpack.c.b16 %v7461, %v7453
      %v7750 = vpack.c.b16 %v7462, %v7454
      %v7751 = vpack.c.b16 %v7463, %v7455
      %v7752 = vpack.c.b16 %v7464, %v7456
      %v7753 = vpack.c.b16 %v7465, %v7457
      %v7754 = vpack.c.b16 %v7474, %v7466
      %v7755 = vpack.c.b16 %v7475, %v7467
      %v7756 = vpack.c.b16 %v7476, %v7468
      %v7757 = vpack.c.b16 %v7477, %v7469
      %v7758 = vpack.c.b16 %v7478, %v7470
      %v7759 = vpack.c.b16 %v7479, %v7471
      %v7760 = vpack.c.b16 %v7480, %v7472
      %v7761 = vpack.c.b16 %v7481, %v7473
      %v7762 = vpack.c.b16 %v7490, %v7482
      %v7763 = vpack.c.b16 %v7491, %v7483
      %v7764 = vpack.c.b16 %v7492, %v7484
      %v7765 = vpack.c.b16 %v7493, %v7485
      %v7766 = vpack.c.b16 %v7494, %v7486
      %v7767 = vpack.c.b16 %v7495, %v7487
      %v7768 = vpack.c.b16 %v7496, %v7488
      %v7769 = vpack.c.b16 %v7497, %v7489
      %v7770 = vpack.c.b16 %v7506, %v7498
      %v7771 = vpack.c.b16 %v7507, %v7499
      %v7772 = vpack.c.b16 %v7508, %v7500
      %v7773 = vpack.c.b16 %v7509, %v7501
      %v7774 = vpack.c.b16 %v7510, %v7502
      %v7775 = vpack.c.b16 %v7511, %v7503
      %v7776 = vpack.c.b16 %v7512, %v7504
      %v7777 = vpack.c.b16 %v7513, %v7505
      %v7778 = vpack.c.b16 %v7522, %v7514
      %v7779 = vpack.c.b16 %v7523, %v7515
      %v7780 = vpack.c.b16 %v7524, %v7516
      %v7781 = vpack.c.b16 %v7525, %v7517
      %v7782 = vpack.c.b16 %v7526, %v7518
      %v7783 = vpack.c.b16 %v7527, %v7519
      %v7784 = vpack.c.b16 %v7528, %v7520
      %v7785 = vpack.c.b16 %v7529, %v7521
      %v7786 = vpack.c.b16 %v7538, %v7530
      %v7787 = vpack.c.b16 %v7539, %v7531
      %v7788 = vpack.c.b16 %v7540, %v7532
      %v7789 = vpack.c.b16 %v7541, %v7533
      %v7790 = vpack.c.b16 %v7542, %v7534
      %v7791 = vpack.c.b16 %v7543, %v7535
      %v7792 = vpack.c.b16 %v7544, %v7536
      %v7793 = vpack.c.b16 %v7545, %v7537
      %v7794 = vpack.c.b16 %v7554, %v7546
      %v7795 = vpack.c.b16 %v7555, %v7547
      %v7796 = vpack.c.b16 %v7556, %v7548
      %v7797 = vpack.c.b16 %v7557, %v7549
      %v7798 = vpack.c.b16 %v7558, %v7550
      %v7799 = vpack.c.b16 %v7559, %v7551
      %v7800 = vpack.c.b16 %v7560, %v7552
      %v7801 = vpack.c.b16 %v7561, %v7553
      %v7802 = vpack.c.b16 %v7570, %v7562
      %v7803 = vpack.c.b16 %v7571, %v7563
      %v7804 = vpack.c.b16 %v7572, %v7564
      %v7805 = vpack.c.b16 %v7573, %v7565
      %v7806 = vpack.c.b16 %v7574, %v7566
      %v7807 = vpack.c.b16 %v7575, %v7567
      %v7808 = vpack.c.b16 %v7576, %v7568
      %v7809 = vpack.c.b16 %v7577, %v7569
      %v7810 = vpack.c.b16 %v7586, %v7578
      %v7811 = vpack.c.b16 %v7587, %v7579
      %v7812 = vpack.c.b16 %v7588, %v7580
      %v7813 = vpack.c.b16 %v7589, %v7581
      %v7814 = vpack.c.b16 %v7590, %v7582
      %v7815 = vpack.c.b16 %v7591, %v7583
      %v7816 = vpack.c.b16 %v7592, %v7584
      %v7817 = vpack.c.b16 %v7593, %v7585
      %v7818 = vpack.c.b16 %v7602, %v7594
      %v7819 = vpack.c.b16 %v7603, %v7595
      %v7820 = vpack.c.b16 %v7604, %v7596
      %v7821 = vpack.c.b16 %v7605, %v7597
      %v7822 = vpack.c.b16 %v7606, %v7598
      %v7823 = vpack.c.b16 %v7607, %v7599
      %v7824 = vpack.c.b16 %v7608, %v7600
      %v7825 = vpack.c.b16 %v7609, %v7601
      %v8043 = vsel %vm3909, %v6958, 0
      %8045 = vmatpush.bf16.msra.mxu0 %v7666
      %8046 = vmatpush.bf16.msra.mxu0 %v7658
      %8047 = vmatpush.bf16.msra.mxu0 %v7650
      %8048 = vmatpush.bf16.msra.mxu0 %v7642
      %8049 = vmatpush.bf16.msra.mxu0 %v7634
      %8050 = vmatpush.bf16.msra.mxu0 %v7626
      %8051 = vmatpush.bf16.msra.mxu0 %v7618
      %8052 = vmatpush.bf16.msra.mxu0 %v7610
      %8053 = vmatmul.bf16.gmra.mxu0 %v6955
      %v8054 = vpop.f32.mrf.mxu0
      %v8055 = vadd.f32 0.0, %v8054
      %v8056 = vpop.f32.mrf.mxu0
      %v8057 = vadd.f32 0.0, %v8056
      %8058 = vdwg.mxu0
      %8059 = vmatpush.bf16.msra.mxu0 %v7730
      %8060 = vmatpush.bf16.msra.mxu0 %v7722
      %8061 = vmatpush.bf16.msra.mxu0 %v7714
      %8062 = vmatpush.bf16.msra.mxu0 %v7706
      %8063 = vmatpush.bf16.msra.mxu0 %v7698
      %8064 = vmatpush.bf16.msra.mxu0 %v7690
      %8065 = vmatpush.bf16.msra.mxu0 %v7682
      %8066 = vmatpush.bf16.msra.mxu0 %v7674
      %8067 = vmatmul.bf16.gmra.mxu0 %v6956
      %v8068 = vpop.f32.mrf.mxu0
      %v8069 = vadd.f32 %v8055, %v8068
      %v8070 = vpop.f32.mrf.mxu0
      %v8071 = vadd.f32 %v8057, %v8070
      %8072 = vdwg.mxu0
      %8073 = vmatpush.bf16.msra.mxu0 %v7794
      %8074 = vmatpush.bf16.msra.mxu0 %v7786
      %8075 = vmatpush.bf16.msra.mxu0 %v7778
      %8076 = vmatpush.bf16.msra.mxu0 %v7770
      %8077 = vmatpush.bf16.msra.mxu0 %v7762
      %8078 = vmatpush.bf16.msra.mxu0 %v7754
      %8079 = vmatpush.bf16.msra.mxu0 %v7746
      %8080 = vmatpush.bf16.msra.mxu0 %v7738
      %8081 = vmatmul.bf16.gmra.mxu0 %v6957
      %v8082 = vpop.f32.mrf.mxu0
      %v8083 = vadd.f32 %v8069, %v8082
      %v8084 = vpop.f32.mrf.mxu0
      %v8085 = vadd.f32 %v8071, %v8084
      %8086 = vdwg.mxu0
      %8087 = vmatpush.bf16.msra.mxu0 0
      %8088 = vmatpush.bf16.msra.mxu0 0
      %8089 = vmatpush.bf16.msra.mxu0 0
      %8090 = vmatpush.bf16.msra.mxu0 0
      %8091 = vmatpush.bf16.msra.mxu0 0
      %8092 = vmatpush.bf16.msra.mxu0 %v7818
      %8093 = vmatpush.bf16.msra.mxu0 %v7810
      %8094 = vmatpush.bf16.msra.mxu0 %v7802
      %8095 = vmatmul.bf16.gmra.mxu0 %v8043
      %v8096 = vpop.f32.mrf.mxu0
      %v8097 = vadd.f32 %v8083, %v8096
      %v8098 = vpop.f32.mrf.mxu0
      %v8099 = vadd.f32 %v8085, %v8098
      %8100 = vdwg.mxu0
      %8101 = vmatpush.bf16.msra.mxu0 %v7667
      %8102 = vmatpush.bf16.msra.mxu0 %v7659
      %8103 = vmatpush.bf16.msra.mxu0 %v7651
      %8104 = vmatpush.bf16.msra.mxu0 %v7643
      %8105 = vmatpush.bf16.msra.mxu0 %v7635
      %8106 = vmatpush.bf16.msra.mxu0 %v7627
      %8107 = vmatpush.bf16.msra.mxu0 %v7619
      %8108 = vmatpush.bf16.msra.mxu0 %v7611
      %8109 = vmatmul.bf16.gmra.mxu0 %v6955
      %v8110 = vpop.f32.mrf.mxu0
      %v8111 = vadd.f32 0.0, %v8110
      %v8112 = vpop.f32.mrf.mxu0
      %v8113 = vadd.f32 0.0, %v8112
      %8114 = vdwg.mxu0
      %8115 = vmatpush.bf16.msra.mxu0 %v7731
      %8116 = vmatpush.bf16.msra.mxu0 %v7723
      %8117 = vmatpush.bf16.msra.mxu0 %v7715
      %8118 = vmatpush.bf16.msra.mxu0 %v7707
      %8119 = vmatpush.bf16.msra.mxu0 %v7699
      %8120 = vmatpush.bf16.msra.mxu0 %v7691
      %8121 = vmatpush.bf16.msra.mxu0 %v7683
      %8122 = vmatpush.bf16.msra.mxu0 %v7675
      %8123 = vmatmul.bf16.gmra.mxu0 %v6956
      %v8124 = vpop.f32.mrf.mxu0
      %v8125 = vadd.f32 %v8111, %v8124
      %v8126 = vpop.f32.mrf.mxu0
      %v8127 = vadd.f32 %v8113, %v8126
      %8128 = vdwg.mxu0
      %8129 = vmatpush.bf16.msra.mxu0 %v7795
      %8130 = vmatpush.bf16.msra.mxu0 %v7787
      %8131 = vmatpush.bf16.msra.mxu0 %v7779
      %8132 = vmatpush.bf16.msra.mxu0 %v7771
      %8133 = vmatpush.bf16.msra.mxu0 %v7763
      %8134 = vmatpush.bf16.msra.mxu0 %v7755
      %8135 = vmatpush.bf16.msra.mxu0 %v7747
      %8136 = vmatpush.bf16.msra.mxu0 %v7739
      %8137 = vmatmul.bf16.gmra.mxu0 %v6957
      %v8138 = vpop.f32.mrf.mxu0
      %v8139 = vadd.f32 %v8125, %v8138
      %v8140 = vpop.f32.mrf.mxu0
      %v8141 = vadd.f32 %v8127, %v8140
      %8142 = vdwg.mxu0
      %8143 = vmatpush.bf16.msra.mxu0 0
      %8144 = vmatpush.bf16.msra.mxu0 0
      %8145 = vmatpush.bf16.msra.mxu0 0
      %8146 = vmatpush.bf16.msra.mxu0 0
      %8147 = vmatpush.bf16.msra.mxu0 0
      %8148 = vmatpush.bf16.msra.mxu0 %v7819
      %8149 = vmatpush.bf16.msra.mxu0 %v7811
      %8150 = vmatpush.bf16.msra.mxu0 %v7803
      %8151 = vmatmul.bf16.gmra.mxu0 %v8043
      %v8152 = vpop.f32.mrf.mxu0
      %v8153 = vadd.f32 %v8139, %v8152
      %v8154 = vpop.f32.mrf.mxu0
      %v8155 = vadd.f32 %v8141, %v8154
      %8156 = vdwg.mxu0
      %8157 = vmatpush.bf16.msra.mxu0 %v7668
      %8158 = vmatpush.bf16.msra.mxu0 %v7660
      %8159 = vmatpush.bf16.msra.mxu0 %v7652
      %8160 = vmatpush.bf16.msra.mxu0 %v7644
      %8161 = vmatpush.bf16.msra.mxu0 %v7636
      %8162 = vmatpush.bf16.msra.mxu0 %v7628
      %8163 = vmatpush.bf16.msra.mxu0 %v7620
      %8164 = vmatpush.bf16.msra.mxu0 %v7612
      %8165 = vmatmul.bf16.gmra.mxu0 %v6955
      %v8166 = vpop.f32.mrf.mxu0
      %v8167 = vadd.f32 0.0, %v8166
      %v8168 = vpop.f32.mrf.mxu0
      %v8169 = vadd.f32 0.0, %v8168
      %8170 = vdwg.mxu0
      %8171 = vmatpush.bf16.msra.mxu0 %v7732
      %8172 = vmatpush.bf16.msra.mxu0 %v7724
      %8173 = vmatpush.bf16.msra.mxu0 %v7716
      %8174 = vmatpush.bf16.msra.mxu0 %v7708
      %8175 = vmatpush.bf16.msra.mxu0 %v7700
      %8176 = vmatpush.bf16.msra.mxu0 %v7692
      %8177 = vmatpush.bf16.msra.mxu0 %v7684
      %8178 = vmatpush.bf16.msra.mxu0 %v7676
      %8179 = vmatmul.bf16.gmra.mxu0 %v6956
      %v8180 = vpop.f32.mrf.mxu0
      %v8181 = vadd.f32 %v8167, %v8180
      %v8182 = vpop.f32.mrf.mxu0
      %v8183 = vadd.f32 %v8169, %v8182
      %8184 = vdwg.mxu0
      %8185 = vmatpush.bf16.msra.mxu0 %v7796
      %8186 = vmatpush.bf16.msra.mxu0 %v7788
      %8187 = vmatpush.bf16.msra.mxu0 %v7780
      %8188 = vmatpush.bf16.msra.mxu0 %v7772
      %8189 = vmatpush.bf16.msra.mxu0 %v7764
      %8190 = vmatpush.bf16.msra.mxu0 %v7756
      %8191 = vmatpush.bf16.msra.mxu0 %v7748
      %8192 = vmatpush.bf16.msra.mxu0 %v7740
      %8193 = vmatmul.bf16.gmra.mxu0 %v6957
      %v8194 = vpop.f32.mrf.mxu0
      %v8195 = vadd.f32 %v8181, %v8194
      %v8196 = vpop.f32.mrf.mxu0
      %v8197 = vadd.f32 %v8183, %v8196
      %8198 = vdwg.mxu0
      %8199 = vmatpush.bf16.msra.mxu0 0
      %8200 = vmatpush.bf16.msra.mxu0 0
      %8201 = vmatpush.bf16.msra.mxu0 0
      %8202 = vmatpush.bf16.msra.mxu0 0
      %8203 = vmatpush.bf16.msra.mxu0 0
      %8204 = vmatpush.bf16.msra.mxu0 %v7820
      %8205 = vmatpush.bf16.msra.mxu0 %v7812
      %8206 = vmatpush.bf16.msra.mxu0 %v7804
      %8207 = vmatmul.bf16.gmra.mxu0 %v8043
      %v8208 = vpop.f32.mrf.mxu0
      %v8209 = vadd.f32 %v8195, %v8208
      %v8210 = vpop.f32.mrf.mxu0
      %v8211 = vadd.f32 %v8197, %v8210
      %8212 = vdwg.mxu0
      %8213 = vmatpush.bf16.msra.mxu0 %v7669
      %8214 = vmatpush.bf16.msra.mxu0 %v7661
      %8215 = vmatpush.bf16.msra.mxu0 %v7653
      %8216 = vmatpush.bf16.msra.mxu0 %v7645
      %8217 = vmatpush.bf16.msra.mxu0 %v7637
      %8218 = vmatpush.bf16.msra.mxu0 %v7629
      %8219 = vmatpush.bf16.msra.mxu0 %v7621
      %8220 = vmatpush.bf16.msra.mxu0 %v7613
      %8221 = vmatmul.bf16.gmra.mxu0 %v6955
      %v8222 = vpop.f32.mrf.mxu0
      %v8223 = vadd.f32 0.0, %v8222
      %v8224 = vpop.f32.mrf.mxu0
      %v8225 = vadd.f32 0.0, %v8224
      %8226 = vdwg.mxu0
      %8227 = vmatpush.bf16.msra.mxu0 %v7733
      %8228 = vmatpush.bf16.msra.mxu0 %v7725
      %8229 = vmatpush.bf16.msra.mxu0 %v7717
      %8230 = vmatpush.bf16.msra.mxu0 %v7709
      %8231 = vmatpush.bf16.msra.mxu0 %v7701
      %8232 = vmatpush.bf16.msra.mxu0 %v7693
      %8233 = vmatpush.bf16.msra.mxu0 %v7685
      %8234 = vmatpush.bf16.msra.mxu0 %v7677
      %8235 = vmatmul.bf16.gmra.mxu0 %v6956
      %v8236 = vpop.f32.mrf.mxu0
      %v8237 = vadd.f32 %v8223, %v8236
      %v8238 = vpop.f32.mrf.mxu0
      %v8239 = vadd.f32 %v8225, %v8238
      %8240 = vdwg.mxu0
      %8241 = vmatpush.bf16.msra.mxu0 %v7797
      %8242 = vmatpush.bf16.msra.mxu0 %v7789
      %8243 = vmatpush.bf16.msra.mxu0 %v7781
      %8244 = vmatpush.bf16.msra.mxu0 %v7773
      %8245 = vmatpush.bf16.msra.mxu0 %v7765
      %8246 = vmatpush.bf16.msra.mxu0 %v7757
      %8247 = vmatpush.bf16.msra.mxu0 %v7749
      %8248 = vmatpush.bf16.msra.mxu0 %v7741
      %8249 = vmatmul.bf16.gmra.mxu0 %v6957
      %v8250 = vpop.f32.mrf.mxu0
      %v8251 = vadd.f32 %v8237, %v8250
      %v8252 = vpop.f32.mrf.mxu0
      %v8253 = vadd.f32 %v8239, %v8252
      %8254 = vdwg.mxu0
      %8255 = vmatpush.bf16.msra.mxu0 0
      %8256 = vmatpush.bf16.msra.mxu0 0
      %8257 = vmatpush.bf16.msra.mxu0 0
      %8258 = vmatpush.bf16.msra.mxu0 0
      %8259 = vmatpush.bf16.msra.mxu0 0
      %8260 = vmatpush.bf16.msra.mxu0 %v7821
      %8261 = vmatpush.bf16.msra.mxu0 %v7813
      %8262 = vmatpush.bf16.msra.mxu0 %v7805
      %8263 = vmatmul.bf16.gmra.mxu0 %v8043
      %v8264 = vpop.f32.mrf.mxu0
      %v8265 = vadd.f32 %v8251, %v8264
      %v8266 = vpop.f32.mrf.mxu0
      %v8267 = vadd.f32 %v8253, %v8266
      %8268 = vdwg.mxu0
      %8269 = vmatpush.bf16.msra.mxu0 %v7670
      %8270 = vmatpush.bf16.msra.mxu0 %v7662
      %8271 = vmatpush.bf16.msra.mxu0 %v7654
      %8272 = vmatpush.bf16.msra.mxu0 %v7646
      %8273 = vmatpush.bf16.msra.mxu0 %v7638
      %8274 = vmatpush.bf16.msra.mxu0 %v7630
      %8275 = vmatpush.bf16.msra.mxu0 %v7622
      %8276 = vmatpush.bf16.msra.mxu0 %v7614
      %8277 = vmatmul.bf16.gmra.mxu0 %v6955
      %v8278 = vpop.f32.mrf.mxu0
      %v8279 = vadd.f32 0.0, %v8278
      %v8280 = vpop.f32.mrf.mxu0
      %v8281 = vadd.f32 0.0, %v8280
      %8282 = vdwg.mxu0
      %8283 = vmatpush.bf16.msra.mxu0 %v7734
      %8284 = vmatpush.bf16.msra.mxu0 %v7726
      %8285 = vmatpush.bf16.msra.mxu0 %v7718
      %8286 = vmatpush.bf16.msra.mxu0 %v7710
      %8287 = vmatpush.bf16.msra.mxu0 %v7702
      %8288 = vmatpush.bf16.msra.mxu0 %v7694
      %8289 = vmatpush.bf16.msra.mxu0 %v7686
      %8290 = vmatpush.bf16.msra.mxu0 %v7678
      %8291 = vmatmul.bf16.gmra.mxu0 %v6956
      %v8292 = vpop.f32.mrf.mxu0
      %v8293 = vadd.f32 %v8279, %v8292
      %v8294 = vpop.f32.mrf.mxu0
      %v8295 = vadd.f32 %v8281, %v8294
      %8296 = vdwg.mxu0
      %8297 = vmatpush.bf16.msra.mxu0 %v7798
      %8298 = vmatpush.bf16.msra.mxu0 %v7790
      %8299 = vmatpush.bf16.msra.mxu0 %v7782
      %8300 = vmatpush.bf16.msra.mxu0 %v7774
      %8301 = vmatpush.bf16.msra.mxu0 %v7766
      %8302 = vmatpush.bf16.msra.mxu0 %v7758
      %8303 = vmatpush.bf16.msra.mxu0 %v7750
      %8304 = vmatpush.bf16.msra.mxu0 %v7742
      %8305 = vmatmul.bf16.gmra.mxu0 %v6957
      %v8306 = vpop.f32.mrf.mxu0
      %v8307 = vadd.f32 %v8293, %v8306
      %v8308 = vpop.f32.mrf.mxu0
      %v8309 = vadd.f32 %v8295, %v8308
      %8310 = vdwg.mxu0
      %8311 = vmatpush.bf16.msra.mxu0 0
      %8312 = vmatpush.bf16.msra.mxu0 0
      %8313 = vmatpush.bf16.msra.mxu0 0
      %8314 = vmatpush.bf16.msra.mxu0 0
      %8315 = vmatpush.bf16.msra.mxu0 0
      %8316 = vmatpush.bf16.msra.mxu0 %v7822
      %8317 = vmatpush.bf16.msra.mxu0 %v7814
      %8318 = vmatpush.bf16.msra.mxu0 %v7806
      %8319 = vmatmul.bf16.gmra.mxu0 %v8043
      %v8320 = vpop.f32.mrf.mxu0
      %v8321 = vadd.f32 %v8307, %v8320
      %v8322 = vpop.f32.mrf.mxu0
      %v8323 = vadd.f32 %v8309, %v8322
      %8324 = vdwg.mxu0
      %8325 = vmatpush.bf16.msra.mxu0 %v7671
      %8326 = vmatpush.bf16.msra.mxu0 %v7663
      %8327 = vmatpush.bf16.msra.mxu0 %v7655
      %8328 = vmatpush.bf16.msra.mxu0 %v7647
      %8329 = vmatpush.bf16.msra.mxu0 %v7639
      %8330 = vmatpush.bf16.msra.mxu0 %v7631
      %8331 = vmatpush.bf16.msra.mxu0 %v7623
      %8332 = vmatpush.bf16.msra.mxu0 %v7615
      %8333 = vmatmul.bf16.gmra.mxu0 %v6955
      %v8334 = vpop.f32.mrf.mxu0
      %v8335 = vadd.f32 0.0, %v8334
      %v8336 = vpop.f32.mrf.mxu0
      %v8337 = vadd.f32 0.0, %v8336
      %8338 = vdwg.mxu0
      %8339 = vmatpush.bf16.msra.mxu0 %v7735
      %8340 = vmatpush.bf16.msra.mxu0 %v7727
      %8341 = vmatpush.bf16.msra.mxu0 %v7719
      %8342 = vmatpush.bf16.msra.mxu0 %v7711
      %8343 = vmatpush.bf16.msra.mxu0 %v7703
      %8344 = vmatpush.bf16.msra.mxu0 %v7695
      %8345 = vmatpush.bf16.msra.mxu0 %v7687
      %8346 = vmatpush.bf16.msra.mxu0 %v7679
      %8347 = vmatmul.bf16.gmra.mxu0 %v6956
      %v8348 = vpop.f32.mrf.mxu0
      %v8349 = vadd.f32 %v8335, %v8348
      %v8350 = vpop.f32.mrf.mxu0
      %v8351 = vadd.f32 %v8337, %v8350
      %8352 = vdwg.mxu0
      %8353 = vmatpush.bf16.msra.mxu0 %v7799
      %8354 = vmatpush.bf16.msra.mxu0 %v7791
      %8355 = vmatpush.bf16.msra.mxu0 %v7783
      %8356 = vmatpush.bf16.msra.mxu0 %v7775
      %8357 = vmatpush.bf16.msra.mxu0 %v7767
      %8358 = vmatpush.bf16.msra.mxu0 %v7759
      %8359 = vmatpush.bf16.msra.mxu0 %v7751
      %8360 = vmatpush.bf16.msra.mxu0 %v7743
      %8361 = vmatmul.bf16.gmra.mxu0 %v6957
      %v8362 = vpop.f32.mrf.mxu0
      %v8363 = vadd.f32 %v8349, %v8362
      %v8364 = vpop.f32.mrf.mxu0
      %v8365 = vadd.f32 %v8351, %v8364
      %8366 = vdwg.mxu0
      %8367 = vmatpush.bf16.msra.mxu0 0
      %8368 = vmatpush.bf16.msra.mxu0 0
      %8369 = vmatpush.bf16.msra.mxu0 0
      %8370 = vmatpush.bf16.msra.mxu0 0
      %8371 = vmatpush.bf16.msra.mxu0 0
      %8372 = vmatpush.bf16.msra.mxu0 %v7823
      %8373 = vmatpush.bf16.msra.mxu0 %v7815
      %8374 = vmatpush.bf16.msra.mxu0 %v7807
      %8375 = vmatmul.bf16.gmra.mxu0 %v8043
      %v8376 = vpop.f32.mrf.mxu0
      %v8377 = vadd.f32 %v8363, %v8376
      %v8378 = vpop.f32.mrf.mxu0
      %v8379 = vadd.f32 %v8365, %v8378
      %8380 = vdwg.mxu0
      %8381 = vmatpush.bf16.msra.mxu0 %v7672
      %8382 = vmatpush.bf16.msra.mxu0 %v7664
      %8383 = vmatpush.bf16.msra.mxu0 %v7656
      %8384 = vmatpush.bf16.msra.mxu0 %v7648
      %8385 = vmatpush.bf16.msra.mxu0 %v7640
      %8386 = vmatpush.bf16.msra.mxu0 %v7632
      %8387 = vmatpush.bf16.msra.mxu0 %v7624
      %8388 = vmatpush.bf16.msra.mxu0 %v7616
      %8389 = vmatmul.bf16.gmra.mxu0 %v6955
      %v8390 = vpop.f32.mrf.mxu0
      %v8391 = vadd.f32 0.0, %v8390
      %v8392 = vpop.f32.mrf.mxu0
      %v8393 = vadd.f32 0.0, %v8392
      %8394 = vdwg.mxu0
      %8395 = vmatpush.bf16.msra.mxu0 %v7736
      %8396 = vmatpush.bf16.msra.mxu0 %v7728
      %8397 = vmatpush.bf16.msra.mxu0 %v7720
      %8398 = vmatpush.bf16.msra.mxu0 %v7712
      %8399 = vmatpush.bf16.msra.mxu0 %v7704
      %8400 = vmatpush.bf16.msra.mxu0 %v7696
      %8401 = vmatpush.bf16.msra.mxu0 %v7688
      %8402 = vmatpush.bf16.msra.mxu0 %v7680
      %8403 = vmatmul.bf16.gmra.mxu0 %v6956
      %v8404 = vpop.f32.mrf.mxu0
      %v8405 = vadd.f32 %v8391, %v8404
      %v8406 = vpop.f32.mrf.mxu0
      %v8407 = vadd.f32 %v8393, %v8406
      %8408 = vdwg.mxu0
      %8409 = vmatpush.bf16.msra.mxu0 %v7800
      %8410 = vmatpush.bf16.msra.mxu0 %v7792
      %8411 = vmatpush.bf16.msra.mxu0 %v7784
      %8412 = vmatpush.bf16.msra.mxu0 %v7776
      %8413 = vmatpush.bf16.msra.mxu0 %v7768
      %8414 = vmatpush.bf16.msra.mxu0 %v7760
      %8415 = vmatpush.bf16.msra.mxu0 %v7752
      %8416 = vmatpush.bf16.msra.mxu0 %v7744
      %8417 = vmatmul.bf16.gmra.mxu0 %v6957
      %v8418 = vpop.f32.mrf.mxu0
      %v8419 = vadd.f32 %v8405, %v8418
      %v8420 = vpop.f32.mrf.mxu0
      %v8421 = vadd.f32 %v8407, %v8420
      %8422 = vdwg.mxu0
      %8423 = vmatpush.bf16.msra.mxu0 0
      %8424 = vmatpush.bf16.msra.mxu0 0
      %8425 = vmatpush.bf16.msra.mxu0 0
      %8426 = vmatpush.bf16.msra.mxu0 0
      %8427 = vmatpush.bf16.msra.mxu0 0
      %8428 = vmatpush.bf16.msra.mxu0 %v7824
      %8429 = vmatpush.bf16.msra.mxu0 %v7816
      %8430 = vmatpush.bf16.msra.mxu0 %v7808
      %8431 = vmatmul.bf16.gmra.mxu0 %v8043
      %v8432 = vpop.f32.mrf.mxu0
      %v8433 = vadd.f32 %v8419, %v8432
      %v8434 = vpop.f32.mrf.mxu0
      %v8435 = vadd.f32 %v8421, %v8434
      %8436 = vdwg.mxu0
      %8437 = vmatpush.bf16.msra.mxu0 %v7673
      %8438 = vmatpush.bf16.msra.mxu0 %v7665
      %8439 = vmatpush.bf16.msra.mxu0 %v7657
      %8440 = vmatpush.bf16.msra.mxu0 %v7649
      %8441 = vmatpush.bf16.msra.mxu0 %v7641
      %8442 = vmatpush.bf16.msra.mxu0 %v7633
      %8443 = vmatpush.bf16.msra.mxu0 %v7625
      %8444 = vmatpush.bf16.msra.mxu0 %v7617
      %8445 = vmatmul.bf16.gmra.mxu0 %v6955
      %v8446 = vpop.f32.mrf.mxu0
      %v8447 = vadd.f32 0.0, %v8446
      %v8448 = vpop.f32.mrf.mxu0
      %v8449 = vadd.f32 0.0, %v8448
      %8450 = vdwg.mxu0
      %8451 = vmatpush.bf16.msra.mxu0 %v7737
      %8452 = vmatpush.bf16.msra.mxu0 %v7729
      %8453 = vmatpush.bf16.msra.mxu0 %v7721
      %8454 = vmatpush.bf16.msra.mxu0 %v7713
      %8455 = vmatpush.bf16.msra.mxu0 %v7705
      %8456 = vmatpush.bf16.msra.mxu0 %v7697
      %8457 = vmatpush.bf16.msra.mxu0 %v7689
      %8458 = vmatpush.bf16.msra.mxu0 %v7681
      %8459 = vmatmul.bf16.gmra.mxu0 %v6956
      %v8460 = vpop.f32.mrf.mxu0
      %v8461 = vadd.f32 %v8447, %v8460
      %v8462 = vpop.f32.mrf.mxu0
      %v8463 = vadd.f32 %v8449, %v8462
      %8464 = vdwg.mxu0
      %8465 = vmatpush.bf16.msra.mxu0 %v7801
      %8466 = vmatpush.bf16.msra.mxu0 %v7793
      %8467 = vmatpush.bf16.msra.mxu0 %v7785
      %8468 = vmatpush.bf16.msra.mxu0 %v7777
      %8469 = vmatpush.bf16.msra.mxu0 %v7769
      %8470 = vmatpush.bf16.msra.mxu0 %v7761
      %8471 = vmatpush.bf16.msra.mxu0 %v7753
      %8472 = vmatpush.bf16.msra.mxu0 %v7745
      %8473 = vmatmul.bf16.gmra.mxu0 %v6957
      %v8474 = vpop.f32.mrf.mxu0
      %v8475 = vadd.f32 %v8461, %v8474
      %v8476 = vpop.f32.mrf.mxu0
      %v8477 = vadd.f32 %v8463, %v8476
      %8478 = vdwg.mxu0
      %8479 = vmatpush.bf16.msra.mxu0 0
      %8480 = vmatpush.bf16.msra.mxu0 0
      %8481 = vmatpush.bf16.msra.mxu0 0
      %8482 = vmatpush.bf16.msra.mxu0 0
      %8483 = vmatpush.bf16.msra.mxu0 0
      %8484 = vmatpush.bf16.msra.mxu0 %v7825
      %8485 = vmatpush.bf16.msra.mxu0 %v7817
      %8486 = vmatpush.bf16.msra.mxu0 %v7809
      %8487 = vmatmul.bf16.gmra.mxu0 %v8043
      %v8488 = vpop.f32.mrf.mxu0
      %v8489 = vadd.f32 %v8475, %v8488
      %v8490 = vpop.f32.mrf.mxu0
      %v8491 = vadd.f32 %v8477, %v8490
      %8492 = vdwg.mxu0
      %v8493 = vmul.f32 %v8097, %v228
      %v8494 = vmul.f32 %v8153, %v229
      %v8495 = vmul.f32 %v8209, %v230
      %v8496 = vmul.f32 %v8265, %v231
      %v8497 = vmul.f32 %v8321, %v232
      %v8498 = vmul.f32 %v8377, %v233
      %v8499 = vmul.f32 %v8433, %v234
      %v8500 = vmul.f32 %v8489, %v235
      %v8501 = vmul.f32 %v8099, %v228
      %v8502 = vmul.f32 %v8155, %v229
      %v8503 = vmul.f32 %v8211, %v230
      %v8504 = vmul.f32 %v8267, %v231
      %v8505 = vmul.f32 %v8323, %v232
      %v8506 = vmul.f32 %v8379, %v233
      %v8507 = vmul.f32 %v8435, %v234
      %v8508 = vmul.f32 %v8491, %v235
      %v8509 = vadd.f32 %v8493, %v8494
      %v8510 = vadd.f32 %v8509, %v8495
      %v8511 = vadd.f32 %v8510, %v8496
      %v8512 = vadd.f32 %v8511, %v8497
      %v8513 = vadd.f32 %v8512, %v8498
      %v8514 = vadd.f32 %v8513, %v8499
      %v8515 = vadd.f32 %v8514, %v8500
      %8516 = vadd.xlane.f32.xlu0 %v8515
      %v8517 = vpop.xlane.xlu0 %8516
      %v8518 = vadd.f32 %v8501, %v8502
      %v8519 = vadd.f32 %v8518, %v8503
      %v8520 = vadd.f32 %v8519, %v8504
      %v8521 = vadd.f32 %v8520, %v8505
      %v8522 = vadd.f32 %v8521, %v8506
      %v8523 = vadd.f32 %v8522, %v8507
      %v8524 = vadd.f32 %v8523, %v8508
      %8525 = vadd.xlane.f32.xlu0 %v8524
      %v8526 = vpop.xlane.xlu0 %8525
      %v8527 = vmul.f32 %v8517, 0.001953125
      %v8528 = vmul.f32 %v8526, 0.001953125
      %v8529 = vmul.f32 %v8493, %v8493
      %v8530 = vmul.f32 %v8494, %v8494
      %v8531 = vmul.f32 %v8495, %v8495
      %v8532 = vmul.f32 %v8496, %v8496
      %v8533 = vmul.f32 %v8497, %v8497
      %v8534 = vmul.f32 %v8498, %v8498
      %v8535 = vmul.f32 %v8499, %v8499
      %v8536 = vmul.f32 %v8500, %v8500
      %v8537 = vmul.f32 %v8501, %v8501
      %v8538 = vmul.f32 %v8502, %v8502
      %v8539 = vmul.f32 %v8503, %v8503
      %v8540 = vmul.f32 %v8504, %v8504
      %v8541 = vmul.f32 %v8505, %v8505
      %v8542 = vmul.f32 %v8506, %v8506
      %v8543 = vmul.f32 %v8507, %v8507
      %v8544 = vmul.f32 %v8508, %v8508
      %v8545 = vadd.f32 %v8529, %v8530
      %v8546 = vadd.f32 %v8545, %v8531
      %v8547 = vadd.f32 %v8546, %v8532
      %v8548 = vadd.f32 %v8547, %v8533
      %v8549 = vadd.f32 %v8548, %v8534
      %v8550 = vadd.f32 %v8549, %v8535
      %v8551 = vadd.f32 %v8550, %v8536
      %8552 = vadd.xlane.f32.xlu0 %v8551
      %v8553 = vpop.xlane.xlu0 %8552
      %v8554 = vadd.f32 %v8537, %v8538
      %v8555 = vadd.f32 %v8554, %v8539
      %v8556 = vadd.f32 %v8555, %v8540
      %v8557 = vadd.f32 %v8556, %v8541
      %v8558 = vadd.f32 %v8557, %v8542
      %v8559 = vadd.f32 %v8558, %v8543
      %v8560 = vadd.f32 %v8559, %v8544
      %8561 = vadd.xlane.f32.xlu0 %v8560
      %v8562 = vpop.xlane.xlu0 %8561
      %v8563 = vmul.f32 %v8553, 0.001953125
      %v8564 = vmul.f32 %v8562, 0.001953125
      %v8565 = vmul.f32 %v8527, %v8527
      %v8566 = vmul.f32 %v8528, %v8528
      %v8567 = vsub.f32 %v8563, %v8565
      %v8568 = vsub.f32 %v8564, %v8566
      %v8569 = vsub.f32 %v8493, %v8527
      %v8570 = vsub.f32 %v8494, %v8527
      %v8571 = vsub.f32 %v8495, %v8527
      %v8572 = vsub.f32 %v8496, %v8527
      %v8573 = vsub.f32 %v8497, %v8527
      %v8574 = vsub.f32 %v8498, %v8527
      %v8575 = vsub.f32 %v8499, %v8527
      %v8576 = vsub.f32 %v8500, %v8527
      %v8577 = vsub.f32 %v8501, %v8528
      %v8578 = vsub.f32 %v8502, %v8528
      %v8579 = vsub.f32 %v8503, %v8528
      %v8580 = vsub.f32 %v8504, %v8528
      %v8581 = vsub.f32 %v8505, %v8528
      %v8582 = vsub.f32 %v8506, %v8528
      %v8583 = vsub.f32 %v8507, %v8528
      %v8584 = vsub.f32 %v8508, %v8528
      %v8585 = vadd.f32 %v8567, 1e-05
      %v8586 = vadd.f32 %v8568, 1e-05
      %v8587 = vrsqrt.pop %v8585
      %v8588 = vmul.f32 %v8587, %v8585
      %v8589 = vmul.f32 %v8588, %v8587
      %v8590 = vmul.f32 0.5, %v8589
      %v8591 = vsub.f32 1.5, %v8590
      %v8592 = vmul.f32 %v8587, %v8591
      %vm8593 = vweird.f32 %v8585
      %vm8594 = vweird.f32 %v8587
      %vm8595 = vmor %vm8593, %vm8594
      %v8596 = vsel %vm8595, %v8587, %v8592
      %v8597 = vrsqrt.pop %v8586
      %v8598 = vmul.f32 %v8597, %v8586
      %v8599 = vmul.f32 %v8598, %v8597
      %v8600 = vmul.f32 0.5, %v8599
      %v8601 = vsub.f32 1.5, %v8600
      %v8602 = vmul.f32 %v8597, %v8601
      %vm8603 = vweird.f32 %v8586
      %vm8604 = vweird.f32 %v8597
      %vm8605 = vmor %vm8603, %vm8604
      %v8606 = vsel %vm8605, %v8597, %v8602
      %v8607 = vmul.f32 %v8569, %v8596
      %v8608 = vmul.f32 %v8570, %v8596
      %v8609 = vmul.f32 %v8571, %v8596
      %v8610 = vmul.f32 %v8572, %v8596
      %v8611 = vmul.f32 %v8573, %v8596
      %v8612 = vmul.f32 %v8574, %v8596
      %v8613 = vmul.f32 %v8575, %v8596
      %v8614 = vmul.f32 %v8576, %v8596
      %v8615 = vmul.f32 %v8577, %v8606
      %v8616 = vmul.f32 %v8578, %v8606
      %v8617 = vmul.f32 %v8579, %v8606
      %v8618 = vmul.f32 %v8580, %v8606
      %v8619 = vmul.f32 %v8581, %v8606
      %v8620 = vmul.f32 %v8582, %v8606
      %v8621 = vmul.f32 %v8583, %v8606
      %v8622 = vmul.f32 %v8584, %v8606
      %vm8623 = vcmp.ge.f32.partialorder %v8607, 0.0
      %vm8624 = vcmp.ge.f32.partialorder %v8608, 0.0
      %vm8625 = vcmp.ge.f32.partialorder %v8609, 0.0
      %vm8626 = vcmp.ge.f32.partialorder %v8610, 0.0
      %vm8627 = vcmp.ge.f32.partialorder %v8611, 0.0
      %vm8628 = vcmp.ge.f32.partialorder %v8612, 0.0
      %vm8629 = vcmp.ge.f32.partialorder %v8613, 0.0
      %vm8630 = vcmp.ge.f32.partialorder %v8614, 0.0
      %vm8631 = vcmp.ge.f32.partialorder %v8615, 0.0
      %vm8632 = vcmp.ge.f32.partialorder %v8616, 0.0
      %vm8633 = vcmp.ge.f32.partialorder %v8617, 0.0
      %vm8634 = vcmp.ge.f32.partialorder %v8618, 0.0
      %vm8635 = vcmp.ge.f32.partialorder %v8619, 0.0
      %vm8636 = vcmp.ge.f32.partialorder %v8620, 0.0
      %vm8637 = vcmp.ge.f32.partialorder %v8621, 0.0
      %vm8638 = vcmp.ge.f32.partialorder %v8622, 0.0
      %v8639 = vmul.f32 %v8607, 0.01
      %v8640 = vmul.f32 %v8608, 0.01
      %v8641 = vmul.f32 %v8609, 0.01
      %v8642 = vmul.f32 %v8610, 0.01
      %v8643 = vmul.f32 %v8611, 0.01
      %v8644 = vmul.f32 %v8612, 0.01
      %v8645 = vmul.f32 %v8613, 0.01
      %v8646 = vmul.f32 %v8614, 0.01
      %v8647 = vmul.f32 %v8615, 0.01
      %v8648 = vmul.f32 %v8616, 0.01
      %v8649 = vmul.f32 %v8617, 0.01
      %v8650 = vmul.f32 %v8618, 0.01
      %v8651 = vmul.f32 %v8619, 0.01
      %v8652 = vmul.f32 %v8620, 0.01
      %v8653 = vmul.f32 %v8621, 0.01
      %v8654 = vmul.f32 %v8622, 0.01
      %v8655 = vsel %vm8623, %v8607, %v8639
      %v8656 = vsel %vm8624, %v8608, %v8640
      %v8657 = vsel %vm8625, %v8609, %v8641
      %v8658 = vsel %vm8626, %v8610, %v8642
      %v8659 = vsel %vm8627, %v8611, %v8643
      %v8660 = vsel %vm8628, %v8612, %v8644
      %v8661 = vsel %vm8629, %v8613, %v8645
      %v8662 = vsel %vm8630, %v8614, %v8646
      %v8663 = vsel %vm8631, %v8615, %v8647
      %v8664 = vsel %vm8632, %v8616, %v8648
      %v8665 = vsel %vm8633, %v8617, %v8649
      %v8666 = vsel %vm8634, %v8618, %v8650
      %v8667 = vsel %vm8635, %v8619, %v8651
      %v8668 = vsel %vm8636, %v8620, %v8652
      %v8669 = vsel %vm8637, %v8621, %v8653
      %v8670 = vsel %vm8638, %v8622, %v8654
      %v8671 = vadd.f32 %v8655, %v313
      %v8672 = vadd.f32 %v8656, %v327
      %v8673 = vadd.f32 %v8657, %v341
      %v8674 = vadd.f32 %v8658, %v355
      %v8675 = vadd.f32 %v8659, %v369
      %v8676 = vadd.f32 %v8660, %v383
      %v8677 = vadd.f32 %v8661, %v397
      %v8678 = vadd.f32 %v8662, %v411
      %v8679 = vadd.f32 %v8663, %v315
      %v8680 = vadd.f32 %v8664, %v329
      %v8681 = vadd.f32 %v8665, %v343
      %v8682 = vadd.f32 %v8666, %v357
      %v8683 = vadd.f32 %v8667, %v371
      %v8684 = vadd.f32 %v8668, %v385
      %v8685 = vadd.f32 %v8669, %v399
      %v8686 = vadd.f32 %v8670, %v413
      %v8687 = vpack.c.bf16 %v8672, %v8671
      %v8688 = vpack.c.bf16 %v8674, %v8673
      %v8689 = vpack.c.bf16 %v8676, %v8675
      %v8690 = vpack.c.bf16 %v8678, %v8677
      %v8691 = vpack.c.bf16 %v8680, %v8679
      %v8692 = vpack.c.bf16 %v8682, %v8681
      %v8693 = vpack.c.bf16 %v8684, %v8683
      %v8694 = vpack.c.bf16 %v8686, %v8685
      %8695 = vst [vmem:[%s224] sm:$0xff] %v8687
      %8696 = vst [vmem:[%s224 + $0x8] sm:$0xff] %v8688
      %8697 = vst [vmem:[%s224 + $0x10] sm:$0xff] %v8689
      %8698 = vst [vmem:[%s224 + $0x18] sm:$0xff] %v8690
      %8699 = vst [vmem:[%s224 + $0x20] sm:$0xff] %v8691
      %8700 = vst [vmem:[%s224 + $0x28] sm:$0xff] %v8692
      %8701 = vst [vmem:[%s224 + $0x30] sm:$0xff] %v8693
      %8702 = vst [vmem:[%s224 + $0x38] sm:$0xff] %v8694
      %p8703 = scmp.lt.s32.totalorder %s16, 1
      %s8704 = scalar_select %p8703, %s16, 1
      %s8705 = smul.addr %s8704, 16
      %s8706 = smul.addr %s8705, 4
      %s8707 = scalar_lea.vmem %s5, %s8706
      // Predicated region
      $region41: #{residual_block_forward.1} parent=39 // pred_check
        %p8708 = pneg %p144
      $region42: #{residual_block_forward.1} parent=39 // pred_check_branch
        %8710 = sbr.rel (%p8708) target = $region44
      $region43: #{residual_block_forward.1} parent=39 // pred_region
        _
      $region44: #{residual_block_forward.1} parent=39 // pred_fallthru
        _
    $region40: #{residual_block_forward.1} parent=5 // pred_fallthru
      _
    %p8711 = scmp.le.s32.totalorder 2, %s11
    // Predicated region
    $region45: #{residual_block_forward.1} parent=5 // pred_check
      %p8712 = pneg %p8711
    $region46: #{residual_block_forward.1} parent=5 // pred_check_branch
      %8714 = sbr.rel (%p8712) target = $region48
    $region47: #{residual_block_forward.1} parent=5 // pred_region
      %s8715 = ssub.s32 %s11, 2
      // Predicated region
      $region49: #{residual_block_forward.1} parent=47 // pred_check
        %p8716 = pneg %p150
      $region50: #{residual_block_forward.1} parent=47 // pred_check_branch
        %8718 = sbr.rel (%p8716) target = $region52
      $region51: #{residual_block_forward.1} parent=47 // pred_region
        %p8719 = scmp.lt.s32.totalorder %s17, 1
        %s8720 = scalar_select %p8719, %s17, 1
        %s8721 = smul.addr %s8720, 16
        %s8722 = smul.addr %s8721, 4
        %s8723 = scalar_lea.vmem %s5, %s8722
      $region52: #{residual_block_forward.1} parent=47 // pred_fallthru
        _
    $region48: #{residual_block_forward.1} parent=5 // pred_fallthru
      _
  $region6: #{residual_block_forward.1} parent=0 // loop_footer
    %s15 = sadd.s32 1, %s11
  $region7: #{residual_block_forward.1} parent=0 // loop_footer_branch
    %10 = sbr.rel target = $region3
  $region8: #{residual_block_forward.1} parent=0 // loop_exit
    _

</llo_original>
